<compile_context>
chip_gen: v6e
topology: v6e:2x2x1
jax: 0.10.0
libtpu: 0.0.40
codegen_flags: <defaults>
</compile_context>

<pallas_src>
import math

import jax
import jax.numpy as jnp
import numpy as np
from jax import lax
from jax.experimental import pallas as pl
from jax.experimental.pallas import tpu as pltpu

# irreps configuration
M0_IN, M1_IN = 4, 4          # 4x0e + 4x1o
M0_H, M1_H = 8, 8            # 8x0e + 8x1o
M0_OUT, M1_OUT = 2, 2        # 2x0e + 2x1o

D_IN = M0_IN + 3 * M1_IN     # 16
D_H = M0_H + 3 * M1_H        # 32
D_OUT = M0_OUT + 3 * M1_OUT  # 8

# dot_general dimension numbers (same conventions as the TPU attention kernels)
NT_DIMS = (((1,), (1,)), ((), ()))   # contract both minor dims
TN_DIMS = (((0,), (0,)), ((), ()))   # contract both major dims


# ----------------------------------------------------------------------------
# fused kernel
# ----------------------------------------------------------------------------
def _tp_block(ab, ws1sc_ref, w011_ref, w101_ref, wgs_ref, wgv_ref,
              *, m0a, m1a, m0b, m1b):
    """One (lin1,lin2) + FullyConnectedTensorProduct + LearnableGate block.

    ab : (2*da, T) f32, rows = [a0 | av(m=0,1,2) | b0 | bv(m=0,1,2)],
         batch on the 128-lane axis.  Returns the gate output
         (m0b + 3*m1b, T); the block's trailing o3.Linear is folded into the
         next layer's weights host-side.
    """
    assert m0b == m1b
    f32, bf16 = jnp.float32, jnp.bfloat16
    da = m0a + 3 * m1a
    T = ab.shape[-1]

    # FC tensor product, stage 1 (MXU, bf16): contract the "first" operand of
    # every parity-allowed path (Wigner-3j factors + norms folded in).
    m_sc = jnp.dot(ws1sc_ref[...], ab[:da].astype(bf16),
                   preferred_element_type=f32)                     # (da*m0b, T)
    m011 = jnp.dot(w011_ref[...], ab[:m0a].astype(bf16),
                   preferred_element_type=f32)                     # (m1a*m1b, T)
    m101 = jnp.dot(w101_ref[...], ab[da:da + m0a].astype(bf16),
                   preferred_element_type=f32)                     # (m1a*m1b, T)

    def row(r):
        # one channel of the "second" operand, replicated across sublanes.
        # TODO(synk): a VMEM scratch + stride-0 load (pl.ds(r, 8, stride=0))
        # would move these broadcasts onto the otherwise-idle vld slots.
        return jnp.broadcast_to(ab[r:r + 1, :], (m0b, T))

    # Stage 2 (VPU, f32): multiply by the "second" operand and reduce.
    t0 = jnp.zeros((m0b, T), f32)
    for v in range(m0a):                                   # 0e x 0e -> 0e
        t0 = t0 + row(da + v) * m_sc[v * m0b:(v + 1) * m0b, :]
    tv = [jnp.zeros((m1b, T), f32) for _ in range(3)]
    for m in range(3):
        for u in range(m1a):
            bvu = row(da + m0a + m * m1a + u)              # shared broadcast
            j = m0a + m * m1a + u
            t0 = t0 + bvu * m_sc[j * m0b:(j + 1) * m0b, :]          # 1o x 1o -> 0e
            tv[m] = tv[m] + bvu * m011[u * m1b:(u + 1) * m1b, :]    # 0e x 1o -> 1o
            avu = row(m0a + m * m1a + u)
            tv[m] = tv[m] + avu * m101[u * m1b:(u + 1) * m1b, :]    # 1o x 0e -> 1o

    # LearnableGate: per-irrep o3.Linear (split host-side) + tanh/tanh Gate.
    sg = jnp.dot(wgs_ref[...], t0.astype(bf16), preferred_element_type=f32)
    s = jnp.tanh(sg[:m0b])
    g = jnp.tanh(sg[m0b:])
    outs = [s]
    for m in range(3):
        vpre = jnp.dot(wgv_ref[...], tv[m].astype(bf16),
                       preferred_element_type=f32)
        outs.append(g * vpre)
    return jnp.concatenate(outs, axis=0)                   # (m0b + 3*m1b, T)


def _model_kernel(x_ref,
                  w12a_ref, s1a_ref, w011a_ref, w101a_ref, wgsa_ref, wgva_ref,
                  w12b_ref, s1b_ref, w011b_ref, w101b_ref, wgsb_ref, wgvb_ref,
                  wfin_ref, y_ref):
    f32, bf16 = jnp.float32, jnp.bfloat16
    # Layout fusion: ingest the (T, 16) e3nn-layout block and contract its
    # channel axis directly (NT matmul) -> features come out batch-on-lanes.
    xb = x_ref[...].astype(bf16)                                   # (T, 16)
    ab1 = lax.dot_general(w12a_ref[...], xb, NT_DIMS,
                          preferred_element_type=f32)              # (2*D_IN, T)
    h1 = _tp_block(ab1, s1a_ref, w011a_ref, w101a_ref, wgsa_ref, wgva_ref,
                   m0a=M0_IN, m1a=M1_IN, m0b=M0_H, m1b=M1_H)       # (32, T)
    # block-1 lin_out is folded into w12b, block-2 lin_out into wfin.
    ab2 = jnp.dot(w12b_ref[...], h1.astype(bf16),
                  preferred_element_type=f32)                      # (2*D_H, T)
    h2 = _tp_block(ab2, s1b_ref, w011b_ref, w101b_ref, wgsb_ref, wgvb_ref,
                   m0a=M0_H, m1a=M1_H, m0b=M0_H, m1b=M1_H)         # (32, T)
    # Final o3.Linear, written back in (T, D_OUT) e3nn layout (TN matmul, f32:
    # tiny, keeps the transposed-operand path on the safest dtype).
    y_ref[...] = lax.dot_general(h2, wfin_ref[...], TN_DIMS,
                                 preferred_element_type=f32)       # (T, 8)


def equivariant_model(x, weights, *, tile_n=512):
    """x: (N, 16) in e3nn layout -> (N, 8) in e3nn layout."""
    n = x.shape[0]
    tile_n = min(tile_n, max(128, ((n + 127) // 128) * 128))
    n_pad = ((n + tile_n - 1) // tile_n) * tile_n
    if n_pad != n:
        x = jnp.pad(x, ((0, n_pad - n), (0, 0)))
    in_specs = [pl.BlockSpec((tile_n, D_IN), lambda i: (i, 0))]
    in_specs += [pl.BlockSpec(w.shape, lambda i: (0, 0)) for w in weights]
    y = pl.pallas_call(
        _model_kernel,
        grid=(n_pad // tile_n,),
        in_specs=in_specs,
        out_specs=pl.BlockSpec((tile_n, D_OUT), lambda i: (i, 0)),
        out_shape=jax.ShapeDtypeStruct((n_pad, D_OUT), jnp.float32),
        compiler_params=pltpu.CompilerParams(
            dimension_semantics=("parallel",)),
    )(x, *weights)
    return y[:n]


# ----------------------------------------------------------------------------
# deterministic parameter init + host-side weight packing / folding
# ----------------------------------------------------------------------------
def init_tp_block_params(key, m0a, m1a, m0b, m1b):
    ks = jax.random.split(key, 13)
    nrm = lambda k, s: jax.random.normal(k, s, jnp.float32)
    return dict(
        w1s=nrm(ks[0], (m0a, m0a)), w1v=nrm(ks[1], (m1a, m1a)),   # lin1
        w2s=nrm(ks[2], (m0a, m0a)), w2v=nrm(ks[3], (m1a, m1a)),   # lin2
        # FC tensor-product path weights, indexed [u, v, k]
        w000=nrm(ks[4], (m0a, m0a, m0b)), w110=nrm(ks[5], (m1a, m1a, m0b)),
        w011=nrm(ks[6], (m0a, m1a, m1b)), w101=nrm(ks[7], (m1a, m0a, m1b)),
        # LearnableGate internal linear
        wgs=nrm(ks[8], (m0b, m0b)), wgg=nrm(ks[9], (m0b, m1b)),
        wgv=nrm(ks[10], (m1b, m1b)),
        # block lin_out
        wos=nrm(ks[11], (m0b, m0b)), wov=nrm(ks[12], (m1b, m1b)),
    )


def _block_diag(a, b):
    out = np.zeros((a.shape[0] + b.shape[0], a.shape[1] + b.shape[1]), np.float32)
    out[:a.shape[0], :a.shape[1]] = a
    out[a.shape[0]:, a.shape[1]:] = b
    return out


def _irreps_linear_matrix(ws, wv, inv_s, inv_v):
    """o3.Linear as a matrix on internal component-major features."""
    ws = np.asarray(ws, np.float32)
    wv = np.asarray(wv, np.float32)
    return _block_diag(ws.T * inv_s,
                       np.kron(np.eye(3, dtype=np.float32), wv.T * inv_v))


def _e3nn_to_internal_perm(m0, m1):
    """p[i_internal] = i_e3nn  (e3nn: scalars | per-u (x,y,z))."""
    p = np.arange(m0 + 3 * m1)
    for m in range(3):
        for u in range(m1):
            p[m0 + m * m1 + u] = m0 + u * 3 + m
    return p


def pack_tp_block(p, m0a, m1a, m0b, m1b):
    inv_a0, inv_a1 = 1.0 / math.sqrt(m0a), 1.0 / math.sqrt(m1a)
    inv_b0, inv_b1 = 1.0 / math.sqrt(m0b), 1.0 / math.sqrt(m1b)
    inv3 = 1.0 / math.sqrt(3.0)            # wigner_3j(1,1,0) / (0,1,1)
    # TODO(synk): 1/sqrt(fan_in) approximation of e3nn's exact path normalization.
    n0 = 1.0 / math.sqrt(m0a * m0a + m1a * m1a)
    n1 = 1.0 / math.sqrt(2.0 * m0a * m1a)
    da = m0a + 3 * m1a

    # lin1 + lin2 stacked: rows [a0|av|b0|bv], internal-order columns.
    w12 = np.concatenate(
        [_irreps_linear_matrix(p["w1s"], p["w1v"], inv_a0, inv_a1),
         _irreps_linear_matrix(p["w2s"], p["w2v"], inv_a0, inv_a1)], axis=0)

    # FC-TP stage-1, scalar-output paths: contracted against a = [a0|av] only
    # (the all-zero b-operand columns of the old packing are trimmed away).
    w000 = np.asarray(p["w000"], np.float32) * n0
    w110 = np.asarray(p["w110"], np.float32) * (inv3 * n0)
    ws1_sc = np.zeros((da * m0b, da), np.float32)
    ws1_sc[:m0a * m0b, :m0a] = w000.transpose(1, 2, 0).reshape(m0a * m0b, m0a)
    blk110 = w110.transpose(1, 2, 0).reshape(m1a * m0b, m1a)
    for m in range(3):
        r0 = (m0a + m * m1a) * m0b
        c0 = m0a + m * m1a
        ws1_sc[r0:r0 + m1a * m0b, c0:c0 + m1a] = blk110

    # vector-output paths: dense, contracted against a0 / b0 respectively.
    w011p = (np.asarray(p["w011"], np.float32) * (inv3 * n1)
             ).transpose(1, 2, 0).reshape(m1a * m1b, m0a)
    w101p = (np.asarray(p["w101"], np.float32) * (inv3 * n1)
             ).transpose(0, 2, 1).reshape(m1a * m1b, m0a)

    # LearnableGate internal o3.Linear, split per irrep (no structural zeros).
    wgs_p = np.concatenate([np.asarray(p["wgs"], np.float32).T,
                            np.asarray(p["wgg"], np.float32).T], axis=0) * inv_b0
    wgv_p = np.asarray(p["wgv"], np.float32).T * inv_b1

    # block lin_out, returned separately (folded into the next linear stage).
    wo = _irreps_linear_matrix(p["wos"], p["wov"], inv_b0, inv_b1)
    return dict(w12=w12, ws1_sc=ws1_sc, w011=w011p, w101=w101p,
                wgs=wgs_p, wgv=wgv_p, wo=wo)


def pack_model_weights(p1, p2, wfs, wfv):
    b1 = pack_tp_block(p1, M0_IN, M1_IN, M0_H, M1_H)
    b2 = pack_tp_block(p2, M0_H, M1_H, M0_H, M1_H)

    # block-1 w12 consumes the raw e3nn-layout input -> permute its columns.
    perm_in = _e3nn_to_internal_perm(M0_IN, M1_IN)
    w12a = np.zeros_like(b1["w12"])
    w12a[:, perm_in] = b1["w12"]

    # fold the purely-linear chains: wo_1 into w12_2, wo_2 into the final linear.
    w12b = b2["w12"] @ b1["wo"]
    wfin = _irreps_linear_matrix(wfs, wfv,
                                 1.0 / math.sqrt(M0_H), 1.0 / math.sqrt(M1_H)) @ b2["wo"]
    perm_out = _e3nn_to_internal_perm(M0_OUT, M1_OUT)
    wfin_e3nn = np.zeros_like(wfin)
    wfin_e3nn[perm_out, :] = wfin
    wfin_t = wfin_e3nn.T                                    # (D_H, D_OUT)

    bf16 = jnp.bfloat16
    return [
        jnp.asarray(w12a, bf16),
        jnp.asarray(b1["ws1_sc"], bf16), jnp.asarray(b1["w011"], bf16),
        jnp.asarray(b1["w101"], bf16), jnp.asarray(b1["wgs"], bf16),
        jnp.asarray(b1["wgv"], bf16),
        jnp.asarray(w12b, bf16),
        jnp.asarray(b2["ws1_sc"], bf16), jnp.asarray(b2["w011"], bf16),
        jnp.asarray(b2["w101"], bf16), jnp.asarray(b2["wgs"], bf16),
        jnp.asarray(b2["wgv"], bf16),
        jnp.asarray(wfin_t, jnp.float32),
    ]


# ----------------------------------------------------------------------------
# pure-JAX reference (standard layout, f32) for a correctness check
# ----------------------------------------------------------------------------
def reference_model(x, p1, p2, wfs, wfv):
    def lin(x0, xv, ws, wv):
        return (x0 @ ws / math.sqrt(ws.shape[0]),
                [v @ wv / math.sqrt(wv.shape[0]) for v in xv])

    def block(x0, xv, p, m0a, m1a, m0b, m1b):
        inv3 = 1.0 / math.sqrt(3.0)
        n0 = 1.0 / math.sqrt(m0a * m0a + m1a * m1a)
        n1 = 1.0 / math.sqrt(2.0 * m0a * m1a)
        a0, av = lin(x0, xv, p["w1s"], p["w1v"])
        b0, bv = lin(x0, xv, p["w2s"], p["w2v"])
        t0 = jnp.einsum("tu,tv,uvk->tk", a0, b0, p["w000"]) * n0
        t0 = t0 + sum(jnp.einsum("tu,tv,uvk->tk", av[m], bv[m], p["w110"])
                      for m in range(3)) * (inv3 * n0)
        tv = [(jnp.einsum("tu,tv,uvk->tk", a0, bv[m], p["w011"])
               + jnp.einsum("tu,tv,uvk->tk", av[m], b0, p["w101"])) * (inv3 * n1)
              for m in range(3)]
        s = jnp.tanh(t0 @ p["wgs"] / math.sqrt(m0b))
        g = jnp.tanh(t0 @ p["wgg"] / math.sqrt(m0b))
        gv = [g * (tv[m] @ p["wgv"] / math.sqrt(m1b)) for m in range(3)]
        y0 = s @ p["wos"] / math.sqrt(m0b)
        yv = [gv[m] @ p["wov"] / math.sqrt(m1b) for m in range(3)]
        return y0, yv

    x0 = x[:, :M0_IN]
    xv_cm = x[:, M0_IN:].reshape(-1, M1_IN, 3)
    xv = [xv_cm[:, :, m] for m in range(3)]
    x0, xv = block(x0, xv, p1, M0_IN, M1_IN, M0_H, M1_H)
    x0, xv = block(x0, xv, p2, M0_H, M1_H, M0_H, M1_H)
    y0 = x0 @ wfs / math.sqrt(M0_H)
    yv = [xv[m] @ wfv / math.sqrt(M1_H) for m in range(3)]
    y_vec = jnp.stack(yv, axis=-1).reshape(x.shape[0], 3 * M1_OUT)
    return jnp.concatenate([y0, y_vec], axis=1)


# ----------------------------------------------------------------------------
if __name__ == "__main__":
    N = 1024           # 2 grid steps of 512 lanes each (megacore-splittable)
    TILE_N = 512

    key = jax.random.PRNGKey(0)
    kx, k1, k2, k3a, k3b = jax.random.split(key, 5)
    x = jax.random.normal(kx, (N, D_IN), jnp.float32)

    p1 = init_tp_block_params(k1, M0_IN, M1_IN, M0_H, M1_H)
    p2 = init_tp_block_params(k2, M0_H, M1_H, M0_H, M1_H)
    wfs = jax.random.normal(k3a, (M0_H, M0_OUT), jnp.float32)
    wfv = jax.random.normal(k3b, (M1_H, M1_OUT), jnp.float32)

    # host-side packing: fold channel mixes, Wigner-3j factors, normalizations,
    # layout permutations and the two lin_out matmuls into 13 small matrices.
    weights = pack_model_weights(p1, p2, np.asarray(wfs), np.asarray(wfv))

    @jax.jit
    def model(x, ws):
        return equivariant_model(x, ws, tile_n=TILE_N)

    out = model(x, weights)
    jax.block_until_ready(out)

    assert out.shape == (N, D_OUT)
    assert out.dtype == jnp.float32
    assert bool(jnp.all(jnp.isfinite(out)))

    ref = reference_model(x, p1, p2, wfs, wfv)
    max_err = float(jnp.max(jnp.abs(out - ref)))
    # bf16 MXU operands -> slightly looser tolerance than pure-f32.
    assert bool(jnp.allclose(out, ref, atol=3e-2, rtol=3e-2)), max_err

    print("KERNEL_OK")
</pallas_src>

<mosaic_0001>
module attributes {stable_mosaic.version = 11 : i64} {
  func.func @_model_kernel(%arg0: i32, %arg1: memref<512x16xf32, #tpu.memory_space<vmem>>, %arg2: memref<32x16xbf16, #tpu.memory_space<vmem>>, %arg3: memref<128x16xbf16, #tpu.memory_space<vmem>>, %arg4: memref<32x4xbf16, #tpu.memory_space<vmem>>, %arg5: memref<32x4xbf16, #tpu.memory_space<vmem>>, %arg6: memref<16x8xbf16, #tpu.memory_space<vmem>>, %arg7: memref<8x8xbf16, #tpu.memory_space<vmem>>, %arg8: memref<64x32xbf16, #tpu.memory_space<vmem>>, %arg9: memref<256x32xbf16, #tpu.memory_space<vmem>>, %arg10: memref<64x8xbf16, #tpu.memory_space<vmem>>, %arg11: memref<64x8xbf16, #tpu.memory_space<vmem>>, %arg12: memref<16x8xbf16, #tpu.memory_space<vmem>>, %arg13: memref<8x8xbf16, #tpu.memory_space<vmem>>, %arg14: memref<32x8xf32, #tpu.memory_space<vmem>>, %arg15: memref<512x8xf32, #tpu.memory_space<vmem>>) attributes {dimension_semantics = [#tpu.dimension_semantics<parallel>], iteration_bounds = array<i64: 2>, scalar_prefetch = 0 : i64, scratch_operands = 0 : i64, tpu.core_type = #tpu.core_type<tc>, window_params = [{transform_indices = @transform_0, window_bounds = array<i64: 512, 16>}, {pipeline_mode = #tpu.pipeline_mode<synchronous>, transform_indices = @transform_1, window_bounds = array<i64: 32, 16>}, {pipeline_mode = #tpu.pipeline_mode<synchronous>, transform_indices = @transform_2, window_bounds = array<i64: 128, 16>}, {pipeline_mode = #tpu.pipeline_mode<synchronous>, transform_indices = @transform_3, window_bounds = array<i64: 32, 4>}, {pipeline_mode = #tpu.pipeline_mode<synchronous>, transform_indices = @transform_4, window_bounds = array<i64: 32, 4>}, {pipeline_mode = #tpu.pipeline_mode<synchronous>, transform_indices = @transform_5, window_bounds = array<i64: 16, 8>}, {pipeline_mode = #tpu.pipeline_mode<synchronous>, transform_indices = @transform_6, window_bounds = array<i64: 8, 8>}, {pipeline_mode = #tpu.pipeline_mode<synchronous>, transform_indices = @transform_7, window_bounds = array<i64: 64, 32>}, {pipeline_mode = #tpu.pipeline_mode<synchronous>, transform_indices = @transform_8, window_bounds = array<i64: 256, 32>}, {pipeline_mode = #tpu.pipeline_mode<synchronous>, transform_indices = @transform_9, window_bounds = array<i64: 64, 8>}, {pipeline_mode = #tpu.pipeline_mode<synchronous>, transform_indices = @transform_10, window_bounds = array<i64: 64, 8>}, {pipeline_mode = #tpu.pipeline_mode<synchronous>, transform_indices = @transform_11, window_bounds = array<i64: 16, 8>}, {pipeline_mode = #tpu.pipeline_mode<synchronous>, transform_indices = @transform_12, window_bounds = array<i64: 8, 8>}, {pipeline_mode = #tpu.pipeline_mode<synchronous>, transform_indices = @transform_13, window_bounds = array<i64: 32, 8>}, {transform_indices = @transform_14, window_bounds = array<i64: 512, 8>}]} {
    %c0 = arith.constant 0 : index
    %c0_0 = arith.constant 0 : index
    %0 = vector.load %arg1[%c0, %c0_0] : memref<512x16xf32, #tpu.memory_space<vmem>>, vector<512x16xf32>
    %1 = arith.truncf %0 : vector<512x16xf32> to vector<512x16xbf16>
    %c0_1 = arith.constant 0 : index
    %c0_2 = arith.constant 0 : index
    %2 = vector.load %arg2[%c0_1, %c0_2] : memref<32x16xbf16, #tpu.memory_space<vmem>>, vector<32x16xbf16>
    %cst = arith.constant dense<0.000000e+00> : vector<32x512xf32>
    %3 = tpu.matmul %2, %1, %cst {dimension_numbers = #tpu.dot_dimension_numbers<[1], [1], [0], [0], [0, 0, 1, 0], [], []>} : vector<32x16xbf16>, vector<512x16xbf16>, vector<32x512xf32> -> vector<32x512xf32>
    %c0_3 = arith.constant 0 : index
    %c0_4 = arith.constant 0 : index
    %4 = vector.load %arg3[%c0_3, %c0_4] : memref<128x16xbf16, #tpu.memory_space<vmem>>, vector<128x16xbf16>
    %5 = vector.extract_strided_slice %3 {offsets = [0, 0], sizes = [16, 512], strides = [1, 1]} : vector<32x512xf32> to vector<16x512xf32>
    %6 = arith.truncf %5 : vector<16x512xf32> to vector<16x512xbf16>
    %cst_5 = arith.constant dense<0.000000e+00> : vector<128x512xf32>
    %7 = tpu.matmul %4, %6, %cst_5 {dimension_numbers = #tpu.dot_dimension_numbers<[1], [0], [0], [1], [0, 0, 1, 1], [], []>} : vector<128x16xbf16>, vector<16x512xbf16>, vector<128x512xf32> -> vector<128x512xf32>
    %c0_6 = arith.constant 0 : index
    %c0_7 = arith.constant 0 : index
    %8 = vector.load %arg4[%c0_6, %c0_7] : memref<32x4xbf16, #tpu.memory_space<vmem>>, vector<32x4xbf16>
    %9 = vector.extract_strided_slice %3 {offsets = [0, 0], sizes = [4, 512], strides = [1, 1]} : vector<32x512xf32> to vector<4x512xf32>
    %10 = arith.truncf %9 : vector<4x512xf32> to vector<4x512xbf16>
    %cst_8 = arith.constant dense<0.000000e+00> : vector<32x512xf32>
    %11 = tpu.matmul %8, %10, %cst_8 {dimension_numbers = #tpu.dot_dimension_numbers<[1], [0], [0], [1], [0, 0, 1, 1], [], []>} : vector<32x4xbf16>, vector<4x512xbf16>, vector<32x512xf32> -> vector<32x512xf32>
    %c0_9 = arith.constant 0 : index
    %c0_10 = arith.constant 0 : index
    %12 = vector.load %arg5[%c0_9, %c0_10] : memref<32x4xbf16, #tpu.memory_space<vmem>>, vector<32x4xbf16>
    %13 = vector.extract_strided_slice %3 {offsets = [16, 0], sizes = [4, 512], strides = [1, 1]} : vector<32x512xf32> to vector<4x512xf32>
    %14 = arith.truncf %13 : vector<4x512xf32> to vector<4x512xbf16>
    %cst_11 = arith.constant dense<0.000000e+00> : vector<32x512xf32>
    %15 = tpu.matmul %12, %14, %cst_11 {dimension_numbers = #tpu.dot_dimension_numbers<[1], [0], [0], [1], [0, 0, 1, 1], [], []>} : vector<32x4xbf16>, vector<4x512xbf16>, vector<32x512xf32> -> vector<32x512xf32>
    %cst_12 = arith.constant 0.000000e+00 : f32
    %16 = vector.broadcast %cst_12 : f32 to vector<8x512xf32>
    %17 = vector.extract_strided_slice %3 {offsets = [16, 0], sizes = [1, 512], strides = [1, 1]} : vector<32x512xf32> to vector<1x512xf32>
    %18 = vector.shape_cast %17 : vector<1x512xf32> to vector<1x512xf32>
    %19 = vector.broadcast %18 : vector<1x512xf32> to vector<8x512xf32>
    %20 = vector.extract_strided_slice %7 {offsets = [0, 0], sizes = [8, 512], strides = [1, 1]} : vector<128x512xf32> to vector<8x512xf32>
    %21 = arith.mulf %19, %20 : vector<8x512xf32>
    %22 = arith.addf %16, %21 : vector<8x512xf32>
    %23 = vector.extract_strided_slice %3 {offsets = [17, 0], sizes = [1, 512], strides = [1, 1]} : vector<32x512xf32> to vector<1x512xf32>
    %24 = vector.shape_cast %23 : vector<1x512xf32> to vector<1x512xf32>
    %25 = vector.broadcast %24 : vector<1x512xf32> to vector<8x512xf32>
    %26 = vector.extract_strided_slice %7 {offsets = [8, 0], sizes = [8, 512], strides = [1, 1]} : vector<128x512xf32> to vector<8x512xf32>
    %27 = arith.mulf %25, %26 : vector<8x512xf32>
    %28 = arith.addf %22, %27 : vector<8x512xf32>
    %29 = vector.extract_strided_slice %3 {offsets = [18, 0], sizes = [1, 512], strides = [1, 1]} : vector<32x512xf32> to vector<1x512xf32>
    %30 = vector.shape_cast %29 : vector<1x512xf32> to vector<1x512xf32>
    %31 = vector.broadcast %30 : vector<1x512xf32> to vector<8x512xf32>
    %32 = vector.extract_strided_slice %7 {offsets = [16, 0], sizes = [8, 512], strides = [1, 1]} : vector<128x512xf32> to vector<8x512xf32>
    %33 = arith.mulf %31, %32 : vector<8x512xf32>
    %34 = arith.addf %28, %33 : vector<8x512xf32>
    %35 = vector.extract_strided_slice %3 {offsets = [19, 0], sizes = [1, 512], strides = [1, 1]} : vector<32x512xf32> to vector<1x512xf32>
    %36 = vector.shape_cast %35 : vector<1x512xf32> to vector<1x512xf32>
    %37 = vector.broadcast %36 : vector<1x512xf32> to vector<8x512xf32>
    %38 = vector.extract_strided_slice %7 {offsets = [24, 0], sizes = [8, 512], strides = [1, 1]} : vector<128x512xf32> to vector<8x512xf32>
    %39 = arith.mulf %37, %38 : vector<8x512xf32>
    %40 = arith.addf %34, %39 : vector<8x512xf32>
    %cst_13 = arith.constant 0.000000e+00 : f32
    %41 = vector.broadcast %cst_13 : f32 to vector<8x512xf32>
    %cst_14 = arith.constant 0.000000e+00 : f32
    %42 = vector.broadcast %cst_14 : f32 to vector<8x512xf32>
    %cst_15 = arith.constant 0.000000e+00 : f32
    %43 = vector.broadcast %cst_15 : f32 to vector<8x512xf32>
    %44 = vector.extract_strided_slice %3 {offsets = [20, 0], sizes = [1, 512], strides = [1, 1]} : vector<32x512xf32> to vector<1x512xf32>
    %45 = vector.shape_cast %44 : vector<1x512xf32> to vector<1x512xf32>
    %46 = vector.broadcast %45 : vector<1x512xf32> to vector<8x512xf32>
    %47 = vector.extract_strided_slice %7 {offsets = [32, 0], sizes = [8, 512], strides = [1, 1]} : vector<128x512xf32> to vector<8x512xf32>
    %48 = arith.mulf %46, %47 : vector<8x512xf32>
    %49 = arith.addf %40, %48 : vector<8x512xf32>
    %50 = vector.extract_strided_slice %11 {offsets = [0, 0], sizes = [8, 512], strides = [1, 1]} : vector<32x512xf32> to vector<8x512xf32>
    %51 = arith.mulf %46, %50 : vector<8x512xf32>
    %52 = arith.addf %41, %51 : vector<8x512xf32>
    %53 = vector.extract_strided_slice %3 {offsets = [4, 0], sizes = [1, 512], strides = [1, 1]} : vector<32x512xf32> to vector<1x512xf32>
    %54 = vector.shape_cast %53 : vector<1x512xf32> to vector<1x512xf32>
    %55 = vector.broadcast %54 : vector<1x512xf32> to vector<8x512xf32>
    %56 = vector.extract_strided_slice %15 {offsets = [0, 0], sizes = [8, 512], strides = [1, 1]} : vector<32x512xf32> to vector<8x512xf32>
    %57 = arith.mulf %55, %56 : vector<8x512xf32>
    %58 = arith.addf %52, %57 : vector<8x512xf32>
    %59 = vector.extract_strided_slice %3 {offsets = [21, 0], sizes = [1, 512], strides = [1, 1]} : vector<32x512xf32> to vector<1x512xf32>
    %60 = vector.shape_cast %59 : vector<1x512xf32> to vector<1x512xf32>
    %61 = vector.broadcast %60 : vector<1x512xf32> to vector<8x512xf32>
    %62 = vector.extract_strided_slice %7 {offsets = [40, 0], sizes = [8, 512], strides = [1, 1]} : vector<128x512xf32> to vector<8x512xf32>
    %63 = arith.mulf %61, %62 : vector<8x512xf32>
    %64 = arith.addf %49, %63 : vector<8x512xf32>
    %65 = vector.extract_strided_slice %11 {offsets = [8, 0], sizes = [8, 512], strides = [1, 1]} : vector<32x512xf32> to vector<8x512xf32>
    %66 = arith.mulf %61, %65 : vector<8x512xf32>
    %67 = arith.addf %58, %66 : vector<8x512xf32>
    %68 = vector.extract_strided_slice %3 {offsets = [5, 0], sizes = [1, 512], strides = [1, 1]} : vector<32x512xf32> to vector<1x512xf32>
    %69 = vector.shape_cast %68 : vector<1x512xf32> to vector<1x512xf32>
    %70 = vector.broadcast %69 : vector<1x512xf32> to vector<8x512xf32>
    %71 = vector.extract_strided_slice %15 {offsets = [8, 0], sizes = [8, 512], strides = [1, 1]} : vector<32x512xf32> to vector<8x512xf32>
    %72 = arith.mulf %70, %71 : vector<8x512xf32>
    %73 = arith.addf %67, %72 : vector<8x512xf32>
    %74 = vector.extract_strided_slice %3 {offsets = [22, 0], sizes = [1, 512], strides = [1, 1]} : vector<32x512xf32> to vector<1x512xf32>
    %75 = vector.shape_cast %74 : vector<1x512xf32> to vector<1x512xf32>
    %76 = vector.broadcast %75 : vector<1x512xf32> to vector<8x512xf32>
    %77 = vector.extract_strided_slice %7 {offsets = [48, 0], sizes = [8, 512], strides = [1, 1]} : vector<128x512xf32> to vector<8x512xf32>
    %78 = arith.mulf %76, %77 : vector<8x512xf32>
    %79 = arith.addf %64, %78 : vector<8x512xf32>
    %80 = vector.extract_strided_slice %11 {offsets = [16, 0], sizes = [8, 512], strides = [1, 1]} : vector<32x512xf32> to vector<8x512xf32>
    %81 = arith.mulf %76, %80 : vector<8x512xf32>
    %82 = arith.addf %73, %81 : vector<8x512xf32>
    %83 = vector.extract_strided_slice %3 {offsets = [6, 0], sizes = [1, 512], strides = [1, 1]} : vector<32x512xf32> to vector<1x512xf32>
    %84 = vector.shape_cast %83 : vector<1x512xf32> to vector<1x512xf32>
    %85 = vector.broadcast %84 : vector<1x512xf32> to vector<8x512xf32>
    %86 = vector.extract_strided_slice %15 {offsets = [16, 0], sizes = [8, 512], strides = [1, 1]} : vector<32x512xf32> to vector<8x512xf32>
    %87 = arith.mulf %85, %86 : vector<8x512xf32>
    %88 = arith.addf %82, %87 : vector<8x512xf32>
    %89 = vector.extract_strided_slice %3 {offsets = [23, 0], sizes = [1, 512], strides = [1, 1]} : vector<32x512xf32> to vector<1x512xf32>
    %90 = vector.shape_cast %89 : vector<1x512xf32> to vector<1x512xf32>
    %91 = vector.broadcast %90 : vector<1x512xf32> to vector<8x512xf32>
    %92 = vector.extract_strided_slice %7 {offsets = [56, 0], sizes = [8, 512], strides = [1, 1]} : vector<128x512xf32> to vector<8x512xf32>
    %93 = arith.mulf %91, %92 : vector<8x512xf32>
    %94 = arith.addf %79, %93 : vector<8x512xf32>
    %95 = vector.extract_strided_slice %11 {offsets = [24, 0], sizes = [8, 512], strides = [1, 1]} : vector<32x512xf32> to vector<8x512xf32>
    %96 = arith.mulf %91, %95 : vector<8x512xf32>
    %97 = arith.addf %88, %96 : vector<8x512xf32>
    %98 = vector.extract_strided_slice %3 {offsets = [7, 0], sizes = [1, 512], strides = [1, 1]} : vector<32x512xf32> to vector<1x512xf32>
    %99 = vector.shape_cast %98 : vector<1x512xf32> to vector<1x512xf32>
    %100 = vector.broadcast %99 : vector<1x512xf32> to vector<8x512xf32>
    %101 = vector.extract_strided_slice %15 {offsets = [24, 0], sizes = [8, 512], strides = [1, 1]} : vector<32x512xf32> to vector<8x512xf32>
    %102 = arith.mulf %100, %101 : vector<8x512xf32>
    %103 = arith.addf %97, %102 : vector<8x512xf32>
    %104 = vector.extract_strided_slice %3 {offsets = [24, 0], sizes = [1, 512], strides = [1, 1]} : vector<32x512xf32> to vector<1x512xf32>
    %105 = vector.shape_cast %104 : vector<1x512xf32> to vector<1x512xf32>
    %106 = vector.broadcast %105 : vector<1x512xf32> to vector<8x512xf32>
    %107 = vector.extract_strided_slice %7 {offsets = [64, 0], sizes = [8, 512], strides = [1, 1]} : vector<128x512xf32> to vector<8x512xf32>
    %108 = arith.mulf %106, %107 : vector<8x512xf32>
    %109 = arith.addf %94, %108 : vector<8x512xf32>
    %110 = vector.extract_strided_slice %11 {offsets = [0, 0], sizes = [8, 512], strides = [1, 1]} : vector<32x512xf32> to vector<8x512xf32>
    %111 = arith.mulf %106, %110 : vector<8x512xf32>
    %112 = arith.addf %42, %111 : vector<8x512xf32>
    %113 = vector.extract_strided_slice %3 {offsets = [8, 0], sizes = [1, 512], strides = [1, 1]} : vector<32x512xf32> to vector<1x512xf32>
    %114 = vector.shape_cast %113 : vector<1x512xf32> to vector<1x512xf32>
    %115 = vector.broadcast %114 : vector<1x512xf32> to vector<8x512xf32>
    %116 = vector.extract_strided_slice %15 {offsets = [0, 0], sizes = [8, 512], strides = [1, 1]} : vector<32x512xf32> to vector<8x512xf32>
    %117 = arith.mulf %115, %116 : vector<8x512xf32>
    %118 = arith.addf %112, %117 : vector<8x512xf32>
    %119 = vector.extract_strided_slice %3 {offsets = [25, 0], sizes = [1, 512], strides = [1, 1]} : vector<32x512xf32> to vector<1x512xf32>
    %120 = vector.shape_cast %119 : vector<1x512xf32> to vector<1x512xf32>
    %121 = vector.broadcast %120 : vector<1x512xf32> to vector<8x512xf32>
    %122 = vector.extract_strided_slice %7 {offsets = [72, 0], sizes = [8, 512], strides = [1, 1]} : vector<128x512xf32> to vector<8x512xf32>
    %123 = arith.mulf %121, %122 : vector<8x512xf32>
    %124 = arith.addf %109, %123 : vector<8x512xf32>
    %125 = vector.extract_strided_slice %11 {offsets = [8, 0], sizes = [8, 512], strides = [1, 1]} : vector<32x512xf32> to vector<8x512xf32>
    %126 = arith.mulf %121, %125 : vector<8x512xf32>
    %127 = arith.addf %118, %126 : vector<8x512xf32>
    %128 = vector.extract_strided_slice %3 {offsets = [9, 0], sizes = [1, 512], strides = [1, 1]} : vector<32x512xf32> to vector<1x512xf32>
    %129 = vector.shape_cast %128 : vector<1x512xf32> to vector<1x512xf32>
    %130 = vector.broadcast %129 : vector<1x512xf32> to vector<8x512xf32>
    %131 = vector.extract_strided_slice %15 {offsets = [8, 0], sizes = [8, 512], strides = [1, 1]} : vector<32x512xf32> to vector<8x512xf32>
    %132 = arith.mulf %130, %131 : vector<8x512xf32>
    %133 = arith.addf %127, %132 : vector<8x512xf32>
    %134 = vector.extract_strided_slice %3 {offsets = [26, 0], sizes = [1, 512], strides = [1, 1]} : vector<32x512xf32> to vector<1x512xf32>
    %135 = vector.shape_cast %134 : vector<1x512xf32> to vector<1x512xf32>
    %136 = vector.broadcast %135 : vector<1x512xf32> to vector<8x512xf32>
    %137 = vector.extract_strided_slice %7 {offsets = [80, 0], sizes = [8, 512], strides = [1, 1]} : vector<128x512xf32> to vector<8x512xf32>
    %138 = arith.mulf %136, %137 : vector<8x512xf32>
    %139 = arith.addf %124, %138 : vector<8x512xf32>
    %140 = vector.extract_strided_slice %11 {offsets = [16, 0], sizes = [8, 512], strides = [1, 1]} : vector<32x512xf32> to vector<8x512xf32>
    %141 = arith.mulf %136, %140 : vector<8x512xf32>
    %142 = arith.addf %133, %141 : vector<8x512xf32>
    %143 = vector.extract_strided_slice %3 {offsets = [10, 0], sizes = [1, 512], strides = [1, 1]} : vector<32x512xf32> to vector<1x512xf32>
    %144 = vector.shape_cast %143 : vector<1x512xf32> to vector<1x512xf32>
    %145 = vector.broadcast %144 : vector<1x512xf32> to vector<8x512xf32>
    %146 = vector.extract_strided_slice %15 {offsets = [16, 0], sizes = [8, 512], strides = [1, 1]} : vector<32x512xf32> to vector<8x512xf32>
    %147 = arith.mulf %145, %146 : vector<8x512xf32>
    %148 = arith.addf %142, %147 : vector<8x512xf32>
    %149 = vector.extract_strided_slice %3 {offsets = [27, 0], sizes = [1, 512], strides = [1, 1]} : vector<32x512xf32> to vector<1x512xf32>
    %150 = vector.shape_cast %149 : vector<1x512xf32> to vector<1x512xf32>
    %151 = vector.broadcast %150 : vector<1x512xf32> to vector<8x512xf32>
    %152 = vector.extract_strided_slice %7 {offsets = [88, 0], sizes = [8, 512], strides = [1, 1]} : vector<128x512xf32> to vector<8x512xf32>
    %153 = arith.mulf %151, %152 : vector<8x512xf32>
    %154 = arith.addf %139, %153 : vector<8x512xf32>
    %155 = vector.extract_strided_slice %11 {offsets = [24, 0], sizes = [8, 512], strides = [1, 1]} : vector<32x512xf32> to vector<8x512xf32>
    %156 = arith.mulf %151, %155 : vector<8x512xf32>
    %157 = arith.addf %148, %156 : vector<8x512xf32>
    %158 = vector.extract_strided_slice %3 {offsets = [11, 0], sizes = [1, 512], strides = [1, 1]} : vector<32x512xf32> to vector<1x512xf32>
    %159 = vector.shape_cast %158 : vector<1x512xf32> to vector<1x512xf32>
    %160 = vector.broadcast %159 : vector<1x512xf32> to vector<8x512xf32>
    %161 = vector.extract_strided_slice %15 {offsets = [24, 0], sizes = [8, 512], strides = [1, 1]} : vector<32x512xf32> to vector<8x512xf32>
    %162 = arith.mulf %160, %161 : vector<8x512xf32>
    %163 = arith.addf %157, %162 : vector<8x512xf32>
    %164 = vector.extract_strided_slice %3 {offsets = [28, 0], sizes = [1, 512], strides = [1, 1]} : vector<32x512xf32> to vector<1x512xf32>
    %165 = vector.shape_cast %164 : vector<1x512xf32> to vector<1x512xf32>
    %166 = vector.broadcast %165 : vector<1x512xf32> to vector<8x512xf32>
    %167 = vector.extract_strided_slice %7 {offsets = [96, 0], sizes = [8, 512], strides = [1, 1]} : vector<128x512xf32> to vector<8x512xf32>
    %168 = arith.mulf %166, %167 : vector<8x512xf32>
    %169 = arith.addf %154, %168 : vector<8x512xf32>
    %170 = vector.extract_strided_slice %11 {offsets = [0, 0], sizes = [8, 512], strides = [1, 1]} : vector<32x512xf32> to vector<8x512xf32>
    %171 = arith.mulf %166, %170 : vector<8x512xf32>
    %172 = arith.addf %43, %171 : vector<8x512xf32>
    %173 = vector.extract_strided_slice %3 {offsets = [12, 0], sizes = [1, 512], strides = [1, 1]} : vector<32x512xf32> to vector<1x512xf32>
    %174 = vector.shape_cast %173 : vector<1x512xf32> to vector<1x512xf32>
    %175 = vector.broadcast %174 : vector<1x512xf32> to vector<8x512xf32>
    %176 = vector.extract_strided_slice %15 {offsets = [0, 0], sizes = [8, 512], strides = [1, 1]} : vector<32x512xf32> to vector<8x512xf32>
    %177 = arith.mulf %175, %176 : vector<8x512xf32>
    %178 = arith.addf %172, %177 : vector<8x512xf32>
    %179 = vector.extract_strided_slice %3 {offsets = [29, 0], sizes = [1, 512], strides = [1, 1]} : vector<32x512xf32> to vector<1x512xf32>
    %180 = vector.shape_cast %179 : vector<1x512xf32> to vector<1x512xf32>
    %181 = vector.broadcast %180 : vector<1x512xf32> to vector<8x512xf32>
    %182 = vector.extract_strided_slice %7 {offsets = [104, 0], sizes = [8, 512], strides = [1, 1]} : vector<128x512xf32> to vector<8x512xf32>
    %183 = arith.mulf %181, %182 : vector<8x512xf32>
    %184 = arith.addf %169, %183 : vector<8x512xf32>
    %185 = vector.extract_strided_slice %11 {offsets = [8, 0], sizes = [8, 512], strides = [1, 1]} : vector<32x512xf32> to vector<8x512xf32>
    %186 = arith.mulf %181, %185 : vector<8x512xf32>
    %187 = arith.addf %178, %186 : vector<8x512xf32>
    %188 = vector.extract_strided_slice %3 {offsets = [13, 0], sizes = [1, 512], strides = [1, 1]} : vector<32x512xf32> to vector<1x512xf32>
    %189 = vector.shape_cast %188 : vector<1x512xf32> to vector<1x512xf32>
    %190 = vector.broadcast %189 : vector<1x512xf32> to vector<8x512xf32>
    %191 = vector.extract_strided_slice %15 {offsets = [8, 0], sizes = [8, 512], strides = [1, 1]} : vector<32x512xf32> to vector<8x512xf32>
    %192 = arith.mulf %190, %191 : vector<8x512xf32>
    %193 = arith.addf %187, %192 : vector<8x512xf32>
    %194 = vector.extract_strided_slice %3 {offsets = [30, 0], sizes = [1, 512], strides = [1, 1]} : vector<32x512xf32> to vector<1x512xf32>
    %195 = vector.shape_cast %194 : vector<1x512xf32> to vector<1x512xf32>
    %196 = vector.broadcast %195 : vector<1x512xf32> to vector<8x512xf32>
    %197 = vector.extract_strided_slice %7 {offsets = [112, 0], sizes = [8, 512], strides = [1, 1]} : vector<128x512xf32> to vector<8x512xf32>
    %198 = arith.mulf %196, %197 : vector<8x512xf32>
    %199 = arith.addf %184, %198 : vector<8x512xf32>
    %200 = vector.extract_strided_slice %11 {offsets = [16, 0], sizes = [8, 512], strides = [1, 1]} : vector<32x512xf32> to vector<8x512xf32>
    %201 = arith.mulf %196, %200 : vector<8x512xf32>
    %202 = arith.addf %193, %201 : vector<8x512xf32>
    %203 = vector.extract_strided_slice %3 {offsets = [14, 0], sizes = [1, 512], strides = [1, 1]} : vector<32x512xf32> to vector<1x512xf32>
    %204 = vector.shape_cast %203 : vector<1x512xf32> to vector<1x512xf32>
    %205 = vector.broadcast %204 : vector<1x512xf32> to vector<8x512xf32>
    %206 = vector.extract_strided_slice %15 {offsets = [16, 0], sizes = [8, 512], strides = [1, 1]} : vector<32x512xf32> to vector<8x512xf32>
    %207 = arith.mulf %205, %206 : vector<8x512xf32>
    %208 = arith.addf %202, %207 : vector<8x512xf32>
    %209 = vector.extract_strided_slice %3 {offsets = [31, 0], sizes = [1, 512], strides = [1, 1]} : vector<32x512xf32> to vector<1x512xf32>
    %210 = vector.shape_cast %209 : vector<1x512xf32> to vector<1x512xf32>
    %211 = vector.broadcast %210 : vector<1x512xf32> to vector<8x512xf32>
    %212 = vector.extract_strided_slice %7 {offsets = [120, 0], sizes = [8, 512], strides = [1, 1]} : vector<128x512xf32> to vector<8x512xf32>
    %213 = arith.mulf %211, %212 : vector<8x512xf32>
    %214 = arith.addf %199, %213 : vector<8x512xf32>
    %215 = vector.extract_strided_slice %11 {offsets = [24, 0], sizes = [8, 512], strides = [1, 1]} : vector<32x512xf32> to vector<8x512xf32>
    %216 = arith.mulf %211, %215 : vector<8x512xf32>
    %217 = arith.addf %208, %216 : vector<8x512xf32>
    %218 = vector.extract_strided_slice %3 {offsets = [15, 0], sizes = [1, 512], strides = [1, 1]} : vector<32x512xf32> to vector<1x512xf32>
    %219 = vector.shape_cast %218 : vector<1x512xf32> to vector<1x512xf32>
    %220 = vector.broadcast %219 : vector<1x512xf32> to vector<8x512xf32>
    %221 = vector.extract_strided_slice %15 {offsets = [24, 0], sizes = [8, 512], strides = [1, 1]} : vector<32x512xf32> to vector<8x512xf32>
    %222 = arith.mulf %220, %221 : vector<8x512xf32>
    %223 = arith.addf %217, %222 : vector<8x512xf32>
    %c0_16 = arith.constant 0 : index
    %c0_17 = arith.constant 0 : index
    %224 = vector.load %arg6[%c0_16, %c0_17] : memref<16x8xbf16, #tpu.memory_space<vmem>>, vector<16x8xbf16>
    %225 = arith.truncf %214 : vector<8x512xf32> to vector<8x512xbf16>
    %cst_18 = arith.constant dense<0.000000e+00> : vector<16x512xf32>
    %226 = tpu.matmul %224, %225, %cst_18 {dimension_numbers = #tpu.dot_dimension_numbers<[1], [0], [0], [1], [0, 0, 1, 1], [], []>} : vector<16x8xbf16>, vector<8x512xbf16>, vector<16x512xf32> -> vector<16x512xf32>
    %227 = vector.extract_strided_slice %226 {offsets = [0, 0], sizes = [8, 512], strides = [1, 1]} : vector<16x512xf32> to vector<8x512xf32>
    %228 = math.tanh %227 : vector<8x512xf32>
    %229 = vector.extract_strided_slice %226 {offsets = [8, 0], sizes = [8, 512], strides = [1, 1]} : vector<16x512xf32> to vector<8x512xf32>
    %230 = math.tanh %229 : vector<8x512xf32>
    %c0_19 = arith.constant 0 : index
    %c0_20 = arith.constant 0 : index
    %231 = vector.load %arg7[%c0_19, %c0_20] : memref<8x8xbf16, #tpu.memory_space<vmem>>, vector<8x8xbf16>
    %232 = arith.truncf %103 : vector<8x512xf32> to vector<8x512xbf16>
    %cst_21 = arith.constant dense<0.000000e+00> : vector<8x512xf32>
    %233 = tpu.matmul %231, %232, %cst_21 {dimension_numbers = #tpu.dot_dimension_numbers<[1], [0], [0], [1], [0, 0, 1, 1], [], []>} : vector<8x8xbf16>, vector<8x512xbf16>, vector<8x512xf32> -> vector<8x512xf32>
    %234 = arith.mulf %230, %233 : vector<8x512xf32>
    %c0_22 = arith.constant 0 : index
    %c0_23 = arith.constant 0 : index
    %235 = vector.load %arg7[%c0_22, %c0_23] : memref<8x8xbf16, #tpu.memory_space<vmem>>, vector<8x8xbf16>
    %236 = arith.truncf %163 : vector<8x512xf32> to vector<8x512xbf16>
    %cst_24 = arith.constant dense<0.000000e+00> : vector<8x512xf32>
    %237 = tpu.matmul %235, %236, %cst_24 {dimension_numbers = #tpu.dot_dimension_numbers<[1], [0], [0], [1], [0, 0, 1, 1], [], []>} : vector<8x8xbf16>, vector<8x512xbf16>, vector<8x512xf32> -> vector<8x512xf32>
    %238 = arith.mulf %230, %237 : vector<8x512xf32>
    %c0_25 = arith.constant 0 : index
    %c0_26 = arith.constant 0 : index
    %239 = vector.load %arg7[%c0_25, %c0_26] : memref<8x8xbf16, #tpu.memory_space<vmem>>, vector<8x8xbf16>
    %240 = arith.truncf %223 : vector<8x512xf32> to vector<8x512xbf16>
    %cst_27 = arith.constant dense<0.000000e+00> : vector<8x512xf32>
    %241 = tpu.matmul %239, %240, %cst_27 {dimension_numbers = #tpu.dot_dimension_numbers<[1], [0], [0], [1], [0, 0, 1, 1], [], []>} : vector<8x8xbf16>, vector<8x512xbf16>, vector<8x512xf32> -> vector<8x512xf32>
    %242 = arith.mulf %230, %241 : vector<8x512xf32>
    %243 = tpu.concatenate %228, %234, %238, %242 in 0 : vector<8x512xf32>, vector<8x512xf32>, vector<8x512xf32>, vector<8x512xf32> -> vector<32x512xf32>
    %c0_28 = arith.constant 0 : index
    %c0_29 = arith.constant 0 : index
    %244 = vector.load %arg8[%c0_28, %c0_29] : memref<64x32xbf16, #tpu.memory_space<vmem>>, vector<64x32xbf16>
    %245 = arith.truncf %243 : vector<32x512xf32> to vector<32x512xbf16>
    %cst_30 = arith.constant dense<0.000000e+00> : vector<64x512xf32>
    %246 = tpu.matmul %244, %245, %cst_30 {dimension_numbers = #tpu.dot_dimension_numbers<[1], [0], [0], [1], [0, 0, 1, 1], [], []>} : vector<64x32xbf16>, vector<32x512xbf16>, vector<64x512xf32> -> vector<64x512xf32>
    %c0_31 = arith.constant 0 : index
    %c0_32 = arith.constant 0 : index
    %247 = vector.load %arg9[%c0_31, %c0_32] : memref<256x32xbf16, #tpu.memory_space<vmem>>, vector<256x32xbf16>
    %248 = vector.extract_strided_slice %246 {offsets = [0, 0], sizes = [32, 512], strides = [1, 1]} : vector<64x512xf32> to vector<32x512xf32>
    %249 = arith.truncf %248 : vector<32x512xf32> to vector<32x512xbf16>
    %cst_33 = arith.constant dense<0.000000e+00> : vector<256x512xf32>
    %250 = tpu.matmul %247, %249, %cst_33 {dimension_numbers = #tpu.dot_dimension_numbers<[1], [0], [0], [1], [0, 0, 1, 1], [], []>} : vector<256x32xbf16>, vector<32x512xbf16>, vector<256x512xf32> -> vector<256x512xf32>
    %c0_34 = arith.constant 0 : index
    %c0_35 = arith.constant 0 : index
    %251 = vector.load %arg10[%c0_34, %c0_35] : memref<64x8xbf16, #tpu.memory_space<vmem>>, vector<64x8xbf16>
    %252 = vector.extract_strided_slice %246 {offsets = [0, 0], sizes = [8, 512], strides = [1, 1]} : vector<64x512xf32> to vector<8x512xf32>
    %253 = arith.truncf %252 : vector<8x512xf32> to vector<8x512xbf16>
    %cst_36 = arith.constant dense<0.000000e+00> : vector<64x512xf32>
    %254 = tpu.matmul %251, %253, %cst_36 {dimension_numbers = #tpu.dot_dimension_numbers<[1], [0], [0], [1], [0, 0, 1, 1], [], []>} : vector<64x8xbf16>, vector<8x512xbf16>, vector<64x512xf32> -> vector<64x512xf32>
    %c0_37 = arith.constant 0 : index
    %c0_38 = arith.constant 0 : index
    %255 = vector.load %arg11[%c0_37, %c0_38] : memref<64x8xbf16, #tpu.memory_space<vmem>>, vector<64x8xbf16>
    %256 = vector.extract_strided_slice %246 {offsets = [32, 0], sizes = [8, 512], strides = [1, 1]} : vector<64x512xf32> to vector<8x512xf32>
    %257 = arith.truncf %256 : vector<8x512xf32> to vector<8x512xbf16>
    %cst_39 = arith.constant dense<0.000000e+00> : vector<64x512xf32>
    %258 = tpu.matmul %255, %257, %cst_39 {dimension_numbers = #tpu.dot_dimension_numbers<[1], [0], [0], [1], [0, 0, 1, 1], [], []>} : vector<64x8xbf16>, vector<8x512xbf16>, vector<64x512xf32> -> vector<64x512xf32>
    %cst_40 = arith.constant 0.000000e+00 : f32
    %259 = vector.broadcast %cst_40 : f32 to vector<8x512xf32>
    %260 = vector.extract_strided_slice %246 {offsets = [32, 0], sizes = [1, 512], strides = [1, 1]} : vector<64x512xf32> to vector<1x512xf32>
    %261 = vector.shape_cast %260 : vector<1x512xf32> to vector<1x512xf32>
    %262 = vector.broadcast %261 : vector<1x512xf32> to vector<8x512xf32>
    %263 = vector.extract_strided_slice %250 {offsets = [0, 0], sizes = [8, 512], strides = [1, 1]} : vector<256x512xf32> to vector<8x512xf32>
    %264 = arith.mulf %262, %263 : vector<8x512xf32>
    %265 = arith.addf %259, %264 : vector<8x512xf32>
    %266 = vector.extract_strided_slice %246 {offsets = [33, 0], sizes = [1, 512], strides = [1, 1]} : vector<64x512xf32> to vector<1x512xf32>
    %267 = vector.shape_cast %266 : vector<1x512xf32> to vector<1x512xf32>
    %268 = vector.broadcast %267 : vector<1x512xf32> to vector<8x512xf32>
    %269 = vector.extract_strided_slice %250 {offsets = [8, 0], sizes = [8, 512], strides = [1, 1]} : vector<256x512xf32> to vector<8x512xf32>
    %270 = arith.mulf %268, %269 : vector<8x512xf32>
    %271 = arith.addf %265, %270 : vector<8x512xf32>
    %272 = vector.extract_strided_slice %246 {offsets = [34, 0], sizes = [1, 512], strides = [1, 1]} : vector<64x512xf32> to vector<1x512xf32>
    %273 = vector.shape_cast %272 : vector<1x512xf32> to vector<1x512xf32>
    %274 = vector.broadcast %273 : vector<1x512xf32> to vector<8x512xf32>
    %275 = vector.extract_strided_slice %250 {offsets = [16, 0], sizes = [8, 512], strides = [1, 1]} : vector<256x512xf32> to vector<8x512xf32>
    %276 = arith.mulf %274, %275 : vector<8x512xf32>
    %277 = arith.addf %271, %276 : vector<8x512xf32>
    %278 = vector.extract_strided_slice %246 {offsets = [35, 0], sizes = [1, 512], strides = [1, 1]} : vector<64x512xf32> to vector<1x512xf32>
    %279 = vector.shape_cast %278 : vector<1x512xf32> to vector<1x512xf32>
    %280 = vector.broadcast %279 : vector<1x512xf32> to vector<8x512xf32>
    %281 = vector.extract_strided_slice %250 {offsets = [24, 0], sizes = [8, 512], strides = [1, 1]} : vector<256x512xf32> to vector<8x512xf32>
    %282 = arith.mulf %280, %281 : vector<8x512xf32>
    %283 = arith.addf %277, %282 : vector<8x512xf32>
    %284 = vector.extract_strided_slice %246 {offsets = [36, 0], sizes = [1, 512], strides = [1, 1]} : vector<64x512xf32> to vector<1x512xf32>
    %285 = vector.shape_cast %284 : vector<1x512xf32> to vector<1x512xf32>
    %286 = vector.broadcast %285 : vector<1x512xf32> to vector<8x512xf32>
    %287 = vector.extract_strided_slice %250 {offsets = [32, 0], sizes = [8, 512], strides = [1, 1]} : vector<256x512xf32> to vector<8x512xf32>
    %288 = arith.mulf %286, %287 : vector<8x512xf32>
    %289 = arith.addf %283, %288 : vector<8x512xf32>
    %290 = vector.extract_strided_slice %246 {offsets = [37, 0], sizes = [1, 512], strides = [1, 1]} : vector<64x512xf32> to vector<1x512xf32>
    %291 = vector.shape_cast %290 : vector<1x512xf32> to vector<1x512xf32>
    %292 = vector.broadcast %291 : vector<1x512xf32> to vector<8x512xf32>
    %293 = vector.extract_strided_slice %250 {offsets = [40, 0], sizes = [8, 512], strides = [1, 1]} : vector<256x512xf32> to vector<8x512xf32>
    %294 = arith.mulf %292, %293 : vector<8x512xf32>
    %295 = arith.addf %289, %294 : vector<8x512xf32>
    %296 = vector.extract_strided_slice %246 {offsets = [38, 0], sizes = [1, 512], strides = [1, 1]} : vector<64x512xf32> to vector<1x512xf32>
    %297 = vector.shape_cast %296 : vector<1x512xf32> to vector<1x512xf32>
    %298 = vector.broadcast %297 : vector<1x512xf32> to vector<8x512xf32>
    %299 = vector.extract_strided_slice %250 {offsets = [48, 0], sizes = [8, 512], strides = [1, 1]} : vector<256x512xf32> to vector<8x512xf32>
    %300 = arith.mulf %298, %299 : vector<8x512xf32>
    %301 = arith.addf %295, %300 : vector<8x512xf32>
    %302 = vector.extract_strided_slice %246 {offsets = [39, 0], sizes = [1, 512], strides = [1, 1]} : vector<64x512xf32> to vector<1x512xf32>
    %303 = vector.shape_cast %302 : vector<1x512xf32> to vector<1x512xf32>
    %304 = vector.broadcast %303 : vector<1x512xf32> to vector<8x512xf32>
    %305 = vector.extract_strided_slice %250 {offsets = [56, 0], sizes = [8, 512], strides = [1, 1]} : vector<256x512xf32> to vector<8x512xf32>
    %306 = arith.mulf %304, %305 : vector<8x512xf32>
    %307 = arith.addf %301, %306 : vector<8x512xf32>
    %cst_41 = arith.constant 0.000000e+00 : f32
    %308 = vector.broadcast %cst_41 : f32 to vector<8x512xf32>
    %cst_42 = arith.constant 0.000000e+00 : f32
    %309 = vector.broadcast %cst_42 : f32 to vector<8x512xf32>
    %cst_43 = arith.constant 0.000000e+00 : f32
    %310 = vector.broadcast %cst_43 : f32 to vector<8x512xf32>
    %311 = vector.extract_strided_slice %246 {offsets = [40, 0], sizes = [1, 512], strides = [1, 1]} : vector<64x512xf32> to vector<1x512xf32>
    %312 = vector.shape_cast %311 : vector<1x512xf32> to vector<1x512xf32>
    %313 = vector.broadcast %312 : vector<1x512xf32> to vector<8x512xf32>
    %314 = vector.extract_strided_slice %250 {offsets = [64, 0], sizes = [8, 512], strides = [1, 1]} : vector<256x512xf32> to vector<8x512xf32>
    %315 = arith.mulf %313, %314 : vector<8x512xf32>
    %316 = arith.addf %307, %315 : vector<8x512xf32>
    %317 = vector.extract_strided_slice %254 {offsets = [0, 0], sizes = [8, 512], strides = [1, 1]} : vector<64x512xf32> to vector<8x512xf32>
    %318 = arith.mulf %313, %317 : vector<8x512xf32>
    %319 = arith.addf %308, %318 : vector<8x512xf32>
    %320 = vector.extract_strided_slice %246 {offsets = [8, 0], sizes = [1, 512], strides = [1, 1]} : vector<64x512xf32> to vector<1x512xf32>
    %321 = vector.shape_cast %320 : vector<1x512xf32> to vector<1x512xf32>
    %322 = vector.broadcast %321 : vector<1x512xf32> to vector<8x512xf32>
    %323 = vector.extract_strided_slice %258 {offsets = [0, 0], sizes = [8, 512], strides = [1, 1]} : vector<64x512xf32> to vector<8x512xf32>
    %324 = arith.mulf %322, %323 : vector<8x512xf32>
    %325 = arith.addf %319, %324 : vector<8x512xf32>
    %326 = vector.extract_strided_slice %246 {offsets = [41, 0], sizes = [1, 512], strides = [1, 1]} : vector<64x512xf32> to vector<1x512xf32>
    %327 = vector.shape_cast %326 : vector<1x512xf32> to vector<1x512xf32>
    %328 = vector.broadcast %327 : vector<1x512xf32> to vector<8x512xf32>
    %329 = vector.extract_strided_slice %250 {offsets = [72, 0], sizes = [8, 512], strides = [1, 1]} : vector<256x512xf32> to vector<8x512xf32>
    %330 = arith.mulf %328, %329 : vector<8x512xf32>
    %331 = arith.addf %316, %330 : vector<8x512xf32>
    %332 = vector.extract_strided_slice %254 {offsets = [8, 0], sizes = [8, 512], strides = [1, 1]} : vector<64x512xf32> to vector<8x512xf32>
    %333 = arith.mulf %328, %332 : vector<8x512xf32>
    %334 = arith.addf %325, %333 : vector<8x512xf32>
    %335 = vector.extract_strided_slice %246 {offsets = [9, 0], sizes = [1, 512], strides = [1, 1]} : vector<64x512xf32> to vector<1x512xf32>
    %336 = vector.shape_cast %335 : vector<1x512xf32> to vector<1x512xf32>
    %337 = vector.broadcast %336 : vector<1x512xf32> to vector<8x512xf32>
    %338 = vector.extract_strided_slice %258 {offsets = [8, 0], sizes = [8, 512], strides = [1, 1]} : vector<64x512xf32> to vector<8x512xf32>
    %339 = arith.mulf %337, %338 : vector<8x512xf32>
    %340 = arith.addf %334, %339 : vector<8x512xf32>
    %341 = vector.extract_strided_slice %246 {offsets = [42, 0], sizes = [1, 512], strides = [1, 1]} : vector<64x512xf32> to vector<1x512xf32>
    %342 = vector.shape_cast %341 : vector<1x512xf32> to vector<1x512xf32>
    %343 = vector.broadcast %342 : vector<1x512xf32> to vector<8x512xf32>
    %344 = vector.extract_strided_slice %250 {offsets = [80, 0], sizes = [8, 512], strides = [1, 1]} : vector<256x512xf32> to vector<8x512xf32>
    %345 = arith.mulf %343, %344 : vector<8x512xf32>
    %346 = arith.addf %331, %345 : vector<8x512xf32>
    %347 = vector.extract_strided_slice %254 {offsets = [16, 0], sizes = [8, 512], strides = [1, 1]} : vector<64x512xf32> to vector<8x512xf32>
    %348 = arith.mulf %343, %347 : vector<8x512xf32>
    %349 = arith.addf %340, %348 : vector<8x512xf32>
    %350 = vector.extract_strided_slice %246 {offsets = [10, 0], sizes = [1, 512], strides = [1, 1]} : vector<64x512xf32> to vector<1x512xf32>
    %351 = vector.shape_cast %350 : vector<1x512xf32> to vector<1x512xf32>
    %352 = vector.broadcast %351 : vector<1x512xf32> to vector<8x512xf32>
    %353 = vector.extract_strided_slice %258 {offsets = [16, 0], sizes = [8, 512], strides = [1, 1]} : vector<64x512xf32> to vector<8x512xf32>
    %354 = arith.mulf %352, %353 : vector<8x512xf32>
    %355 = arith.addf %349, %354 : vector<8x512xf32>
    %356 = vector.extract_strided_slice %246 {offsets = [43, 0], sizes = [1, 512], strides = [1, 1]} : vector<64x512xf32> to vector<1x512xf32>
    %357 = vector.shape_cast %356 : vector<1x512xf32> to vector<1x512xf32>
    %358 = vector.broadcast %357 : vector<1x512xf32> to vector<8x512xf32>
    %359 = vector.extract_strided_slice %250 {offsets = [88, 0], sizes = [8, 512], strides = [1, 1]} : vector<256x512xf32> to vector<8x512xf32>
    %360 = arith.mulf %358, %359 : vector<8x512xf32>
    %361 = arith.addf %346, %360 : vector<8x512xf32>
    %362 = vector.extract_strided_slice %254 {offsets = [24, 0], sizes = [8, 512], strides = [1, 1]} : vector<64x512xf32> to vector<8x512xf32>
    %363 = arith.mulf %358, %362 : vector<8x512xf32>
    %364 = arith.addf %355, %363 : vector<8x512xf32>
    %365 = vector.extract_strided_slice %246 {offsets = [11, 0], sizes = [1, 512], strides = [1, 1]} : vector<64x512xf32> to vector<1x512xf32>
    %366 = vector.shape_cast %365 : vector<1x512xf32> to vector<1x512xf32>
    %367 = vector.broadcast %366 : vector<1x512xf32> to vector<8x512xf32>
    %368 = vector.extract_strided_slice %258 {offsets = [24, 0], sizes = [8, 512], strides = [1, 1]} : vector<64x512xf32> to vector<8x512xf32>
    %369 = arith.mulf %367, %368 : vector<8x512xf32>
    %370 = arith.addf %364, %369 : vector<8x512xf32>
    %371 = vector.extract_strided_slice %246 {offsets = [44, 0], sizes = [1, 512], strides = [1, 1]} : vector<64x512xf32> to vector<1x512xf32>
    %372 = vector.shape_cast %371 : vector<1x512xf32> to vector<1x512xf32>
    %373 = vector.broadcast %372 : vector<1x512xf32> to vector<8x512xf32>
    %374 = vector.extract_strided_slice %250 {offsets = [96, 0], sizes = [8, 512], strides = [1, 1]} : vector<256x512xf32> to vector<8x512xf32>
    %375 = arith.mulf %373, %374 : vector<8x512xf32>
    %376 = arith.addf %361, %375 : vector<8x512xf32>
    %377 = vector.extract_strided_slice %254 {offsets = [32, 0], sizes = [8, 512], strides = [1, 1]} : vector<64x512xf32> to vector<8x512xf32>
    %378 = arith.mulf %373, %377 : vector<8x512xf32>
    %379 = arith.addf %370, %378 : vector<8x512xf32>
    %380 = vector.extract_strided_slice %246 {offsets = [12, 0], sizes = [1, 512], strides = [1, 1]} : vector<64x512xf32> to vector<1x512xf32>
    %381 = vector.shape_cast %380 : vector<1x512xf32> to vector<1x512xf32>
    %382 = vector.broadcast %381 : vector<1x512xf32> to vector<8x512xf32>
    %383 = vector.extract_strided_slice %258 {offsets = [32, 0], sizes = [8, 512], strides = [1, 1]} : vector<64x512xf32> to vector<8x512xf32>
    %384 = arith.mulf %382, %383 : vector<8x512xf32>
    %385 = arith.addf %379, %384 : vector<8x512xf32>
    %386 = vector.extract_strided_slice %246 {offsets = [45, 0], sizes = [1, 512], strides = [1, 1]} : vector<64x512xf32> to vector<1x512xf32>
    %387 = vector.shape_cast %386 : vector<1x512xf32> to vector<1x512xf32>
    %388 = vector.broadcast %387 : vector<1x512xf32> to vector<8x512xf32>
    %389 = vector.extract_strided_slice %250 {offsets = [104, 0], sizes = [8, 512], strides = [1, 1]} : vector<256x512xf32> to vector<8x512xf32>
    %390 = arith.mulf %388, %389 : vector<8x512xf32>
    %391 = arith.addf %376, %390 : vector<8x512xf32>
    %392 = vector.extract_strided_slice %254 {offsets = [40, 0], sizes = [8, 512], strides = [1, 1]} : vector<64x512xf32> to vector<8x512xf32>
    %393 = arith.mulf %388, %392 : vector<8x512xf32>
    %394 = arith.addf %385, %393 : vector<8x512xf32>
    %395 = vector.extract_strided_slice %246 {offsets = [13, 0], sizes = [1, 512], strides = [1, 1]} : vector<64x512xf32> to vector<1x512xf32>
    %396 = vector.shape_cast %395 : vector<1x512xf32> to vector<1x512xf32>
    %397 = vector.broadcast %396 : vector<1x512xf32> to vector<8x512xf32>
    %398 = vector.extract_strided_slice %258 {offsets = [40, 0], sizes = [8, 512], strides = [1, 1]} : vector<64x512xf32> to vector<8x512xf32>
    %399 = arith.mulf %397, %398 : vector<8x512xf32>
    %400 = arith.addf %394, %399 : vector<8x512xf32>
    %401 = vector.extract_strided_slice %246 {offsets = [46, 0], sizes = [1, 512], strides = [1, 1]} : vector<64x512xf32> to vector<1x512xf32>
    %402 = vector.shape_cast %401 : vector<1x512xf32> to vector<1x512xf32>
    %403 = vector.broadcast %402 : vector<1x512xf32> to vector<8x512xf32>
    %404 = vector.extract_strided_slice %250 {offsets = [112, 0], sizes = [8, 512], strides = [1, 1]} : vector<256x512xf32> to vector<8x512xf32>
    %405 = arith.mulf %403, %404 : vector<8x512xf32>
    %406 = arith.addf %391, %405 : vector<8x512xf32>
    %407 = vector.extract_strided_slice %254 {offsets = [48, 0], sizes = [8, 512], strides = [1, 1]} : vector<64x512xf32> to vector<8x512xf32>
    %408 = arith.mulf %403, %407 : vector<8x512xf32>
    %409 = arith.addf %400, %408 : vector<8x512xf32>
    %410 = vector.extract_strided_slice %246 {offsets = [14, 0], sizes = [1, 512], strides = [1, 1]} : vector<64x512xf32> to vector<1x512xf32>
    %411 = vector.shape_cast %410 : vector<1x512xf32> to vector<1x512xf32>
    %412 = vector.broadcast %411 : vector<1x512xf32> to vector<8x512xf32>
    %413 = vector.extract_strided_slice %258 {offsets = [48, 0], sizes = [8, 512], strides = [1, 1]} : vector<64x512xf32> to vector<8x512xf32>
    %414 = arith.mulf %412, %413 : vector<8x512xf32>
    %415 = arith.addf %409, %414 : vector<8x512xf32>
    %416 = vector.extract_strided_slice %246 {offsets = [47, 0], sizes = [1, 512], strides = [1, 1]} : vector<64x512xf32> to vector<1x512xf32>
    %417 = vector.shape_cast %416 : vector<1x512xf32> to vector<1x512xf32>
    %418 = vector.broadcast %417 : vector<1x512xf32> to vector<8x512xf32>
    %419 = vector.extract_strided_slice %250 {offsets = [120, 0], sizes = [8, 512], strides = [1, 1]} : vector<256x512xf32> to vector<8x512xf32>
    %420 = arith.mulf %418, %419 : vector<8x512xf32>
    %421 = arith.addf %406, %420 : vector<8x512xf32>
    %422 = vector.extract_strided_slice %254 {offsets = [56, 0], sizes = [8, 512], strides = [1, 1]} : vector<64x512xf32> to vector<8x512xf32>
    %423 = arith.mulf %418, %422 : vector<8x512xf32>
    %424 = arith.addf %415, %423 : vector<8x512xf32>
    %425 = vector.extract_strided_slice %246 {offsets = [15, 0], sizes = [1, 512], strides = [1, 1]} : vector<64x512xf32> to vector<1x512xf32>
    %426 = vector.shape_cast %425 : vector<1x512xf32> to vector<1x512xf32>
    %427 = vector.broadcast %426 : vector<1x512xf32> to vector<8x512xf32>
    %428 = vector.extract_strided_slice %258 {offsets = [56, 0], sizes = [8, 512], strides = [1, 1]} : vector<64x512xf32> to vector<8x512xf32>
    %429 = arith.mulf %427, %428 : vector<8x512xf32>
    %430 = arith.addf %424, %429 : vector<8x512xf32>
    %431 = vector.extract_strided_slice %246 {offsets = [48, 0], sizes = [1, 512], strides = [1, 1]} : vector<64x512xf32> to vector<1x512xf32>
    %432 = vector.shape_cast %431 : vector<1x512xf32> to vector<1x512xf32>
    %433 = vector.broadcast %432 : vector<1x512xf32> to vector<8x512xf32>
    %434 = vector.extract_strided_slice %250 {offsets = [128, 0], sizes = [8, 512], strides = [1, 1]} : vector<256x512xf32> to vector<8x512xf32>
    %435 = arith.mulf %433, %434 : vector<8x512xf32>
    %436 = arith.addf %421, %435 : vector<8x512xf32>
    %437 = vector.extract_strided_slice %254 {offsets = [0, 0], sizes = [8, 512], strides = [1, 1]} : vector<64x512xf32> to vector<8x512xf32>
    %438 = arith.mulf %433, %437 : vector<8x512xf32>
    %439 = arith.addf %309, %438 : vector<8x512xf32>
    %440 = vector.extract_strided_slice %246 {offsets = [16, 0], sizes = [1, 512], strides = [1, 1]} : vector<64x512xf32> to vector<1x512xf32>
    %441 = vector.shape_cast %440 : vector<1x512xf32> to vector<1x512xf32>
    %442 = vector.broadcast %441 : vector<1x512xf32> to vector<8x512xf32>
    %443 = vector.extract_strided_slice %258 {offsets = [0, 0], sizes = [8, 512], strides = [1, 1]} : vector<64x512xf32> to vector<8x512xf32>
    %444 = arith.mulf %442, %443 : vector<8x512xf32>
    %445 = arith.addf %439, %444 : vector<8x512xf32>
    %446 = vector.extract_strided_slice %246 {offsets = [49, 0], sizes = [1, 512], strides = [1, 1]} : vector<64x512xf32> to vector<1x512xf32>
    %447 = vector.shape_cast %446 : vector<1x512xf32> to vector<1x512xf32>
    %448 = vector.broadcast %447 : vector<1x512xf32> to vector<8x512xf32>
    %449 = vector.extract_strided_slice %250 {offsets = [136, 0], sizes = [8, 512], strides = [1, 1]} : vector<256x512xf32> to vector<8x512xf32>
    %450 = arith.mulf %448, %449 : vector<8x512xf32>
    %451 = arith.addf %436, %450 : vector<8x512xf32>
    %452 = vector.extract_strided_slice %254 {offsets = [8, 0], sizes = [8, 512], strides = [1, 1]} : vector<64x512xf32> to vector<8x512xf32>
    %453 = arith.mulf %448, %452 : vector<8x512xf32>
    %454 = arith.addf %445, %453 : vector<8x512xf32>
    %455 = vector.extract_strided_slice %246 {offsets = [17, 0], sizes = [1, 512], strides = [1, 1]} : vector<64x512xf32> to vector<1x512xf32>
    %456 = vector.shape_cast %455 : vector<1x512xf32> to vector<1x512xf32>
    %457 = vector.broadcast %456 : vector<1x512xf32> to vector<8x512xf32>
    %458 = vector.extract_strided_slice %258 {offsets = [8, 0], sizes = [8, 512], strides = [1, 1]} : vector<64x512xf32> to vector<8x512xf32>
    %459 = arith.mulf %457, %458 : vector<8x512xf32>
    %460 = arith.addf %454, %459 : vector<8x512xf32>
    %461 = vector.extract_strided_slice %246 {offsets = [50, 0], sizes = [1, 512], strides = [1, 1]} : vector<64x512xf32> to vector<1x512xf32>
    %462 = vector.shape_cast %461 : vector<1x512xf32> to vector<1x512xf32>
    %463 = vector.broadcast %462 : vector<1x512xf32> to vector<8x512xf32>
    %464 = vector.extract_strided_slice %250 {offsets = [144, 0], sizes = [8, 512], strides = [1, 1]} : vector<256x512xf32> to vector<8x512xf32>
    %465 = arith.mulf %463, %464 : vector<8x512xf32>
    %466 = arith.addf %451, %465 : vector<8x512xf32>
    %467 = vector.extract_strided_slice %254 {offsets = [16, 0], sizes = [8, 512], strides = [1, 1]} : vector<64x512xf32> to vector<8x512xf32>
    %468 = arith.mulf %463, %467 : vector<8x512xf32>
    %469 = arith.addf %460, %468 : vector<8x512xf32>
    %470 = vector.extract_strided_slice %246 {offsets = [18, 0], sizes = [1, 512], strides = [1, 1]} : vector<64x512xf32> to vector<1x512xf32>
    %471 = vector.shape_cast %470 : vector<1x512xf32> to vector<1x512xf32>
    %472 = vector.broadcast %471 : vector<1x512xf32> to vector<8x512xf32>
    %473 = vector.extract_strided_slice %258 {offsets = [16, 0], sizes = [8, 512], strides = [1, 1]} : vector<64x512xf32> to vector<8x512xf32>
    %474 = arith.mulf %472, %473 : vector<8x512xf32>
    %475 = arith.addf %469, %474 : vector<8x512xf32>
    %476 = vector.extract_strided_slice %246 {offsets = [51, 0], sizes = [1, 512], strides = [1, 1]} : vector<64x512xf32> to vector<1x512xf32>
    %477 = vector.shape_cast %476 : vector<1x512xf32> to vector<1x512xf32>
    %478 = vector.broadcast %477 : vector<1x512xf32> to vector<8x512xf32>
    %479 = vector.extract_strided_slice %250 {offsets = [152, 0], sizes = [8, 512], strides = [1, 1]} : vector<256x512xf32> to vector<8x512xf32>
    %480 = arith.mulf %478, %479 : vector<8x512xf32>
    %481 = arith.addf %466, %480 : vector<8x512xf32>
    %482 = vector.extract_strided_slice %254 {offsets = [24, 0], sizes = [8, 512], strides = [1, 1]} : vector<64x512xf32> to vector<8x512xf32>
    %483 = arith.mulf %478, %482 : vector<8x512xf32>
    %484 = arith.addf %475, %483 : vector<8x512xf32>
    %485 = vector.extract_strided_slice %246 {offsets = [19, 0], sizes = [1, 512], strides = [1, 1]} : vector<64x512xf32> to vector<1x512xf32>
    %486 = vector.shape_cast %485 : vector<1x512xf32> to vector<1x512xf32>
    %487 = vector.broadcast %486 : vector<1x512xf32> to vector<8x512xf32>
    %488 = vector.extract_strided_slice %258 {offsets = [24, 0], sizes = [8, 512], strides = [1, 1]} : vector<64x512xf32> to vector<8x512xf32>
    %489 = arith.mulf %487, %488 : vector<8x512xf32>
    %490 = arith.addf %484, %489 : vector<8x512xf32>
    %491 = vector.extract_strided_slice %246 {offsets = [52, 0], sizes = [1, 512], strides = [1, 1]} : vector<64x512xf32> to vector<1x512xf32>
    %492 = vector.shape_cast %491 : vector<1x512xf32> to vector<1x512xf32>
    %493 = vector.broadcast %492 : vector<1x512xf32> to vector<8x512xf32>
    %494 = vector.extract_strided_slice %250 {offsets = [160, 0], sizes = [8, 512], strides = [1, 1]} : vector<256x512xf32> to vector<8x512xf32>
    %495 = arith.mulf %493, %494 : vector<8x512xf32>
    %496 = arith.addf %481, %495 : vector<8x512xf32>
    %497 = vector.extract_strided_slice %254 {offsets = [32, 0], sizes = [8, 512], strides = [1, 1]} : vector<64x512xf32> to vector<8x512xf32>
    %498 = arith.mulf %493, %497 : vector<8x512xf32>
    %499 = arith.addf %490, %498 : vector<8x512xf32>
    %500 = vector.extract_strided_slice %246 {offsets = [20, 0], sizes = [1, 512], strides = [1, 1]} : vector<64x512xf32> to vector<1x512xf32>
    %501 = vector.shape_cast %500 : vector<1x512xf32> to vector<1x512xf32>
    %502 = vector.broadcast %501 : vector<1x512xf32> to vector<8x512xf32>
    %503 = vector.extract_strided_slice %258 {offsets = [32, 0], sizes = [8, 512], strides = [1, 1]} : vector<64x512xf32> to vector<8x512xf32>
    %504 = arith.mulf %502, %503 : vector<8x512xf32>
    %505 = arith.addf %499, %504 : vector<8x512xf32>
    %506 = vector.extract_strided_slice %246 {offsets = [53, 0], sizes = [1, 512], strides = [1, 1]} : vector<64x512xf32> to vector<1x512xf32>
    %507 = vector.shape_cast %506 : vector<1x512xf32> to vector<1x512xf32>
    %508 = vector.broadcast %507 : vector<1x512xf32> to vector<8x512xf32>
    %509 = vector.extract_strided_slice %250 {offsets = [168, 0], sizes = [8, 512], strides = [1, 1]} : vector<256x512xf32> to vector<8x512xf32>
    %510 = arith.mulf %508, %509 : vector<8x512xf32>
    %511 = arith.addf %496, %510 : vector<8x512xf32>
    %512 = vector.extract_strided_slice %254 {offsets = [40, 0], sizes = [8, 512], strides = [1, 1]} : vector<64x512xf32> to vector<8x512xf32>
    %513 = arith.mulf %508, %512 : vector<8x512xf32>
    %514 = arith.addf %505, %513 : vector<8x512xf32>
    %515 = vector.extract_strided_slice %246 {offsets = [21, 0], sizes = [1, 512], strides = [1, 1]} : vector<64x512xf32> to vector<1x512xf32>
    %516 = vector.shape_cast %515 : vector<1x512xf32> to vector<1x512xf32>
    %517 = vector.broadcast %516 : vector<1x512xf32> to vector<8x512xf32>
    %518 = vector.extract_strided_slice %258 {offsets = [40, 0], sizes = [8, 512], strides = [1, 1]} : vector<64x512xf32> to vector<8x512xf32>
    %519 = arith.mulf %517, %518 : vector<8x512xf32>
    %520 = arith.addf %514, %519 : vector<8x512xf32>
    %521 = vector.extract_strided_slice %246 {offsets = [54, 0], sizes = [1, 512], strides = [1, 1]} : vector<64x512xf32> to vector<1x512xf32>
    %522 = vector.shape_cast %521 : vector<1x512xf32> to vector<1x512xf32>
    %523 = vector.broadcast %522 : vector<1x512xf32> to vector<8x512xf32>
    %524 = vector.extract_strided_slice %250 {offsets = [176, 0], sizes = [8, 512], strides = [1, 1]} : vector<256x512xf32> to vector<8x512xf32>
    %525 = arith.mulf %523, %524 : vector<8x512xf32>
    %526 = arith.addf %511, %525 : vector<8x512xf32>
    %527 = vector.extract_strided_slice %254 {offsets = [48, 0], sizes = [8, 512], strides = [1, 1]} : vector<64x512xf32> to vector<8x512xf32>
    %528 = arith.mulf %523, %527 : vector<8x512xf32>
    %529 = arith.addf %520, %528 : vector<8x512xf32>
    %530 = vector.extract_strided_slice %246 {offsets = [22, 0], sizes = [1, 512], strides = [1, 1]} : vector<64x512xf32> to vector<1x512xf32>
    %531 = vector.shape_cast %530 : vector<1x512xf32> to vector<1x512xf32>
    %532 = vector.broadcast %531 : vector<1x512xf32> to vector<8x512xf32>
    %533 = vector.extract_strided_slice %258 {offsets = [48, 0], sizes = [8, 512], strides = [1, 1]} : vector<64x512xf32> to vector<8x512xf32>
    %534 = arith.mulf %532, %533 : vector<8x512xf32>
    %535 = arith.addf %529, %534 : vector<8x512xf32>
    %536 = vector.extract_strided_slice %246 {offsets = [55, 0], sizes = [1, 512], strides = [1, 1]} : vector<64x512xf32> to vector<1x512xf32>
    %537 = vector.shape_cast %536 : vector<1x512xf32> to vector<1x512xf32>
    %538 = vector.broadcast %537 : vector<1x512xf32> to vector<8x512xf32>
    %539 = vector.extract_strided_slice %250 {offsets = [184, 0], sizes = [8, 512], strides = [1, 1]} : vector<256x512xf32> to vector<8x512xf32>
    %540 = arith.mulf %538, %539 : vector<8x512xf32>
    %541 = arith.addf %526, %540 : vector<8x512xf32>
    %542 = vector.extract_strided_slice %254 {offsets = [56, 0], sizes = [8, 512], strides = [1, 1]} : vector<64x512xf32> to vector<8x512xf32>
    %543 = arith.mulf %538, %542 : vector<8x512xf32>
    %544 = arith.addf %535, %543 : vector<8x512xf32>
    %545 = vector.extract_strided_slice %246 {offsets = [23, 0], sizes = [1, 512], strides = [1, 1]} : vector<64x512xf32> to vector<1x512xf32>
    %546 = vector.shape_cast %545 : vector<1x512xf32> to vector<1x512xf32>
    %547 = vector.broadcast %546 : vector<1x512xf32> to vector<8x512xf32>
    %548 = vector.extract_strided_slice %258 {offsets = [56, 0], sizes = [8, 512], strides = [1, 1]} : vector<64x512xf32> to vector<8x512xf32>
    %549 = arith.mulf %547, %548 : vector<8x512xf32>
    %550 = arith.addf %544, %549 : vector<8x512xf32>
    %551 = vector.extract_strided_slice %246 {offsets = [56, 0], sizes = [1, 512], strides = [1, 1]} : vector<64x512xf32> to vector<1x512xf32>
    %552 = vector.shape_cast %551 : vector<1x512xf32> to vector<1x512xf32>
    %553 = vector.broadcast %552 : vector<1x512xf32> to vector<8x512xf32>
    %554 = vector.extract_strided_slice %250 {offsets = [192, 0], sizes = [8, 512], strides = [1, 1]} : vector<256x512xf32> to vector<8x512xf32>
    %555 = arith.mulf %553, %554 : vector<8x512xf32>
    %556 = arith.addf %541, %555 : vector<8x512xf32>
    %557 = vector.extract_strided_slice %254 {offsets = [0, 0], sizes = [8, 512], strides = [1, 1]} : vector<64x512xf32> to vector<8x512xf32>
    %558 = arith.mulf %553, %557 : vector<8x512xf32>
    %559 = arith.addf %310, %558 : vector<8x512xf32>
    %560 = vector.extract_strided_slice %246 {offsets = [24, 0], sizes = [1, 512], strides = [1, 1]} : vector<64x512xf32> to vector<1x512xf32>
    %561 = vector.shape_cast %560 : vector<1x512xf32> to vector<1x512xf32>
    %562 = vector.broadcast %561 : vector<1x512xf32> to vector<8x512xf32>
    %563 = vector.extract_strided_slice %258 {offsets = [0, 0], sizes = [8, 512], strides = [1, 1]} : vector<64x512xf32> to vector<8x512xf32>
    %564 = arith.mulf %562, %563 : vector<8x512xf32>
    %565 = arith.addf %559, %564 : vector<8x512xf32>
    %566 = vector.extract_strided_slice %246 {offsets = [57, 0], sizes = [1, 512], strides = [1, 1]} : vector<64x512xf32> to vector<1x512xf32>
    %567 = vector.shape_cast %566 : vector<1x512xf32> to vector<1x512xf32>
    %568 = vector.broadcast %567 : vector<1x512xf32> to vector<8x512xf32>
    %569 = vector.extract_strided_slice %250 {offsets = [200, 0], sizes = [8, 512], strides = [1, 1]} : vector<256x512xf32> to vector<8x512xf32>
    %570 = arith.mulf %568, %569 : vector<8x512xf32>
    %571 = arith.addf %556, %570 : vector<8x512xf32>
    %572 = vector.extract_strided_slice %254 {offsets = [8, 0], sizes = [8, 512], strides = [1, 1]} : vector<64x512xf32> to vector<8x512xf32>
    %573 = arith.mulf %568, %572 : vector<8x512xf32>
    %574 = arith.addf %565, %573 : vector<8x512xf32>
    %575 = vector.extract_strided_slice %246 {offsets = [25, 0], sizes = [1, 512], strides = [1, 1]} : vector<64x512xf32> to vector<1x512xf32>
    %576 = vector.shape_cast %575 : vector<1x512xf32> to vector<1x512xf32>
    %577 = vector.broadcast %576 : vector<1x512xf32> to vector<8x512xf32>
    %578 = vector.extract_strided_slice %258 {offsets = [8, 0], sizes = [8, 512], strides = [1, 1]} : vector<64x512xf32> to vector<8x512xf32>
    %579 = arith.mulf %577, %578 : vector<8x512xf32>
    %580 = arith.addf %574, %579 : vector<8x512xf32>
    %581 = vector.extract_strided_slice %246 {offsets = [58, 0], sizes = [1, 512], strides = [1, 1]} : vector<64x512xf32> to vector<1x512xf32>
    %582 = vector.shape_cast %581 : vector<1x512xf32> to vector<1x512xf32>
    %583 = vector.broadcast %582 : vector<1x512xf32> to vector<8x512xf32>
    %584 = vector.extract_strided_slice %250 {offsets = [208, 0], sizes = [8, 512], strides = [1, 1]} : vector<256x512xf32> to vector<8x512xf32>
    %585 = arith.mulf %583, %584 : vector<8x512xf32>
    %586 = arith.addf %571, %585 : vector<8x512xf32>
    %587 = vector.extract_strided_slice %254 {offsets = [16, 0], sizes = [8, 512], strides = [1, 1]} : vector<64x512xf32> to vector<8x512xf32>
    %588 = arith.mulf %583, %587 : vector<8x512xf32>
    %589 = arith.addf %580, %588 : vector<8x512xf32>
    %590 = vector.extract_strided_slice %246 {offsets = [26, 0], sizes = [1, 512], strides = [1, 1]} : vector<64x512xf32> to vector<1x512xf32>
    %591 = vector.shape_cast %590 : vector<1x512xf32> to vector<1x512xf32>
    %592 = vector.broadcast %591 : vector<1x512xf32> to vector<8x512xf32>
    %593 = vector.extract_strided_slice %258 {offsets = [16, 0], sizes = [8, 512], strides = [1, 1]} : vector<64x512xf32> to vector<8x512xf32>
    %594 = arith.mulf %592, %593 : vector<8x512xf32>
    %595 = arith.addf %589, %594 : vector<8x512xf32>
    %596 = vector.extract_strided_slice %246 {offsets = [59, 0], sizes = [1, 512], strides = [1, 1]} : vector<64x512xf32> to vector<1x512xf32>
    %597 = vector.shape_cast %596 : vector<1x512xf32> to vector<1x512xf32>
    %598 = vector.broadcast %597 : vector<1x512xf32> to vector<8x512xf32>
    %599 = vector.extract_strided_slice %250 {offsets = [216, 0], sizes = [8, 512], strides = [1, 1]} : vector<256x512xf32> to vector<8x512xf32>
    %600 = arith.mulf %598, %599 : vector<8x512xf32>
    %601 = arith.addf %586, %600 : vector<8x512xf32>
    %602 = vector.extract_strided_slice %254 {offsets = [24, 0], sizes = [8, 512], strides = [1, 1]} : vector<64x512xf32> to vector<8x512xf32>
    %603 = arith.mulf %598, %602 : vector<8x512xf32>
    %604 = arith.addf %595, %603 : vector<8x512xf32>
    %605 = vector.extract_strided_slice %246 {offsets = [27, 0], sizes = [1, 512], strides = [1, 1]} : vector<64x512xf32> to vector<1x512xf32>
    %606 = vector.shape_cast %605 : vector<1x512xf32> to vector<1x512xf32>
    %607 = vector.broadcast %606 : vector<1x512xf32> to vector<8x512xf32>
    %608 = vector.extract_strided_slice %258 {offsets = [24, 0], sizes = [8, 512], strides = [1, 1]} : vector<64x512xf32> to vector<8x512xf32>
    %609 = arith.mulf %607, %608 : vector<8x512xf32>
    %610 = arith.addf %604, %609 : vector<8x512xf32>
    %611 = vector.extract_strided_slice %246 {offsets = [60, 0], sizes = [1, 512], strides = [1, 1]} : vector<64x512xf32> to vector<1x512xf32>
    %612 = vector.shape_cast %611 : vector<1x512xf32> to vector<1x512xf32>
    %613 = vector.broadcast %612 : vector<1x512xf32> to vector<8x512xf32>
    %614 = vector.extract_strided_slice %250 {offsets = [224, 0], sizes = [8, 512], strides = [1, 1]} : vector<256x512xf32> to vector<8x512xf32>
    %615 = arith.mulf %613, %614 : vector<8x512xf32>
    %616 = arith.addf %601, %615 : vector<8x512xf32>
    %617 = vector.extract_strided_slice %254 {offsets = [32, 0], sizes = [8, 512], strides = [1, 1]} : vector<64x512xf32> to vector<8x512xf32>
    %618 = arith.mulf %613, %617 : vector<8x512xf32>
    %619 = arith.addf %610, %618 : vector<8x512xf32>
    %620 = vector.extract_strided_slice %246 {offsets = [28, 0], sizes = [1, 512], strides = [1, 1]} : vector<64x512xf32> to vector<1x512xf32>
    %621 = vector.shape_cast %620 : vector<1x512xf32> to vector<1x512xf32>
    %622 = vector.broadcast %621 : vector<1x512xf32> to vector<8x512xf32>
    %623 = vector.extract_strided_slice %258 {offsets = [32, 0], sizes = [8, 512], strides = [1, 1]} : vector<64x512xf32> to vector<8x512xf32>
    %624 = arith.mulf %622, %623 : vector<8x512xf32>
    %625 = arith.addf %619, %624 : vector<8x512xf32>
    %626 = vector.extract_strided_slice %246 {offsets = [61, 0], sizes = [1, 512], strides = [1, 1]} : vector<64x512xf32> to vector<1x512xf32>
    %627 = vector.shape_cast %626 : vector<1x512xf32> to vector<1x512xf32>
    %628 = vector.broadcast %627 : vector<1x512xf32> to vector<8x512xf32>
    %629 = vector.extract_strided_slice %250 {offsets = [232, 0], sizes = [8, 512], strides = [1, 1]} : vector<256x512xf32> to vector<8x512xf32>
    %630 = arith.mulf %628, %629 : vector<8x512xf32>
    %631 = arith.addf %616, %630 : vector<8x512xf32>
    %632 = vector.extract_strided_slice %254 {offsets = [40, 0], sizes = [8, 512], strides = [1, 1]} : vector<64x512xf32> to vector<8x512xf32>
    %633 = arith.mulf %628, %632 : vector<8x512xf32>
    %634 = arith.addf %625, %633 : vector<8x512xf32>
    %635 = vector.extract_strided_slice %246 {offsets = [29, 0], sizes = [1, 512], strides = [1, 1]} : vector<64x512xf32> to vector<1x512xf32>
    %636 = vector.shape_cast %635 : vector<1x512xf32> to vector<1x512xf32>
    %637 = vector.broadcast %636 : vector<1x512xf32> to vector<8x512xf32>
    %638 = vector.extract_strided_slice %258 {offsets = [40, 0], sizes = [8, 512], strides = [1, 1]} : vector<64x512xf32> to vector<8x512xf32>
    %639 = arith.mulf %637, %638 : vector<8x512xf32>
    %640 = arith.addf %634, %639 : vector<8x512xf32>
    %641 = vector.extract_strided_slice %246 {offsets = [62, 0], sizes = [1, 512], strides = [1, 1]} : vector<64x512xf32> to vector<1x512xf32>
    %642 = vector.shape_cast %641 : vector<1x512xf32> to vector<1x512xf32>
    %643 = vector.broadcast %642 : vector<1x512xf32> to vector<8x512xf32>
    %644 = vector.extract_strided_slice %250 {offsets = [240, 0], sizes = [8, 512], strides = [1, 1]} : vector<256x512xf32> to vector<8x512xf32>
    %645 = arith.mulf %643, %644 : vector<8x512xf32>
    %646 = arith.addf %631, %645 : vector<8x512xf32>
    %647 = vector.extract_strided_slice %254 {offsets = [48, 0], sizes = [8, 512], strides = [1, 1]} : vector<64x512xf32> to vector<8x512xf32>
    %648 = arith.mulf %643, %647 : vector<8x512xf32>
    %649 = arith.addf %640, %648 : vector<8x512xf32>
    %650 = vector.extract_strided_slice %246 {offsets = [30, 0], sizes = [1, 512], strides = [1, 1]} : vector<64x512xf32> to vector<1x512xf32>
    %651 = vector.shape_cast %650 : vector<1x512xf32> to vector<1x512xf32>
    %652 = vector.broadcast %651 : vector<1x512xf32> to vector<8x512xf32>
    %653 = vector.extract_strided_slice %258 {offsets = [48, 0], sizes = [8, 512], strides = [1, 1]} : vector<64x512xf32> to vector<8x512xf32>
    %654 = arith.mulf %652, %653 : vector<8x512xf32>
    %655 = arith.addf %649, %654 : vector<8x512xf32>
    %656 = vector.extract_strided_slice %246 {offsets = [63, 0], sizes = [1, 512], strides = [1, 1]} : vector<64x512xf32> to vector<1x512xf32>
    %657 = vector.shape_cast %656 : vector<1x512xf32> to vector<1x512xf32>
    %658 = vector.broadcast %657 : vector<1x512xf32> to vector<8x512xf32>
    %659 = vector.extract_strided_slice %250 {offsets = [248, 0], sizes = [8, 512], strides = [1, 1]} : vector<256x512xf32> to vector<8x512xf32>
    %660 = arith.mulf %658, %659 : vector<8x512xf32>
    %661 = arith.addf %646, %660 : vector<8x512xf32>
    %662 = vector.extract_strided_slice %254 {offsets = [56, 0], sizes = [8, 512], strides = [1, 1]} : vector<64x512xf32> to vector<8x512xf32>
    %663 = arith.mulf %658, %662 : vector<8x512xf32>
    %664 = arith.addf %655, %663 : vector<8x512xf32>
    %665 = vector.extract_strided_slice %246 {offsets = [31, 0], sizes = [1, 512], strides = [1, 1]} : vector<64x512xf32> to vector<1x512xf32>
    %666 = vector.shape_cast %665 : vector<1x512xf32> to vector<1x512xf32>
    %667 = vector.broadcast %666 : vector<1x512xf32> to vector<8x512xf32>
    %668 = vector.extract_strided_slice %258 {offsets = [56, 0], sizes = [8, 512], strides = [1, 1]} : vector<64x512xf32> to vector<8x512xf32>
    %669 = arith.mulf %667, %668 : vector<8x512xf32>
    %670 = arith.addf %664, %669 : vector<8x512xf32>
    %c0_44 = arith.constant 0 : index
    %c0_45 = arith.constant 0 : index
    %671 = vector.load %arg12[%c0_44, %c0_45] : memref<16x8xbf16, #tpu.memory_space<vmem>>, vector<16x8xbf16>
    %672 = arith.truncf %661 : vector<8x512xf32> to vector<8x512xbf16>
    %cst_46 = arith.constant dense<0.000000e+00> : vector<16x512xf32>
    %673 = tpu.matmul %671, %672, %cst_46 {dimension_numbers = #tpu.dot_dimension_numbers<[1], [0], [0], [1], [0, 0, 1, 1], [], []>} : vector<16x8xbf16>, vector<8x512xbf16>, vector<16x512xf32> -> vector<16x512xf32>
    %674 = vector.extract_strided_slice %673 {offsets = [0, 0], sizes = [8, 512], strides = [1, 1]} : vector<16x512xf32> to vector<8x512xf32>
    %675 = math.tanh %674 : vector<8x512xf32>
    %676 = vector.extract_strided_slice %673 {offsets = [8, 0], sizes = [8, 512], strides = [1, 1]} : vector<16x512xf32> to vector<8x512xf32>
    %677 = math.tanh %676 : vector<8x512xf32>
    %c0_47 = arith.constant 0 : index
    %c0_48 = arith.constant 0 : index
    %678 = vector.load %arg13[%c0_47, %c0_48] : memref<8x8xbf16, #tpu.memory_space<vmem>>, vector<8x8xbf16>
    %679 = arith.truncf %430 : vector<8x512xf32> to vector<8x512xbf16>
    %cst_49 = arith.constant dense<0.000000e+00> : vector<8x512xf32>
    %680 = tpu.matmul %678, %679, %cst_49 {dimension_numbers = #tpu.dot_dimension_numbers<[1], [0], [0], [1], [0, 0, 1, 1], [], []>} : vector<8x8xbf16>, vector<8x512xbf16>, vector<8x512xf32> -> vector<8x512xf32>
    %681 = arith.mulf %677, %680 : vector<8x512xf32>
    %c0_50 = arith.constant 0 : index
    %c0_51 = arith.constant 0 : index
    %682 = vector.load %arg13[%c0_50, %c0_51] : memref<8x8xbf16, #tpu.memory_space<vmem>>, vector<8x8xbf16>
    %683 = arith.truncf %550 : vector<8x512xf32> to vector<8x512xbf16>
    %cst_52 = arith.constant dense<0.000000e+00> : vector<8x512xf32>
    %684 = tpu.matmul %682, %683, %cst_52 {dimension_numbers = #tpu.dot_dimension_numbers<[1], [0], [0], [1], [0, 0, 1, 1], [], []>} : vector<8x8xbf16>, vector<8x512xbf16>, vector<8x512xf32> -> vector<8x512xf32>
    %685 = arith.mulf %677, %684 : vector<8x512xf32>
    %c0_53 = arith.constant 0 : index
    %c0_54 = arith.constant 0 : index
    %686 = vector.load %arg13[%c0_53, %c0_54] : memref<8x8xbf16, #tpu.memory_space<vmem>>, vector<8x8xbf16>
    %687 = arith.truncf %670 : vector<8x512xf32> to vector<8x512xbf16>
    %cst_55 = arith.constant dense<0.000000e+00> : vector<8x512xf32>
    %688 = tpu.matmul %686, %687, %cst_55 {dimension_numbers = #tpu.dot_dimension_numbers<[1], [0], [0], [1], [0, 0, 1, 1], [], []>} : vector<8x8xbf16>, vector<8x512xbf16>, vector<8x512xf32> -> vector<8x512xf32>
    %689 = arith.mulf %677, %688 : vector<8x512xf32>
    %690 = tpu.concatenate %675, %681, %685, %689 in 0 : vector<8x512xf32>, vector<8x512xf32>, vector<8x512xf32>, vector<8x512xf32> -> vector<32x512xf32>
    %c0_56 = arith.constant 0 : index
    %c0_57 = arith.constant 0 : index
    %691 = vector.load %arg14[%c0_56, %c0_57] : memref<32x8xf32, #tpu.memory_space<vmem>>, vector<32x8xf32>
    %cst_58 = arith.constant dense<0.000000e+00> : vector<512x8xf32>
    %692 = tpu.matmul %690, %691, %cst_58 {dimension_numbers = #tpu.dot_dimension_numbers<[0], [0], [1], [1], [0, 1, 1, 1], [], []>} : vector<32x512xf32>, vector<32x8xf32>, vector<512x8xf32> -> vector<512x8xf32>
    %c0_59 = arith.constant 0 : index
    %c0_60 = arith.constant 0 : index
    %693 = vector.load %arg15[%c0_59, %c0_60] : memref<512x8xf32, #tpu.memory_space<vmem>>, vector<512x8xf32>
    tpu.vector_store %arg15[%c0_59, %c0_60], %692 {strides = array<i32>} : memref<512x8xf32, #tpu.memory_space<vmem>>, vector<512x8xf32>,
    return
  }
  func.func @transform_0(%arg0: i32) -> (i32, i32) {
    %c0_i32 = arith.constant 0 : i32
    %c0_i32_0 = arith.constant 0 : i32
    return %arg0, %c0_i32 : i32, i32
  }
  func.func @transform_1(%arg0: i32) -> (i32, i32) {
    %c0_i32 = arith.constant 0 : i32
    %c0_i32_0 = arith.constant 0 : i32
    %c0_i32_1 = arith.constant 0 : i32
    return %c0_i32, %c0_i32_0 : i32, i32
  }
  func.func @transform_2(%arg0: i32) -> (i32, i32) {
    %c0_i32 = arith.constant 0 : i32
    %c0_i32_0 = arith.constant 0 : i32
    %c0_i32_1 = arith.constant 0 : i32
    return %c0_i32, %c0_i32_0 : i32, i32
  }
  func.func @transform_3(%arg0: i32) -> (i32, i32) {
    %c0_i32 = arith.constant 0 : i32
    %c0_i32_0 = arith.constant 0 : i32
    %c0_i32_1 = arith.constant 0 : i32
    return %c0_i32, %c0_i32_0 : i32, i32
  }
  func.func @transform_4(%arg0: i32) -> (i32, i32) {
    %c0_i32 = arith.constant 0 : i32
    %c0_i32_0 = arith.constant 0 : i32
    %c0_i32_1 = arith.constant 0 : i32
    return %c0_i32, %c0_i32_0 : i32, i32
  }
  func.func @transform_5(%arg0: i32) -> (i32, i32) {
    %c0_i32 = arith.constant 0 : i32
    %c0_i32_0 = arith.constant 0 : i32
    %c0_i32_1 = arith.constant 0 : i32
    return %c0_i32, %c0_i32_0 : i32, i32
  }
  func.func @transform_6(%arg0: i32) -> (i32, i32) {
    %c0_i32 = arith.constant 0 : i32
    %c0_i32_0 = arith.constant 0 : i32
    %c0_i32_1 = arith.constant 0 : i32
    return %c0_i32, %c0_i32_0 : i32, i32
  }
  func.func @transform_7(%arg0: i32) -> (i32, i32) {
    %c0_i32 = arith.constant 0 : i32
    %c0_i32_0 = arith.constant 0 : i32
    %c0_i32_1 = arith.constant 0 : i32
    return %c0_i32, %c0_i32_0 : i32, i32
  }
  func.func @transform_8(%arg0: i32) -> (i32, i32) {
    %c0_i32 = arith.constant 0 : i32
    %c0_i32_0 = arith.constant 0 : i32
    %c0_i32_1 = arith.constant 0 : i32
    return %c0_i32, %c0_i32_0 : i32, i32
  }
  func.func @transform_9(%arg0: i32) -> (i32, i32) {
    %c0_i32 = arith.constant 0 : i32
    %c0_i32_0 = arith.constant 0 : i32
    %c0_i32_1 = arith.constant 0 : i32
    return %c0_i32, %c0_i32_0 : i32, i32
  }
  func.func @transform_10(%arg0: i32) -> (i32, i32) {
    %c0_i32 = arith.constant 0 : i32
    %c0_i32_0 = arith.constant 0 : i32
    %c0_i32_1 = arith.constant 0 : i32
    return %c0_i32, %c0_i32_0 : i32, i32
  }
  func.func @transform_11(%arg0: i32) -> (i32, i32) {
    %c0_i32 = arith.constant 0 : i32
    %c0_i32_0 = arith.constant 0 : i32
    %c0_i32_1 = arith.constant 0 : i32
    return %c0_i32, %c0_i32_0 : i32, i32
  }
  func.func @transform_12(%arg0: i32) -> (i32, i32) {
    %c0_i32 = arith.constant 0 : i32
    %c0_i32_0 = arith.constant 0 : i32
    %c0_i32_1 = arith.constant 0 : i32
    return %c0_i32, %c0_i32_0 : i32, i32
  }
  func.func @transform_13(%arg0: i32) -> (i32, i32) {
    %c0_i32 = arith.constant 0 : i32
    %c0_i32_0 = arith.constant 0 : i32
    %c0_i32_1 = arith.constant 0 : i32
    return %c0_i32, %c0_i32_0 : i32, i32
  }
  func.func @transform_14(%arg0: i32) -> (i32, i32) {
    %c0_i32 = arith.constant 0 : i32
    %c0_i32_0 = arith.constant 0 : i32
    return %arg0, %c0_i32 : i32, i32
  }
}

</mosaic_0001>

<llo_original>
// kernel: model.1
$region0: #{model.1}
  #allocation0 [shape = 'u32[]', space=smem, size = 0x4, offset = 0x4, fixed_abs, tag = 'smem constant byte address 0x4 - core index']
  #allocation1 [shape = 'u32[144,128]{1,0:T(1,128)}', space=vmem, size = 0x12000, scoped, tag = 'internal scratch']
  %s0 = inlined_call_operand.vmem [shape: f32[1024,16], index: 0, kind: input, shape index: {}]
  %s1 = inlined_call_operand.vmem [shape: bf16[32,16], index: 1, kind: input, shape index: {}]
  %s2 = inlined_call_operand.vmem [shape: bf16[128,16], index: 2, kind: input, shape index: {}]
  %s3 = inlined_call_operand.vmem [shape: bf16[32,4], index: 3, kind: input, shape index: {}]
  %s4 = inlined_call_operand.vmem [shape: bf16[32,4], index: 4, kind: input, shape index: {}]
  %s5 = inlined_call_operand.vmem [shape: bf16[16,8], index: 5, kind: input, shape index: {}]
  %s6 = inlined_call_operand.vmem [shape: bf16[8,8], index: 6, kind: input, shape index: {}]
  %s7 = inlined_call_operand.vmem [shape: bf16[64,32], index: 7, kind: input, shape index: {}]
  %s8 = inlined_call_operand.vmem [shape: bf16[256,32], index: 8, kind: input, shape index: {}]
  %s9 = inlined_call_operand.vmem [shape: bf16[64,8], index: 9, kind: input, shape index: {}]
  %s10 = inlined_call_operand.vmem [shape: bf16[64,8], index: 10, kind: input, shape index: {}]
  %s11 = inlined_call_operand.vmem [shape: bf16[16,8], index: 11, kind: input, shape index: {}]
  %s12 = inlined_call_operand.vmem [shape: bf16[8,8], index: 12, kind: input, shape index: {}]
  %s13 = inlined_call_operand.vmem [shape: f32[32,8], index: 13, kind: input, shape index: {}]
  %s14 = inlined_call_operand.vmem [shape: f32[1024,8], index: 14, kind: output, shape index: {}]
  %s15 = sld [smem:[#allocation0]]
  $region89: #{model.1} parent=0
    _
  %s17 = ssub.s32 1, %s15
  %s18 = scalar_select 0, %s17, %s15
  loop: start=0, step=1, limit=4
  $region2: #{model.1} parent=0 // loop_pre_header
    _
  $region3: #{model.1} parent=0 // loop_header
    %s20 = sphi 0, %s24
    %p21 = scmp.ge.s32.totalorder %s20, 4
    %s30 = sphi 0, %s32
    %s33 = sphi 0, %s30
    %s34 = sphi 0, %s33
    %s50 = sphi 0, %s34
    %s54 = sphi 0, %s54
    %s56 = sphi 0, %s54
    %s57 = sphi 0, %s56
    %s71 = sphi 0, %s57
    %s75 = sphi 0, %s75
    %s77 = sphi 0, %s75
    %s78 = sphi 0, %s77
    %s92 = sphi 0, %s78
    %s96 = sphi 0, %s96
    %s98 = sphi 0, %s96
    %s99 = sphi 0, %s98
    %s113 = sphi 0, %s99
    %s117 = sphi 0, %s117
    %s119 = sphi 0, %s117
    %s120 = sphi 0, %s119
    %s134 = sphi 0, %s120
    %s138 = sphi 0, %s138
    %s140 = sphi 0, %s138
    %s141 = sphi 0, %s140
    %s155 = sphi 0, %s141
    %s159 = sphi 0, %s159
    %s161 = sphi 0, %s159
    %s162 = sphi 0, %s161
    %s176 = sphi 0, %s162
    %s180 = sphi 0, %s180
    %s182 = sphi 0, %s180
    %s183 = sphi 0, %s182
    %s197 = sphi 0, %s183
    %s201 = sphi 0, %s201
    %s203 = sphi 0, %s201
    %s204 = sphi 0, %s203
    %s218 = sphi 0, %s204
    %s222 = sphi 0, %s222
    %s224 = sphi 0, %s222
    %s225 = sphi 0, %s224
    %s239 = sphi 0, %s225
    %s243 = sphi 0, %s243
    %s245 = sphi 0, %s243
    %s246 = sphi 0, %s245
    %s260 = sphi 0, %s246
    %s264 = sphi 0, %s264
    %s266 = sphi 0, %s264
    %s267 = sphi 0, %s266
    %s281 = sphi 0, %s267
    %s285 = sphi 0, %s285
    %s287 = sphi 0, %s285
    %s288 = sphi 0, %s287
    %s302 = sphi 0, %s288
    %s306 = sphi 0, %s306
    %s308 = sphi 0, %s306
    %s309 = sphi 0, %s308
    %s323 = sphi 0, %s309
    %s329 = sphi 0, %s331
    %s332 = sphi 0, %s329
    %s333 = sphi 0, %s332
    %s349 = sphi 0, %s333
  $region4: #{model.1} parent=0 // loop_header_branch
    %23 = sbr.rel (%p21) target = $region8
  $region5: #{model.1} parent=0 // loop_body
    %s25 = ssub.s32 %s20, 1
    %s26 = ssub.s32 %s20, 2
    %s27 = sadd.s32 %s20, 1
    %s28 = ssub.s32 %s20, %s27
    %p29 = scmp.eq.s32.totalorder %s28, 0
    %s31 = sadd.s32 %s30, 1
    %s32 = scalar_select %p29, %s30, %s31
    %p35 = pneg %p29
    %p36 = scmp.eq.s32.totalorder %s20, 1
    %p37 = por %p35, %p36
    %p38 = scmp.ne.s32.totalorder %s30, %s33
    %p39 = scmp.eq.s32.totalorder %s20, 0
    %p40 = por %p38, %p39
    %p41 = scmp.ne.s32.totalorder %s30, %s33
    %p42 = scmp.eq.s32.totalorder %s25, 1
    %p43 = por %p41, %p42
    %p44 = scmp.ne.s32.totalorder %s33, %s34
    %p45 = scmp.eq.s32.totalorder %s25, 0
    %p46 = por %p44, %p45
    %p47 = scmp.ne.s32.totalorder %s33, %s34
    %p48 = scmp.eq.s32.totalorder %s26, 1
    %p49 = por %p47, %p48
    %p51 = scmp.ne.s32.totalorder %s34, %s50
    %p52 = scmp.eq.s32.totalorder %s26, 0
    %p53 = por %p51, %p52
    %s55 = sadd.s32 %s54, 1
    %p58 = scmp.eq.s32.totalorder %s20, 1
    %p59 = scmp.ne.s32.totalorder %s54, %s56
    %p60 = scmp.eq.s32.totalorder %s20, 0
    %p61 = por %p59, %p60
    %p62 = scmp.ne.s32.totalorder %s54, %s56
    %p63 = scmp.eq.s32.totalorder %s25, 1
    %p64 = por %p62, %p63
    %p65 = scmp.ne.s32.totalorder %s56, %s57
    %p66 = scmp.eq.s32.totalorder %s25, 0
    %p67 = por %p65, %p66
    %p68 = scmp.ne.s32.totalorder %s56, %s57
    %p69 = scmp.eq.s32.totalorder %s26, 1
    %p70 = por %p68, %p69
    %p72 = scmp.ne.s32.totalorder %s57, %s71
    %p73 = scmp.eq.s32.totalorder %s26, 0
    %p74 = por %p72, %p73
    %s76 = sadd.s32 %s75, 1
    %p79 = scmp.eq.s32.totalorder %s20, 1
    %p80 = scmp.ne.s32.totalorder %s75, %s77
    %p81 = scmp.eq.s32.totalorder %s20, 0
    %p82 = por %p80, %p81
    %p83 = scmp.ne.s32.totalorder %s75, %s77
    %p84 = scmp.eq.s32.totalorder %s25, 1
    %p85 = por %p83, %p84
    %p86 = scmp.ne.s32.totalorder %s77, %s78
    %p87 = scmp.eq.s32.totalorder %s25, 0
    %p88 = por %p86, %p87
    %p89 = scmp.ne.s32.totalorder %s77, %s78
    %p90 = scmp.eq.s32.totalorder %s26, 1
    %p91 = por %p89, %p90
    %p93 = scmp.ne.s32.totalorder %s78, %s92
    %p94 = scmp.eq.s32.totalorder %s26, 0
    %p95 = por %p93, %p94
    %s97 = sadd.s32 %s96, 1
    %p100 = scmp.eq.s32.totalorder %s20, 1
    %p101 = scmp.ne.s32.totalorder %s96, %s98
    %p102 = scmp.eq.s32.totalorder %s20, 0
    %p103 = por %p101, %p102
    %p104 = scmp.ne.s32.totalorder %s96, %s98
    %p105 = scmp.eq.s32.totalorder %s25, 1
    %p106 = por %p104, %p105
    %p107 = scmp.ne.s32.totalorder %s98, %s99
    %p108 = scmp.eq.s32.totalorder %s25, 0
    %p109 = por %p107, %p108
    %p110 = scmp.ne.s32.totalorder %s98, %s99
    %p111 = scmp.eq.s32.totalorder %s26, 1
    %p112 = por %p110, %p111
    %p114 = scmp.ne.s32.totalorder %s99, %s113
    %p115 = scmp.eq.s32.totalorder %s26, 0
    %p116 = por %p114, %p115
    %s118 = sadd.s32 %s117, 1
    %p121 = scmp.eq.s32.totalorder %s20, 1
    %p122 = scmp.ne.s32.totalorder %s117, %s119
    %p123 = scmp.eq.s32.totalorder %s20, 0
    %p124 = por %p122, %p123
    %p125 = scmp.ne.s32.totalorder %s117, %s119
    %p126 = scmp.eq.s32.totalorder %s25, 1
    %p127 = por %p125, %p126
    %p128 = scmp.ne.s32.totalorder %s119, %s120
    %p129 = scmp.eq.s32.totalorder %s25, 0
    %p130 = por %p128, %p129
    %p131 = scmp.ne.s32.totalorder %s119, %s120
    %p132 = scmp.eq.s32.totalorder %s26, 1
    %p133 = por %p131, %p132
    %p135 = scmp.ne.s32.totalorder %s120, %s134
    %p136 = scmp.eq.s32.totalorder %s26, 0
    %p137 = por %p135, %p136
    %s139 = sadd.s32 %s138, 1
    %p142 = scmp.eq.s32.totalorder %s20, 1
    %p143 = scmp.ne.s32.totalorder %s138, %s140
    %p144 = scmp.eq.s32.totalorder %s20, 0
    %p145 = por %p143, %p144
    %p146 = scmp.ne.s32.totalorder %s138, %s140
    %p147 = scmp.eq.s32.totalorder %s25, 1
    %p148 = por %p146, %p147
    %p149 = scmp.ne.s32.totalorder %s140, %s141
    %p150 = scmp.eq.s32.totalorder %s25, 0
    %p151 = por %p149, %p150
    %p152 = scmp.ne.s32.totalorder %s140, %s141
    %p153 = scmp.eq.s32.totalorder %s26, 1
    %p154 = por %p152, %p153
    %p156 = scmp.ne.s32.totalorder %s141, %s155
    %p157 = scmp.eq.s32.totalorder %s26, 0
    %p158 = por %p156, %p157
    %s160 = sadd.s32 %s159, 1
    %p163 = scmp.eq.s32.totalorder %s20, 1
    %p164 = scmp.ne.s32.totalorder %s159, %s161
    %p165 = scmp.eq.s32.totalorder %s20, 0
    %p166 = por %p164, %p165
    %p167 = scmp.ne.s32.totalorder %s159, %s161
    %p168 = scmp.eq.s32.totalorder %s25, 1
    %p169 = por %p167, %p168
    %p170 = scmp.ne.s32.totalorder %s161, %s162
    %p171 = scmp.eq.s32.totalorder %s25, 0
    %p172 = por %p170, %p171
    %p173 = scmp.ne.s32.totalorder %s161, %s162
    %p174 = scmp.eq.s32.totalorder %s26, 1
    %p175 = por %p173, %p174
    %p177 = scmp.ne.s32.totalorder %s162, %s176
    %p178 = scmp.eq.s32.totalorder %s26, 0
    %p179 = por %p177, %p178
    %s181 = sadd.s32 %s180, 1
    %p184 = scmp.eq.s32.totalorder %s20, 1
    %p185 = scmp.ne.s32.totalorder %s180, %s182
    %p186 = scmp.eq.s32.totalorder %s20, 0
    %p187 = por %p185, %p186
    %p188 = scmp.ne.s32.totalorder %s180, %s182
    %p189 = scmp.eq.s32.totalorder %s25, 1
    %p190 = por %p188, %p189
    %p191 = scmp.ne.s32.totalorder %s182, %s183
    %p192 = scmp.eq.s32.totalorder %s25, 0
    %p193 = por %p191, %p192
    %p194 = scmp.ne.s32.totalorder %s182, %s183
    %p195 = scmp.eq.s32.totalorder %s26, 1
    %p196 = por %p194, %p195
    %p198 = scmp.ne.s32.totalorder %s183, %s197
    %p199 = scmp.eq.s32.totalorder %s26, 0
    %p200 = por %p198, %p199
    %s202 = sadd.s32 %s201, 1
    %p205 = scmp.eq.s32.totalorder %s20, 1
    %p206 = scmp.ne.s32.totalorder %s201, %s203
    %p207 = scmp.eq.s32.totalorder %s20, 0
    %p208 = por %p206, %p207
    %p209 = scmp.ne.s32.totalorder %s201, %s203
    %p210 = scmp.eq.s32.totalorder %s25, 1
    %p211 = por %p209, %p210
    %p212 = scmp.ne.s32.totalorder %s203, %s204
    %p213 = scmp.eq.s32.totalorder %s25, 0
    %p214 = por %p212, %p213
    %p215 = scmp.ne.s32.totalorder %s203, %s204
    %p216 = scmp.eq.s32.totalorder %s26, 1
    %p217 = por %p215, %p216
    %p219 = scmp.ne.s32.totalorder %s204, %s218
    %p220 = scmp.eq.s32.totalorder %s26, 0
    %p221 = por %p219, %p220
    %s223 = sadd.s32 %s222, 1
    %p226 = scmp.eq.s32.totalorder %s20, 1
    %p227 = scmp.ne.s32.totalorder %s222, %s224
    %p228 = scmp.eq.s32.totalorder %s20, 0
    %p229 = por %p227, %p228
    %p230 = scmp.ne.s32.totalorder %s222, %s224
    %p231 = scmp.eq.s32.totalorder %s25, 1
    %p232 = por %p230, %p231
    %p233 = scmp.ne.s32.totalorder %s224, %s225
    %p234 = scmp.eq.s32.totalorder %s25, 0
    %p235 = por %p233, %p234
    %p236 = scmp.ne.s32.totalorder %s224, %s225
    %p237 = scmp.eq.s32.totalorder %s26, 1
    %p238 = por %p236, %p237
    %p240 = scmp.ne.s32.totalorder %s225, %s239
    %p241 = scmp.eq.s32.totalorder %s26, 0
    %p242 = por %p240, %p241
    %s244 = sadd.s32 %s243, 1
    %p247 = scmp.eq.s32.totalorder %s20, 1
    %p248 = scmp.ne.s32.totalorder %s243, %s245
    %p249 = scmp.eq.s32.totalorder %s20, 0
    %p250 = por %p248, %p249
    %p251 = scmp.ne.s32.totalorder %s243, %s245
    %p252 = scmp.eq.s32.totalorder %s25, 1
    %p253 = por %p251, %p252
    %p254 = scmp.ne.s32.totalorder %s245, %s246
    %p255 = scmp.eq.s32.totalorder %s25, 0
    %p256 = por %p254, %p255
    %p257 = scmp.ne.s32.totalorder %s245, %s246
    %p258 = scmp.eq.s32.totalorder %s26, 1
    %p259 = por %p257, %p258
    %p261 = scmp.ne.s32.totalorder %s246, %s260
    %p262 = scmp.eq.s32.totalorder %s26, 0
    %p263 = por %p261, %p262
    %s265 = sadd.s32 %s264, 1
    %p268 = scmp.eq.s32.totalorder %s20, 1
    %p269 = scmp.ne.s32.totalorder %s264, %s266
    %p270 = scmp.eq.s32.totalorder %s20, 0
    %p271 = por %p269, %p270
    %p272 = scmp.ne.s32.totalorder %s264, %s266
    %p273 = scmp.eq.s32.totalorder %s25, 1
    %p274 = por %p272, %p273
    %p275 = scmp.ne.s32.totalorder %s266, %s267
    %p276 = scmp.eq.s32.totalorder %s25, 0
    %p277 = por %p275, %p276
    %p278 = scmp.ne.s32.totalorder %s266, %s267
    %p279 = scmp.eq.s32.totalorder %s26, 1
    %p280 = por %p278, %p279
    %p282 = scmp.ne.s32.totalorder %s267, %s281
    %p283 = scmp.eq.s32.totalorder %s26, 0
    %p284 = por %p282, %p283
    %s286 = sadd.s32 %s285, 1
    %p289 = scmp.eq.s32.totalorder %s20, 1
    %p290 = scmp.ne.s32.totalorder %s285, %s287
    %p291 = scmp.eq.s32.totalorder %s20, 0
    %p292 = por %p290, %p291
    %p293 = scmp.ne.s32.totalorder %s285, %s287
    %p294 = scmp.eq.s32.totalorder %s25, 1
    %p295 = por %p293, %p294
    %p296 = scmp.ne.s32.totalorder %s287, %s288
    %p297 = scmp.eq.s32.totalorder %s25, 0
    %p298 = por %p296, %p297
    %p299 = scmp.ne.s32.totalorder %s287, %s288
    %p300 = scmp.eq.s32.totalorder %s26, 1
    %p301 = por %p299, %p300
    %p303 = scmp.ne.s32.totalorder %s288, %s302
    %p304 = scmp.eq.s32.totalorder %s26, 0
    %p305 = por %p303, %p304
    %s307 = sadd.s32 %s306, 1
    %p310 = scmp.eq.s32.totalorder %s20, 1
    %p311 = scmp.ne.s32.totalorder %s306, %s308
    %p312 = scmp.eq.s32.totalorder %s20, 0
    %p313 = por %p311, %p312
    %p314 = scmp.ne.s32.totalorder %s306, %s308
    %p315 = scmp.eq.s32.totalorder %s25, 1
    %p316 = por %p314, %p315
    %p317 = scmp.ne.s32.totalorder %s308, %s309
    %p318 = scmp.eq.s32.totalorder %s25, 0
    %p319 = por %p317, %p318
    %p320 = scmp.ne.s32.totalorder %s308, %s309
    %p321 = scmp.eq.s32.totalorder %s26, 1
    %p322 = por %p320, %p321
    %p324 = scmp.ne.s32.totalorder %s309, %s323
    %p325 = scmp.eq.s32.totalorder %s26, 0
    %p326 = por %p324, %p325
    %s327 = ssub.s32 %s20, %s27
    %p328 = scmp.eq.s32.totalorder %s327, 0
    %s330 = sadd.s32 %s329, 1
    %s331 = scalar_select %p328, %s329, %s330
    %p334 = pneg %p328
    %p335 = scmp.eq.s32.totalorder %s20, 1
    %p336 = por %p334, %p335
    %p337 = scmp.ne.s32.totalorder %s329, %s332
    %p338 = scmp.eq.s32.totalorder %s20, 0
    %p339 = por %p337, %p338
    %p340 = scmp.ne.s32.totalorder %s329, %s332
    %p341 = scmp.eq.s32.totalorder %s25, 1
    %p342 = por %p340, %p341
    %p343 = scmp.ne.s32.totalorder %s332, %s333
    %p344 = scmp.eq.s32.totalorder %s25, 0
    %p345 = por %p343, %p344
    %p346 = scmp.ne.s32.totalorder %s332, %s333
    %p347 = scmp.eq.s32.totalorder %s26, 1
    %p348 = por %p346, %p347
    %p350 = scmp.ne.s32.totalorder %s333, %s349
    %p351 = scmp.eq.s32.totalorder %s26, 0
    %p352 = por %p350, %p351
    %p353 = scmp.le.s32.totalorder 1, %s20
    %p354 = scmp.lt.s32.totalorder %s20, 3
    %p355 = pnand %p353, %p354
    %p356 = pneg %p355
    // Predicated region
    $region9: #{model.1} parent=5 // pred_check
      _
    $region10: #{model.1} parent=5 // pred_check_branch
      %358 = sbr.rel (%p355) target = $region12
    $region11: #{model.1} parent=5 // pred_region
      %s359 = ssub.s32 %s20, 1
      // Predicated region
      $region13: #{model.1} parent=11 // pred_check
        %p360 = pneg %p67
      $region14: #{model.1} parent=11 // pred_check_branch
        %362 = sbr.rel (%p360) target = $region16
      $region15: #{model.1} parent=11 // pred_region
        _
      $region16: #{model.1} parent=11 // pred_fallthru
        _
      // Predicated region
      $region17: #{model.1} parent=11 // pred_check
        %p363 = pneg %p88
      $region18: #{model.1} parent=11 // pred_check_branch
        %365 = sbr.rel (%p363) target = $region20
      $region19: #{model.1} parent=11 // pred_region
        _
      $region20: #{model.1} parent=11 // pred_fallthru
        _
      // Predicated region
      $region21: #{model.1} parent=11 // pred_check
        %p366 = pneg %p109
      $region22: #{model.1} parent=11 // pred_check_branch
        %368 = sbr.rel (%p366) target = $region24
      $region23: #{model.1} parent=11 // pred_region
        _
      $region24: #{model.1} parent=11 // pred_fallthru
        _
      // Predicated region
      $region25: #{model.1} parent=11 // pred_check
        %p369 = pneg %p130
      $region26: #{model.1} parent=11 // pred_check_branch
        %371 = sbr.rel (%p369) target = $region28
      $region27: #{model.1} parent=11 // pred_region
        _
      $region28: #{model.1} parent=11 // pred_fallthru
        _
      // Predicated region
      $region29: #{model.1} parent=11 // pred_check
        %p372 = pneg %p151
      $region30: #{model.1} parent=11 // pred_check_branch
        %374 = sbr.rel (%p372) target = $region32
      $region31: #{model.1} parent=11 // pred_region
        _
      $region32: #{model.1} parent=11 // pred_fallthru
        _
      // Predicated region
      $region33: #{model.1} parent=11 // pred_check
        %p375 = pneg %p172
      $region34: #{model.1} parent=11 // pred_check_branch
        %377 = sbr.rel (%p375) target = $region36
      $region35: #{model.1} parent=11 // pred_region
        _
      $region36: #{model.1} parent=11 // pred_fallthru
        _
      // Predicated region
      $region37: #{model.1} parent=11 // pred_check
        %p378 = pneg %p193
      $region38: #{model.1} parent=11 // pred_check_branch
        %380 = sbr.rel (%p378) target = $region40
      $region39: #{model.1} parent=11 // pred_region
        _
      $region40: #{model.1} parent=11 // pred_fallthru
        _
      // Predicated region
      $region41: #{model.1} parent=11 // pred_check
        %p381 = pneg %p214
      $region42: #{model.1} parent=11 // pred_check_branch
        %383 = sbr.rel (%p381) target = $region44
      $region43: #{model.1} parent=11 // pred_region
        _
      $region44: #{model.1} parent=11 // pred_fallthru
        _
      // Predicated region
      $region45: #{model.1} parent=11 // pred_check
        %p384 = pneg %p235
      $region46: #{model.1} parent=11 // pred_check_branch
        %386 = sbr.rel (%p384) target = $region48
      $region47: #{model.1} parent=11 // pred_region
        _
      $region48: #{model.1} parent=11 // pred_fallthru
        _
      // Predicated region
      $region49: #{model.1} parent=11 // pred_check
        %p387 = pneg %p256
      $region50: #{model.1} parent=11 // pred_check_branch
        %389 = sbr.rel (%p387) target = $region52
      $region51: #{model.1} parent=11 // pred_region
        _
      $region52: #{model.1} parent=11 // pred_fallthru
        _
      // Predicated region
      $region53: #{model.1} parent=11 // pred_check
        %p390 = pneg %p277
      $region54: #{model.1} parent=11 // pred_check_branch
        %392 = sbr.rel (%p390) target = $region56
      $region55: #{model.1} parent=11 // pred_region
        _
      $region56: #{model.1} parent=11 // pred_fallthru
        _
      // Predicated region
      $region57: #{model.1} parent=11 // pred_check
        %p393 = pneg %p298
      $region58: #{model.1} parent=11 // pred_check_branch
        %395 = sbr.rel (%p393) target = $region60
      $region59: #{model.1} parent=11 // pred_region
        _
      $region60: #{model.1} parent=11 // pred_fallthru
        _
      // Predicated region
      $region61: #{model.1} parent=11 // pred_check
        %p396 = pneg %p319
      $region62: #{model.1} parent=11 // pred_check_branch
        %398 = sbr.rel (%p396) target = $region64
      $region63: #{model.1} parent=11 // pred_region
        _
      $region64: #{model.1} parent=11 // pred_fallthru
        _
    $region12: #{model.1} parent=5 // pred_fallthru
      _
    %p399 = scmp.lt.s32.totalorder %s20, 2
    // Predicated region
    $region65: #{model.1} parent=5 // pred_check
      %p400 = pneg %p399
    $region66: #{model.1} parent=5 // pred_check_branch
      %402 = sbr.rel (%p400) target = $region68
    $region67: #{model.1} parent=5 // pred_region
      // Predicated region
      $region69: #{model.1} parent=67 // pred_check
        %p403 = pneg %p40
      $region70: #{model.1} parent=67 // pred_check_branch
        %405 = sbr.rel (%p403) target = $region72
      $region71: #{model.1} parent=67 // pred_region
        %s406 = smul.u32 64, %s20
        %p407 = scmp.lt.s32.totalorder %s406, 127
        %s408 = scalar_select %p407, %s406, 127
        %s409 = smul.addr %s408, 8
        %s410 = scalar_lea.vmem %s0, %s409
        %s411 = smul.u32 64, %s20
      $region72: #{model.1} parent=67 // pred_fallthru
        _
    $region68: #{model.1} parent=5 // pred_fallthru
      _
    %p412 = scmp.le.s32.totalorder 1, %s20
    %p413 = scmp.lt.s32.totalorder %s20, 3
    %p414 = pnand %p412, %p413
    %p415 = pneg %p414
    // Predicated region
    $region73: #{model.1} parent=5 // pred_check
      _
    $region74: #{model.1} parent=5 // pred_check_branch
      %417 = sbr.rel (%p414) target = $region76
    $region75: #{model.1} parent=5 // pred_region
      %s418 = ssub.s32 %s20, 1
      %s419 = smul.u32 64, %s25
      %p420 = scmp.lt.s32.totalorder %s419, 127
      %s421 = scalar_select %p420, %s419, 127
      %s422 = smul.addr %s421, 8
      %s423 = scalar_lea.vmem %s0, %s422
      %p424 = pneg %p46
      %p425 = pneg %p43
      %p426 = pneg %p67
      %p427 = pneg %p64
      %p428 = pneg %p88
      %p429 = pneg %p85
      %p430 = pneg %p109
      %p431 = pneg %p106
      %p432 = pneg %p130
      %p433 = pneg %p127
      %p434 = pneg %p151
      %p435 = pneg %p148
      %p436 = pneg %p172
      %p437 = pneg %p169
      %p438 = pneg %p193
      %p439 = pneg %p190
      %p440 = pneg %p214
      %p441 = pneg %p211
      %p442 = pneg %p235
      %p443 = pneg %p232
      %p444 = pneg %p256
      %p445 = pneg %p253
      %p446 = pneg %p277
      %p447 = pneg %p274
      %p448 = pneg %p298
      %p449 = pneg %p295
      %p450 = pneg %p319
      %p451 = pneg %p316
      %p452 = pneg %p345
      %p453 = pneg %p342
      %s454 = smul.u32 64, %s25
      %p455 = scmp.lt.s32.totalorder %s454, 127
      %s456 = scalar_select %p455, %s454, 127
      %s457 = smul.addr %s456, 8
      %s458 = scalar_lea.vmem %s14, %s457
      %s459 = smul.u32 64, %s25
      %p460 = scmp.lt.s32.totalorder %s459, 127
      %s461 = scalar_select %p460, %s459, 127
      %s462 = smul.addr %s461, 8
      %s463 = scalar_lea.vmem %s0, %s462
      %s464 = smul.u32 64, %s25
      %s465 = smul.u32 64, %s25
      %p466 = scmp.lt.s32.totalorder %s465, 127
      %s467 = scalar_select %p466, %s465, 127
      %s468 = smul.addr %s467, 8
      %s469 = scalar_lea.vmem %s14, %s468
      %s470 = smul.u32 64, %s25
      %v472 = vld [vmem:[%s463] sm:$0xff]
      %v473 = vld [vmem:[%s463 + $0x8] sm:$0xff]
      %v474 = vld [vmem:[%s463 + $0x10] sm:$0xff]
      %v475 = vld [vmem:[%s463 + $0x18] sm:$0xff]
      %v476 = vld [vmem:[%s463 + $0x20] sm:$0xff]
      %v477 = vld [vmem:[%s463 + $0x28] sm:$0xff]
      %v478 = vld [vmem:[%s463 + $0x30] sm:$0xff]
      %v479 = vld [vmem:[%s463 + $0x38] sm:$0xff]
      %v480 = vld [vmem:[%s463 + $0x40] sm:$0xff]
      %v481 = vld [vmem:[%s463 + $0x48] sm:$0xff]
      %v482 = vld [vmem:[%s463 + $0x50] sm:$0xff]
      %v483 = vld [vmem:[%s463 + $0x58] sm:$0xff]
      %v484 = vld [vmem:[%s463 + $0x60] sm:$0xff]
      %v485 = vld [vmem:[%s463 + $0x68] sm:$0xff]
      %v486 = vld [vmem:[%s463 + $0x70] sm:$0xff]
      %v487 = vld [vmem:[%s463 + $0x78] sm:$0xff]
      %v488 = vld [vmem:[%s463 + $0x80] sm:$0xff]
      %v489 = vld [vmem:[%s463 + $0x88] sm:$0xff]
      %v490 = vld [vmem:[%s463 + $0x90] sm:$0xff]
      %v491 = vld [vmem:[%s463 + $0x98] sm:$0xff]
      %v492 = vld [vmem:[%s463 + $0xa0] sm:$0xff]
      %v493 = vld [vmem:[%s463 + $0xa8] sm:$0xff]
      %v494 = vld [vmem:[%s463 + $0xb0] sm:$0xff]
      %v495 = vld [vmem:[%s463 + $0xb8] sm:$0xff]
      %v496 = vld [vmem:[%s463 + $0xc0] sm:$0xff]
      %v497 = vld [vmem:[%s463 + $0xc8] sm:$0xff]
      %v498 = vld [vmem:[%s463 + $0xd0] sm:$0xff]
      %v499 = vld [vmem:[%s463 + $0xd8] sm:$0xff]
      %v500 = vld [vmem:[%s463 + $0xe0] sm:$0xff]
      %v501 = vld [vmem:[%s463 + $0xe8] sm:$0xff]
      %v502 = vld [vmem:[%s463 + $0xf0] sm:$0xff]
      %v503 = vld [vmem:[%s463 + $0xf8] sm:$0xff]
      %v504 = vld [vmem:[%s463 + $0x100] sm:$0xff]
      %v505 = vld [vmem:[%s463 + $0x108] sm:$0xff]
      %v506 = vld [vmem:[%s463 + $0x110] sm:$0xff]
      %v507 = vld [vmem:[%s463 + $0x118] sm:$0xff]
      %v508 = vld [vmem:[%s463 + $0x120] sm:$0xff]
      %v509 = vld [vmem:[%s463 + $0x128] sm:$0xff]
      %v510 = vld [vmem:[%s463 + $0x130] sm:$0xff]
      %v511 = vld [vmem:[%s463 + $0x138] sm:$0xff]
      %v512 = vld [vmem:[%s463 + $0x140] sm:$0xff]
      %v513 = vld [vmem:[%s463 + $0x148] sm:$0xff]
      %v514 = vld [vmem:[%s463 + $0x150] sm:$0xff]
      %v515 = vld [vmem:[%s463 + $0x158] sm:$0xff]
      %v516 = vld [vmem:[%s463 + $0x160] sm:$0xff]
      %v517 = vld [vmem:[%s463 + $0x168] sm:$0xff]
      %v518 = vld [vmem:[%s463 + $0x170] sm:$0xff]
      %v519 = vld [vmem:[%s463 + $0x178] sm:$0xff]
      %v520 = vld [vmem:[%s463 + $0x180] sm:$0xff]
      %v521 = vld [vmem:[%s463 + $0x188] sm:$0xff]
      %v522 = vld [vmem:[%s463 + $0x190] sm:$0xff]
      %v523 = vld [vmem:[%s463 + $0x198] sm:$0xff]
      %v524 = vld [vmem:[%s463 + $0x1a0] sm:$0xff]
      %v525 = vld [vmem:[%s463 + $0x1a8] sm:$0xff]
      %v526 = vld [vmem:[%s463 + $0x1b0] sm:$0xff]
      %v527 = vld [vmem:[%s463 + $0x1b8] sm:$0xff]
      %v528 = vld [vmem:[%s463 + $0x1c0] sm:$0xff]
      %v529 = vld [vmem:[%s463 + $0x1c8] sm:$0xff]
      %v530 = vld [vmem:[%s463 + $0x1d0] sm:$0xff]
      %v531 = vld [vmem:[%s463 + $0x1d8] sm:$0xff]
      %v532 = vld [vmem:[%s463 + $0x1e0] sm:$0xff]
      %v533 = vld [vmem:[%s463 + $0x1e8] sm:$0xff]
      %v534 = vld [vmem:[%s463 + $0x1f0] sm:$0xff]
      %v535 = vld [vmem:[%s463 + $0x1f8] sm:$0xff]
      %v536 = vpack.c.bf16 %v473, %v472
      %v537 = vpack.c.bf16 %v475, %v474
      %v538 = vpack.c.bf16 %v477, %v476
      %v539 = vpack.c.bf16 %v479, %v478
      %v540 = vpack.c.bf16 %v481, %v480
      %v541 = vpack.c.bf16 %v483, %v482
      %v542 = vpack.c.bf16 %v485, %v484
      %v543 = vpack.c.bf16 %v487, %v486
      %v544 = vpack.c.bf16 %v489, %v488
      %v545 = vpack.c.bf16 %v491, %v490
      %v546 = vpack.c.bf16 %v493, %v492
      %v547 = vpack.c.bf16 %v495, %v494
      %v548 = vpack.c.bf16 %v497, %v496
      %v549 = vpack.c.bf16 %v499, %v498
      %v550 = vpack.c.bf16 %v501, %v500
      %v551 = vpack.c.bf16 %v503, %v502
      %v552 = vpack.c.bf16 %v505, %v504
      %v553 = vpack.c.bf16 %v507, %v506
      %v554 = vpack.c.bf16 %v509, %v508
      %v555 = vpack.c.bf16 %v511, %v510
      %v556 = vpack.c.bf16 %v513, %v512
      %v557 = vpack.c.bf16 %v515, %v514
      %v558 = vpack.c.bf16 %v517, %v516
      %v559 = vpack.c.bf16 %v519, %v518
      %v560 = vpack.c.bf16 %v521, %v520
      %v561 = vpack.c.bf16 %v523, %v522
      %v562 = vpack.c.bf16 %v525, %v524
      %v563 = vpack.c.bf16 %v527, %v526
      %v564 = vpack.c.bf16 %v529, %v528
      %v565 = vpack.c.bf16 %v531, %v530
      %v566 = vpack.c.bf16 %v533, %v532
      %v567 = vpack.c.bf16 %v535, %v534
      %v568 = vld [vmem:[%s1] sm:$0xf]
      %v569 = vld [vmem:[%s1 + $0x4] sm:$0xf]
      %v570 = vld [vmem:[%s1 + $0x8] sm:$0xf]
      %v571 = vld [vmem:[%s1 + $0xc] sm:$0xf]
      %v576 = vunpack.c.l.b16 %v568
      %v577 = vunpack.c.l.b16 %v569
      %v578 = vunpack.c.l.b16 %v570
      %v579 = vunpack.c.l.b16 %v571
      %v580 = vpack.c.b16 %v577, %v576
      %v581 = vpack.c.b16 %v579, %v578
      %vm582 = vcmask 130048
      %v584 = vsel %vm582, %v580, 0
      %v587 = vsel %vm582, %v581, 0
      %v590 = vsel %vm582, %v536, 0
      %v593 = vsel %vm582, %v537, 0
      %v596 = vsel %vm582, %v538, 0
      %v599 = vsel %vm582, %v539, 0
      %v602 = vsel %vm582, %v540, 0
      %v605 = vsel %vm582, %v541, 0
      %v608 = vsel %vm582, %v542, 0
      %v611 = vsel %vm582, %v543, 0
      %v614 = vsel %vm582, %v544, 0
      %v617 = vsel %vm582, %v545, 0
      %v620 = vsel %vm582, %v546, 0
      %v623 = vsel %vm582, %v547, 0
      %v626 = vsel %vm582, %v548, 0
      %v629 = vsel %vm582, %v549, 0
      %v632 = vsel %vm582, %v550, 0
      %v635 = vsel %vm582, %v551, 0
      %v638 = vsel %vm582, %v552, 0
      %v641 = vsel %vm582, %v553, 0
      %v644 = vsel %vm582, %v554, 0
      %v647 = vsel %vm582, %v555, 0
      %v650 = vsel %vm582, %v556, 0
      %v653 = vsel %vm582, %v557, 0
      %v656 = vsel %vm582, %v558, 0
      %v659 = vsel %vm582, %v559, 0
      %v662 = vsel %vm582, %v560, 0
      %v665 = vsel %vm582, %v561, 0
      %v668 = vsel %vm582, %v562, 0
      %v671 = vsel %vm582, %v563, 0
      %v674 = vsel %vm582, %v564, 0
      %v677 = vsel %vm582, %v565, 0
      %v680 = vsel %vm582, %v566, 0
      %v683 = vsel %vm582, %v567, 0
      %685 = vmatprep.subr.bf16.mxu0 0
      %686 = vmatpush1.bf16.xpose.msra.mxu0 %v611
      %687 = vmatprep.subr.bf16.mxu0 0
      %688 = vmatpush1.bf16.xpose.msra.mxu0 %v608
      %689 = vmatprep.subr.bf16.mxu0 0
      %690 = vmatpush1.bf16.xpose.msra.mxu0 %v605
      %691 = vmatprep.subr.bf16.mxu0 0
      %692 = vmatpush1.bf16.xpose.msra.mxu0 %v602
      %693 = vmatprep.subr.bf16.mxu0 0
      %694 = vmatpush1.bf16.xpose.msra.mxu0 %v599
      %695 = vmatprep.subr.bf16.mxu0 0
      %696 = vmatpush1.bf16.xpose.msra.mxu0 %v596
      %697 = vmatprep.subr.bf16.mxu0 0
      %698 = vmatpush1.bf16.xpose.msra.mxu0 %v593
      %699 = vmatprep.subr.bf16.mxu0 0
      %700 = vmatpush1.bf16.xpose.msra.mxu0 %v590
      %701 = vmatprep.subr.bf16.mxu0 0
      %702 = vmatpush2.bf16.xpose.msra.mxu0 %v635
      %703 = vmatprep.subr.bf16.mxu0 0
      %704 = vmatpush2.bf16.xpose.msra.mxu0 %v632
      %705 = vmatprep.subr.bf16.mxu0 0
      %706 = vmatpush2.bf16.xpose.msra.mxu0 %v629
      %707 = vmatprep.subr.bf16.mxu0 0
      %708 = vmatpush2.bf16.xpose.msra.mxu0 %v626
      %709 = vmatprep.subr.bf16.mxu0 0
      %710 = vmatpush2.bf16.xpose.msra.mxu0 %v623
      %711 = vmatprep.subr.bf16.mxu0 0
      %712 = vmatpush2.bf16.xpose.msra.mxu0 %v620
      %713 = vmatprep.subr.bf16.mxu0 0
      %714 = vmatpush2.bf16.xpose.msra.mxu0 %v617
      %715 = vmatprep.subr.bf16.mxu0 0
      %716 = vmatpush2.bf16.xpose.msra.mxu0 %v614
      %717 = vmatprep.mubr.bf16.mxu0 0
      %718 = vmatmul.mubr.bf16.gmra.mxu0 %v584
      %v719 = vpop.f32.mrf.mxu0
      %v720 = vadd.f32 0.0, %v719
      %v721 = vpop.f32.mrf.mxu0
      %v722 = vadd.f32 0.0, %v721
      %v723 = vpop.f32.mrf.mxu0
      %v724 = vadd.f32 0.0, %v723
      %v725 = vpop.f32.mrf.mxu0
      %v726 = vadd.f32 0.0, %v725
      %727 = vmatprep.mubr.bf16.mxu0 0
      %728 = vmatmul.mubr.bf16.gmra.mxu0 %v587
      %v729 = vpop.f32.mrf.mxu0
      %v730 = vadd.f32 0.0, %v729
      %v731 = vpop.f32.mrf.mxu0
      %v732 = vadd.f32 0.0, %v731
      %v733 = vpop.f32.mrf.mxu0
      %v734 = vadd.f32 0.0, %v733
      %v735 = vpop.f32.mrf.mxu0
      %v736 = vadd.f32 0.0, %v735
      %737 = vdwg.mxu0
      %738 = vmatprep.subr.bf16.mxu0 0
      %739 = vmatpush1.bf16.xpose.msra.mxu0 %v659
      %740 = vmatprep.subr.bf16.mxu0 0
      %741 = vmatpush1.bf16.xpose.msra.mxu0 %v656
      %742 = vmatprep.subr.bf16.mxu0 0
      %743 = vmatpush1.bf16.xpose.msra.mxu0 %v653
      %744 = vmatprep.subr.bf16.mxu0 0
      %745 = vmatpush1.bf16.xpose.msra.mxu0 %v650
      %746 = vmatprep.subr.bf16.mxu0 0
      %747 = vmatpush1.bf16.xpose.msra.mxu0 %v647
      %748 = vmatprep.subr.bf16.mxu0 0
      %749 = vmatpush1.bf16.xpose.msra.mxu0 %v644
      %750 = vmatprep.subr.bf16.mxu0 0
      %751 = vmatpush1.bf16.xpose.msra.mxu0 %v641
      %752 = vmatprep.subr.bf16.mxu0 0
      %753 = vmatpush1.bf16.xpose.msra.mxu0 %v638
      %754 = vmatprep.subr.bf16.mxu0 0
      %755 = vmatpush2.bf16.xpose.msra.mxu0 %v683
      %756 = vmatprep.subr.bf16.mxu0 0
      %757 = vmatpush2.bf16.xpose.msra.mxu0 %v680
      %758 = vmatprep.subr.bf16.mxu0 0
      %759 = vmatpush2.bf16.xpose.msra.mxu0 %v677
      %760 = vmatprep.subr.bf16.mxu0 0
      %761 = vmatpush2.bf16.xpose.msra.mxu0 %v674
      %762 = vmatprep.subr.bf16.mxu0 0
      %763 = vmatpush2.bf16.xpose.msra.mxu0 %v671
      %764 = vmatprep.subr.bf16.mxu0 0
      %765 = vmatpush2.bf16.xpose.msra.mxu0 %v668
      %766 = vmatprep.subr.bf16.mxu0 0
      %767 = vmatpush2.bf16.xpose.msra.mxu0 %v665
      %768 = vmatprep.subr.bf16.mxu0 0
      %769 = vmatpush2.bf16.xpose.msra.mxu0 %v662
      %770 = vmatprep.mubr.bf16.mxu0 0
      %771 = vmatmul.mubr.bf16.gmra.mxu0 %v584
      %v772 = vpop.f32.mrf.mxu0
      %v773 = vadd.f32 0.0, %v772
      %v774 = vpop.f32.mrf.mxu0
      %v775 = vadd.f32 0.0, %v774
      %v776 = vpop.f32.mrf.mxu0
      %v777 = vadd.f32 0.0, %v776
      %v778 = vpop.f32.mrf.mxu0
      %v779 = vadd.f32 0.0, %v778
      %780 = vmatprep.mubr.bf16.mxu0 0
      %781 = vmatmul.mubr.bf16.gmra.mxu0 %v587
      %v782 = vpop.f32.mrf.mxu0
      %v783 = vadd.f32 0.0, %v782
      %v784 = vpop.f32.mrf.mxu0
      %v785 = vadd.f32 0.0, %v784
      %v786 = vpop.f32.mrf.mxu0
      %v787 = vadd.f32 0.0, %v786
      %v788 = vpop.f32.mrf.mxu0
      %v789 = vadd.f32 0.0, %v788
      %790 = vdwg.mxu0
      %v791 = vld [vmem:[%s2] sm:$0xf]
      %v792 = vld [vmem:[%s2 + $0x4] sm:$0xf]
      %v793 = vld [vmem:[%s2 + $0x8] sm:$0xf]
      %v794 = vld [vmem:[%s2 + $0xc] sm:$0xf]
      %v795 = vld [vmem:[%s2 + $0x10] sm:$0xf]
      %v796 = vld [vmem:[%s2 + $0x14] sm:$0xf]
      %v797 = vld [vmem:[%s2 + $0x18] sm:$0xf]
      %v798 = vld [vmem:[%s2 + $0x1c] sm:$0xf]
      %v799 = vld [vmem:[%s2 + $0x20] sm:$0xf]
      %v800 = vld [vmem:[%s2 + $0x24] sm:$0xf]
      %v801 = vld [vmem:[%s2 + $0x28] sm:$0xf]
      %v802 = vld [vmem:[%s2 + $0x2c] sm:$0xf]
      %v803 = vld [vmem:[%s2 + $0x30] sm:$0xf]
      %v804 = vld [vmem:[%s2 + $0x34] sm:$0xf]
      %v805 = vld [vmem:[%s2 + $0x38] sm:$0xf]
      %v806 = vld [vmem:[%s2 + $0x3c] sm:$0xf]
      %v807 = vpack.c.bf16 %v724, %v720
      %v808 = vpack.c.bf16 %v726, %v722
      %v809 = vpack.c.bf16 %v777, %v773
      %v810 = vpack.c.bf16 %v779, %v775
      %v827 = vunpack.c.l.b16 %v791
      %v828 = vunpack.c.l.b16 %v792
      %v829 = vunpack.c.l.b16 %v793
      %v830 = vunpack.c.l.b16 %v794
      %v831 = vunpack.c.l.b16 %v795
      %v832 = vunpack.c.l.b16 %v796
      %v833 = vunpack.c.l.b16 %v797
      %v834 = vunpack.c.l.b16 %v798
      %v835 = vunpack.c.l.b16 %v799
      %v836 = vunpack.c.l.b16 %v800
      %v837 = vunpack.c.l.b16 %v801
      %v838 = vunpack.c.l.b16 %v802
      %v839 = vunpack.c.l.b16 %v803
      %v840 = vunpack.c.l.b16 %v804
      %v841 = vunpack.c.l.b16 %v805
      %v842 = vunpack.c.l.b16 %v806
      %v843 = vpack.c.b16 %v828, %v827
      %v844 = vpack.c.b16 %v830, %v829
      %v845 = vpack.c.b16 %v832, %v831
      %v846 = vpack.c.b16 %v834, %v833
      %v847 = vpack.c.b16 %v836, %v835
      %v848 = vpack.c.b16 %v838, %v837
      %v849 = vpack.c.b16 %v840, %v839
      %v850 = vpack.c.b16 %v842, %v841
      %v852 = vsel %vm582, %v843, 0
      %v855 = vsel %vm582, %v844, 0
      %v858 = vsel %vm582, %v845, 0
      %v861 = vsel %vm582, %v846, 0
      %v864 = vsel %vm582, %v847, 0
      %v867 = vsel %vm582, %v848, 0
      %v870 = vsel %vm582, %v849, 0
      %v873 = vsel %vm582, %v850, 0
      %875 = vmatprep.subr.bf16.mxu0 0
      %876 = vmatpush1.bf16.msra.mxu0 0
      %877 = vmatprep.subr.bf16.mxu0 0
      %878 = vmatpush1.bf16.msra.mxu0 0
      %879 = vmatprep.subr.bf16.mxu0 0
      %880 = vmatpush1.bf16.msra.mxu0 0
      %881 = vmatprep.subr.bf16.mxu0 0
      %882 = vmatpush1.bf16.msra.mxu0 0
      %883 = vmatprep.subr.bf16.mxu0 0
      %884 = vmatpush1.bf16.msra.mxu0 0
      %885 = vmatprep.subr.bf16.mxu0 0
      %886 = vmatpush1.bf16.msra.mxu0 0
      %887 = vmatprep.subr.bf16.mxu0 0
      %888 = vmatpush1.bf16.msra.mxu0 0
      %889 = vmatprep.subr.bf16.mxu0 %v808
      %890 = vmatpush1.bf16.msra.mxu0 %v807
      %891 = vmatprep.subr.bf16.mxu0 0
      %892 = vmatpush2.bf16.msra.mxu0 0
      %893 = vmatprep.subr.bf16.mxu0 0
      %894 = vmatpush2.bf16.msra.mxu0 0
      %895 = vmatprep.subr.bf16.mxu0 0
      %896 = vmatpush2.bf16.msra.mxu0 0
      %897 = vmatprep.subr.bf16.mxu0 0
      %898 = vmatpush2.bf16.msra.mxu0 0
      %899 = vmatprep.subr.bf16.mxu0 0
      %900 = vmatpush2.bf16.msra.mxu0 0
      %901 = vmatprep.subr.bf16.mxu0 0
      %902 = vmatpush2.bf16.msra.mxu0 0
      %903 = vmatprep.subr.bf16.mxu0 0
      %904 = vmatpush2.bf16.msra.mxu0 0
      %905 = vmatprep.subr.bf16.mxu0 0
      %906 = vmatpush2.bf16.msra.mxu0 0
      %907 = vmatprep.mubr.bf16.mxu0 0
      %908 = vmatmul.mubr.bf16.gmra.mxu0 %v852
      %v909 = vpop.f32.mrf.mxu0
      %v910 = vadd.f32 0.0, %v909
      %v911 = vpop.f32.mrf.mxu0
      %v912 = vadd.f32 0.0, %v911
      %v913 = vpop.f32.mrf.mxu0
      %v914 = vadd.f32 0.0, %v913
      %v915 = vpop.f32.mrf.mxu0
      %v916 = vadd.f32 0.0, %v915
      %917 = vmatprep.mubr.bf16.mxu0 0
      %918 = vmatmul.mubr.bf16.gmra.mxu0 %v855
      %v919 = vpop.f32.mrf.mxu0
      %v920 = vadd.f32 0.0, %v919
      %v921 = vpop.f32.mrf.mxu0
      %v922 = vadd.f32 0.0, %v921
      %v923 = vpop.f32.mrf.mxu0
      %v924 = vadd.f32 0.0, %v923
      %v925 = vpop.f32.mrf.mxu0
      %v926 = vadd.f32 0.0, %v925
      %927 = vmatprep.mubr.bf16.mxu0 0
      %928 = vmatmul.mubr.bf16.gmra.mxu0 %v858
      %v929 = vpop.f32.mrf.mxu0
      %v930 = vadd.f32 0.0, %v929
      %v931 = vpop.f32.mrf.mxu0
      %v932 = vadd.f32 0.0, %v931
      %v933 = vpop.f32.mrf.mxu0
      %v934 = vadd.f32 0.0, %v933
      %v935 = vpop.f32.mrf.mxu0
      %v936 = vadd.f32 0.0, %v935
      %937 = vmatprep.mubr.bf16.mxu0 0
      %938 = vmatmul.mubr.bf16.gmra.mxu0 %v861
      %v939 = vpop.f32.mrf.mxu0
      %v940 = vadd.f32 0.0, %v939
      %v941 = vpop.f32.mrf.mxu0
      %v942 = vadd.f32 0.0, %v941
      %v943 = vpop.f32.mrf.mxu0
      %v944 = vadd.f32 0.0, %v943
      %v945 = vpop.f32.mrf.mxu0
      %v946 = vadd.f32 0.0, %v945
      %947 = vmatprep.mubr.bf16.mxu0 0
      %948 = vmatmul.mubr.bf16.gmra.mxu0 %v864
      %v949 = vpop.f32.mrf.mxu0
      %v950 = vadd.f32 0.0, %v949
      %v951 = vpop.f32.mrf.mxu0
      %v952 = vadd.f32 0.0, %v951
      %v953 = vpop.f32.mrf.mxu0
      %v954 = vadd.f32 0.0, %v953
      %v955 = vpop.f32.mrf.mxu0
      %v956 = vadd.f32 0.0, %v955
      %957 = vmatprep.mubr.bf16.mxu0 0
      %958 = vmatmul.mubr.bf16.gmra.mxu0 %v867
      %v959 = vpop.f32.mrf.mxu0
      %v960 = vadd.f32 0.0, %v959
      %v961 = vpop.f32.mrf.mxu0
      %v962 = vadd.f32 0.0, %v961
      %v963 = vpop.f32.mrf.mxu0
      %v964 = vadd.f32 0.0, %v963
      %v965 = vpop.f32.mrf.mxu0
      %v966 = vadd.f32 0.0, %v965
      %967 = vmatprep.mubr.bf16.mxu0 0
      %968 = vmatmul.mubr.bf16.gmra.mxu0 %v870
      %v969 = vpop.f32.mrf.mxu0
      %v970 = vadd.f32 0.0, %v969
      %v971 = vpop.f32.mrf.mxu0
      %v972 = vadd.f32 0.0, %v971
      %v973 = vpop.f32.mrf.mxu0
      %v974 = vadd.f32 0.0, %v973
      %v975 = vpop.f32.mrf.mxu0
      %v976 = vadd.f32 0.0, %v975
      %977 = vmatprep.mubr.bf16.mxu0 0
      %978 = vmatmul.mubr.bf16.gmra.mxu0 %v873
      %v979 = vpop.f32.mrf.mxu0
      %v980 = vadd.f32 0.0, %v979
      %v981 = vpop.f32.mrf.mxu0
      %v982 = vadd.f32 0.0, %v981
      %v983 = vpop.f32.mrf.mxu0
      %v984 = vadd.f32 0.0, %v983
      %v985 = vpop.f32.mrf.mxu0
      %v986 = vadd.f32 0.0, %v985
      %987 = vdwg.mxu0
      %988 = vmatprep.subr.bf16.mxu0 0
      %989 = vmatpush1.bf16.msra.mxu0 0
      %990 = vmatprep.subr.bf16.mxu0 0
      %991 = vmatpush1.bf16.msra.mxu0 0
      %992 = vmatprep.subr.bf16.mxu0 0
      %993 = vmatpush1.bf16.msra.mxu0 0
      %994 = vmatprep.subr.bf16.mxu0 0
      %995 = vmatpush1.bf16.msra.mxu0 0
      %996 = vmatprep.subr.bf16.mxu0 0
      %997 = vmatpush1.bf16.msra.mxu0 0
      %998 = vmatprep.subr.bf16.mxu0 0
      %999 = vmatpush1.bf16.msra.mxu0 0
      %1000 = vmatprep.subr.bf16.mxu0 0
      %1001 = vmatpush1.bf16.msra.mxu0 0
      %1002 = vmatprep.subr.bf16.mxu0 %v810
      %1003 = vmatpush1.bf16.msra.mxu0 %v809
      %1004 = vmatprep.subr.bf16.mxu0 0
      %1005 = vmatpush2.bf16.msra.mxu0 0
      %1006 = vmatprep.subr.bf16.mxu0 0
      %1007 = vmatpush2.bf16.msra.mxu0 0
      %1008 = vmatprep.subr.bf16.mxu0 0
      %1009 = vmatpush2.bf16.msra.mxu0 0
      %1010 = vmatprep.subr.bf16.mxu0 0
      %1011 = vmatpush2.bf16.msra.mxu0 0
      %1012 = vmatprep.subr.bf16.mxu0 0
      %1013 = vmatpush2.bf16.msra.mxu0 0
      %1014 = vmatprep.subr.bf16.mxu0 0
      %1015 = vmatpush2.bf16.msra.mxu0 0
      %1016 = vmatprep.subr.bf16.mxu0 0
      %1017 = vmatpush2.bf16.msra.mxu0 0
      %1018 = vmatprep.subr.bf16.mxu0 0
      %1019 = vmatpush2.bf16.msra.mxu0 0
      %1020 = vmatprep.mubr.bf16.mxu0 0
      %1021 = vmatmul.mubr.bf16.gmra.mxu0 %v852
      %v1022 = vpop.f32.mrf.mxu0
      %v1023 = vadd.f32 0.0, %v1022
      %v1024 = vpop.f32.mrf.mxu0
      %v1025 = vadd.f32 0.0, %v1024
      %v1026 = vpop.f32.mrf.mxu0
      %v1027 = vadd.f32 0.0, %v1026
      %v1028 = vpop.f32.mrf.mxu0
      %v1029 = vadd.f32 0.0, %v1028
      %1030 = vmatprep.mubr.bf16.mxu0 0
      %1031 = vmatmul.mubr.bf16.gmra.mxu0 %v855
      %v1032 = vpop.f32.mrf.mxu0
      %v1033 = vadd.f32 0.0, %v1032
      %v1034 = vpop.f32.mrf.mxu0
      %v1035 = vadd.f32 0.0, %v1034
      %v1036 = vpop.f32.mrf.mxu0
      %v1037 = vadd.f32 0.0, %v1036
      %v1038 = vpop.f32.mrf.mxu0
      %v1039 = vadd.f32 0.0, %v1038
      %1040 = vmatprep.mubr.bf16.mxu0 0
      %1041 = vmatmul.mubr.bf16.gmra.mxu0 %v858
      %v1042 = vpop.f32.mrf.mxu0
      %v1043 = vadd.f32 0.0, %v1042
      %v1044 = vpop.f32.mrf.mxu0
      %v1045 = vadd.f32 0.0, %v1044
      %v1046 = vpop.f32.mrf.mxu0
      %v1047 = vadd.f32 0.0, %v1046
      %v1048 = vpop.f32.mrf.mxu0
      %v1049 = vadd.f32 0.0, %v1048
      %1050 = vmatprep.mubr.bf16.mxu0 0
      %1051 = vmatmul.mubr.bf16.gmra.mxu0 %v861
      %v1052 = vpop.f32.mrf.mxu0
      %v1053 = vadd.f32 0.0, %v1052
      %v1054 = vpop.f32.mrf.mxu0
      %v1055 = vadd.f32 0.0, %v1054
      %v1056 = vpop.f32.mrf.mxu0
      %v1057 = vadd.f32 0.0, %v1056
      %v1058 = vpop.f32.mrf.mxu0
      %v1059 = vadd.f32 0.0, %v1058
      %1060 = vmatprep.mubr.bf16.mxu0 0
      %1061 = vmatmul.mubr.bf16.gmra.mxu0 %v864
      %v1062 = vpop.f32.mrf.mxu0
      %v1063 = vadd.f32 0.0, %v1062
      %v1064 = vpop.f32.mrf.mxu0
      %v1065 = vadd.f32 0.0, %v1064
      %v1066 = vpop.f32.mrf.mxu0
      %v1067 = vadd.f32 0.0, %v1066
      %v1068 = vpop.f32.mrf.mxu0
      %v1069 = vadd.f32 0.0, %v1068
      %1070 = vmatprep.mubr.bf16.mxu0 0
      %1071 = vmatmul.mubr.bf16.gmra.mxu0 %v867
      %v1072 = vpop.f32.mrf.mxu0
      %v1073 = vadd.f32 0.0, %v1072
      %v1074 = vpop.f32.mrf.mxu0
      %v1075 = vadd.f32 0.0, %v1074
      %v1076 = vpop.f32.mrf.mxu0
      %v1077 = vadd.f32 0.0, %v1076
      %v1078 = vpop.f32.mrf.mxu0
      %v1079 = vadd.f32 0.0, %v1078
      %1080 = vmatprep.mubr.bf16.mxu0 0
      %1081 = vmatmul.mubr.bf16.gmra.mxu0 %v870
      %v1082 = vpop.f32.mrf.mxu0
      %v1083 = vadd.f32 0.0, %v1082
      %v1084 = vpop.f32.mrf.mxu0
      %v1085 = vadd.f32 0.0, %v1084
      %v1086 = vpop.f32.mrf.mxu0
      %v1087 = vadd.f32 0.0, %v1086
      %v1088 = vpop.f32.mrf.mxu0
      %v1089 = vadd.f32 0.0, %v1088
      %1090 = vmatprep.mubr.bf16.mxu0 0
      %1091 = vmatmul.mubr.bf16.gmra.mxu0 %v873
      %v1092 = vpop.f32.mrf.mxu0
      %v1093 = vadd.f32 0.0, %v1092
      %v1094 = vpop.f32.mrf.mxu0
      %v1095 = vadd.f32 0.0, %v1094
      %v1096 = vpop.f32.mrf.mxu0
      %v1097 = vadd.f32 0.0, %v1096
      %v1098 = vpop.f32.mrf.mxu0
      %v1099 = vadd.f32 0.0, %v1098
      %1100 = vdwg.mxu0
      %v1101 = vld [vmem:[%s3] sm:$0xf]
      %v1102 = vld [vmem:[%s3 + $0x4] sm:$0xf]
      %v1103 = vld [vmem:[%s3 + $0x8] sm:$0xf]
      %v1104 = vld [vmem:[%s3 + $0xc] sm:$0xf]
      %v1105 = vpack.c.bf16 %v720, %v720
      %v1106 = vpack.c.bf16 %v722, %v722
      %v1107 = vpack.c.bf16 %v773, %v773
      %v1108 = vpack.c.bf16 %v775, %v775
      %v1113 = vunpack.c.l.b16 %v1101
      %v1114 = vunpack.c.l.b16 %v1102
      %v1115 = vunpack.c.l.b16 %v1103
      %v1116 = vunpack.c.l.b16 %v1104
      %v1117 = vpack.c.b16 %v1114, %v1113
      %v1118 = vpack.c.b16 %v1116, %v1115
      %vm1119 = vcmask 31744
      %v1121 = vsel %vm1119, %v1117, 0
      %v1124 = vsel %vm1119, %v1118, 0
      %vm1126 = vcmask 1041408
      %v1128 = vsel %vm1126, %v1105, 0
      %v1131 = vsel %vm1126, %v1106, 0
      %v1134 = vsel %vm1126, %v1107, 0
      %v1137 = vsel %vm1126, %v1108, 0
      %1139 = vmatprep.subr.bf16.mxu0 0
      %1140 = vmatpush1.bf16.msra.mxu0 0
      %1141 = vmatprep.subr.bf16.mxu0 0
      %1142 = vmatpush1.bf16.msra.mxu0 0
      %1143 = vmatprep.subr.bf16.mxu0 0
      %1144 = vmatpush1.bf16.msra.mxu0 0
      %1145 = vmatprep.subr.bf16.mxu0 0
      %1146 = vmatpush1.bf16.msra.mxu0 0
      %1147 = vmatprep.subr.bf16.mxu0 0
      %1148 = vmatpush1.bf16.msra.mxu0 0
      %1149 = vmatprep.subr.bf16.mxu0 0
      %1150 = vmatpush1.bf16.msra.mxu0 0
      %1151 = vmatprep.subr.bf16.mxu0 0
      %1152 = vmatpush1.bf16.msra.mxu0 0
      %1153 = vmatprep.subr.bf16.mxu0 %v1131
      %1154 = vmatpush1.bf16.msra.mxu0 %v1128
      %1155 = vmatprep.subr.bf16.mxu0 0
      %1156 = vmatpush2.bf16.msra.mxu0 0
      %1157 = vmatprep.subr.bf16.mxu0 0
      %1158 = vmatpush2.bf16.msra.mxu0 0
      %1159 = vmatprep.subr.bf16.mxu0 0
      %1160 = vmatpush2.bf16.msra.mxu0 0
      %1161 = vmatprep.subr.bf16.mxu0 0
      %1162 = vmatpush2.bf16.msra.mxu0 0
      %1163 = vmatprep.subr.bf16.mxu0 0
      %1164 = vmatpush2.bf16.msra.mxu0 0
      %1165 = vmatprep.subr.bf16.mxu0 0
      %1166 = vmatpush2.bf16.msra.mxu0 0
      %1167 = vmatprep.subr.bf16.mxu0 0
      %1168 = vmatpush2.bf16.msra.mxu0 0
      %1169 = vmatprep.subr.bf16.mxu0 0
      %1170 = vmatpush2.bf16.msra.mxu0 0
      %1171 = vmatprep.mubr.bf16.mxu0 0
      %1172 = vmatmul.mubr.bf16.gmra.mxu0 %v1121
      %v1173 = vpop.f32.mrf.mxu0
      %v1174 = vadd.f32 0.0, %v1173
      %v1175 = vpop.f32.mrf.mxu0
      %v1176 = vadd.f32 0.0, %v1175
      %v1177 = vpop.f32.mrf.mxu0
      %v1178 = vadd.f32 0.0, %v1177
      %v1179 = vpop.f32.mrf.mxu0
      %v1180 = vadd.f32 0.0, %v1179
      %1181 = vmatprep.mubr.bf16.mxu0 0
      %1182 = vmatmul.mubr.bf16.gmra.mxu0 %v1124
      %v1183 = vpop.f32.mrf.mxu0
      %v1184 = vadd.f32 0.0, %v1183
      %v1185 = vpop.f32.mrf.mxu0
      %v1186 = vadd.f32 0.0, %v1185
      %v1187 = vpop.f32.mrf.mxu0
      %v1188 = vadd.f32 0.0, %v1187
      %v1189 = vpop.f32.mrf.mxu0
      %v1190 = vadd.f32 0.0, %v1189
      %1191 = vdwg.mxu0
      %1192 = vmatprep.subr.bf16.mxu0 0
      %1193 = vmatpush1.bf16.msra.mxu0 0
      %1194 = vmatprep.subr.bf16.mxu0 0
      %1195 = vmatpush1.bf16.msra.mxu0 0
      %1196 = vmatprep.subr.bf16.mxu0 0
      %1197 = vmatpush1.bf16.msra.mxu0 0
      %1198 = vmatprep.subr.bf16.mxu0 0
      %1199 = vmatpush1.bf16.msra.mxu0 0
      %1200 = vmatprep.subr.bf16.mxu0 0
      %1201 = vmatpush1.bf16.msra.mxu0 0
      %1202 = vmatprep.subr.bf16.mxu0 0
      %1203 = vmatpush1.bf16.msra.mxu0 0
      %1204 = vmatprep.subr.bf16.mxu0 0
      %1205 = vmatpush1.bf16.msra.mxu0 0
      %1206 = vmatprep.subr.bf16.mxu0 %v1137
      %1207 = vmatpush1.bf16.msra.mxu0 %v1134
      %1208 = vmatprep.subr.bf16.mxu0 0
      %1209 = vmatpush2.bf16.msra.mxu0 0
      %1210 = vmatprep.subr.bf16.mxu0 0
      %1211 = vmatpush2.bf16.msra.mxu0 0
      %1212 = vmatprep.subr.bf16.mxu0 0
      %1213 = vmatpush2.bf16.msra.mxu0 0
      %1214 = vmatprep.subr.bf16.mxu0 0
      %1215 = vmatpush2.bf16.msra.mxu0 0
      %1216 = vmatprep.subr.bf16.mxu0 0
      %1217 = vmatpush2.bf16.msra.mxu0 0
      %1218 = vmatprep.subr.bf16.mxu0 0
      %1219 = vmatpush2.bf16.msra.mxu0 0
      %1220 = vmatprep.subr.bf16.mxu0 0
      %1221 = vmatpush2.bf16.msra.mxu0 0
      %1222 = vmatprep.subr.bf16.mxu0 0
      %1223 = vmatpush2.bf16.msra.mxu0 0
      %1224 = vmatprep.mubr.bf16.mxu0 0
      %1225 = vmatmul.mubr.bf16.gmra.mxu0 %v1121
      %v1226 = vpop.f32.mrf.mxu0
      %v1227 = vadd.f32 0.0, %v1226
      %v1228 = vpop.f32.mrf.mxu0
      %v1229 = vadd.f32 0.0, %v1228
      %v1230 = vpop.f32.mrf.mxu0
      %v1231 = vadd.f32 0.0, %v1230
      %v1232 = vpop.f32.mrf.mxu0
      %v1233 = vadd.f32 0.0, %v1232
      %1234 = vmatprep.mubr.bf16.mxu0 0
      %1235 = vmatmul.mubr.bf16.gmra.mxu0 %v1124
      %v1236 = vpop.f32.mrf.mxu0
      %v1237 = vadd.f32 0.0, %v1236
      %v1238 = vpop.f32.mrf.mxu0
      %v1239 = vadd.f32 0.0, %v1238
      %v1240 = vpop.f32.mrf.mxu0
      %v1241 = vadd.f32 0.0, %v1240
      %v1242 = vpop.f32.mrf.mxu0
      %v1243 = vadd.f32 0.0, %v1242
      %1244 = vdwg.mxu0
      %v1245 = vld [vmem:[%s4] sm:$0xf]
      %v1246 = vld [vmem:[%s4 + $0x4] sm:$0xf]
      %v1247 = vld [vmem:[%s4 + $0x8] sm:$0xf]
      %v1248 = vld [vmem:[%s4 + $0xc] sm:$0xf]
      %v1249 = vpack.c.bf16 %v730, %v730
      %v1250 = vpack.c.bf16 %v732, %v732
      %v1251 = vpack.c.bf16 %v783, %v783
      %v1252 = vpack.c.bf16 %v785, %v785
      %v1257 = vunpack.c.l.b16 %v1245
      %v1258 = vunpack.c.l.b16 %v1246
      %v1259 = vunpack.c.l.b16 %v1247
      %v1260 = vunpack.c.l.b16 %v1248
      %v1261 = vpack.c.b16 %v1258, %v1257
      %v1262 = vpack.c.b16 %v1260, %v1259
      %v1264 = vsel %vm1119, %v1261, 0
      %v1267 = vsel %vm1119, %v1262, 0
      %v1270 = vsel %vm1126, %v1249, 0
      %v1273 = vsel %vm1126, %v1250, 0
      %v1276 = vsel %vm1126, %v1251, 0
      %v1279 = vsel %vm1126, %v1252, 0
      %1281 = vmatprep.subr.bf16.mxu0 0
      %1282 = vmatpush1.bf16.msra.mxu0 0
      %1283 = vmatprep.subr.bf16.mxu0 0
      %1284 = vmatpush1.bf16.msra.mxu0 0
      %1285 = vmatprep.subr.bf16.mxu0 0
      %1286 = vmatpush1.bf16.msra.mxu0 0
      %1287 = vmatprep.subr.bf16.mxu0 0
      %1288 = vmatpush1.bf16.msra.mxu0 0
      %1289 = vmatprep.subr.bf16.mxu0 0
      %1290 = vmatpush1.bf16.msra.mxu0 0
      %1291 = vmatprep.subr.bf16.mxu0 0
      %1292 = vmatpush1.bf16.msra.mxu0 0
      %1293 = vmatprep.subr.bf16.mxu0 0
      %1294 = vmatpush1.bf16.msra.mxu0 0
      %1295 = vmatprep.subr.bf16.mxu0 %v1273
      %1296 = vmatpush1.bf16.msra.mxu0 %v1270
      %1297 = vmatprep.subr.bf16.mxu0 0
      %1298 = vmatpush2.bf16.msra.mxu0 0
      %1299 = vmatprep.subr.bf16.mxu0 0
      %1300 = vmatpush2.bf16.msra.mxu0 0
      %1301 = vmatprep.subr.bf16.mxu0 0
      %1302 = vmatpush2.bf16.msra.mxu0 0
      %1303 = vmatprep.subr.bf16.mxu0 0
      %1304 = vmatpush2.bf16.msra.mxu0 0
      %1305 = vmatprep.subr.bf16.mxu0 0
      %1306 = vmatpush2.bf16.msra.mxu0 0
      %1307 = vmatprep.subr.bf16.mxu0 0
      %1308 = vmatpush2.bf16.msra.mxu0 0
      %1309 = vmatprep.subr.bf16.mxu0 0
      %1310 = vmatpush2.bf16.msra.mxu0 0
      %1311 = vmatprep.subr.bf16.mxu0 0
      %1312 = vmatpush2.bf16.msra.mxu0 0
      %1313 = vmatprep.mubr.bf16.mxu0 0
      %1314 = vmatmul.mubr.bf16.gmra.mxu0 %v1264
      %v1315 = vpop.f32.mrf.mxu0
      %v1316 = vadd.f32 0.0, %v1315
      %v1317 = vpop.f32.mrf.mxu0
      %v1318 = vadd.f32 0.0, %v1317
      %v1319 = vpop.f32.mrf.mxu0
      %v1320 = vadd.f32 0.0, %v1319
      %v1321 = vpop.f32.mrf.mxu0
      %v1322 = vadd.f32 0.0, %v1321
      %1323 = vmatprep.mubr.bf16.mxu0 0
      %1324 = vmatmul.mubr.bf16.gmra.mxu0 %v1267
      %v1325 = vpop.f32.mrf.mxu0
      %v1326 = vadd.f32 0.0, %v1325
      %v1327 = vpop.f32.mrf.mxu0
      %v1328 = vadd.f32 0.0, %v1327
      %v1329 = vpop.f32.mrf.mxu0
      %v1330 = vadd.f32 0.0, %v1329
      %v1331 = vpop.f32.mrf.mxu0
      %v1332 = vadd.f32 0.0, %v1331
      %1333 = vdwg.mxu0
      %1334 = vmatprep.subr.bf16.mxu0 0
      %1335 = vmatpush1.bf16.msra.mxu0 0
      %1336 = vmatprep.subr.bf16.mxu0 0
      %1337 = vmatpush1.bf16.msra.mxu0 0
      %1338 = vmatprep.subr.bf16.mxu0 0
      %1339 = vmatpush1.bf16.msra.mxu0 0
      %1340 = vmatprep.subr.bf16.mxu0 0
      %1341 = vmatpush1.bf16.msra.mxu0 0
      %1342 = vmatprep.subr.bf16.mxu0 0
      %1343 = vmatpush1.bf16.msra.mxu0 0
      %1344 = vmatprep.subr.bf16.mxu0 0
      %1345 = vmatpush1.bf16.msra.mxu0 0
      %1346 = vmatprep.subr.bf16.mxu0 0
      %1347 = vmatpush1.bf16.msra.mxu0 0
      %1348 = vmatprep.subr.bf16.mxu0 %v1279
      %1349 = vmatpush1.bf16.msra.mxu0 %v1276
      %1350 = vmatprep.subr.bf16.mxu0 0
      %1351 = vmatpush2.bf16.msra.mxu0 0
      %1352 = vmatprep.subr.bf16.mxu0 0
      %1353 = vmatpush2.bf16.msra.mxu0 0
      %1354 = vmatprep.subr.bf16.mxu0 0
      %1355 = vmatpush2.bf16.msra.mxu0 0
      %1356 = vmatprep.subr.bf16.mxu0 0
      %1357 = vmatpush2.bf16.msra.mxu0 0
      %1358 = vmatprep.subr.bf16.mxu0 0
      %1359 = vmatpush2.bf16.msra.mxu0 0
      %1360 = vmatprep.subr.bf16.mxu0 0
      %1361 = vmatpush2.bf16.msra.mxu0 0
      %1362 = vmatprep.subr.bf16.mxu0 0
      %1363 = vmatpush2.bf16.msra.mxu0 0
      %1364 = vmatprep.subr.bf16.mxu0 0
      %1365 = vmatpush2.bf16.msra.mxu0 0
      %1366 = vmatprep.mubr.bf16.mxu0 0
      %1367 = vmatmul.mubr.bf16.gmra.mxu0 %v1264
      %v1368 = vpop.f32.mrf.mxu0
      %v1369 = vadd.f32 0.0, %v1368
      %v1370 = vpop.f32.mrf.mxu0
      %v1371 = vadd.f32 0.0, %v1370
      %v1372 = vpop.f32.mrf.mxu0
      %v1373 = vadd.f32 0.0, %v1372
      %v1374 = vpop.f32.mrf.mxu0
      %v1375 = vadd.f32 0.0, %v1374
      %1376 = vmatprep.mubr.bf16.mxu0 0
      %1377 = vmatmul.mubr.bf16.gmra.mxu0 %v1267
      %v1378 = vpop.f32.mrf.mxu0
      %v1379 = vadd.f32 0.0, %v1378
      %v1380 = vpop.f32.mrf.mxu0
      %v1381 = vadd.f32 0.0, %v1380
      %v1382 = vpop.f32.mrf.mxu0
      %v1383 = vadd.f32 0.0, %v1382
      %v1384 = vpop.f32.mrf.mxu0
      %v1385 = vadd.f32 0.0, %v1384
      %1386 = vdwg.mxu0
      %v1387 = vlaneseq
      %v1388 = vshrl.u32 %v1387, 7
      %v1389 = vsub.s32 0, %v1388
      %v1390 = vrot.slane %v730, %v1389
      %v1391 = vlaneseq
      %v1392 = vshrl.u32 %v1391, 7
      %v1393 = vsub.s32 0, %v1392
      %v1394 = vrot.slane %v732, %v1393
      %v1395 = vlaneseq
      %v1396 = vshrl.u32 %v1395, 7
      %v1397 = vsub.s32 0, %v1396
      %v1398 = vrot.slane %v783, %v1397
      %v1399 = vlaneseq
      %v1400 = vshrl.u32 %v1399, 7
      %v1401 = vsub.s32 0, %v1400
      %v1402 = vrot.slane %v785, %v1401
      %v1403 = vmul.f32 %v1390, %v910
      %v1404 = vmul.f32 %v1394, %v912
      %v1405 = vmul.f32 %v1398, %v1023
      %v1406 = vmul.f32 %v1402, %v1025
      %v1407 = vadd.f32 %v1403, 0.0
      %v1408 = vadd.f32 %v1404, 0.0
      %v1409 = vadd.f32 %v1405, 0.0
      %v1410 = vadd.f32 %v1406, 0.0
      %v1411 = vlaneseq
      %v1412 = vshrl.u32 %v1411, 7
      %v1413 = vsub.s32 1, %v1412
      %v1414 = vrot.slane %v730, %v1413
      %v1415 = vlaneseq
      %v1416 = vshrl.u32 %v1415, 7
      %v1417 = vsub.s32 1, %v1416
      %v1418 = vrot.slane %v732, %v1417
      %v1419 = vlaneseq
      %v1420 = vshrl.u32 %v1419, 7
      %v1421 = vsub.s32 1, %v1420
      %v1422 = vrot.slane %v783, %v1421
      %v1423 = vlaneseq
      %v1424 = vshrl.u32 %v1423, 7
      %v1425 = vsub.s32 1, %v1424
      %v1426 = vrot.slane %v785, %v1425
      %v1427 = vmul.f32 %v1414, %v914
      %v1428 = vmul.f32 %v1418, %v916
      %v1429 = vmul.f32 %v1422, %v1027
      %v1430 = vmul.f32 %v1426, %v1029
      %v1431 = vadd.f32 %v1407, %v1427
      %v1432 = vadd.f32 %v1408, %v1428
      %v1433 = vadd.f32 %v1409, %v1429
      %v1434 = vadd.f32 %v1410, %v1430
      %v1435 = vlaneseq
      %v1436 = vshrl.u32 %v1435, 7
      %v1437 = vsub.s32 2, %v1436
      %v1438 = vrot.slane %v730, %v1437
      %v1439 = vlaneseq
      %v1440 = vshrl.u32 %v1439, 7
      %v1441 = vsub.s32 2, %v1440
      %v1442 = vrot.slane %v732, %v1441
      %v1443 = vlaneseq
      %v1444 = vshrl.u32 %v1443, 7
      %v1445 = vsub.s32 2, %v1444
      %v1446 = vrot.slane %v783, %v1445
      %v1447 = vlaneseq
      %v1448 = vshrl.u32 %v1447, 7
      %v1449 = vsub.s32 2, %v1448
      %v1450 = vrot.slane %v785, %v1449
      %v1451 = vmul.f32 %v1438, %v920
      %v1452 = vmul.f32 %v1442, %v922
      %v1453 = vmul.f32 %v1446, %v1033
      %v1454 = vmul.f32 %v1450, %v1035
      %v1455 = vadd.f32 %v1431, %v1451
      %v1456 = vadd.f32 %v1432, %v1452
      %v1457 = vadd.f32 %v1433, %v1453
      %v1458 = vadd.f32 %v1434, %v1454
      %v1459 = vlaneseq
      %v1460 = vshrl.u32 %v1459, 7
      %v1461 = vsub.s32 3, %v1460
      %v1462 = vrot.slane %v730, %v1461
      %v1463 = vlaneseq
      %v1464 = vshrl.u32 %v1463, 7
      %v1465 = vsub.s32 3, %v1464
      %v1466 = vrot.slane %v732, %v1465
      %v1467 = vlaneseq
      %v1468 = vshrl.u32 %v1467, 7
      %v1469 = vsub.s32 3, %v1468
      %v1470 = vrot.slane %v783, %v1469
      %v1471 = vlaneseq
      %v1472 = vshrl.u32 %v1471, 7
      %v1473 = vsub.s32 3, %v1472
      %v1474 = vrot.slane %v785, %v1473
      %v1475 = vmul.f32 %v1462, %v924
      %v1476 = vmul.f32 %v1466, %v926
      %v1477 = vmul.f32 %v1470, %v1037
      %v1478 = vmul.f32 %v1474, %v1039
      %v1479 = vadd.f32 %v1455, %v1475
      %v1480 = vadd.f32 %v1456, %v1476
      %v1481 = vadd.f32 %v1457, %v1477
      %v1482 = vadd.f32 %v1458, %v1478
      %v1483 = vlaneseq
      %v1484 = vshrl.u32 %v1483, 7
      %v1485 = vsub.s32 4, %v1484
      %v1486 = vrot.slane %v730, %v1485
      %v1487 = vlaneseq
      %v1488 = vshrl.u32 %v1487, 7
      %v1489 = vsub.s32 4, %v1488
      %v1490 = vrot.slane %v732, %v1489
      %v1491 = vlaneseq
      %v1492 = vshrl.u32 %v1491, 7
      %v1493 = vsub.s32 4, %v1492
      %v1494 = vrot.slane %v783, %v1493
      %v1495 = vlaneseq
      %v1496 = vshrl.u32 %v1495, 7
      %v1497 = vsub.s32 4, %v1496
      %v1498 = vrot.slane %v785, %v1497
      %v1499 = vmul.f32 %v1486, %v930
      %v1500 = vmul.f32 %v1490, %v932
      %v1501 = vmul.f32 %v1494, %v1043
      %v1502 = vmul.f32 %v1498, %v1045
      %v1503 = vadd.f32 %v1479, %v1499
      %v1504 = vadd.f32 %v1480, %v1500
      %v1505 = vadd.f32 %v1481, %v1501
      %v1506 = vadd.f32 %v1482, %v1502
      %v1507 = vmul.f32 %v1486, %v1174
      %v1508 = vmul.f32 %v1490, %v1176
      %v1509 = vmul.f32 %v1494, %v1227
      %v1510 = vmul.f32 %v1498, %v1229
      %v1511 = vadd.f32 %v1507, 0.0
      %v1512 = vadd.f32 %v1508, 0.0
      %v1513 = vadd.f32 %v1509, 0.0
      %v1514 = vadd.f32 %v1510, 0.0
      %v1515 = vlaneseq
      %v1516 = vshrl.u32 %v1515, 7
      %v1517 = vsub.s32 4, %v1516
      %v1518 = vrot.slane %v720, %v1517
      %v1519 = vlaneseq
      %v1520 = vshrl.u32 %v1519, 7
      %v1521 = vsub.s32 4, %v1520
      %v1522 = vrot.slane %v722, %v1521
      %v1523 = vlaneseq
      %v1524 = vshrl.u32 %v1523, 7
      %v1525 = vsub.s32 4, %v1524
      %v1526 = vrot.slane %v773, %v1525
      %v1527 = vlaneseq
      %v1528 = vshrl.u32 %v1527, 7
      %v1529 = vsub.s32 4, %v1528
      %v1530 = vrot.slane %v775, %v1529
      %v1531 = vmul.f32 %v1518, %v1316
      %v1532 = vmul.f32 %v1522, %v1318
      %v1533 = vmul.f32 %v1526, %v1369
      %v1534 = vmul.f32 %v1530, %v1371
      %v1535 = vadd.f32 %v1511, %v1531
      %v1536 = vadd.f32 %v1512, %v1532
      %v1537 = vadd.f32 %v1513, %v1533
      %v1538 = vadd.f32 %v1514, %v1534
      %v1539 = vlaneseq
      %v1540 = vshrl.u32 %v1539, 7
      %v1541 = vsub.s32 5, %v1540
      %v1542 = vrot.slane %v730, %v1541
      %v1543 = vlaneseq
      %v1544 = vshrl.u32 %v1543, 7
      %v1545 = vsub.s32 5, %v1544
      %v1546 = vrot.slane %v732, %v1545
      %v1547 = vlaneseq
      %v1548 = vshrl.u32 %v1547, 7
      %v1549 = vsub.s32 5, %v1548
      %v1550 = vrot.slane %v783, %v1549
      %v1551 = vlaneseq
      %v1552 = vshrl.u32 %v1551, 7
      %v1553 = vsub.s32 5, %v1552
      %v1554 = vrot.slane %v785, %v1553
      %v1555 = vmul.f32 %v1542, %v934
      %v1556 = vmul.f32 %v1546, %v936
      %v1557 = vmul.f32 %v1550, %v1047
      %v1558 = vmul.f32 %v1554, %v1049
      %v1559 = vadd.f32 %v1503, %v1555
      %v1560 = vadd.f32 %v1504, %v1556
      %v1561 = vadd.f32 %v1505, %v1557
      %v1562 = vadd.f32 %v1506, %v1558
      %v1563 = vmul.f32 %v1542, %v1178
      %v1564 = vmul.f32 %v1546, %v1180
      %v1565 = vmul.f32 %v1550, %v1231
      %v1566 = vmul.f32 %v1554, %v1233
      %v1567 = vadd.f32 %v1535, %v1563
      %v1568 = vadd.f32 %v1536, %v1564
      %v1569 = vadd.f32 %v1537, %v1565
      %v1570 = vadd.f32 %v1538, %v1566
      %v1571 = vlaneseq
      %v1572 = vshrl.u32 %v1571, 7
      %v1573 = vsub.s32 5, %v1572
      %v1574 = vrot.slane %v720, %v1573
      %v1575 = vlaneseq
      %v1576 = vshrl.u32 %v1575, 7
      %v1577 = vsub.s32 5, %v1576
      %v1578 = vrot.slane %v722, %v1577
      %v1579 = vlaneseq
      %v1580 = vshrl.u32 %v1579, 7
      %v1581 = vsub.s32 5, %v1580
      %v1582 = vrot.slane %v773, %v1581
      %v1583 = vlaneseq
      %v1584 = vshrl.u32 %v1583, 7
      %v1585 = vsub.s32 5, %v1584
      %v1586 = vrot.slane %v775, %v1585
      %v1587 = vmul.f32 %v1574, %v1320
      %v1588 = vmul.f32 %v1578, %v1322
      %v1589 = vmul.f32 %v1582, %v1373
      %v1590 = vmul.f32 %v1586, %v1375
      %v1591 = vadd.f32 %v1567, %v1587
      %v1592 = vadd.f32 %v1568, %v1588
      %v1593 = vadd.f32 %v1569, %v1589
      %v1594 = vadd.f32 %v1570, %v1590
      %v1595 = vlaneseq
      %v1596 = vshrl.u32 %v1595, 7
      %v1597 = vsub.s32 6, %v1596
      %v1598 = vrot.slane %v730, %v1597
      %v1599 = vlaneseq
      %v1600 = vshrl.u32 %v1599, 7
      %v1601 = vsub.s32 6, %v1600
      %v1602 = vrot.slane %v732, %v1601
      %v1603 = vlaneseq
      %v1604 = vshrl.u32 %v1603, 7
      %v1605 = vsub.s32 6, %v1604
      %v1606 = vrot.slane %v783, %v1605
      %v1607 = vlaneseq
      %v1608 = vshrl.u32 %v1607, 7
      %v1609 = vsub.s32 6, %v1608
      %v1610 = vrot.slane %v785, %v1609
      %v1611 = vmul.f32 %v1598, %v940
      %v1612 = vmul.f32 %v1602, %v942
      %v1613 = vmul.f32 %v1606, %v1053
      %v1614 = vmul.f32 %v1610, %v1055
      %v1615 = vadd.f32 %v1559, %v1611
      %v1616 = vadd.f32 %v1560, %v1612
      %v1617 = vadd.f32 %v1561, %v1613
      %v1618 = vadd.f32 %v1562, %v1614
      %v1619 = vmul.f32 %v1598, %v1184
      %v1620 = vmul.f32 %v1602, %v1186
      %v1621 = vmul.f32 %v1606, %v1237
      %v1622 = vmul.f32 %v1610, %v1239
      %v1623 = vadd.f32 %v1591, %v1619
      %v1624 = vadd.f32 %v1592, %v1620
      %v1625 = vadd.f32 %v1593, %v1621
      %v1626 = vadd.f32 %v1594, %v1622
      %v1627 = vlaneseq
      %v1628 = vshrl.u32 %v1627, 7
      %v1629 = vsub.s32 6, %v1628
      %v1630 = vrot.slane %v720, %v1629
      %v1631 = vlaneseq
      %v1632 = vshrl.u32 %v1631, 7
      %v1633 = vsub.s32 6, %v1632
      %v1634 = vrot.slane %v722, %v1633
      %v1635 = vlaneseq
      %v1636 = vshrl.u32 %v1635, 7
      %v1637 = vsub.s32 6, %v1636
      %v1638 = vrot.slane %v773, %v1637
      %v1639 = vlaneseq
      %v1640 = vshrl.u32 %v1639, 7
      %v1641 = vsub.s32 6, %v1640
      %v1642 = vrot.slane %v775, %v1641
      %v1643 = vmul.f32 %v1630, %v1326
      %v1644 = vmul.f32 %v1634, %v1328
      %v1645 = vmul.f32 %v1638, %v1379
      %v1646 = vmul.f32 %v1642, %v1381
      %v1647 = vadd.f32 %v1623, %v1643
      %v1648 = vadd.f32 %v1624, %v1644
      %v1649 = vadd.f32 %v1625, %v1645
      %v1650 = vadd.f32 %v1626, %v1646
      %v1651 = vlaneseq
      %v1652 = vshrl.u32 %v1651, 7
      %v1653 = vsub.s32 7, %v1652
      %v1654 = vrot.slane %v730, %v1653
      %v1655 = vlaneseq
      %v1656 = vshrl.u32 %v1655, 7
      %v1657 = vsub.s32 7, %v1656
      %v1658 = vrot.slane %v732, %v1657
      %v1659 = vlaneseq
      %v1660 = vshrl.u32 %v1659, 7
      %v1661 = vsub.s32 7, %v1660
      %v1662 = vrot.slane %v783, %v1661
      %v1663 = vlaneseq
      %v1664 = vshrl.u32 %v1663, 7
      %v1665 = vsub.s32 7, %v1664
      %v1666 = vrot.slane %v785, %v1665
      %v1667 = vmul.f32 %v1654, %v944
      %v1668 = vmul.f32 %v1658, %v946
      %v1669 = vmul.f32 %v1662, %v1057
      %v1670 = vmul.f32 %v1666, %v1059
      %v1671 = vadd.f32 %v1615, %v1667
      %v1672 = vadd.f32 %v1616, %v1668
      %v1673 = vadd.f32 %v1617, %v1669
      %v1674 = vadd.f32 %v1618, %v1670
      %v1675 = vmul.f32 %v1654, %v1188
      %v1676 = vmul.f32 %v1658, %v1190
      %v1677 = vmul.f32 %v1662, %v1241
      %v1678 = vmul.f32 %v1666, %v1243
      %v1679 = vadd.f32 %v1647, %v1675
      %v1680 = vadd.f32 %v1648, %v1676
      %v1681 = vadd.f32 %v1649, %v1677
      %v1682 = vadd.f32 %v1650, %v1678
      %v1683 = vlaneseq
      %v1684 = vshrl.u32 %v1683, 7
      %v1685 = vsub.s32 7, %v1684
      %v1686 = vrot.slane %v720, %v1685
      %v1687 = vlaneseq
      %v1688 = vshrl.u32 %v1687, 7
      %v1689 = vsub.s32 7, %v1688
      %v1690 = vrot.slane %v722, %v1689
      %v1691 = vlaneseq
      %v1692 = vshrl.u32 %v1691, 7
      %v1693 = vsub.s32 7, %v1692
      %v1694 = vrot.slane %v773, %v1693
      %v1695 = vlaneseq
      %v1696 = vshrl.u32 %v1695, 7
      %v1697 = vsub.s32 7, %v1696
      %v1698 = vrot.slane %v775, %v1697
      %v1699 = vmul.f32 %v1686, %v1330
      %v1700 = vmul.f32 %v1690, %v1332
      %v1701 = vmul.f32 %v1694, %v1383
      %v1702 = vmul.f32 %v1698, %v1385
      %v1703 = vadd.f32 %v1679, %v1699
      %v1704 = vadd.f32 %v1680, %v1700
      %v1705 = vadd.f32 %v1681, %v1701
      %v1706 = vadd.f32 %v1682, %v1702
      %v1707 = vlaneseq
      %v1708 = vshrl.u32 %v1707, 7
      %v1709 = vsub.s32 0, %v1708
      %v1710 = vrot.slane %v734, %v1709
      %v1711 = vlaneseq
      %v1712 = vshrl.u32 %v1711, 7
      %v1713 = vsub.s32 0, %v1712
      %v1714 = vrot.slane %v736, %v1713
      %v1715 = vlaneseq
      %v1716 = vshrl.u32 %v1715, 7
      %v1717 = vsub.s32 0, %v1716
      %v1718 = vrot.slane %v787, %v1717
      %v1719 = vlaneseq
      %v1720 = vshrl.u32 %v1719, 7
      %v1721 = vsub.s32 0, %v1720
      %v1722 = vrot.slane %v789, %v1721
      %v1723 = vmul.f32 %v1710, %v950
      %v1724 = vmul.f32 %v1714, %v952
      %v1725 = vmul.f32 %v1718, %v1063
      %v1726 = vmul.f32 %v1722, %v1065
      %v1727 = vadd.f32 %v1671, %v1723
      %v1728 = vadd.f32 %v1672, %v1724
      %v1729 = vadd.f32 %v1673, %v1725
      %v1730 = vadd.f32 %v1674, %v1726
      %v1731 = vmul.f32 %v1710, %v1174
      %v1732 = vmul.f32 %v1714, %v1176
      %v1733 = vmul.f32 %v1718, %v1227
      %v1734 = vmul.f32 %v1722, %v1229
      %v1735 = vadd.f32 %v1731, 0.0
      %v1736 = vadd.f32 %v1732, 0.0
      %v1737 = vadd.f32 %v1733, 0.0
      %v1738 = vadd.f32 %v1734, 0.0
      %v1739 = vlaneseq
      %v1740 = vshrl.u32 %v1739, 7
      %v1741 = vsub.s32 0, %v1740
      %v1742 = vrot.slane %v724, %v1741
      %v1743 = vlaneseq
      %v1744 = vshrl.u32 %v1743, 7
      %v1745 = vsub.s32 0, %v1744
      %v1746 = vrot.slane %v726, %v1745
      %v1747 = vlaneseq
      %v1748 = vshrl.u32 %v1747, 7
      %v1749 = vsub.s32 0, %v1748
      %v1750 = vrot.slane %v777, %v1749
      %v1751 = vlaneseq
      %v1752 = vshrl.u32 %v1751, 7
      %v1753 = vsub.s32 0, %v1752
      %v1754 = vrot.slane %v779, %v1753
      %v1755 = vmul.f32 %v1742, %v1316
      %v1756 = vmul.f32 %v1746, %v1318
      %v1757 = vmul.f32 %v1750, %v1369
      %v1758 = vmul.f32 %v1754, %v1371
      %v1759 = vadd.f32 %v1735, %v1755
      %v1760 = vadd.f32 %v1736, %v1756
      %v1761 = vadd.f32 %v1737, %v1757
      %v1762 = vadd.f32 %v1738, %v1758
      %v1763 = vlaneseq
      %v1764 = vshrl.u32 %v1763, 7
      %v1765 = vsub.s32 1, %v1764
      %v1766 = vrot.slane %v734, %v1765
      %v1767 = vlaneseq
      %v1768 = vshrl.u32 %v1767, 7
      %v1769 = vsub.s32 1, %v1768
      %v1770 = vrot.slane %v736, %v1769
      %v1771 = vlaneseq
      %v1772 = vshrl.u32 %v1771, 7
      %v1773 = vsub.s32 1, %v1772
      %v1774 = vrot.slane %v787, %v1773
      %v1775 = vlaneseq
      %v1776 = vshrl.u32 %v1775, 7
      %v1777 = vsub.s32 1, %v1776
      %v1778 = vrot.slane %v789, %v1777
      %v1779 = vmul.f32 %v1766, %v954
      %v1780 = vmul.f32 %v1770, %v956
      %v1781 = vmul.f32 %v1774, %v1067
      %v1782 = vmul.f32 %v1778, %v1069
      %v1783 = vadd.f32 %v1727, %v1779
      %v1784 = vadd.f32 %v1728, %v1780
      %v1785 = vadd.f32 %v1729, %v1781
      %v1786 = vadd.f32 %v1730, %v1782
      %v1787 = vmul.f32 %v1766, %v1178
      %v1788 = vmul.f32 %v1770, %v1180
      %v1789 = vmul.f32 %v1774, %v1231
      %v1790 = vmul.f32 %v1778, %v1233
      %v1791 = vadd.f32 %v1759, %v1787
      %v1792 = vadd.f32 %v1760, %v1788
      %v1793 = vadd.f32 %v1761, %v1789
      %v1794 = vadd.f32 %v1762, %v1790
      %v1795 = vlaneseq
      %v1796 = vshrl.u32 %v1795, 7
      %v1797 = vsub.s32 1, %v1796
      %v1798 = vrot.slane %v724, %v1797
      %v1799 = vlaneseq
      %v1800 = vshrl.u32 %v1799, 7
      %v1801 = vsub.s32 1, %v1800
      %v1802 = vrot.slane %v726, %v1801
      %v1803 = vlaneseq
      %v1804 = vshrl.u32 %v1803, 7
      %v1805 = vsub.s32 1, %v1804
      %v1806 = vrot.slane %v777, %v1805
      %v1807 = vlaneseq
      %v1808 = vshrl.u32 %v1807, 7
      %v1809 = vsub.s32 1, %v1808
      %v1810 = vrot.slane %v779, %v1809
      %v1811 = vmul.f32 %v1798, %v1320
      %v1812 = vmul.f32 %v1802, %v1322
      %v1813 = vmul.f32 %v1806, %v1373
      %v1814 = vmul.f32 %v1810, %v1375
      %v1815 = vadd.f32 %v1791, %v1811
      %v1816 = vadd.f32 %v1792, %v1812
      %v1817 = vadd.f32 %v1793, %v1813
      %v1818 = vadd.f32 %v1794, %v1814
      %v1819 = vlaneseq
      %v1820 = vshrl.u32 %v1819, 7
      %v1821 = vsub.s32 2, %v1820
      %v1822 = vrot.slane %v734, %v1821
      %v1823 = vlaneseq
      %v1824 = vshrl.u32 %v1823, 7
      %v1825 = vsub.s32 2, %v1824
      %v1826 = vrot.slane %v736, %v1825
      %v1827 = vlaneseq
      %v1828 = vshrl.u32 %v1827, 7
      %v1829 = vsub.s32 2, %v1828
      %v1830 = vrot.slane %v787, %v1829
      %v1831 = vlaneseq
      %v1832 = vshrl.u32 %v1831, 7
      %v1833 = vsub.s32 2, %v1832
      %v1834 = vrot.slane %v789, %v1833
      %v1835 = vmul.f32 %v1822, %v960
      %v1836 = vmul.f32 %v1826, %v962
      %v1837 = vmul.f32 %v1830, %v1073
      %v1838 = vmul.f32 %v1834, %v1075
      %v1839 = vadd.f32 %v1783, %v1835
      %v1840 = vadd.f32 %v1784, %v1836
      %v1841 = vadd.f32 %v1785, %v1837
      %v1842 = vadd.f32 %v1786, %v1838
      %v1843 = vmul.f32 %v1822, %v1184
      %v1844 = vmul.f32 %v1826, %v1186
      %v1845 = vmul.f32 %v1830, %v1237
      %v1846 = vmul.f32 %v1834, %v1239
      %v1847 = vadd.f32 %v1815, %v1843
      %v1848 = vadd.f32 %v1816, %v1844
      %v1849 = vadd.f32 %v1817, %v1845
      %v1850 = vadd.f32 %v1818, %v1846
      %v1851 = vlaneseq
      %v1852 = vshrl.u32 %v1851, 7
      %v1853 = vsub.s32 2, %v1852
      %v1854 = vrot.slane %v724, %v1853
      %v1855 = vlaneseq
      %v1856 = vshrl.u32 %v1855, 7
      %v1857 = vsub.s32 2, %v1856
      %v1858 = vrot.slane %v726, %v1857
      %v1859 = vlaneseq
      %v1860 = vshrl.u32 %v1859, 7
      %v1861 = vsub.s32 2, %v1860
      %v1862 = vrot.slane %v777, %v1861
      %v1863 = vlaneseq
      %v1864 = vshrl.u32 %v1863, 7
      %v1865 = vsub.s32 2, %v1864
      %v1866 = vrot.slane %v779, %v1865
      %v1867 = vmul.f32 %v1854, %v1326
      %v1868 = vmul.f32 %v1858, %v1328
      %v1869 = vmul.f32 %v1862, %v1379
      %v1870 = vmul.f32 %v1866, %v1381
      %v1871 = vadd.f32 %v1847, %v1867
      %v1872 = vadd.f32 %v1848, %v1868
      %v1873 = vadd.f32 %v1849, %v1869
      %v1874 = vadd.f32 %v1850, %v1870
      %v1875 = vlaneseq
      %v1876 = vshrl.u32 %v1875, 7
      %v1877 = vsub.s32 3, %v1876
      %v1878 = vrot.slane %v734, %v1877
      %v1879 = vlaneseq
      %v1880 = vshrl.u32 %v1879, 7
      %v1881 = vsub.s32 3, %v1880
      %v1882 = vrot.slane %v736, %v1881
      %v1883 = vlaneseq
      %v1884 = vshrl.u32 %v1883, 7
      %v1885 = vsub.s32 3, %v1884
      %v1886 = vrot.slane %v787, %v1885
      %v1887 = vlaneseq
      %v1888 = vshrl.u32 %v1887, 7
      %v1889 = vsub.s32 3, %v1888
      %v1890 = vrot.slane %v789, %v1889
      %v1891 = vmul.f32 %v1878, %v964
      %v1892 = vmul.f32 %v1882, %v966
      %v1893 = vmul.f32 %v1886, %v1077
      %v1894 = vmul.f32 %v1890, %v1079
      %v1895 = vadd.f32 %v1839, %v1891
      %v1896 = vadd.f32 %v1840, %v1892
      %v1897 = vadd.f32 %v1841, %v1893
      %v1898 = vadd.f32 %v1842, %v1894
      %v1899 = vmul.f32 %v1878, %v1188
      %v1900 = vmul.f32 %v1882, %v1190
      %v1901 = vmul.f32 %v1886, %v1241
      %v1902 = vmul.f32 %v1890, %v1243
      %v1903 = vadd.f32 %v1871, %v1899
      %v1904 = vadd.f32 %v1872, %v1900
      %v1905 = vadd.f32 %v1873, %v1901
      %v1906 = vadd.f32 %v1874, %v1902
      %v1907 = vlaneseq
      %v1908 = vshrl.u32 %v1907, 7
      %v1909 = vsub.s32 3, %v1908
      %v1910 = vrot.slane %v724, %v1909
      %v1911 = vlaneseq
      %v1912 = vshrl.u32 %v1911, 7
      %v1913 = vsub.s32 3, %v1912
      %v1914 = vrot.slane %v726, %v1913
      %v1915 = vlaneseq
      %v1916 = vshrl.u32 %v1915, 7
      %v1917 = vsub.s32 3, %v1916
      %v1918 = vrot.slane %v777, %v1917
      %v1919 = vlaneseq
      %v1920 = vshrl.u32 %v1919, 7
      %v1921 = vsub.s32 3, %v1920
      %v1922 = vrot.slane %v779, %v1921
      %v1923 = vmul.f32 %v1910, %v1330
      %v1924 = vmul.f32 %v1914, %v1332
      %v1925 = vmul.f32 %v1918, %v1383
      %v1926 = vmul.f32 %v1922, %v1385
      %v1927 = vadd.f32 %v1903, %v1923
      %v1928 = vadd.f32 %v1904, %v1924
      %v1929 = vadd.f32 %v1905, %v1925
      %v1930 = vadd.f32 %v1906, %v1926
      %v1931 = vlaneseq
      %v1932 = vshrl.u32 %v1931, 7
      %v1933 = vsub.s32 4, %v1932
      %v1934 = vrot.slane %v734, %v1933
      %v1935 = vlaneseq
      %v1936 = vshrl.u32 %v1935, 7
      %v1937 = vsub.s32 4, %v1936
      %v1938 = vrot.slane %v736, %v1937
      %v1939 = vlaneseq
      %v1940 = vshrl.u32 %v1939, 7
      %v1941 = vsub.s32 4, %v1940
      %v1942 = vrot.slane %v787, %v1941
      %v1943 = vlaneseq
      %v1944 = vshrl.u32 %v1943, 7
      %v1945 = vsub.s32 4, %v1944
      %v1946 = vrot.slane %v789, %v1945
      %v1947 = vmul.f32 %v1934, %v970
      %v1948 = vmul.f32 %v1938, %v972
      %v1949 = vmul.f32 %v1942, %v1083
      %v1950 = vmul.f32 %v1946, %v1085
      %v1951 = vadd.f32 %v1895, %v1947
      %v1952 = vadd.f32 %v1896, %v1948
      %v1953 = vadd.f32 %v1897, %v1949
      %v1954 = vadd.f32 %v1898, %v1950
      %v1955 = vmul.f32 %v1934, %v1174
      %v1956 = vmul.f32 %v1938, %v1176
      %v1957 = vmul.f32 %v1942, %v1227
      %v1958 = vmul.f32 %v1946, %v1229
      %v1959 = vadd.f32 %v1955, 0.0
      %v1960 = vadd.f32 %v1956, 0.0
      %v1961 = vadd.f32 %v1957, 0.0
      %v1962 = vadd.f32 %v1958, 0.0
      %v1963 = vlaneseq
      %v1964 = vshrl.u32 %v1963, 7
      %v1965 = vsub.s32 4, %v1964
      %v1966 = vrot.slane %v724, %v1965
      %v1967 = vlaneseq
      %v1968 = vshrl.u32 %v1967, 7
      %v1969 = vsub.s32 4, %v1968
      %v1970 = vrot.slane %v726, %v1969
      %v1971 = vlaneseq
      %v1972 = vshrl.u32 %v1971, 7
      %v1973 = vsub.s32 4, %v1972
      %v1974 = vrot.slane %v777, %v1973
      %v1975 = vlaneseq
      %v1976 = vshrl.u32 %v1975, 7
      %v1977 = vsub.s32 4, %v1976
      %v1978 = vrot.slane %v779, %v1977
      %v1979 = vmul.f32 %v1966, %v1316
      %v1980 = vmul.f32 %v1970, %v1318
      %v1981 = vmul.f32 %v1974, %v1369
      %v1982 = vmul.f32 %v1978, %v1371
      %v1983 = vadd.f32 %v1959, %v1979
      %v1984 = vadd.f32 %v1960, %v1980
      %v1985 = vadd.f32 %v1961, %v1981
      %v1986 = vadd.f32 %v1962, %v1982
      %v1987 = vlaneseq
      %v1988 = vshrl.u32 %v1987, 7
      %v1989 = vsub.s32 5, %v1988
      %v1990 = vrot.slane %v734, %v1989
      %v1991 = vlaneseq
      %v1992 = vshrl.u32 %v1991, 7
      %v1993 = vsub.s32 5, %v1992
      %v1994 = vrot.slane %v736, %v1993
      %v1995 = vlaneseq
      %v1996 = vshrl.u32 %v1995, 7
      %v1997 = vsub.s32 5, %v1996
      %v1998 = vrot.slane %v787, %v1997
      %v1999 = vlaneseq
      %v2000 = vshrl.u32 %v1999, 7
      %v2001 = vsub.s32 5, %v2000
      %v2002 = vrot.slane %v789, %v2001
      %v2003 = vmul.f32 %v1990, %v974
      %v2004 = vmul.f32 %v1994, %v976
      %v2005 = vmul.f32 %v1998, %v1087
      %v2006 = vmul.f32 %v2002, %v1089
      %v2007 = vadd.f32 %v1951, %v2003
      %v2008 = vadd.f32 %v1952, %v2004
      %v2009 = vadd.f32 %v1953, %v2005
      %v2010 = vadd.f32 %v1954, %v2006
      %v2011 = vmul.f32 %v1990, %v1178
      %v2012 = vmul.f32 %v1994, %v1180
      %v2013 = vmul.f32 %v1998, %v1231
      %v2014 = vmul.f32 %v2002, %v1233
      %v2015 = vadd.f32 %v1983, %v2011
      %v2016 = vadd.f32 %v1984, %v2012
      %v2017 = vadd.f32 %v1985, %v2013
      %v2018 = vadd.f32 %v1986, %v2014
      %v2019 = vlaneseq
      %v2020 = vshrl.u32 %v2019, 7
      %v2021 = vsub.s32 5, %v2020
      %v2022 = vrot.slane %v724, %v2021
      %v2023 = vlaneseq
      %v2024 = vshrl.u32 %v2023, 7
      %v2025 = vsub.s32 5, %v2024
      %v2026 = vrot.slane %v726, %v2025
      %v2027 = vlaneseq
      %v2028 = vshrl.u32 %v2027, 7
      %v2029 = vsub.s32 5, %v2028
      %v2030 = vrot.slane %v777, %v2029
      %v2031 = vlaneseq
      %v2032 = vshrl.u32 %v2031, 7
      %v2033 = vsub.s32 5, %v2032
      %v2034 = vrot.slane %v779, %v2033
      %v2035 = vmul.f32 %v2022, %v1320
      %v2036 = vmul.f32 %v2026, %v1322
      %v2037 = vmul.f32 %v2030, %v1373
      %v2038 = vmul.f32 %v2034, %v1375
      %v2039 = vadd.f32 %v2015, %v2035
      %v2040 = vadd.f32 %v2016, %v2036
      %v2041 = vadd.f32 %v2017, %v2037
      %v2042 = vadd.f32 %v2018, %v2038
      %v2043 = vlaneseq
      %v2044 = vshrl.u32 %v2043, 7
      %v2045 = vsub.s32 6, %v2044
      %v2046 = vrot.slane %v734, %v2045
      %v2047 = vlaneseq
      %v2048 = vshrl.u32 %v2047, 7
      %v2049 = vsub.s32 6, %v2048
      %v2050 = vrot.slane %v736, %v2049
      %v2051 = vlaneseq
      %v2052 = vshrl.u32 %v2051, 7
      %v2053 = vsub.s32 6, %v2052
      %v2054 = vrot.slane %v787, %v2053
      %v2055 = vlaneseq
      %v2056 = vshrl.u32 %v2055, 7
      %v2057 = vsub.s32 6, %v2056
      %v2058 = vrot.slane %v789, %v2057
      %v2059 = vmul.f32 %v2046, %v980
      %v2060 = vmul.f32 %v2050, %v982
      %v2061 = vmul.f32 %v2054, %v1093
      %v2062 = vmul.f32 %v2058, %v1095
      %v2063 = vadd.f32 %v2007, %v2059
      %v2064 = vadd.f32 %v2008, %v2060
      %v2065 = vadd.f32 %v2009, %v2061
      %v2066 = vadd.f32 %v2010, %v2062
      %v2067 = vmul.f32 %v2046, %v1184
      %v2068 = vmul.f32 %v2050, %v1186
      %v2069 = vmul.f32 %v2054, %v1237
      %v2070 = vmul.f32 %v2058, %v1239
      %v2071 = vadd.f32 %v2039, %v2067
      %v2072 = vadd.f32 %v2040, %v2068
      %v2073 = vadd.f32 %v2041, %v2069
      %v2074 = vadd.f32 %v2042, %v2070
      %v2075 = vlaneseq
      %v2076 = vshrl.u32 %v2075, 7
      %v2077 = vsub.s32 6, %v2076
      %v2078 = vrot.slane %v724, %v2077
      %v2079 = vlaneseq
      %v2080 = vshrl.u32 %v2079, 7
      %v2081 = vsub.s32 6, %v2080
      %v2082 = vrot.slane %v726, %v2081
      %v2083 = vlaneseq
      %v2084 = vshrl.u32 %v2083, 7
      %v2085 = vsub.s32 6, %v2084
      %v2086 = vrot.slane %v777, %v2085
      %v2087 = vlaneseq
      %v2088 = vshrl.u32 %v2087, 7
      %v2089 = vsub.s32 6, %v2088
      %v2090 = vrot.slane %v779, %v2089
      %v2091 = vmul.f32 %v2078, %v1326
      %v2092 = vmul.f32 %v2082, %v1328
      %v2093 = vmul.f32 %v2086, %v1379
      %v2094 = vmul.f32 %v2090, %v1381
      %v2095 = vadd.f32 %v2071, %v2091
      %v2096 = vadd.f32 %v2072, %v2092
      %v2097 = vadd.f32 %v2073, %v2093
      %v2098 = vadd.f32 %v2074, %v2094
      %v2099 = vlaneseq
      %v2100 = vshrl.u32 %v2099, 7
      %v2101 = vsub.s32 7, %v2100
      %v2102 = vrot.slane %v734, %v2101
      %v2103 = vlaneseq
      %v2104 = vshrl.u32 %v2103, 7
      %v2105 = vsub.s32 7, %v2104
      %v2106 = vrot.slane %v736, %v2105
      %v2107 = vlaneseq
      %v2108 = vshrl.u32 %v2107, 7
      %v2109 = vsub.s32 7, %v2108
      %v2110 = vrot.slane %v787, %v2109
      %v2111 = vlaneseq
      %v2112 = vshrl.u32 %v2111, 7
      %v2113 = vsub.s32 7, %v2112
      %v2114 = vrot.slane %v789, %v2113
      %v2115 = vmul.f32 %v2102, %v984
      %v2116 = vmul.f32 %v2106, %v986
      %v2117 = vmul.f32 %v2110, %v1097
      %v2118 = vmul.f32 %v2114, %v1099
      %v2119 = vadd.f32 %v2063, %v2115
      %v2120 = vadd.f32 %v2064, %v2116
      %v2121 = vadd.f32 %v2065, %v2117
      %v2122 = vadd.f32 %v2066, %v2118
      %v2123 = vmul.f32 %v2102, %v1188
      %v2124 = vmul.f32 %v2106, %v1190
      %v2125 = vmul.f32 %v2110, %v1241
      %v2126 = vmul.f32 %v2114, %v1243
      %v2127 = vadd.f32 %v2095, %v2123
      %v2128 = vadd.f32 %v2096, %v2124
      %v2129 = vadd.f32 %v2097, %v2125
      %v2130 = vadd.f32 %v2098, %v2126
      %v2131 = vlaneseq
      %v2132 = vshrl.u32 %v2131, 7
      %v2133 = vsub.s32 7, %v2132
      %v2134 = vrot.slane %v724, %v2133
      %v2135 = vlaneseq
      %v2136 = vshrl.u32 %v2135, 7
      %v2137 = vsub.s32 7, %v2136
      %v2138 = vrot.slane %v726, %v2137
      %v2139 = vlaneseq
      %v2140 = vshrl.u32 %v2139, 7
      %v2141 = vsub.s32 7, %v2140
      %v2142 = vrot.slane %v777, %v2141
      %v2143 = vlaneseq
      %v2144 = vshrl.u32 %v2143, 7
      %v2145 = vsub.s32 7, %v2144
      %v2146 = vrot.slane %v779, %v2145
      %v2147 = vmul.f32 %v2134, %v1330
      %v2148 = vmul.f32 %v2138, %v1332
      %v2149 = vmul.f32 %v2142, %v1383
      %v2150 = vmul.f32 %v2146, %v1385
      %v2151 = vadd.f32 %v2127, %v2147
      %v2152 = vadd.f32 %v2128, %v2148
      %v2153 = vadd.f32 %v2129, %v2149
      %v2154 = vadd.f32 %v2130, %v2150
      %v2155 = vld [vmem:[%s5] sm:$0xf]
      %v2156 = vld [vmem:[%s5 + $0x4] sm:$0xf]
      %v2157 = vpack.c.bf16 %v2119, %v2119
      %v2158 = vpack.c.bf16 %v2120, %v2120
      %v2159 = vpack.c.bf16 %v2121, %v2121
      %v2160 = vpack.c.bf16 %v2122, %v2122
      %v2163 = vunpack.c.l.b16 %v2155
      %v2164 = vunpack.c.l.b16 %v2156
      %v2165 = vpack.c.b16 %v2164, %v2163
      %vm2166 = vcmask 64512
      %v2168 = vsel %vm2166, %v2165, 0
      %vm2170 = vcmask 1043456
      %v2172 = vsel %vm2170, %v2157, 0
      %v2175 = vsel %vm2170, %v2158, 0
      %v2178 = vsel %vm2170, %v2159, 0
      %v2181 = vsel %vm2170, %v2160, 0
      %2183 = vmatprep.subr.bf16.mxu0 0
      %2184 = vmatpush1.bf16.msra.mxu0 0
      %2185 = vmatprep.subr.bf16.mxu0 0
      %2186 = vmatpush1.bf16.msra.mxu0 0
      %2187 = vmatprep.subr.bf16.mxu0 0
      %2188 = vmatpush1.bf16.msra.mxu0 0
      %2189 = vmatprep.subr.bf16.mxu0 0
      %2190 = vmatpush1.bf16.msra.mxu0 0
      %2191 = vmatprep.subr.bf16.mxu0 0
      %2192 = vmatpush1.bf16.msra.mxu0 0
      %2193 = vmatprep.subr.bf16.mxu0 0
      %2194 = vmatpush1.bf16.msra.mxu0 0
      %2195 = vmatprep.subr.bf16.mxu0 0
      %2196 = vmatpush1.bf16.msra.mxu0 0
      %2197 = vmatprep.subr.bf16.mxu0 %v2175
      %2198 = vmatpush1.bf16.msra.mxu0 %v2172
      %2199 = vmatprep.subr.bf16.mxu0 0
      %2200 = vmatpush2.bf16.msra.mxu0 0
      %2201 = vmatprep.subr.bf16.mxu0 0
      %2202 = vmatpush2.bf16.msra.mxu0 0
      %2203 = vmatprep.subr.bf16.mxu0 0
      %2204 = vmatpush2.bf16.msra.mxu0 0
      %2205 = vmatprep.subr.bf16.mxu0 0
      %2206 = vmatpush2.bf16.msra.mxu0 0
      %2207 = vmatprep.subr.bf16.mxu0 0
      %2208 = vmatpush2.bf16.msra.mxu0 0
      %2209 = vmatprep.subr.bf16.mxu0 0
      %2210 = vmatpush2.bf16.msra.mxu0 0
      %2211 = vmatprep.subr.bf16.mxu0 0
      %2212 = vmatpush2.bf16.msra.mxu0 0
      %2213 = vmatprep.subr.bf16.mxu0 0
      %2214 = vmatpush2.bf16.msra.mxu0 0
      %2215 = vmatprep.mubr.bf16.mxu0 0
      %2216 = vmatmul.mubr.bf16.gmra.mxu0 %v2168
      %v2217 = vpop.f32.mrf.mxu0
      %v2218 = vadd.f32 0.0, %v2217
      %v2219 = vpop.f32.mrf.mxu0
      %v2220 = vadd.f32 0.0, %v2219
      %v2221 = vpop.f32.mrf.mxu0
      %v2222 = vadd.f32 0.0, %v2221
      %v2223 = vpop.f32.mrf.mxu0
      %v2224 = vadd.f32 0.0, %v2223
      %2225 = vdwg.mxu0
      %2226 = vmatprep.subr.bf16.mxu0 0
      %2227 = vmatpush1.bf16.msra.mxu0 0
      %2228 = vmatprep.subr.bf16.mxu0 0
      %2229 = vmatpush1.bf16.msra.mxu0 0
      %2230 = vmatprep.subr.bf16.mxu0 0
      %2231 = vmatpush1.bf16.msra.mxu0 0
      %2232 = vmatprep.subr.bf16.mxu0 0
      %2233 = vmatpush1.bf16.msra.mxu0 0
      %2234 = vmatprep.subr.bf16.mxu0 0
      %2235 = vmatpush1.bf16.msra.mxu0 0
      %2236 = vmatprep.subr.bf16.mxu0 0
      %2237 = vmatpush1.bf16.msra.mxu0 0
      %2238 = vmatprep.subr.bf16.mxu0 0
      %2239 = vmatpush1.bf16.msra.mxu0 0
      %2240 = vmatprep.subr.bf16.mxu0 %v2181
      %2241 = vmatpush1.bf16.msra.mxu0 %v2178
      %2242 = vmatprep.subr.bf16.mxu0 0
      %2243 = vmatpush2.bf16.msra.mxu0 0
      %2244 = vmatprep.subr.bf16.mxu0 0
      %2245 = vmatpush2.bf16.msra.mxu0 0
      %2246 = vmatprep.subr.bf16.mxu0 0
      %2247 = vmatpush2.bf16.msra.mxu0 0
      %2248 = vmatprep.subr.bf16.mxu0 0
      %2249 = vmatpush2.bf16.msra.mxu0 0
      %2250 = vmatprep.subr.bf16.mxu0 0
      %2251 = vmatpush2.bf16.msra.mxu0 0
      %2252 = vmatprep.subr.bf16.mxu0 0
      %2253 = vmatpush2.bf16.msra.mxu0 0
      %2254 = vmatprep.subr.bf16.mxu0 0
      %2255 = vmatpush2.bf16.msra.mxu0 0
      %2256 = vmatprep.subr.bf16.mxu0 0
      %2257 = vmatpush2.bf16.msra.mxu0 0
      %2258 = vmatprep.mubr.bf16.mxu0 0
      %2259 = vmatmul.mubr.bf16.gmra.mxu0 %v2168
      %v2260 = vpop.f32.mrf.mxu0
      %v2261 = vadd.f32 0.0, %v2260
      %v2262 = vpop.f32.mrf.mxu0
      %v2263 = vadd.f32 0.0, %v2262
      %v2264 = vpop.f32.mrf.mxu0
      %v2265 = vadd.f32 0.0, %v2264
      %v2266 = vpop.f32.mrf.mxu0
      %v2267 = vadd.f32 0.0, %v2266
      %2268 = vdwg.mxu0
      %v2269 = vtanh.pop %v2218
      %v2270 = vtanh.pop %v2220
      %v2271 = vtanh.pop %v2261
      %v2272 = vtanh.pop %v2263
      %v2273 = vtanh.pop %v2222
      %v2274 = vtanh.pop %v2224
      %v2275 = vtanh.pop %v2265
      %v2276 = vtanh.pop %v2267
      %v2277 = vld [vmem:[%s6] sm:$0xf]
      %v2278 = vpack.c.bf16 %v1703, %v1703
      %v2279 = vpack.c.bf16 %v1704, %v1704
      %v2280 = vpack.c.bf16 %v1705, %v1705
      %v2281 = vpack.c.bf16 %v1706, %v1706
      %v2283 = vsel %vm2166, %v2277, 0
      %v2286 = vsel %vm2170, %v2278, 0
      %v2289 = vsel %vm2170, %v2279, 0
      %v2292 = vsel %vm2170, %v2280, 0
      %v2295 = vsel %vm2170, %v2281, 0
      %2297 = vmatprep.subr.bf16.mxu0 0
      %2298 = vmatpush1.bf16.msra.mxu0 0
      %2299 = vmatprep.subr.bf16.mxu0 0
      %2300 = vmatpush1.bf16.msra.mxu0 0
      %2301 = vmatprep.subr.bf16.mxu0 0
      %2302 = vmatpush1.bf16.msra.mxu0 0
      %2303 = vmatprep.subr.bf16.mxu0 0
      %2304 = vmatpush1.bf16.msra.mxu0 0
      %2305 = vmatprep.subr.bf16.mxu0 0
      %2306 = vmatpush1.bf16.msra.mxu0 0
      %2307 = vmatprep.subr.bf16.mxu0 0
      %2308 = vmatpush1.bf16.msra.mxu0 0
      %2309 = vmatprep.subr.bf16.mxu0 0
      %2310 = vmatpush1.bf16.msra.mxu0 0
      %2311 = vmatprep.subr.bf16.mxu0 %v2289
      %2312 = vmatpush1.bf16.msra.mxu0 %v2286
      %2313 = vmatprep.subr.bf16.mxu0 0
      %2314 = vmatpush2.bf16.msra.mxu0 0
      %2315 = vmatprep.subr.bf16.mxu0 0
      %2316 = vmatpush2.bf16.msra.mxu0 0
      %2317 = vmatprep.subr.bf16.mxu0 0
      %2318 = vmatpush2.bf16.msra.mxu0 0
      %2319 = vmatprep.subr.bf16.mxu0 0
      %2320 = vmatpush2.bf16.msra.mxu0 0
      %2321 = vmatprep.subr.bf16.mxu0 0
      %2322 = vmatpush2.bf16.msra.mxu0 0
      %2323 = vmatprep.subr.bf16.mxu0 0
      %2324 = vmatpush2.bf16.msra.mxu0 0
      %2325 = vmatprep.subr.bf16.mxu0 0
      %2326 = vmatpush2.bf16.msra.mxu0 0
      %2327 = vmatprep.subr.bf16.mxu0 0
      %2328 = vmatpush2.bf16.msra.mxu0 0
      %2329 = vmatprep.mubr.bf16.mxu0 0
      %2330 = vmatmul.mubr.bf16.gmra.mxu0 %v2283
      %v2331 = vpop.f32.mrf.mxu0
      %v2332 = vadd.f32 0.0, %v2331
      %v2333 = vpop.f32.mrf.mxu0
      %v2334 = vadd.f32 0.0, %v2333
      %v2335 = vpop.f32.mrf.mxu0
      %v2336 = vpop.f32.mrf.mxu0
      %2337 = vdwg.mxu0
      %2338 = vmatprep.subr.bf16.mxu0 0
      %2339 = vmatpush1.bf16.msra.mxu0 0
      %2340 = vmatprep.subr.bf16.mxu0 0
      %2341 = vmatpush1.bf16.msra.mxu0 0
      %2342 = vmatprep.subr.bf16.mxu0 0
      %2343 = vmatpush1.bf16.msra.mxu0 0
      %2344 = vmatprep.subr.bf16.mxu0 0
      %2345 = vmatpush1.bf16.msra.mxu0 0
      %2346 = vmatprep.subr.bf16.mxu0 0
      %2347 = vmatpush1.bf16.msra.mxu0 0
      %2348 = vmatprep.subr.bf16.mxu0 0
      %2349 = vmatpush1.bf16.msra.mxu0 0
      %2350 = vmatprep.subr.bf16.mxu0 0
      %2351 = vmatpush1.bf16.msra.mxu0 0
      %2352 = vmatprep.subr.bf16.mxu0 %v2295
      %2353 = vmatpush1.bf16.msra.mxu0 %v2292
      %2354 = vmatprep.subr.bf16.mxu0 0
      %2355 = vmatpush2.bf16.msra.mxu0 0
      %2356 = vmatprep.subr.bf16.mxu0 0
      %2357 = vmatpush2.bf16.msra.mxu0 0
      %2358 = vmatprep.subr.bf16.mxu0 0
      %2359 = vmatpush2.bf16.msra.mxu0 0
      %2360 = vmatprep.subr.bf16.mxu0 0
      %2361 = vmatpush2.bf16.msra.mxu0 0
      %2362 = vmatprep.subr.bf16.mxu0 0
      %2363 = vmatpush2.bf16.msra.mxu0 0
      %2364 = vmatprep.subr.bf16.mxu0 0
      %2365 = vmatpush2.bf16.msra.mxu0 0
      %2366 = vmatprep.subr.bf16.mxu0 0
      %2367 = vmatpush2.bf16.msra.mxu0 0
      %2368 = vmatprep.subr.bf16.mxu0 0
      %2369 = vmatpush2.bf16.msra.mxu0 0
      %2370 = vmatprep.mubr.bf16.mxu0 0
      %2371 = vmatmul.mubr.bf16.gmra.mxu0 %v2283
      %v2372 = vpop.f32.mrf.mxu0
      %v2373 = vadd.f32 0.0, %v2372
      %v2374 = vpop.f32.mrf.mxu0
      %v2375 = vadd.f32 0.0, %v2374
      %v2376 = vpop.f32.mrf.mxu0
      %v2377 = vpop.f32.mrf.mxu0
      %2378 = vdwg.mxu0
      %v2379 = vmul.f32 %v2273, %v2332
      %v2380 = vmul.f32 %v2274, %v2334
      %v2381 = vmul.f32 %v2275, %v2373
      %v2382 = vmul.f32 %v2276, %v2375
      %v2383 = vpack.c.bf16 %v1927, %v1927
      %v2384 = vpack.c.bf16 %v1928, %v1928
      %v2385 = vpack.c.bf16 %v1929, %v1929
      %v2386 = vpack.c.bf16 %v1930, %v1930
      %v2388 = vsel %vm2170, %v2383, 0
      %v2391 = vsel %vm2170, %v2384, 0
      %v2394 = vsel %vm2170, %v2385, 0
      %v2397 = vsel %vm2170, %v2386, 0
      %2399 = vmatprep.subr.bf16.mxu0 0
      %2400 = vmatpush1.bf16.msra.mxu0 0
      %2401 = vmatprep.subr.bf16.mxu0 0
      %2402 = vmatpush1.bf16.msra.mxu0 0
      %2403 = vmatprep.subr.bf16.mxu0 0
      %2404 = vmatpush1.bf16.msra.mxu0 0
      %2405 = vmatprep.subr.bf16.mxu0 0
      %2406 = vmatpush1.bf16.msra.mxu0 0
      %2407 = vmatprep.subr.bf16.mxu0 0
      %2408 = vmatpush1.bf16.msra.mxu0 0
      %2409 = vmatprep.subr.bf16.mxu0 0
      %2410 = vmatpush1.bf16.msra.mxu0 0
      %2411 = vmatprep.subr.bf16.mxu0 0
      %2412 = vmatpush1.bf16.msra.mxu0 0
      %2413 = vmatprep.subr.bf16.mxu0 %v2391
      %2414 = vmatpush1.bf16.msra.mxu0 %v2388
      %2415 = vmatprep.subr.bf16.mxu0 0
      %2416 = vmatpush2.bf16.msra.mxu0 0
      %2417 = vmatprep.subr.bf16.mxu0 0
      %2418 = vmatpush2.bf16.msra.mxu0 0
      %2419 = vmatprep.subr.bf16.mxu0 0
      %2420 = vmatpush2.bf16.msra.mxu0 0
      %2421 = vmatprep.subr.bf16.mxu0 0
      %2422 = vmatpush2.bf16.msra.mxu0 0
      %2423 = vmatprep.subr.bf16.mxu0 0
      %2424 = vmatpush2.bf16.msra.mxu0 0
      %2425 = vmatprep.subr.bf16.mxu0 0
      %2426 = vmatpush2.bf16.msra.mxu0 0
      %2427 = vmatprep.subr.bf16.mxu0 0
      %2428 = vmatpush2.bf16.msra.mxu0 0
      %2429 = vmatprep.subr.bf16.mxu0 0
      %2430 = vmatpush2.bf16.msra.mxu0 0
      %2431 = vmatprep.mubr.bf16.mxu0 0
      %2432 = vmatmul.mubr.bf16.gmra.mxu0 %v2283
      %v2433 = vpop.f32.mrf.mxu0
      %v2434 = vadd.f32 0.0, %v2433
      %v2435 = vpop.f32.mrf.mxu0
      %v2436 = vadd.f32 0.0, %v2435
      %v2437 = vpop.f32.mrf.mxu0
      %v2438 = vpop.f32.mrf.mxu0
      %2439 = vdwg.mxu0
      %2440 = vmatprep.subr.bf16.mxu0 0
      %2441 = vmatpush1.bf16.msra.mxu0 0
      %2442 = vmatprep.subr.bf16.mxu0 0
      %2443 = vmatpush1.bf16.msra.mxu0 0
      %2444 = vmatprep.subr.bf16.mxu0 0
      %2445 = vmatpush1.bf16.msra.mxu0 0
      %2446 = vmatprep.subr.bf16.mxu0 0
      %2447 = vmatpush1.bf16.msra.mxu0 0
      %2448 = vmatprep.subr.bf16.mxu0 0
      %2449 = vmatpush1.bf16.msra.mxu0 0
      %2450 = vmatprep.subr.bf16.mxu0 0
      %2451 = vmatpush1.bf16.msra.mxu0 0
      %2452 = vmatprep.subr.bf16.mxu0 0
      %2453 = vmatpush1.bf16.msra.mxu0 0
      %2454 = vmatprep.subr.bf16.mxu0 %v2397
      %2455 = vmatpush1.bf16.msra.mxu0 %v2394
      %2456 = vmatprep.subr.bf16.mxu0 0
      %2457 = vmatpush2.bf16.msra.mxu0 0
      %2458 = vmatprep.subr.bf16.mxu0 0
      %2459 = vmatpush2.bf16.msra.mxu0 0
      %2460 = vmatprep.subr.bf16.mxu0 0
      %2461 = vmatpush2.bf16.msra.mxu0 0
      %2462 = vmatprep.subr.bf16.mxu0 0
      %2463 = vmatpush2.bf16.msra.mxu0 0
      %2464 = vmatprep.subr.bf16.mxu0 0
      %2465 = vmatpush2.bf16.msra.mxu0 0
      %2466 = vmatprep.subr.bf16.mxu0 0
      %2467 = vmatpush2.bf16.msra.mxu0 0
      %2468 = vmatprep.subr.bf16.mxu0 0
      %2469 = vmatpush2.bf16.msra.mxu0 0
      %2470 = vmatprep.subr.bf16.mxu0 0
      %2471 = vmatpush2.bf16.msra.mxu0 0
      %2472 = vmatprep.mubr.bf16.mxu0 0
      %2473 = vmatmul.mubr.bf16.gmra.mxu0 %v2283
      %v2474 = vpop.f32.mrf.mxu0
      %v2475 = vadd.f32 0.0, %v2474
      %v2476 = vpop.f32.mrf.mxu0
      %v2477 = vadd.f32 0.0, %v2476
      %v2478 = vpop.f32.mrf.mxu0
      %v2479 = vpop.f32.mrf.mxu0
      %2480 = vdwg.mxu0
      %v2481 = vmul.f32 %v2273, %v2434
      %v2482 = vmul.f32 %v2274, %v2436
      %v2483 = vmul.f32 %v2275, %v2475
      %v2484 = vmul.f32 %v2276, %v2477
      %v2485 = vpack.c.bf16 %v2151, %v2151
      %v2486 = vpack.c.bf16 %v2152, %v2152
      %v2487 = vpack.c.bf16 %v2153, %v2153
      %v2488 = vpack.c.bf16 %v2154, %v2154
      %v2490 = vsel %vm2170, %v2485, 0
      %v2493 = vsel %vm2170, %v2486, 0
      %v2496 = vsel %vm2170, %v2487, 0
      %v2499 = vsel %vm2170, %v2488, 0
      %2501 = vmatprep.subr.bf16.mxu0 0
      %2502 = vmatpush1.bf16.msra.mxu0 0
      %2503 = vmatprep.subr.bf16.mxu0 0
      %2504 = vmatpush1.bf16.msra.mxu0 0
      %2505 = vmatprep.subr.bf16.mxu0 0
      %2506 = vmatpush1.bf16.msra.mxu0 0
      %2507 = vmatprep.subr.bf16.mxu0 0
      %2508 = vmatpush1.bf16.msra.mxu0 0
      %2509 = vmatprep.subr.bf16.mxu0 0
      %2510 = vmatpush1.bf16.msra.mxu0 0
      %2511 = vmatprep.subr.bf16.mxu0 0
      %2512 = vmatpush1.bf16.msra.mxu0 0
      %2513 = vmatprep.subr.bf16.mxu0 0
      %2514 = vmatpush1.bf16.msra.mxu0 0
      %2515 = vmatprep.subr.bf16.mxu0 %v2493
      %2516 = vmatpush1.bf16.msra.mxu0 %v2490
      %2517 = vmatprep.subr.bf16.mxu0 0
      %2518 = vmatpush2.bf16.msra.mxu0 0
      %2519 = vmatprep.subr.bf16.mxu0 0
      %2520 = vmatpush2.bf16.msra.mxu0 0
      %2521 = vmatprep.subr.bf16.mxu0 0
      %2522 = vmatpush2.bf16.msra.mxu0 0
      %2523 = vmatprep.subr.bf16.mxu0 0
      %2524 = vmatpush2.bf16.msra.mxu0 0
      %2525 = vmatprep.subr.bf16.mxu0 0
      %2526 = vmatpush2.bf16.msra.mxu0 0
      %2527 = vmatprep.subr.bf16.mxu0 0
      %2528 = vmatpush2.bf16.msra.mxu0 0
      %2529 = vmatprep.subr.bf16.mxu0 0
      %2530 = vmatpush2.bf16.msra.mxu0 0
      %2531 = vmatprep.subr.bf16.mxu0 0
      %2532 = vmatpush2.bf16.msra.mxu0 0
      %2533 = vmatprep.mubr.bf16.mxu0 0
      %2534 = vmatmul.mubr.bf16.gmra.mxu0 %v2283
      %v2535 = vpop.f32.mrf.mxu0
      %v2536 = vadd.f32 0.0, %v2535
      %v2537 = vpop.f32.mrf.mxu0
      %v2538 = vadd.f32 0.0, %v2537
      %v2539 = vpop.f32.mrf.mxu0
      %v2540 = vpop.f32.mrf.mxu0
      %2541 = vdwg.mxu0
      %2542 = vmatprep.subr.bf16.mxu0 0
      %2543 = vmatpush1.bf16.msra.mxu0 0
      %2544 = vmatprep.subr.bf16.mxu0 0
      %2545 = vmatpush1.bf16.msra.mxu0 0
      %2546 = vmatprep.subr.bf16.mxu0 0
      %2547 = vmatpush1.bf16.msra.mxu0 0
      %2548 = vmatprep.subr.bf16.mxu0 0
      %2549 = vmatpush1.bf16.msra.mxu0 0
      %2550 = vmatprep.subr.bf16.mxu0 0
      %2551 = vmatpush1.bf16.msra.mxu0 0
      %2552 = vmatprep.subr.bf16.mxu0 0
      %2553 = vmatpush1.bf16.msra.mxu0 0
      %2554 = vmatprep.subr.bf16.mxu0 0
      %2555 = vmatpush1.bf16.msra.mxu0 0
      %2556 = vmatprep.subr.bf16.mxu0 %v2499
      %2557 = vmatpush1.bf16.msra.mxu0 %v2496
      %2558 = vmatprep.subr.bf16.mxu0 0
      %2559 = vmatpush2.bf16.msra.mxu0 0
      %2560 = vmatprep.subr.bf16.mxu0 0
      %2561 = vmatpush2.bf16.msra.mxu0 0
      %2562 = vmatprep.subr.bf16.mxu0 0
      %2563 = vmatpush2.bf16.msra.mxu0 0
      %2564 = vmatprep.subr.bf16.mxu0 0
      %2565 = vmatpush2.bf16.msra.mxu0 0
      %2566 = vmatprep.subr.bf16.mxu0 0
      %2567 = vmatpush2.bf16.msra.mxu0 0
      %2568 = vmatprep.subr.bf16.mxu0 0
      %2569 = vmatpush2.bf16.msra.mxu0 0
      %2570 = vmatprep.subr.bf16.mxu0 0
      %2571 = vmatpush2.bf16.msra.mxu0 0
      %2572 = vmatprep.subr.bf16.mxu0 0
      %2573 = vmatpush2.bf16.msra.mxu0 0
      %2574 = vmatprep.mubr.bf16.mxu0 0
      %2575 = vmatmul.mubr.bf16.gmra.mxu0 %v2283
      %v2576 = vpop.f32.mrf.mxu0
      %v2577 = vadd.f32 0.0, %v2576
      %v2578 = vpop.f32.mrf.mxu0
      %v2579 = vadd.f32 0.0, %v2578
      %v2580 = vpop.f32.mrf.mxu0
      %v2581 = vpop.f32.mrf.mxu0
      %2582 = vdwg.mxu0
      %v2583 = vmul.f32 %v2273, %v2536
      %v2584 = vmul.f32 %v2274, %v2538
      %v2585 = vmul.f32 %v2275, %v2577
      %v2586 = vmul.f32 %v2276, %v2579
      %v2587 = vld [vmem:[%s7] sm:$0xf]
      %v2588 = vld [vmem:[%s7 + $0x4] sm:$0xf]
      %v2589 = vld [vmem:[%s7 + $0x8] sm:$0xf]
      %v2590 = vld [vmem:[%s7 + $0xc] sm:$0xf]
      %v2591 = vld [vmem:[%s7 + $0x10] sm:$0xf]
      %v2592 = vld [vmem:[%s7 + $0x14] sm:$0xf]
      %v2593 = vld [vmem:[%s7 + $0x18] sm:$0xf]
      %v2594 = vld [vmem:[%s7 + $0x1c] sm:$0xf]
      %v2595 = vpack.c.bf16 %v2379, %v2269
      %v2596 = vpack.c.bf16 %v2380, %v2270
      %v2597 = vpack.c.bf16 %v2381, %v2271
      %v2598 = vpack.c.bf16 %v2382, %v2272
      %v2599 = vpack.c.bf16 %v2583, %v2481
      %v2600 = vpack.c.bf16 %v2584, %v2482
      %v2601 = vpack.c.bf16 %v2585, %v2483
      %v2602 = vpack.c.bf16 %v2586, %v2484
      %v2611 = vunpack.c.l.b16 %v2587
      %v2612 = vunpack.c.l.b16 %v2588
      %v2613 = vunpack.c.l.b16 %v2589
      %v2614 = vunpack.c.l.b16 %v2590
      %v2615 = vunpack.c.l.b16 %v2591
      %v2616 = vunpack.c.l.b16 %v2592
      %v2617 = vunpack.c.l.b16 %v2593
      %v2618 = vunpack.c.l.b16 %v2594
      %v2619 = vpack.c.b16 %v2612, %v2611
      %v2620 = vpack.c.b16 %v2614, %v2613
      %v2621 = vpack.c.b16 %v2616, %v2615
      %v2622 = vpack.c.b16 %v2618, %v2617
      %vm2623 = vcmask 261120
      %v2625 = vsel %vm2623, %v2619, 0
      %v2628 = vsel %vm2623, %v2620, 0
      %v2631 = vsel %vm2623, %v2621, 0
      %v2634 = vsel %vm2623, %v2622, 0
      %2636 = vmatprep.subr.bf16.mxu0 0
      %2637 = vmatpush1.bf16.msra.mxu0 0
      %2638 = vmatprep.subr.bf16.mxu0 0
      %2639 = vmatpush1.bf16.msra.mxu0 0
      %2640 = vmatprep.subr.bf16.mxu0 0
      %2641 = vmatpush1.bf16.msra.mxu0 0
      %2642 = vmatprep.subr.bf16.mxu0 0
      %2643 = vmatpush1.bf16.msra.mxu0 0
      %2644 = vmatprep.subr.bf16.mxu0 0
      %2645 = vmatpush1.bf16.msra.mxu0 0
      %2646 = vmatprep.subr.bf16.mxu0 0
      %2647 = vmatpush1.bf16.msra.mxu0 0
      %2648 = vmatprep.subr.bf16.mxu0 %v2600
      %2649 = vmatpush1.bf16.msra.mxu0 %v2599
      %2650 = vmatprep.subr.bf16.mxu0 %v2596
      %2651 = vmatpush1.bf16.msra.mxu0 %v2595
      %2652 = vmatprep.subr.bf16.mxu0 0
      %2653 = vmatpush2.bf16.msra.mxu0 0
      %2654 = vmatprep.subr.bf16.mxu0 0
      %2655 = vmatpush2.bf16.msra.mxu0 0
      %2656 = vmatprep.subr.bf16.mxu0 0
      %2657 = vmatpush2.bf16.msra.mxu0 0
      %2658 = vmatprep.subr.bf16.mxu0 0
      %2659 = vmatpush2.bf16.msra.mxu0 0
      %2660 = vmatprep.subr.bf16.mxu0 0
      %2661 = vmatpush2.bf16.msra.mxu0 0
      %2662 = vmatprep.subr.bf16.mxu0 0
      %2663 = vmatpush2.bf16.msra.mxu0 0
      %2664 = vmatprep.subr.bf16.mxu0 0
      %2665 = vmatpush2.bf16.msra.mxu0 0
      %2666 = vmatprep.subr.bf16.mxu0 0
      %2667 = vmatpush2.bf16.msra.mxu0 0
      %2668 = vmatprep.mubr.bf16.mxu0 0
      %2669 = vmatmul.mubr.bf16.gmra.mxu0 %v2625
      %v2670 = vpop.f32.mrf.mxu0
      %v2671 = vadd.f32 0.0, %v2670
      %v2672 = vpop.f32.mrf.mxu0
      %v2673 = vadd.f32 0.0, %v2672
      %v2674 = vpop.f32.mrf.mxu0
      %v2675 = vadd.f32 0.0, %v2674
      %v2676 = vpop.f32.mrf.mxu0
      %v2677 = vadd.f32 0.0, %v2676
      %2678 = vmatprep.mubr.bf16.mxu0 0
      %2679 = vmatmul.mubr.bf16.gmra.mxu0 %v2628
      %v2680 = vpop.f32.mrf.mxu0
      %v2681 = vadd.f32 0.0, %v2680
      %v2682 = vpop.f32.mrf.mxu0
      %v2683 = vadd.f32 0.0, %v2682
      %v2684 = vpop.f32.mrf.mxu0
      %v2685 = vadd.f32 0.0, %v2684
      %v2686 = vpop.f32.mrf.mxu0
      %v2687 = vadd.f32 0.0, %v2686
      %2688 = vmatprep.mubr.bf16.mxu0 0
      %2689 = vmatmul.mubr.bf16.gmra.mxu0 %v2631
      %v2690 = vpop.f32.mrf.mxu0
      %v2691 = vadd.f32 0.0, %v2690
      %v2692 = vpop.f32.mrf.mxu0
      %v2693 = vadd.f32 0.0, %v2692
      %v2694 = vpop.f32.mrf.mxu0
      %v2695 = vadd.f32 0.0, %v2694
      %v2696 = vpop.f32.mrf.mxu0
      %v2697 = vadd.f32 0.0, %v2696
      %2698 = vmatprep.mubr.bf16.mxu0 0
      %2699 = vmatmul.mubr.bf16.gmra.mxu0 %v2634
      %v2700 = vpop.f32.mrf.mxu0
      %v2701 = vadd.f32 0.0, %v2700
      %v2702 = vpop.f32.mrf.mxu0
      %v2703 = vadd.f32 0.0, %v2702
      %v2704 = vpop.f32.mrf.mxu0
      %v2705 = vadd.f32 0.0, %v2704
      %v2706 = vpop.f32.mrf.mxu0
      %v2707 = vadd.f32 0.0, %v2706
      %2708 = vdwg.mxu0
      %2709 = vmatprep.subr.bf16.mxu0 0
      %2710 = vmatpush1.bf16.msra.mxu0 0
      %2711 = vmatprep.subr.bf16.mxu0 0
      %2712 = vmatpush1.bf16.msra.mxu0 0
      %2713 = vmatprep.subr.bf16.mxu0 0
      %2714 = vmatpush1.bf16.msra.mxu0 0
      %2715 = vmatprep.subr.bf16.mxu0 0
      %2716 = vmatpush1.bf16.msra.mxu0 0
      %2717 = vmatprep.subr.bf16.mxu0 0
      %2718 = vmatpush1.bf16.msra.mxu0 0
      %2719 = vmatprep.subr.bf16.mxu0 0
      %2720 = vmatpush1.bf16.msra.mxu0 0
      %2721 = vmatprep.subr.bf16.mxu0 %v2602
      %2722 = vmatpush1.bf16.msra.mxu0 %v2601
      %2723 = vmatprep.subr.bf16.mxu0 %v2598
      %2724 = vmatpush1.bf16.msra.mxu0 %v2597
      %2725 = vmatprep.subr.bf16.mxu0 0
      %2726 = vmatpush2.bf16.msra.mxu0 0
      %2727 = vmatprep.subr.bf16.mxu0 0
      %2728 = vmatpush2.bf16.msra.mxu0 0
      %2729 = vmatprep.subr.bf16.mxu0 0
      %2730 = vmatpush2.bf16.msra.mxu0 0
      %2731 = vmatprep.subr.bf16.mxu0 0
      %2732 = vmatpush2.bf16.msra.mxu0 0
      %2733 = vmatprep.subr.bf16.mxu0 0
      %2734 = vmatpush2.bf16.msra.mxu0 0
      %2735 = vmatprep.subr.bf16.mxu0 0
      %2736 = vmatpush2.bf16.msra.mxu0 0
      %2737 = vmatprep.subr.bf16.mxu0 0
      %2738 = vmatpush2.bf16.msra.mxu0 0
      %2739 = vmatprep.subr.bf16.mxu0 0
      %2740 = vmatpush2.bf16.msra.mxu0 0
      %2741 = vmatprep.mubr.bf16.mxu0 0
      %2742 = vmatmul.mubr.bf16.gmra.mxu0 %v2625
      %v2743 = vpop.f32.mrf.mxu0
      %v2744 = vadd.f32 0.0, %v2743
      %v2745 = vpop.f32.mrf.mxu0
      %v2746 = vadd.f32 0.0, %v2745
      %v2747 = vpop.f32.mrf.mxu0
      %v2748 = vadd.f32 0.0, %v2747
      %v2749 = vpop.f32.mrf.mxu0
      %v2750 = vadd.f32 0.0, %v2749
      %2751 = vmatprep.mubr.bf16.mxu0 0
      %2752 = vmatmul.mubr.bf16.gmra.mxu0 %v2628
      %v2753 = vpop.f32.mrf.mxu0
      %v2754 = vadd.f32 0.0, %v2753
      %v2755 = vpop.f32.mrf.mxu0
      %v2756 = vadd.f32 0.0, %v2755
      %v2757 = vpop.f32.mrf.mxu0
      %v2758 = vadd.f32 0.0, %v2757
      %v2759 = vpop.f32.mrf.mxu0
      %v2760 = vadd.f32 0.0, %v2759
      %2761 = vmatprep.mubr.bf16.mxu0 0
      %2762 = vmatmul.mubr.bf16.gmra.mxu0 %v2631
      %v2763 = vpop.f32.mrf.mxu0
      %v2764 = vadd.f32 0.0, %v2763
      %v2765 = vpop.f32.mrf.mxu0
      %v2766 = vadd.f32 0.0, %v2765
      %v2767 = vpop.f32.mrf.mxu0
      %v2768 = vadd.f32 0.0, %v2767
      %v2769 = vpop.f32.mrf.mxu0
      %v2770 = vadd.f32 0.0, %v2769
      %2771 = vmatprep.mubr.bf16.mxu0 0
      %2772 = vmatmul.mubr.bf16.gmra.mxu0 %v2634
      %v2773 = vpop.f32.mrf.mxu0
      %v2774 = vadd.f32 0.0, %v2773
      %v2775 = vpop.f32.mrf.mxu0
      %v2776 = vadd.f32 0.0, %v2775
      %v2777 = vpop.f32.mrf.mxu0
      %v2778 = vadd.f32 0.0, %v2777
      %v2779 = vpop.f32.mrf.mxu0
      %v2780 = vadd.f32 0.0, %v2779
      %2781 = vdwg.mxu0
      %v2782 = vld [vmem:[%s8] sm:$0xf]
      %v2783 = vld [vmem:[%s8 + $0x4] sm:$0xf]
      %v2784 = vld [vmem:[%s8 + $0x8] sm:$0xf]
      %v2785 = vld [vmem:[%s8 + $0xc] sm:$0xf]
      %v2786 = vld [vmem:[%s8 + $0x10] sm:$0xf]
      %v2787 = vld [vmem:[%s8 + $0x14] sm:$0xf]
      %v2788 = vld [vmem:[%s8 + $0x18] sm:$0xf]
      %v2789 = vld [vmem:[%s8 + $0x1c] sm:$0xf]
      %v2790 = vld [vmem:[%s8 + $0x20] sm:$0xf]
      %v2791 = vld [vmem:[%s8 + $0x24] sm:$0xf]
      %v2792 = vld [vmem:[%s8 + $0x28] sm:$0xf]
      %v2793 = vld [vmem:[%s8 + $0x2c] sm:$0xf]
      %v2794 = vld [vmem:[%s8 + $0x30] sm:$0xf]
      %v2795 = vld [vmem:[%s8 + $0x34] sm:$0xf]
      %v2796 = vld [vmem:[%s8 + $0x38] sm:$0xf]
      %v2797 = vld [vmem:[%s8 + $0x3c] sm:$0xf]
      %v2798 = vld [vmem:[%s8 + $0x40] sm:$0xf]
      %v2799 = vld [vmem:[%s8 + $0x44] sm:$0xf]
      %v2800 = vld [vmem:[%s8 + $0x48] sm:$0xf]
      %v2801 = vld [vmem:[%s8 + $0x4c] sm:$0xf]
      %v2802 = vld [vmem:[%s8 + $0x50] sm:$0xf]
      %v2803 = vld [vmem:[%s8 + $0x54] sm:$0xf]
      %v2804 = vld [vmem:[%s8 + $0x58] sm:$0xf]
      %v2805 = vld [vmem:[%s8 + $0x5c] sm:$0xf]
      %v2806 = vld [vmem:[%s8 + $0x60] sm:$0xf]
      %v2807 = vld [vmem:[%s8 + $0x64] sm:$0xf]
      %v2808 = vld [vmem:[%s8 + $0x68] sm:$0xf]
      %v2809 = vld [vmem:[%s8 + $0x6c] sm:$0xf]
      %v2810 = vld [vmem:[%s8 + $0x70] sm:$0xf]
      %v2811 = vld [vmem:[%s8 + $0x74] sm:$0xf]
      %v2812 = vld [vmem:[%s8 + $0x78] sm:$0xf]
      %v2813 = vld [vmem:[%s8 + $0x7c] sm:$0xf]
      %v2814 = vpack.c.bf16 %v2675, %v2671
      %v2815 = vpack.c.bf16 %v2677, %v2673
      %v2816 = vpack.c.bf16 %v2748, %v2744
      %v2817 = vpack.c.bf16 %v2750, %v2746
      %v2818 = vpack.c.bf16 %v2685, %v2681
      %v2819 = vpack.c.bf16 %v2687, %v2683
      %v2820 = vpack.c.bf16 %v2758, %v2754
      %v2821 = vpack.c.bf16 %v2760, %v2756
      %v2854 = vunpack.c.l.b16 %v2782
      %v2855 = vunpack.c.l.b16 %v2783
      %v2856 = vunpack.c.l.b16 %v2784
      %v2857 = vunpack.c.l.b16 %v2785
      %v2858 = vunpack.c.l.b16 %v2786
      %v2859 = vunpack.c.l.b16 %v2787
      %v2860 = vunpack.c.l.b16 %v2788
      %v2861 = vunpack.c.l.b16 %v2789
      %v2862 = vunpack.c.l.b16 %v2790
      %v2863 = vunpack.c.l.b16 %v2791
      %v2864 = vunpack.c.l.b16 %v2792
      %v2865 = vunpack.c.l.b16 %v2793
      %v2866 = vunpack.c.l.b16 %v2794
      %v2867 = vunpack.c.l.b16 %v2795
      %v2868 = vunpack.c.l.b16 %v2796
      %v2869 = vunpack.c.l.b16 %v2797
      %v2870 = vunpack.c.l.b16 %v2798
      %v2871 = vunpack.c.l.b16 %v2799
      %v2872 = vunpack.c.l.b16 %v2800
      %v2873 = vunpack.c.l.b16 %v2801
      %v2874 = vunpack.c.l.b16 %v2802
      %v2875 = vunpack.c.l.b16 %v2803
      %v2876 = vunpack.c.l.b16 %v2804
      %v2877 = vunpack.c.l.b16 %v2805
      %v2878 = vunpack.c.l.b16 %v2806
      %v2879 = vunpack.c.l.b16 %v2807
      %v2880 = vunpack.c.l.b16 %v2808
      %v2881 = vunpack.c.l.b16 %v2809
      %v2882 = vunpack.c.l.b16 %v2810
      %v2883 = vunpack.c.l.b16 %v2811
      %v2884 = vunpack.c.l.b16 %v2812
      %v2885 = vunpack.c.l.b16 %v2813
      %v2886 = vpack.c.b16 %v2855, %v2854
      %v2887 = vpack.c.b16 %v2857, %v2856
      %v2888 = vpack.c.b16 %v2859, %v2858
      %v2889 = vpack.c.b16 %v2861, %v2860
      %v2890 = vpack.c.b16 %v2863, %v2862
      %v2891 = vpack.c.b16 %v2865, %v2864
      %v2892 = vpack.c.b16 %v2867, %v2866
      %v2893 = vpack.c.b16 %v2869, %v2868
      %v2894 = vpack.c.b16 %v2871, %v2870
      %v2895 = vpack.c.b16 %v2873, %v2872
      %v2896 = vpack.c.b16 %v2875, %v2874
      %v2897 = vpack.c.b16 %v2877, %v2876
      %v2898 = vpack.c.b16 %v2879, %v2878
      %v2899 = vpack.c.b16 %v2881, %v2880
      %v2900 = vpack.c.b16 %v2883, %v2882
      %v2901 = vpack.c.b16 %v2885, %v2884
      %v2903 = vsel %vm2623, %v2886, 0
      %v2906 = vsel %vm2623, %v2887, 0
      %v2909 = vsel %vm2623, %v2888, 0
      %v2912 = vsel %vm2623, %v2889, 0
      %v2915 = vsel %vm2623, %v2890, 0
      %v2918 = vsel %vm2623, %v2891, 0
      %v2921 = vsel %vm2623, %v2892, 0
      %v2924 = vsel %vm2623, %v2893, 0
      %v2927 = vsel %vm2623, %v2894, 0
      %v2930 = vsel %vm2623, %v2895, 0
      %v2933 = vsel %vm2623, %v2896, 0
      %v2936 = vsel %vm2623, %v2897, 0
      %v2939 = vsel %vm2623, %v2898, 0
      %v2942 = vsel %vm2623, %v2899, 0
      %v2945 = vsel %vm2623, %v2900, 0
      %v2948 = vsel %vm2623, %v2901, 0
      %2950 = vmatprep.subr.bf16.mxu0 0
      %2951 = vmatpush1.bf16.msra.mxu0 0
      %2952 = vmatprep.subr.bf16.mxu0 0
      %2953 = vmatpush1.bf16.msra.mxu0 0
      %2954 = vmatprep.subr.bf16.mxu0 0
      %2955 = vmatpush1.bf16.msra.mxu0 0
      %2956 = vmatprep.subr.bf16.mxu0 0
      %2957 = vmatpush1.bf16.msra.mxu0 0
      %2958 = vmatprep.subr.bf16.mxu0 0
      %2959 = vmatpush1.bf16.msra.mxu0 0
      %2960 = vmatprep.subr.bf16.mxu0 0
      %2961 = vmatpush1.bf16.msra.mxu0 0
      %2962 = vmatprep.subr.bf16.mxu0 %v2819
      %2963 = vmatpush1.bf16.msra.mxu0 %v2818
      %2964 = vmatprep.subr.bf16.mxu0 %v2815
      %2965 = vmatpush1.bf16.msra.mxu0 %v2814
      %2966 = vmatprep.subr.bf16.mxu0 0
      %2967 = vmatpush2.bf16.msra.mxu0 0
      %2968 = vmatprep.subr.bf16.mxu0 0
      %2969 = vmatpush2.bf16.msra.mxu0 0
      %2970 = vmatprep.subr.bf16.mxu0 0
      %2971 = vmatpush2.bf16.msra.mxu0 0
      %2972 = vmatprep.subr.bf16.mxu0 0
      %2973 = vmatpush2.bf16.msra.mxu0 0
      %2974 = vmatprep.subr.bf16.mxu0 0
      %2975 = vmatpush2.bf16.msra.mxu0 0
      %2976 = vmatprep.subr.bf16.mxu0 0
      %2977 = vmatpush2.bf16.msra.mxu0 0
      %2978 = vmatprep.subr.bf16.mxu0 0
      %2979 = vmatpush2.bf16.msra.mxu0 0
      %2980 = vmatprep.subr.bf16.mxu0 0
      %2981 = vmatpush2.bf16.msra.mxu0 0
      %2982 = vmatprep.mubr.bf16.mxu0 0
      %2983 = vmatmul.mubr.bf16.gmra.mxu0 %v2903
      %v2984 = vpop.f32.mrf.mxu0
      %v2985 = vadd.f32 0.0, %v2984
      %v2986 = vpop.f32.mrf.mxu0
      %v2987 = vadd.f32 0.0, %v2986
      %v2988 = vpop.f32.mrf.mxu0
      %v2989 = vadd.f32 0.0, %v2988
      %v2990 = vpop.f32.mrf.mxu0
      %v2991 = vadd.f32 0.0, %v2990
      %2992 = vmatprep.mubr.bf16.mxu0 0
      %2993 = vmatmul.mubr.bf16.gmra.mxu0 %v2906
      %v2994 = vpop.f32.mrf.mxu0
      %v2995 = vadd.f32 0.0, %v2994
      %v2996 = vpop.f32.mrf.mxu0
      %v2997 = vadd.f32 0.0, %v2996
      %v2998 = vpop.f32.mrf.mxu0
      %v2999 = vadd.f32 0.0, %v2998
      %v3000 = vpop.f32.mrf.mxu0
      %v3001 = vadd.f32 0.0, %v3000
      %3002 = vmatprep.mubr.bf16.mxu0 0
      %3003 = vmatmul.mubr.bf16.gmra.mxu0 %v2909
      %v3004 = vpop.f32.mrf.mxu0
      %v3005 = vadd.f32 0.0, %v3004
      %v3006 = vpop.f32.mrf.mxu0
      %v3007 = vadd.f32 0.0, %v3006
      %v3008 = vpop.f32.mrf.mxu0
      %v3009 = vadd.f32 0.0, %v3008
      %v3010 = vpop.f32.mrf.mxu0
      %v3011 = vadd.f32 0.0, %v3010
      %3012 = vmatprep.mubr.bf16.mxu0 0
      %3013 = vmatmul.mubr.bf16.gmra.mxu0 %v2912
      %v3014 = vpop.f32.mrf.mxu0
      %v3015 = vadd.f32 0.0, %v3014
      %v3016 = vpop.f32.mrf.mxu0
      %v3017 = vadd.f32 0.0, %v3016
      %v3018 = vpop.f32.mrf.mxu0
      %v3019 = vadd.f32 0.0, %v3018
      %v3020 = vpop.f32.mrf.mxu0
      %v3021 = vadd.f32 0.0, %v3020
      %3022 = vmatprep.mubr.bf16.mxu0 0
      %3023 = vmatmul.mubr.bf16.gmra.mxu0 %v2915
      %v3024 = vpop.f32.mrf.mxu0
      %v3025 = vadd.f32 0.0, %v3024
      %v3026 = vpop.f32.mrf.mxu0
      %v3027 = vadd.f32 0.0, %v3026
      %v3028 = vpop.f32.mrf.mxu0
      %v3029 = vadd.f32 0.0, %v3028
      %v3030 = vpop.f32.mrf.mxu0
      %v3031 = vadd.f32 0.0, %v3030
      %3032 = vmatprep.mubr.bf16.mxu0 0
      %3033 = vmatmul.mubr.bf16.gmra.mxu0 %v2918
      %v3034 = vpop.f32.mrf.mxu0
      %v3035 = vadd.f32 0.0, %v3034
      %v3036 = vpop.f32.mrf.mxu0
      %v3037 = vadd.f32 0.0, %v3036
      %v3038 = vpop.f32.mrf.mxu0
      %v3039 = vadd.f32 0.0, %v3038
      %v3040 = vpop.f32.mrf.mxu0
      %v3041 = vadd.f32 0.0, %v3040
      %3042 = vmatprep.mubr.bf16.mxu0 0
      %3043 = vmatmul.mubr.bf16.gmra.mxu0 %v2921
      %v3044 = vpop.f32.mrf.mxu0
      %v3045 = vadd.f32 0.0, %v3044
      %v3046 = vpop.f32.mrf.mxu0
      %v3047 = vadd.f32 0.0, %v3046
      %v3048 = vpop.f32.mrf.mxu0
      %v3049 = vadd.f32 0.0, %v3048
      %v3050 = vpop.f32.mrf.mxu0
      %v3051 = vadd.f32 0.0, %v3050
      %3052 = vmatprep.mubr.bf16.mxu0 0
      %3053 = vmatmul.mubr.bf16.gmra.mxu0 %v2924
      %v3054 = vpop.f32.mrf.mxu0
      %v3055 = vadd.f32 0.0, %v3054
      %v3056 = vpop.f32.mrf.mxu0
      %v3057 = vadd.f32 0.0, %v3056
      %v3058 = vpop.f32.mrf.mxu0
      %v3059 = vadd.f32 0.0, %v3058
      %v3060 = vpop.f32.mrf.mxu0
      %v3061 = vadd.f32 0.0, %v3060
      %3062 = vmatprep.mubr.bf16.mxu0 0
      %3063 = vmatmul.mubr.bf16.gmra.mxu0 %v2927
      %v3064 = vpop.f32.mrf.mxu0
      %v3065 = vadd.f32 0.0, %v3064
      %v3066 = vpop.f32.mrf.mxu0
      %v3067 = vadd.f32 0.0, %v3066
      %v3068 = vpop.f32.mrf.mxu0
      %v3069 = vadd.f32 0.0, %v3068
      %v3070 = vpop.f32.mrf.mxu0
      %v3071 = vadd.f32 0.0, %v3070
      %3072 = vmatprep.mubr.bf16.mxu0 0
      %3073 = vmatmul.mubr.bf16.gmra.mxu0 %v2930
      %v3074 = vpop.f32.mrf.mxu0
      %v3075 = vadd.f32 0.0, %v3074
      %v3076 = vpop.f32.mrf.mxu0
      %v3077 = vadd.f32 0.0, %v3076
      %v3078 = vpop.f32.mrf.mxu0
      %v3079 = vadd.f32 0.0, %v3078
      %v3080 = vpop.f32.mrf.mxu0
      %v3081 = vadd.f32 0.0, %v3080
      %3082 = vmatprep.mubr.bf16.mxu0 0
      %3083 = vmatmul.mubr.bf16.gmra.mxu0 %v2933
      %v3084 = vpop.f32.mrf.mxu0
      %v3085 = vadd.f32 0.0, %v3084
      %v3086 = vpop.f32.mrf.mxu0
      %v3087 = vadd.f32 0.0, %v3086
      %v3088 = vpop.f32.mrf.mxu0
      %v3089 = vadd.f32 0.0, %v3088
      %v3090 = vpop.f32.mrf.mxu0
      %v3091 = vadd.f32 0.0, %v3090
      %3092 = vmatprep.mubr.bf16.mxu0 0
      %3093 = vmatmul.mubr.bf16.gmra.mxu0 %v2936
      %v3094 = vpop.f32.mrf.mxu0
      %v3095 = vadd.f32 0.0, %v3094
      %v3096 = vpop.f32.mrf.mxu0
      %v3097 = vadd.f32 0.0, %v3096
      %v3098 = vpop.f32.mrf.mxu0
      %v3099 = vadd.f32 0.0, %v3098
      %v3100 = vpop.f32.mrf.mxu0
      %v3101 = vadd.f32 0.0, %v3100
      %3102 = vmatprep.mubr.bf16.mxu0 0
      %3103 = vmatmul.mubr.bf16.gmra.mxu0 %v2939
      %v3104 = vpop.f32.mrf.mxu0
      %v3105 = vadd.f32 0.0, %v3104
      %v3106 = vpop.f32.mrf.mxu0
      %v3107 = vadd.f32 0.0, %v3106
      %v3108 = vpop.f32.mrf.mxu0
      %v3109 = vadd.f32 0.0, %v3108
      %v3110 = vpop.f32.mrf.mxu0
      %v3111 = vadd.f32 0.0, %v3110
      %3112 = vmatprep.mubr.bf16.mxu0 0
      %3113 = vmatmul.mubr.bf16.gmra.mxu0 %v2942
      %v3114 = vpop.f32.mrf.mxu0
      %v3115 = vadd.f32 0.0, %v3114
      %v3116 = vpop.f32.mrf.mxu0
      %v3117 = vadd.f32 0.0, %v3116
      %v3118 = vpop.f32.mrf.mxu0
      %v3119 = vadd.f32 0.0, %v3118
      %v3120 = vpop.f32.mrf.mxu0
      %v3121 = vadd.f32 0.0, %v3120
      %3122 = vmatprep.mubr.bf16.mxu0 0
      %3123 = vmatmul.mubr.bf16.gmra.mxu0 %v2945
      %v3124 = vpop.f32.mrf.mxu0
      %v3125 = vadd.f32 0.0, %v3124
      %v3126 = vpop.f32.mrf.mxu0
      %v3127 = vadd.f32 0.0, %v3126
      %v3128 = vpop.f32.mrf.mxu0
      %v3129 = vadd.f32 0.0, %v3128
      %v3130 = vpop.f32.mrf.mxu0
      %v3131 = vadd.f32 0.0, %v3130
      %3132 = vmatprep.mubr.bf16.mxu0 0
      %3133 = vmatmul.mubr.bf16.gmra.mxu0 %v2948
      %v3134 = vpop.f32.mrf.mxu0
      %v3135 = vadd.f32 0.0, %v3134
      %v3136 = vpop.f32.mrf.mxu0
      %v3137 = vadd.f32 0.0, %v3136
      %v3138 = vpop.f32.mrf.mxu0
      %v3139 = vadd.f32 0.0, %v3138
      %v3140 = vpop.f32.mrf.mxu0
      %v3141 = vadd.f32 0.0, %v3140
      %3142 = vdwg.mxu0
      %3143 = vmatprep.subr.bf16.mxu0 0
      %3144 = vmatpush1.bf16.msra.mxu0 0
      %3145 = vmatprep.subr.bf16.mxu0 0
      %3146 = vmatpush1.bf16.msra.mxu0 0
      %3147 = vmatprep.subr.bf16.mxu0 0
      %3148 = vmatpush1.bf16.msra.mxu0 0
      %3149 = vmatprep.subr.bf16.mxu0 0
      %3150 = vmatpush1.bf16.msra.mxu0 0
      %3151 = vmatprep.subr.bf16.mxu0 0
      %3152 = vmatpush1.bf16.msra.mxu0 0
      %3153 = vmatprep.subr.bf16.mxu0 0
      %3154 = vmatpush1.bf16.msra.mxu0 0
      %3155 = vmatprep.subr.bf16.mxu0 %v2821
      %3156 = vmatpush1.bf16.msra.mxu0 %v2820
      %3157 = vmatprep.subr.bf16.mxu0 %v2817
      %3158 = vmatpush1.bf16.msra.mxu0 %v2816
      %3159 = vmatprep.subr.bf16.mxu0 0
      %3160 = vmatpush2.bf16.msra.mxu0 0
      %3161 = vmatprep.subr.bf16.mxu0 0
      %3162 = vmatpush2.bf16.msra.mxu0 0
      %3163 = vmatprep.subr.bf16.mxu0 0
      %3164 = vmatpush2.bf16.msra.mxu0 0
      %3165 = vmatprep.subr.bf16.mxu0 0
      %3166 = vmatpush2.bf16.msra.mxu0 0
      %3167 = vmatprep.subr.bf16.mxu0 0
      %3168 = vmatpush2.bf16.msra.mxu0 0
      %3169 = vmatprep.subr.bf16.mxu0 0
      %3170 = vmatpush2.bf16.msra.mxu0 0
      %3171 = vmatprep.subr.bf16.mxu0 0
      %3172 = vmatpush2.bf16.msra.mxu0 0
      %3173 = vmatprep.subr.bf16.mxu0 0
      %3174 = vmatpush2.bf16.msra.mxu0 0
      %3175 = vmatprep.mubr.bf16.mxu0 0
      %3176 = vmatmul.mubr.bf16.gmra.mxu0 %v2903
      %v3177 = vpop.f32.mrf.mxu0
      %v3178 = vadd.f32 0.0, %v3177
      %v3179 = vpop.f32.mrf.mxu0
      %v3180 = vadd.f32 0.0, %v3179
      %v3181 = vpop.f32.mrf.mxu0
      %v3182 = vadd.f32 0.0, %v3181
      %v3183 = vpop.f32.mrf.mxu0
      %v3184 = vadd.f32 0.0, %v3183
      %3185 = vmatprep.mubr.bf16.mxu0 0
      %3186 = vmatmul.mubr.bf16.gmra.mxu0 %v2906
      %v3187 = vpop.f32.mrf.mxu0
      %v3188 = vadd.f32 0.0, %v3187
      %v3189 = vpop.f32.mrf.mxu0
      %v3190 = vadd.f32 0.0, %v3189
      %v3191 = vpop.f32.mrf.mxu0
      %v3192 = vadd.f32 0.0, %v3191
      %v3193 = vpop.f32.mrf.mxu0
      %v3194 = vadd.f32 0.0, %v3193
      %3195 = vmatprep.mubr.bf16.mxu0 0
      %3196 = vmatmul.mubr.bf16.gmra.mxu0 %v2909
      %v3197 = vpop.f32.mrf.mxu0
      %v3198 = vadd.f32 0.0, %v3197
      %v3199 = vpop.f32.mrf.mxu0
      %v3200 = vadd.f32 0.0, %v3199
      %v3201 = vpop.f32.mrf.mxu0
      %v3202 = vadd.f32 0.0, %v3201
      %v3203 = vpop.f32.mrf.mxu0
      %v3204 = vadd.f32 0.0, %v3203
      %3205 = vmatprep.mubr.bf16.mxu0 0
      %3206 = vmatmul.mubr.bf16.gmra.mxu0 %v2912
      %v3207 = vpop.f32.mrf.mxu0
      %v3208 = vadd.f32 0.0, %v3207
      %v3209 = vpop.f32.mrf.mxu0
      %v3210 = vadd.f32 0.0, %v3209
      %v3211 = vpop.f32.mrf.mxu0
      %v3212 = vadd.f32 0.0, %v3211
      %v3213 = vpop.f32.mrf.mxu0
      %v3214 = vadd.f32 0.0, %v3213
      %3215 = vmatprep.mubr.bf16.mxu0 0
      %3216 = vmatmul.mubr.bf16.gmra.mxu0 %v2915
      %v3217 = vpop.f32.mrf.mxu0
      %v3218 = vadd.f32 0.0, %v3217
      %v3219 = vpop.f32.mrf.mxu0
      %v3220 = vadd.f32 0.0, %v3219
      %v3221 = vpop.f32.mrf.mxu0
      %v3222 = vadd.f32 0.0, %v3221
      %v3223 = vpop.f32.mrf.mxu0
      %v3224 = vadd.f32 0.0, %v3223
      %3225 = vmatprep.mubr.bf16.mxu0 0
      %3226 = vmatmul.mubr.bf16.gmra.mxu0 %v2918
      %v3227 = vpop.f32.mrf.mxu0
      %v3228 = vadd.f32 0.0, %v3227
      %v3229 = vpop.f32.mrf.mxu0
      %v3230 = vadd.f32 0.0, %v3229
      %v3231 = vpop.f32.mrf.mxu0
      %v3232 = vadd.f32 0.0, %v3231
      %v3233 = vpop.f32.mrf.mxu0
      %v3234 = vadd.f32 0.0, %v3233
      %3235 = vmatprep.mubr.bf16.mxu0 0
      %3236 = vmatmul.mubr.bf16.gmra.mxu0 %v2921
      %v3237 = vpop.f32.mrf.mxu0
      %v3238 = vadd.f32 0.0, %v3237
      %v3239 = vpop.f32.mrf.mxu0
      %v3240 = vadd.f32 0.0, %v3239
      %v3241 = vpop.f32.mrf.mxu0
      %v3242 = vadd.f32 0.0, %v3241
      %v3243 = vpop.f32.mrf.mxu0
      %v3244 = vadd.f32 0.0, %v3243
      %3245 = vmatprep.mubr.bf16.mxu0 0
      %3246 = vmatmul.mubr.bf16.gmra.mxu0 %v2924
      %v3247 = vpop.f32.mrf.mxu0
      %v3248 = vadd.f32 0.0, %v3247
      %v3249 = vpop.f32.mrf.mxu0
      %v3250 = vadd.f32 0.0, %v3249
      %v3251 = vpop.f32.mrf.mxu0
      %v3252 = vadd.f32 0.0, %v3251
      %v3253 = vpop.f32.mrf.mxu0
      %v3254 = vadd.f32 0.0, %v3253
      %3255 = vmatprep.mubr.bf16.mxu0 0
      %3256 = vmatmul.mubr.bf16.gmra.mxu0 %v2927
      %v3257 = vpop.f32.mrf.mxu0
      %v3258 = vadd.f32 0.0, %v3257
      %v3259 = vpop.f32.mrf.mxu0
      %v3260 = vadd.f32 0.0, %v3259
      %v3261 = vpop.f32.mrf.mxu0
      %v3262 = vadd.f32 0.0, %v3261
      %v3263 = vpop.f32.mrf.mxu0
      %v3264 = vadd.f32 0.0, %v3263
      %3265 = vmatprep.mubr.bf16.mxu0 0
      %3266 = vmatmul.mubr.bf16.gmra.mxu0 %v2930
      %v3267 = vpop.f32.mrf.mxu0
      %v3268 = vadd.f32 0.0, %v3267
      %v3269 = vpop.f32.mrf.mxu0
      %v3270 = vadd.f32 0.0, %v3269
      %v3271 = vpop.f32.mrf.mxu0
      %v3272 = vadd.f32 0.0, %v3271
      %v3273 = vpop.f32.mrf.mxu0
      %v3274 = vadd.f32 0.0, %v3273
      %3275 = vmatprep.mubr.bf16.mxu0 0
      %3276 = vmatmul.mubr.bf16.gmra.mxu0 %v2933
      %v3277 = vpop.f32.mrf.mxu0
      %v3278 = vadd.f32 0.0, %v3277
      %v3279 = vpop.f32.mrf.mxu0
      %v3280 = vadd.f32 0.0, %v3279
      %v3281 = vpop.f32.mrf.mxu0
      %v3282 = vadd.f32 0.0, %v3281
      %v3283 = vpop.f32.mrf.mxu0
      %v3284 = vadd.f32 0.0, %v3283
      %3285 = vmatprep.mubr.bf16.mxu0 0
      %3286 = vmatmul.mubr.bf16.gmra.mxu0 %v2936
      %v3287 = vpop.f32.mrf.mxu0
      %v3288 = vadd.f32 0.0, %v3287
      %v3289 = vpop.f32.mrf.mxu0
      %v3290 = vadd.f32 0.0, %v3289
      %v3291 = vpop.f32.mrf.mxu0
      %v3292 = vadd.f32 0.0, %v3291
      %v3293 = vpop.f32.mrf.mxu0
      %v3294 = vadd.f32 0.0, %v3293
      %3295 = vmatprep.mubr.bf16.mxu0 0
      %3296 = vmatmul.mubr.bf16.gmra.mxu0 %v2939
      %v3297 = vpop.f32.mrf.mxu0
      %v3298 = vadd.f32 0.0, %v3297
      %v3299 = vpop.f32.mrf.mxu0
      %v3300 = vadd.f32 0.0, %v3299
      %v3301 = vpop.f32.mrf.mxu0
      %v3302 = vadd.f32 0.0, %v3301
      %v3303 = vpop.f32.mrf.mxu0
      %v3304 = vadd.f32 0.0, %v3303
      %3305 = vmatprep.mubr.bf16.mxu0 0
      %3306 = vmatmul.mubr.bf16.gmra.mxu0 %v2942
      %v3307 = vpop.f32.mrf.mxu0
      %v3308 = vadd.f32 0.0, %v3307
      %v3309 = vpop.f32.mrf.mxu0
      %v3310 = vadd.f32 0.0, %v3309
      %v3311 = vpop.f32.mrf.mxu0
      %v3312 = vadd.f32 0.0, %v3311
      %v3313 = vpop.f32.mrf.mxu0
      %v3314 = vadd.f32 0.0, %v3313
      %3315 = vmatprep.mubr.bf16.mxu0 0
      %3316 = vmatmul.mubr.bf16.gmra.mxu0 %v2945
      %v3317 = vpop.f32.mrf.mxu0
      %v3318 = vadd.f32 0.0, %v3317
      %v3319 = vpop.f32.mrf.mxu0
      %v3320 = vadd.f32 0.0, %v3319
      %v3321 = vpop.f32.mrf.mxu0
      %v3322 = vadd.f32 0.0, %v3321
      %v3323 = vpop.f32.mrf.mxu0
      %v3324 = vadd.f32 0.0, %v3323
      %3325 = vmatprep.mubr.bf16.mxu0 0
      %3326 = vmatmul.mubr.bf16.gmra.mxu0 %v2948
      %v3327 = vpop.f32.mrf.mxu0
      %v3328 = vadd.f32 0.0, %v3327
      %v3329 = vpop.f32.mrf.mxu0
      %v3330 = vadd.f32 0.0, %v3329
      %v3331 = vpop.f32.mrf.mxu0
      %v3332 = vadd.f32 0.0, %v3331
      %v3333 = vpop.f32.mrf.mxu0
      %v3334 = vadd.f32 0.0, %v3333
      %3335 = vdwg.mxu0
      %v3336 = vld [vmem:[%s9] sm:$0xf]
      %v3337 = vld [vmem:[%s9 + $0x4] sm:$0xf]
      %v3338 = vld [vmem:[%s9 + $0x8] sm:$0xf]
      %v3339 = vld [vmem:[%s9 + $0xc] sm:$0xf]
      %v3340 = vld [vmem:[%s9 + $0x10] sm:$0xf]
      %v3341 = vld [vmem:[%s9 + $0x14] sm:$0xf]
      %v3342 = vld [vmem:[%s9 + $0x18] sm:$0xf]
      %v3343 = vld [vmem:[%s9 + $0x1c] sm:$0xf]
      %v3344 = vpack.c.bf16 %v2671, %v2671
      %v3345 = vpack.c.bf16 %v2673, %v2673
      %v3346 = vpack.c.bf16 %v2744, %v2744
      %v3347 = vpack.c.bf16 %v2746, %v2746
      %v3356 = vunpack.c.l.b16 %v3336
      %v3357 = vunpack.c.l.b16 %v3337
      %v3358 = vunpack.c.l.b16 %v3338
      %v3359 = vunpack.c.l.b16 %v3339
      %v3360 = vunpack.c.l.b16 %v3340
      %v3361 = vunpack.c.l.b16 %v3341
      %v3362 = vunpack.c.l.b16 %v3342
      %v3363 = vunpack.c.l.b16 %v3343
      %v3364 = vpack.c.b16 %v3357, %v3356
      %v3365 = vpack.c.b16 %v3359, %v3358
      %v3366 = vpack.c.b16 %v3361, %v3360
      %v3367 = vpack.c.b16 %v3363, %v3362
      %v3369 = vsel %vm2166, %v3364, 0
      %v3372 = vsel %vm2166, %v3365, 0
      %v3375 = vsel %vm2166, %v3366, 0
      %v3378 = vsel %vm2166, %v3367, 0
      %v3381 = vsel %vm2170, %v3344, 0
      %v3384 = vsel %vm2170, %v3345, 0
      %v3387 = vsel %vm2170, %v3346, 0
      %v3390 = vsel %vm2170, %v3347, 0
      %3392 = vmatprep.subr.bf16.mxu0 0
      %3393 = vmatpush1.bf16.msra.mxu0 0
      %3394 = vmatprep.subr.bf16.mxu0 0
      %3395 = vmatpush1.bf16.msra.mxu0 0
      %3396 = vmatprep.subr.bf16.mxu0 0
      %3397 = vmatpush1.bf16.msra.mxu0 0
      %3398 = vmatprep.subr.bf16.mxu0 0
      %3399 = vmatpush1.bf16.msra.mxu0 0
      %3400 = vmatprep.subr.bf16.mxu0 0
      %3401 = vmatpush1.bf16.msra.mxu0 0
      %3402 = vmatprep.subr.bf16.mxu0 0
      %3403 = vmatpush1.bf16.msra.mxu0 0
      %3404 = vmatprep.subr.bf16.mxu0 0
      %3405 = vmatpush1.bf16.msra.mxu0 0
      %3406 = vmatprep.subr.bf16.mxu0 %v3384
      %3407 = vmatpush1.bf16.msra.mxu0 %v3381
      %3408 = vmatprep.subr.bf16.mxu0 0
      %3409 = vmatpush2.bf16.msra.mxu0 0
      %3410 = vmatprep.subr.bf16.mxu0 0
      %3411 = vmatpush2.bf16.msra.mxu0 0
      %3412 = vmatprep.subr.bf16.mxu0 0
      %3413 = vmatpush2.bf16.msra.mxu0 0
      %3414 = vmatprep.subr.bf16.mxu0 0
      %3415 = vmatpush2.bf16.msra.mxu0 0
      %3416 = vmatprep.subr.bf16.mxu0 0
      %3417 = vmatpush2.bf16.msra.mxu0 0
      %3418 = vmatprep.subr.bf16.mxu0 0
      %3419 = vmatpush2.bf16.msra.mxu0 0
      %3420 = vmatprep.subr.bf16.mxu0 0
      %3421 = vmatpush2.bf16.msra.mxu0 0
      %3422 = vmatprep.subr.bf16.mxu0 0
      %3423 = vmatpush2.bf16.msra.mxu0 0
      %3424 = vmatprep.mubr.bf16.mxu0 0
      %3425 = vmatmul.mubr.bf16.gmra.mxu0 %v3369
      %v3426 = vpop.f32.mrf.mxu0
      %v3427 = vadd.f32 0.0, %v3426
      %v3428 = vpop.f32.mrf.mxu0
      %v3429 = vadd.f32 0.0, %v3428
      %v3430 = vpop.f32.mrf.mxu0
      %v3431 = vadd.f32 0.0, %v3430
      %v3432 = vpop.f32.mrf.mxu0
      %v3433 = vadd.f32 0.0, %v3432
      %3434 = vmatprep.mubr.bf16.mxu0 0
      %3435 = vmatmul.mubr.bf16.gmra.mxu0 %v3372
      %v3436 = vpop.f32.mrf.mxu0
      %v3437 = vadd.f32 0.0, %v3436
      %v3438 = vpop.f32.mrf.mxu0
      %v3439 = vadd.f32 0.0, %v3438
      %v3440 = vpop.f32.mrf.mxu0
      %v3441 = vadd.f32 0.0, %v3440
      %v3442 = vpop.f32.mrf.mxu0
      %v3443 = vadd.f32 0.0, %v3442
      %3444 = vmatprep.mubr.bf16.mxu0 0
      %3445 = vmatmul.mubr.bf16.gmra.mxu0 %v3375
      %v3446 = vpop.f32.mrf.mxu0
      %v3447 = vadd.f32 0.0, %v3446
      %v3448 = vpop.f32.mrf.mxu0
      %v3449 = vadd.f32 0.0, %v3448
      %v3450 = vpop.f32.mrf.mxu0
      %v3451 = vadd.f32 0.0, %v3450
      %v3452 = vpop.f32.mrf.mxu0
      %v3453 = vadd.f32 0.0, %v3452
      %3454 = vmatprep.mubr.bf16.mxu0 0
      %3455 = vmatmul.mubr.bf16.gmra.mxu0 %v3378
      %v3456 = vpop.f32.mrf.mxu0
      %v3457 = vadd.f32 0.0, %v3456
      %v3458 = vpop.f32.mrf.mxu0
      %v3459 = vadd.f32 0.0, %v3458
      %v3460 = vpop.f32.mrf.mxu0
      %v3461 = vadd.f32 0.0, %v3460
      %v3462 = vpop.f32.mrf.mxu0
      %v3463 = vadd.f32 0.0, %v3462
      %3464 = vdwg.mxu0
      %3465 = vmatprep.subr.bf16.mxu0 0
      %3466 = vmatpush1.bf16.msra.mxu0 0
      %3467 = vmatprep.subr.bf16.mxu0 0
      %3468 = vmatpush1.bf16.msra.mxu0 0
      %3469 = vmatprep.subr.bf16.mxu0 0
      %3470 = vmatpush1.bf16.msra.mxu0 0
      %3471 = vmatprep.subr.bf16.mxu0 0
      %3472 = vmatpush1.bf16.msra.mxu0 0
      %3473 = vmatprep.subr.bf16.mxu0 0
      %3474 = vmatpush1.bf16.msra.mxu0 0
      %3475 = vmatprep.subr.bf16.mxu0 0
      %3476 = vmatpush1.bf16.msra.mxu0 0
      %3477 = vmatprep.subr.bf16.mxu0 0
      %3478 = vmatpush1.bf16.msra.mxu0 0
      %3479 = vmatprep.subr.bf16.mxu0 %v3390
      %3480 = vmatpush1.bf16.msra.mxu0 %v3387
      %3481 = vmatprep.subr.bf16.mxu0 0
      %3482 = vmatpush2.bf16.msra.mxu0 0
      %3483 = vmatprep.subr.bf16.mxu0 0
      %3484 = vmatpush2.bf16.msra.mxu0 0
      %3485 = vmatprep.subr.bf16.mxu0 0
      %3486 = vmatpush2.bf16.msra.mxu0 0
      %3487 = vmatprep.subr.bf16.mxu0 0
      %3488 = vmatpush2.bf16.msra.mxu0 0
      %3489 = vmatprep.subr.bf16.mxu0 0
      %3490 = vmatpush2.bf16.msra.mxu0 0
      %3491 = vmatprep.subr.bf16.mxu0 0
      %3492 = vmatpush2.bf16.msra.mxu0 0
      %3493 = vmatprep.subr.bf16.mxu0 0
      %3494 = vmatpush2.bf16.msra.mxu0 0
      %3495 = vmatprep.subr.bf16.mxu0 0
      %3496 = vmatpush2.bf16.msra.mxu0 0
      %3497 = vmatprep.mubr.bf16.mxu0 0
      %3498 = vmatmul.mubr.bf16.gmra.mxu0 %v3369
      %v3499 = vpop.f32.mrf.mxu0
      %v3500 = vadd.f32 0.0, %v3499
      %v3501 = vpop.f32.mrf.mxu0
      %v3502 = vadd.f32 0.0, %v3501
      %v3503 = vpop.f32.mrf.mxu0
      %v3504 = vadd.f32 0.0, %v3503
      %v3505 = vpop.f32.mrf.mxu0
      %v3506 = vadd.f32 0.0, %v3505
      %3507 = vmatprep.mubr.bf16.mxu0 0
      %3508 = vmatmul.mubr.bf16.gmra.mxu0 %v3372
      %v3509 = vpop.f32.mrf.mxu0
      %v3510 = vadd.f32 0.0, %v3509
      %v3511 = vpop.f32.mrf.mxu0
      %v3512 = vadd.f32 0.0, %v3511
      %v3513 = vpop.f32.mrf.mxu0
      %v3514 = vadd.f32 0.0, %v3513
      %v3515 = vpop.f32.mrf.mxu0
      %v3516 = vadd.f32 0.0, %v3515
      %3517 = vmatprep.mubr.bf16.mxu0 0
      %3518 = vmatmul.mubr.bf16.gmra.mxu0 %v3375
      %v3519 = vpop.f32.mrf.mxu0
      %v3520 = vadd.f32 0.0, %v3519
      %v3521 = vpop.f32.mrf.mxu0
      %v3522 = vadd.f32 0.0, %v3521
      %v3523 = vpop.f32.mrf.mxu0
      %v3524 = vadd.f32 0.0, %v3523
      %v3525 = vpop.f32.mrf.mxu0
      %v3526 = vadd.f32 0.0, %v3525
      %3527 = vmatprep.mubr.bf16.mxu0 0
      %3528 = vmatmul.mubr.bf16.gmra.mxu0 %v3378
      %v3529 = vpop.f32.mrf.mxu0
      %v3530 = vadd.f32 0.0, %v3529
      %v3531 = vpop.f32.mrf.mxu0
      %v3532 = vadd.f32 0.0, %v3531
      %v3533 = vpop.f32.mrf.mxu0
      %v3534 = vadd.f32 0.0, %v3533
      %v3535 = vpop.f32.mrf.mxu0
      %v3536 = vadd.f32 0.0, %v3535
      %3537 = vdwg.mxu0
      %v3538 = vld [vmem:[%s10] sm:$0xf]
      %v3539 = vld [vmem:[%s10 + $0x4] sm:$0xf]
      %v3540 = vld [vmem:[%s10 + $0x8] sm:$0xf]
      %v3541 = vld [vmem:[%s10 + $0xc] sm:$0xf]
      %v3542 = vld [vmem:[%s10 + $0x10] sm:$0xf]
      %v3543 = vld [vmem:[%s10 + $0x14] sm:$0xf]
      %v3544 = vld [vmem:[%s10 + $0x18] sm:$0xf]
      %v3545 = vld [vmem:[%s10 + $0x1c] sm:$0xf]
      %v3546 = vpack.c.bf16 %v2691, %v2691
      %v3547 = vpack.c.bf16 %v2693, %v2693
      %v3548 = vpack.c.bf16 %v2764, %v2764
      %v3549 = vpack.c.bf16 %v2766, %v2766
      %v3558 = vunpack.c.l.b16 %v3538
      %v3559 = vunpack.c.l.b16 %v3539
      %v3560 = vunpack.c.l.b16 %v3540
      %v3561 = vunpack.c.l.b16 %v3541
      %v3562 = vunpack.c.l.b16 %v3542
      %v3563 = vunpack.c.l.b16 %v3543
      %v3564 = vunpack.c.l.b16 %v3544
      %v3565 = vunpack.c.l.b16 %v3545
      %v3566 = vpack.c.b16 %v3559, %v3558
      %v3567 = vpack.c.b16 %v3561, %v3560
      %v3568 = vpack.c.b16 %v3563, %v3562
      %v3569 = vpack.c.b16 %v3565, %v3564
      %v3571 = vsel %vm2166, %v3566, 0
      %v3574 = vsel %vm2166, %v3567, 0
      %v3577 = vsel %vm2166, %v3568, 0
      %v3580 = vsel %vm2166, %v3569, 0
      %v3583 = vsel %vm2170, %v3546, 0
      %v3586 = vsel %vm2170, %v3547, 0
      %v3589 = vsel %vm2170, %v3548, 0
      %v3592 = vsel %vm2170, %v3549, 0
      %3594 = vmatprep.subr.bf16.mxu0 0
      %3595 = vmatpush1.bf16.msra.mxu0 0
      %3596 = vmatprep.subr.bf16.mxu0 0
      %3597 = vmatpush1.bf16.msra.mxu0 0
      %3598 = vmatprep.subr.bf16.mxu0 0
      %3599 = vmatpush1.bf16.msra.mxu0 0
      %3600 = vmatprep.subr.bf16.mxu0 0
      %3601 = vmatpush1.bf16.msra.mxu0 0
      %3602 = vmatprep.subr.bf16.mxu0 0
      %3603 = vmatpush1.bf16.msra.mxu0 0
      %3604 = vmatprep.subr.bf16.mxu0 0
      %3605 = vmatpush1.bf16.msra.mxu0 0
      %3606 = vmatprep.subr.bf16.mxu0 0
      %3607 = vmatpush1.bf16.msra.mxu0 0
      %3608 = vmatprep.subr.bf16.mxu0 %v3586
      %3609 = vmatpush1.bf16.msra.mxu0 %v3583
      %3610 = vmatprep.subr.bf16.mxu0 0
      %3611 = vmatpush2.bf16.msra.mxu0 0
      %3612 = vmatprep.subr.bf16.mxu0 0
      %3613 = vmatpush2.bf16.msra.mxu0 0
      %3614 = vmatprep.subr.bf16.mxu0 0
      %3615 = vmatpush2.bf16.msra.mxu0 0
      %3616 = vmatprep.subr.bf16.mxu0 0
      %3617 = vmatpush2.bf16.msra.mxu0 0
      %3618 = vmatprep.subr.bf16.mxu0 0
      %3619 = vmatpush2.bf16.msra.mxu0 0
      %3620 = vmatprep.subr.bf16.mxu0 0
      %3621 = vmatpush2.bf16.msra.mxu0 0
      %3622 = vmatprep.subr.bf16.mxu0 0
      %3623 = vmatpush2.bf16.msra.mxu0 0
      %3624 = vmatprep.subr.bf16.mxu0 0
      %3625 = vmatpush2.bf16.msra.mxu0 0
      %3626 = vmatprep.mubr.bf16.mxu0 0
      %3627 = vmatmul.mubr.bf16.gmra.mxu0 %v3571
      %v3628 = vpop.f32.mrf.mxu0
      %v3629 = vadd.f32 0.0, %v3628
      %v3630 = vpop.f32.mrf.mxu0
      %v3631 = vadd.f32 0.0, %v3630
      %v3632 = vpop.f32.mrf.mxu0
      %v3633 = vadd.f32 0.0, %v3632
      %v3634 = vpop.f32.mrf.mxu0
      %v3635 = vadd.f32 0.0, %v3634
      %3636 = vmatprep.mubr.bf16.mxu0 0
      %3637 = vmatmul.mubr.bf16.gmra.mxu0 %v3574
      %v3638 = vpop.f32.mrf.mxu0
      %v3639 = vadd.f32 0.0, %v3638
      %v3640 = vpop.f32.mrf.mxu0
      %v3641 = vadd.f32 0.0, %v3640
      %v3642 = vpop.f32.mrf.mxu0
      %v3643 = vadd.f32 0.0, %v3642
      %v3644 = vpop.f32.mrf.mxu0
      %v3645 = vadd.f32 0.0, %v3644
      %3646 = vmatprep.mubr.bf16.mxu0 0
      %3647 = vmatmul.mubr.bf16.gmra.mxu0 %v3577
      %v3648 = vpop.f32.mrf.mxu0
      %v3649 = vadd.f32 0.0, %v3648
      %v3650 = vpop.f32.mrf.mxu0
      %v3651 = vadd.f32 0.0, %v3650
      %v3652 = vpop.f32.mrf.mxu0
      %v3653 = vadd.f32 0.0, %v3652
      %v3654 = vpop.f32.mrf.mxu0
      %v3655 = vadd.f32 0.0, %v3654
      %3656 = vmatprep.mubr.bf16.mxu0 0
      %3657 = vmatmul.mubr.bf16.gmra.mxu0 %v3580
      %v3658 = vpop.f32.mrf.mxu0
      %v3659 = vadd.f32 0.0, %v3658
      %v3660 = vpop.f32.mrf.mxu0
      %v3661 = vadd.f32 0.0, %v3660
      %v3662 = vpop.f32.mrf.mxu0
      %v3663 = vadd.f32 0.0, %v3662
      %v3664 = vpop.f32.mrf.mxu0
      %v3665 = vadd.f32 0.0, %v3664
      %3666 = vdwg.mxu0
      %3667 = vmatprep.subr.bf16.mxu0 0
      %3668 = vmatpush1.bf16.msra.mxu0 0
      %3669 = vmatprep.subr.bf16.mxu0 0
      %3670 = vmatpush1.bf16.msra.mxu0 0
      %3671 = vmatprep.subr.bf16.mxu0 0
      %3672 = vmatpush1.bf16.msra.mxu0 0
      %3673 = vmatprep.subr.bf16.mxu0 0
      %3674 = vmatpush1.bf16.msra.mxu0 0
      %3675 = vmatprep.subr.bf16.mxu0 0
      %3676 = vmatpush1.bf16.msra.mxu0 0
      %3677 = vmatprep.subr.bf16.mxu0 0
      %3678 = vmatpush1.bf16.msra.mxu0 0
      %3679 = vmatprep.subr.bf16.mxu0 0
      %3680 = vmatpush1.bf16.msra.mxu0 0
      %3681 = vmatprep.subr.bf16.mxu0 %v3592
      %3682 = vmatpush1.bf16.msra.mxu0 %v3589
      %3683 = vmatprep.subr.bf16.mxu0 0
      %3684 = vmatpush2.bf16.msra.mxu0 0
      %3685 = vmatprep.subr.bf16.mxu0 0
      %3686 = vmatpush2.bf16.msra.mxu0 0
      %3687 = vmatprep.subr.bf16.mxu0 0
      %3688 = vmatpush2.bf16.msra.mxu0 0
      %3689 = vmatprep.subr.bf16.mxu0 0
      %3690 = vmatpush2.bf16.msra.mxu0 0
      %3691 = vmatprep.subr.bf16.mxu0 0
      %3692 = vmatpush2.bf16.msra.mxu0 0
      %3693 = vmatprep.subr.bf16.mxu0 0
      %3694 = vmatpush2.bf16.msra.mxu0 0
      %3695 = vmatprep.subr.bf16.mxu0 0
      %3696 = vmatpush2.bf16.msra.mxu0 0
      %3697 = vmatprep.subr.bf16.mxu0 0
      %3698 = vmatpush2.bf16.msra.mxu0 0
      %3699 = vmatprep.mubr.bf16.mxu0 0
      %3700 = vmatmul.mubr.bf16.gmra.mxu0 %v3571
      %v3701 = vpop.f32.mrf.mxu0
      %v3702 = vadd.f32 0.0, %v3701
      %v3703 = vpop.f32.mrf.mxu0
      %v3704 = vadd.f32 0.0, %v3703
      %v3705 = vpop.f32.mrf.mxu0
      %v3706 = vadd.f32 0.0, %v3705
      %v3707 = vpop.f32.mrf.mxu0
      %v3708 = vadd.f32 0.0, %v3707
      %3709 = vmatprep.mubr.bf16.mxu0 0
      %3710 = vmatmul.mubr.bf16.gmra.mxu0 %v3574
      %v3711 = vpop.f32.mrf.mxu0
      %v3712 = vadd.f32 0.0, %v3711
      %v3713 = vpop.f32.mrf.mxu0
      %v3714 = vadd.f32 0.0, %v3713
      %v3715 = vpop.f32.mrf.mxu0
      %v3716 = vadd.f32 0.0, %v3715
      %v3717 = vpop.f32.mrf.mxu0
      %v3718 = vadd.f32 0.0, %v3717
      %3719 = vmatprep.mubr.bf16.mxu0 0
      %3720 = vmatmul.mubr.bf16.gmra.mxu0 %v3577
      %v3721 = vpop.f32.mrf.mxu0
      %v3722 = vadd.f32 0.0, %v3721
      %v3723 = vpop.f32.mrf.mxu0
      %v3724 = vadd.f32 0.0, %v3723
      %v3725 = vpop.f32.mrf.mxu0
      %v3726 = vadd.f32 0.0, %v3725
      %v3727 = vpop.f32.mrf.mxu0
      %v3728 = vadd.f32 0.0, %v3727
      %3729 = vmatprep.mubr.bf16.mxu0 0
      %3730 = vmatmul.mubr.bf16.gmra.mxu0 %v3580
      %v3731 = vpop.f32.mrf.mxu0
      %v3732 = vadd.f32 0.0, %v3731
      %v3733 = vpop.f32.mrf.mxu0
      %v3734 = vadd.f32 0.0, %v3733
      %v3735 = vpop.f32.mrf.mxu0
      %v3736 = vadd.f32 0.0, %v3735
      %v3737 = vpop.f32.mrf.mxu0
      %v3738 = vadd.f32 0.0, %v3737
      %3739 = vdwg.mxu0
      %v3740 = vlaneseq
      %v3741 = vshrl.u32 %v3740, 7
      %v3742 = vsub.s32 0, %v3741
      %v3743 = vrot.slane %v2691, %v3742
      %v3744 = vlaneseq
      %v3745 = vshrl.u32 %v3744, 7
      %v3746 = vsub.s32 0, %v3745
      %v3747 = vrot.slane %v2693, %v3746
      %v3748 = vlaneseq
      %v3749 = vshrl.u32 %v3748, 7
      %v3750 = vsub.s32 0, %v3749
      %v3751 = vrot.slane %v2764, %v3750
      %v3752 = vlaneseq
      %v3753 = vshrl.u32 %v3752, 7
      %v3754 = vsub.s32 0, %v3753
      %v3755 = vrot.slane %v2766, %v3754
      %v3756 = vmul.f32 %v3743, %v2985
      %v3757 = vmul.f32 %v3747, %v2987
      %v3758 = vmul.f32 %v3751, %v3178
      %v3759 = vmul.f32 %v3755, %v3180
      %v3760 = vadd.f32 %v3756, 0.0
      %v3761 = vadd.f32 %v3757, 0.0
      %v3762 = vadd.f32 %v3758, 0.0
      %v3763 = vadd.f32 %v3759, 0.0
      %v3764 = vlaneseq
      %v3765 = vshrl.u32 %v3764, 7
      %v3766 = vsub.s32 1, %v3765
      %v3767 = vrot.slane %v2691, %v3766
      %v3768 = vlaneseq
      %v3769 = vshrl.u32 %v3768, 7
      %v3770 = vsub.s32 1, %v3769
      %v3771 = vrot.slane %v2693, %v3770
      %v3772 = vlaneseq
      %v3773 = vshrl.u32 %v3772, 7
      %v3774 = vsub.s32 1, %v3773
      %v3775 = vrot.slane %v2764, %v3774
      %v3776 = vlaneseq
      %v3777 = vshrl.u32 %v3776, 7
      %v3778 = vsub.s32 1, %v3777
      %v3779 = vrot.slane %v2766, %v3778
      %v3780 = vmul.f32 %v3767, %v2989
      %v3781 = vmul.f32 %v3771, %v2991
      %v3782 = vmul.f32 %v3775, %v3182
      %v3783 = vmul.f32 %v3779, %v3184
      %v3784 = vadd.f32 %v3760, %v3780
      %v3785 = vadd.f32 %v3761, %v3781
      %v3786 = vadd.f32 %v3762, %v3782
      %v3787 = vadd.f32 %v3763, %v3783
      %v3788 = vlaneseq
      %v3789 = vshrl.u32 %v3788, 7
      %v3790 = vsub.s32 2, %v3789
      %v3791 = vrot.slane %v2691, %v3790
      %v3792 = vlaneseq
      %v3793 = vshrl.u32 %v3792, 7
      %v3794 = vsub.s32 2, %v3793
      %v3795 = vrot.slane %v2693, %v3794
      %v3796 = vlaneseq
      %v3797 = vshrl.u32 %v3796, 7
      %v3798 = vsub.s32 2, %v3797
      %v3799 = vrot.slane %v2764, %v3798
      %v3800 = vlaneseq
      %v3801 = vshrl.u32 %v3800, 7
      %v3802 = vsub.s32 2, %v3801
      %v3803 = vrot.slane %v2766, %v3802
      %v3804 = vmul.f32 %v3791, %v2995
      %v3805 = vmul.f32 %v3795, %v2997
      %v3806 = vmul.f32 %v3799, %v3188
      %v3807 = vmul.f32 %v3803, %v3190
      %v3808 = vadd.f32 %v3784, %v3804
      %v3809 = vadd.f32 %v3785, %v3805
      %v3810 = vadd.f32 %v3786, %v3806
      %v3811 = vadd.f32 %v3787, %v3807
      %v3812 = vlaneseq
      %v3813 = vshrl.u32 %v3812, 7
      %v3814 = vsub.s32 3, %v3813
      %v3815 = vrot.slane %v2691, %v3814
      %v3816 = vlaneseq
      %v3817 = vshrl.u32 %v3816, 7
      %v3818 = vsub.s32 3, %v3817
      %v3819 = vrot.slane %v2693, %v3818
      %v3820 = vlaneseq
      %v3821 = vshrl.u32 %v3820, 7
      %v3822 = vsub.s32 3, %v3821
      %v3823 = vrot.slane %v2764, %v3822
      %v3824 = vlaneseq
      %v3825 = vshrl.u32 %v3824, 7
      %v3826 = vsub.s32 3, %v3825
      %v3827 = vrot.slane %v2766, %v3826
      %v3828 = vmul.f32 %v3815, %v2999
      %v3829 = vmul.f32 %v3819, %v3001
      %v3830 = vmul.f32 %v3823, %v3192
      %v3831 = vmul.f32 %v3827, %v3194
      %v3832 = vadd.f32 %v3808, %v3828
      %v3833 = vadd.f32 %v3809, %v3829
      %v3834 = vadd.f32 %v3810, %v3830
      %v3835 = vadd.f32 %v3811, %v3831
      %v3836 = vlaneseq
      %v3837 = vshrl.u32 %v3836, 7
      %v3838 = vsub.s32 4, %v3837
      %v3839 = vrot.slane %v2691, %v3838
      %v3840 = vlaneseq
      %v3841 = vshrl.u32 %v3840, 7
      %v3842 = vsub.s32 4, %v3841
      %v3843 = vrot.slane %v2693, %v3842
      %v3844 = vlaneseq
      %v3845 = vshrl.u32 %v3844, 7
      %v3846 = vsub.s32 4, %v3845
      %v3847 = vrot.slane %v2764, %v3846
      %v3848 = vlaneseq
      %v3849 = vshrl.u32 %v3848, 7
      %v3850 = vsub.s32 4, %v3849
      %v3851 = vrot.slane %v2766, %v3850
      %v3852 = vmul.f32 %v3839, %v3005
      %v3853 = vmul.f32 %v3843, %v3007
      %v3854 = vmul.f32 %v3847, %v3198
      %v3855 = vmul.f32 %v3851, %v3200
      %v3856 = vadd.f32 %v3832, %v3852
      %v3857 = vadd.f32 %v3833, %v3853
      %v3858 = vadd.f32 %v3834, %v3854
      %v3859 = vadd.f32 %v3835, %v3855
      %v3860 = vlaneseq
      %v3861 = vshrl.u32 %v3860, 7
      %v3862 = vsub.s32 5, %v3861
      %v3863 = vrot.slane %v2691, %v3862
      %v3864 = vlaneseq
      %v3865 = vshrl.u32 %v3864, 7
      %v3866 = vsub.s32 5, %v3865
      %v3867 = vrot.slane %v2693, %v3866
      %v3868 = vlaneseq
      %v3869 = vshrl.u32 %v3868, 7
      %v3870 = vsub.s32 5, %v3869
      %v3871 = vrot.slane %v2764, %v3870
      %v3872 = vlaneseq
      %v3873 = vshrl.u32 %v3872, 7
      %v3874 = vsub.s32 5, %v3873
      %v3875 = vrot.slane %v2766, %v3874
      %v3876 = vmul.f32 %v3863, %v3009
      %v3877 = vmul.f32 %v3867, %v3011
      %v3878 = vmul.f32 %v3871, %v3202
      %v3879 = vmul.f32 %v3875, %v3204
      %v3880 = vadd.f32 %v3856, %v3876
      %v3881 = vadd.f32 %v3857, %v3877
      %v3882 = vadd.f32 %v3858, %v3878
      %v3883 = vadd.f32 %v3859, %v3879
      %v3884 = vlaneseq
      %v3885 = vshrl.u32 %v3884, 7
      %v3886 = vsub.s32 6, %v3885
      %v3887 = vrot.slane %v2691, %v3886
      %v3888 = vlaneseq
      %v3889 = vshrl.u32 %v3888, 7
      %v3890 = vsub.s32 6, %v3889
      %v3891 = vrot.slane %v2693, %v3890
      %v3892 = vlaneseq
      %v3893 = vshrl.u32 %v3892, 7
      %v3894 = vsub.s32 6, %v3893
      %v3895 = vrot.slane %v2764, %v3894
      %v3896 = vlaneseq
      %v3897 = vshrl.u32 %v3896, 7
      %v3898 = vsub.s32 6, %v3897
      %v3899 = vrot.slane %v2766, %v3898
      %v3900 = vmul.f32 %v3887, %v3015
      %v3901 = vmul.f32 %v3891, %v3017
      %v3902 = vmul.f32 %v3895, %v3208
      %v3903 = vmul.f32 %v3899, %v3210
      %v3904 = vadd.f32 %v3880, %v3900
      %v3905 = vadd.f32 %v3881, %v3901
      %v3906 = vadd.f32 %v3882, %v3902
      %v3907 = vadd.f32 %v3883, %v3903
      %v3908 = vlaneseq
      %v3909 = vshrl.u32 %v3908, 7
      %v3910 = vsub.s32 7, %v3909
      %v3911 = vrot.slane %v2691, %v3910
      %v3912 = vlaneseq
      %v3913 = vshrl.u32 %v3912, 7
      %v3914 = vsub.s32 7, %v3913
      %v3915 = vrot.slane %v2693, %v3914
      %v3916 = vlaneseq
      %v3917 = vshrl.u32 %v3916, 7
      %v3918 = vsub.s32 7, %v3917
      %v3919 = vrot.slane %v2764, %v3918
      %v3920 = vlaneseq
      %v3921 = vshrl.u32 %v3920, 7
      %v3922 = vsub.s32 7, %v3921
      %v3923 = vrot.slane %v2766, %v3922
      %v3924 = vmul.f32 %v3911, %v3019
      %v3925 = vmul.f32 %v3915, %v3021
      %v3926 = vmul.f32 %v3919, %v3212
      %v3927 = vmul.f32 %v3923, %v3214
      %v3928 = vadd.f32 %v3904, %v3924
      %v3929 = vadd.f32 %v3905, %v3925
      %v3930 = vadd.f32 %v3906, %v3926
      %v3931 = vadd.f32 %v3907, %v3927
      %v3932 = vlaneseq
      %v3933 = vshrl.u32 %v3932, 7
      %v3934 = vsub.s32 0, %v3933
      %v3935 = vrot.slane %v2695, %v3934
      %v3936 = vlaneseq
      %v3937 = vshrl.u32 %v3936, 7
      %v3938 = vsub.s32 0, %v3937
      %v3939 = vrot.slane %v2697, %v3938
      %v3940 = vlaneseq
      %v3941 = vshrl.u32 %v3940, 7
      %v3942 = vsub.s32 0, %v3941
      %v3943 = vrot.slane %v2768, %v3942
      %v3944 = vlaneseq
      %v3945 = vshrl.u32 %v3944, 7
      %v3946 = vsub.s32 0, %v3945
      %v3947 = vrot.slane %v2770, %v3946
      %v3948 = vmul.f32 %v3935, %v3025
      %v3949 = vmul.f32 %v3939, %v3027
      %v3950 = vmul.f32 %v3943, %v3218
      %v3951 = vmul.f32 %v3947, %v3220
      %v3952 = vadd.f32 %v3928, %v3948
      %v3953 = vadd.f32 %v3929, %v3949
      %v3954 = vadd.f32 %v3930, %v3950
      %v3955 = vadd.f32 %v3931, %v3951
      %v3956 = vmul.f32 %v3935, %v3427
      %v3957 = vmul.f32 %v3939, %v3429
      %v3958 = vmul.f32 %v3943, %v3500
      %v3959 = vmul.f32 %v3947, %v3502
      %v3960 = vadd.f32 %v3956, 0.0
      %v3961 = vadd.f32 %v3957, 0.0
      %v3962 = vadd.f32 %v3958, 0.0
      %v3963 = vadd.f32 %v3959, 0.0
      %v3964 = vlaneseq
      %v3965 = vshrl.u32 %v3964, 7
      %v3966 = vsub.s32 0, %v3965
      %v3967 = vrot.slane %v2675, %v3966
      %v3968 = vlaneseq
      %v3969 = vshrl.u32 %v3968, 7
      %v3970 = vsub.s32 0, %v3969
      %v3971 = vrot.slane %v2677, %v3970
      %v3972 = vlaneseq
      %v3973 = vshrl.u32 %v3972, 7
      %v3974 = vsub.s32 0, %v3973
      %v3975 = vrot.slane %v2748, %v3974
      %v3976 = vlaneseq
      %v3977 = vshrl.u32 %v3976, 7
      %v3978 = vsub.s32 0, %v3977
      %v3979 = vrot.slane %v2750, %v3978
      %v3980 = vmul.f32 %v3967, %v3629
      %v3981 = vmul.f32 %v3971, %v3631
      %v3982 = vmul.f32 %v3975, %v3702
      %v3983 = vmul.f32 %v3979, %v3704
      %v3984 = vadd.f32 %v3960, %v3980
      %v3985 = vadd.f32 %v3961, %v3981
      %v3986 = vadd.f32 %v3962, %v3982
      %v3987 = vadd.f32 %v3963, %v3983
      %v3988 = vlaneseq
      %v3989 = vshrl.u32 %v3988, 7
      %v3990 = vsub.s32 1, %v3989
      %v3991 = vrot.slane %v2695, %v3990
      %v3992 = vlaneseq
      %v3993 = vshrl.u32 %v3992, 7
      %v3994 = vsub.s32 1, %v3993
      %v3995 = vrot.slane %v2697, %v3994
      %v3996 = vlaneseq
      %v3997 = vshrl.u32 %v3996, 7
      %v3998 = vsub.s32 1, %v3997
      %v3999 = vrot.slane %v2768, %v3998
      %v4000 = vlaneseq
      %v4001 = vshrl.u32 %v4000, 7
      %v4002 = vsub.s32 1, %v4001
      %v4003 = vrot.slane %v2770, %v4002
      %v4004 = vmul.f32 %v3991, %v3029
      %v4005 = vmul.f32 %v3995, %v3031
      %v4006 = vmul.f32 %v3999, %v3222
      %v4007 = vmul.f32 %v4003, %v3224
      %v4008 = vadd.f32 %v3952, %v4004
      %v4009 = vadd.f32 %v3953, %v4005
      %v4010 = vadd.f32 %v3954, %v4006
      %v4011 = vadd.f32 %v3955, %v4007
      %v4012 = vmul.f32 %v3991, %v3431
      %v4013 = vmul.f32 %v3995, %v3433
      %v4014 = vmul.f32 %v3999, %v3504
      %v4015 = vmul.f32 %v4003, %v3506
      %v4016 = vadd.f32 %v3984, %v4012
      %v4017 = vadd.f32 %v3985, %v4013
      %v4018 = vadd.f32 %v3986, %v4014
      %v4019 = vadd.f32 %v3987, %v4015
      %v4020 = vlaneseq
      %v4021 = vshrl.u32 %v4020, 7
      %v4022 = vsub.s32 1, %v4021
      %v4023 = vrot.slane %v2675, %v4022
      %v4024 = vlaneseq
      %v4025 = vshrl.u32 %v4024, 7
      %v4026 = vsub.s32 1, %v4025
      %v4027 = vrot.slane %v2677, %v4026
      %v4028 = vlaneseq
      %v4029 = vshrl.u32 %v4028, 7
      %v4030 = vsub.s32 1, %v4029
      %v4031 = vrot.slane %v2748, %v4030
      %v4032 = vlaneseq
      %v4033 = vshrl.u32 %v4032, 7
      %v4034 = vsub.s32 1, %v4033
      %v4035 = vrot.slane %v2750, %v4034
      %v4036 = vmul.f32 %v4023, %v3633
      %v4037 = vmul.f32 %v4027, %v3635
      %v4038 = vmul.f32 %v4031, %v3706
      %v4039 = vmul.f32 %v4035, %v3708
      %v4040 = vadd.f32 %v4016, %v4036
      %v4041 = vadd.f32 %v4017, %v4037
      %v4042 = vadd.f32 %v4018, %v4038
      %v4043 = vadd.f32 %v4019, %v4039
      %v4044 = vlaneseq
      %v4045 = vshrl.u32 %v4044, 7
      %v4046 = vsub.s32 2, %v4045
      %v4047 = vrot.slane %v2695, %v4046
      %v4048 = vlaneseq
      %v4049 = vshrl.u32 %v4048, 7
      %v4050 = vsub.s32 2, %v4049
      %v4051 = vrot.slane %v2697, %v4050
      %v4052 = vlaneseq
      %v4053 = vshrl.u32 %v4052, 7
      %v4054 = vsub.s32 2, %v4053
      %v4055 = vrot.slane %v2768, %v4054
      %v4056 = vlaneseq
      %v4057 = vshrl.u32 %v4056, 7
      %v4058 = vsub.s32 2, %v4057
      %v4059 = vrot.slane %v2770, %v4058
      %v4060 = vmul.f32 %v4047, %v3035
      %v4061 = vmul.f32 %v4051, %v3037
      %v4062 = vmul.f32 %v4055, %v3228
      %v4063 = vmul.f32 %v4059, %v3230
      %v4064 = vadd.f32 %v4008, %v4060
      %v4065 = vadd.f32 %v4009, %v4061
      %v4066 = vadd.f32 %v4010, %v4062
      %v4067 = vadd.f32 %v4011, %v4063
      %v4068 = vmul.f32 %v4047, %v3437
      %v4069 = vmul.f32 %v4051, %v3439
      %v4070 = vmul.f32 %v4055, %v3510
      %v4071 = vmul.f32 %v4059, %v3512
      %v4072 = vadd.f32 %v4040, %v4068
      %v4073 = vadd.f32 %v4041, %v4069
      %v4074 = vadd.f32 %v4042, %v4070
      %v4075 = vadd.f32 %v4043, %v4071
      %v4076 = vlaneseq
      %v4077 = vshrl.u32 %v4076, 7
      %v4078 = vsub.s32 2, %v4077
      %v4079 = vrot.slane %v2675, %v4078
      %v4080 = vlaneseq
      %v4081 = vshrl.u32 %v4080, 7
      %v4082 = vsub.s32 2, %v4081
      %v4083 = vrot.slane %v2677, %v4082
      %v4084 = vlaneseq
      %v4085 = vshrl.u32 %v4084, 7
      %v4086 = vsub.s32 2, %v4085
      %v4087 = vrot.slane %v2748, %v4086
      %v4088 = vlaneseq
      %v4089 = vshrl.u32 %v4088, 7
      %v4090 = vsub.s32 2, %v4089
      %v4091 = vrot.slane %v2750, %v4090
      %v4092 = vmul.f32 %v4079, %v3639
      %v4093 = vmul.f32 %v4083, %v3641
      %v4094 = vmul.f32 %v4087, %v3712
      %v4095 = vmul.f32 %v4091, %v3714
      %v4096 = vadd.f32 %v4072, %v4092
      %v4097 = vadd.f32 %v4073, %v4093
      %v4098 = vadd.f32 %v4074, %v4094
      %v4099 = vadd.f32 %v4075, %v4095
      %v4100 = vlaneseq
      %v4101 = vshrl.u32 %v4100, 7
      %v4102 = vsub.s32 3, %v4101
      %v4103 = vrot.slane %v2695, %v4102
      %v4104 = vlaneseq
      %v4105 = vshrl.u32 %v4104, 7
      %v4106 = vsub.s32 3, %v4105
      %v4107 = vrot.slane %v2697, %v4106
      %v4108 = vlaneseq
      %v4109 = vshrl.u32 %v4108, 7
      %v4110 = vsub.s32 3, %v4109
      %v4111 = vrot.slane %v2768, %v4110
      %v4112 = vlaneseq
      %v4113 = vshrl.u32 %v4112, 7
      %v4114 = vsub.s32 3, %v4113
      %v4115 = vrot.slane %v2770, %v4114
      %v4116 = vmul.f32 %v4103, %v3039
      %v4117 = vmul.f32 %v4107, %v3041
      %v4118 = vmul.f32 %v4111, %v3232
      %v4119 = vmul.f32 %v4115, %v3234
      %v4120 = vadd.f32 %v4064, %v4116
      %v4121 = vadd.f32 %v4065, %v4117
      %v4122 = vadd.f32 %v4066, %v4118
      %v4123 = vadd.f32 %v4067, %v4119
      %v4124 = vmul.f32 %v4103, %v3441
      %v4125 = vmul.f32 %v4107, %v3443
      %v4126 = vmul.f32 %v4111, %v3514
      %v4127 = vmul.f32 %v4115, %v3516
      %v4128 = vadd.f32 %v4096, %v4124
      %v4129 = vadd.f32 %v4097, %v4125
      %v4130 = vadd.f32 %v4098, %v4126
      %v4131 = vadd.f32 %v4099, %v4127
      %v4132 = vlaneseq
      %v4133 = vshrl.u32 %v4132, 7
      %v4134 = vsub.s32 3, %v4133
      %v4135 = vrot.slane %v2675, %v4134
      %v4136 = vlaneseq
      %v4137 = vshrl.u32 %v4136, 7
      %v4138 = vsub.s32 3, %v4137
      %v4139 = vrot.slane %v2677, %v4138
      %v4140 = vlaneseq
      %v4141 = vshrl.u32 %v4140, 7
      %v4142 = vsub.s32 3, %v4141
      %v4143 = vrot.slane %v2748, %v4142
      %v4144 = vlaneseq
      %v4145 = vshrl.u32 %v4144, 7
      %v4146 = vsub.s32 3, %v4145
      %v4147 = vrot.slane %v2750, %v4146
      %v4148 = vmul.f32 %v4135, %v3643
      %v4149 = vmul.f32 %v4139, %v3645
      %v4150 = vmul.f32 %v4143, %v3716
      %v4151 = vmul.f32 %v4147, %v3718
      %v4152 = vadd.f32 %v4128, %v4148
      %v4153 = vadd.f32 %v4129, %v4149
      %v4154 = vadd.f32 %v4130, %v4150
      %v4155 = vadd.f32 %v4131, %v4151
      %v4156 = vlaneseq
      %v4157 = vshrl.u32 %v4156, 7
      %v4158 = vsub.s32 4, %v4157
      %v4159 = vrot.slane %v2695, %v4158
      %v4160 = vlaneseq
      %v4161 = vshrl.u32 %v4160, 7
      %v4162 = vsub.s32 4, %v4161
      %v4163 = vrot.slane %v2697, %v4162
      %v4164 = vlaneseq
      %v4165 = vshrl.u32 %v4164, 7
      %v4166 = vsub.s32 4, %v4165
      %v4167 = vrot.slane %v2768, %v4166
      %v4168 = vlaneseq
      %v4169 = vshrl.u32 %v4168, 7
      %v4170 = vsub.s32 4, %v4169
      %v4171 = vrot.slane %v2770, %v4170
      %v4172 = vmul.f32 %v4159, %v3045
      %v4173 = vmul.f32 %v4163, %v3047
      %v4174 = vmul.f32 %v4167, %v3238
      %v4175 = vmul.f32 %v4171, %v3240
      %v4176 = vadd.f32 %v4120, %v4172
      %v4177 = vadd.f32 %v4121, %v4173
      %v4178 = vadd.f32 %v4122, %v4174
      %v4179 = vadd.f32 %v4123, %v4175
      %v4180 = vmul.f32 %v4159, %v3447
      %v4181 = vmul.f32 %v4163, %v3449
      %v4182 = vmul.f32 %v4167, %v3520
      %v4183 = vmul.f32 %v4171, %v3522
      %v4184 = vadd.f32 %v4152, %v4180
      %v4185 = vadd.f32 %v4153, %v4181
      %v4186 = vadd.f32 %v4154, %v4182
      %v4187 = vadd.f32 %v4155, %v4183
      %v4188 = vlaneseq
      %v4189 = vshrl.u32 %v4188, 7
      %v4190 = vsub.s32 4, %v4189
      %v4191 = vrot.slane %v2675, %v4190
      %v4192 = vlaneseq
      %v4193 = vshrl.u32 %v4192, 7
      %v4194 = vsub.s32 4, %v4193
      %v4195 = vrot.slane %v2677, %v4194
      %v4196 = vlaneseq
      %v4197 = vshrl.u32 %v4196, 7
      %v4198 = vsub.s32 4, %v4197
      %v4199 = vrot.slane %v2748, %v4198
      %v4200 = vlaneseq
      %v4201 = vshrl.u32 %v4200, 7
      %v4202 = vsub.s32 4, %v4201
      %v4203 = vrot.slane %v2750, %v4202
      %v4204 = vmul.f32 %v4191, %v3649
      %v4205 = vmul.f32 %v4195, %v3651
      %v4206 = vmul.f32 %v4199, %v3722
      %v4207 = vmul.f32 %v4203, %v3724
      %v4208 = vadd.f32 %v4184, %v4204
      %v4209 = vadd.f32 %v4185, %v4205
      %v4210 = vadd.f32 %v4186, %v4206
      %v4211 = vadd.f32 %v4187, %v4207
      %v4212 = vlaneseq
      %v4213 = vshrl.u32 %v4212, 7
      %v4214 = vsub.s32 5, %v4213
      %v4215 = vrot.slane %v2695, %v4214
      %v4216 = vlaneseq
      %v4217 = vshrl.u32 %v4216, 7
      %v4218 = vsub.s32 5, %v4217
      %v4219 = vrot.slane %v2697, %v4218
      %v4220 = vlaneseq
      %v4221 = vshrl.u32 %v4220, 7
      %v4222 = vsub.s32 5, %v4221
      %v4223 = vrot.slane %v2768, %v4222
      %v4224 = vlaneseq
      %v4225 = vshrl.u32 %v4224, 7
      %v4226 = vsub.s32 5, %v4225
      %v4227 = vrot.slane %v2770, %v4226
      %v4228 = vmul.f32 %v4215, %v3049
      %v4229 = vmul.f32 %v4219, %v3051
      %v4230 = vmul.f32 %v4223, %v3242
      %v4231 = vmul.f32 %v4227, %v3244
      %v4232 = vadd.f32 %v4176, %v4228
      %v4233 = vadd.f32 %v4177, %v4229
      %v4234 = vadd.f32 %v4178, %v4230
      %v4235 = vadd.f32 %v4179, %v4231
      %v4236 = vmul.f32 %v4215, %v3451
      %v4237 = vmul.f32 %v4219, %v3453
      %v4238 = vmul.f32 %v4223, %v3524
      %v4239 = vmul.f32 %v4227, %v3526
      %v4240 = vadd.f32 %v4208, %v4236
      %v4241 = vadd.f32 %v4209, %v4237
      %v4242 = vadd.f32 %v4210, %v4238
      %v4243 = vadd.f32 %v4211, %v4239
      %v4244 = vlaneseq
      %v4245 = vshrl.u32 %v4244, 7
      %v4246 = vsub.s32 5, %v4245
      %v4247 = vrot.slane %v2675, %v4246
      %v4248 = vlaneseq
      %v4249 = vshrl.u32 %v4248, 7
      %v4250 = vsub.s32 5, %v4249
      %v4251 = vrot.slane %v2677, %v4250
      %v4252 = vlaneseq
      %v4253 = vshrl.u32 %v4252, 7
      %v4254 = vsub.s32 5, %v4253
      %v4255 = vrot.slane %v2748, %v4254
      %v4256 = vlaneseq
      %v4257 = vshrl.u32 %v4256, 7
      %v4258 = vsub.s32 5, %v4257
      %v4259 = vrot.slane %v2750, %v4258
      %v4260 = vmul.f32 %v4247, %v3653
      %v4261 = vmul.f32 %v4251, %v3655
      %v4262 = vmul.f32 %v4255, %v3726
      %v4263 = vmul.f32 %v4259, %v3728
      %v4264 = vadd.f32 %v4240, %v4260
      %v4265 = vadd.f32 %v4241, %v4261
      %v4266 = vadd.f32 %v4242, %v4262
      %v4267 = vadd.f32 %v4243, %v4263
      %v4268 = vlaneseq
      %v4269 = vshrl.u32 %v4268, 7
      %v4270 = vsub.s32 6, %v4269
      %v4271 = vrot.slane %v2695, %v4270
      %v4272 = vlaneseq
      %v4273 = vshrl.u32 %v4272, 7
      %v4274 = vsub.s32 6, %v4273
      %v4275 = vrot.slane %v2697, %v4274
      %v4276 = vlaneseq
      %v4277 = vshrl.u32 %v4276, 7
      %v4278 = vsub.s32 6, %v4277
      %v4279 = vrot.slane %v2768, %v4278
      %v4280 = vlaneseq
      %v4281 = vshrl.u32 %v4280, 7
      %v4282 = vsub.s32 6, %v4281
      %v4283 = vrot.slane %v2770, %v4282
      %v4284 = vmul.f32 %v4271, %v3055
      %v4285 = vmul.f32 %v4275, %v3057
      %v4286 = vmul.f32 %v4279, %v3248
      %v4287 = vmul.f32 %v4283, %v3250
      %v4288 = vadd.f32 %v4232, %v4284
      %v4289 = vadd.f32 %v4233, %v4285
      %v4290 = vadd.f32 %v4234, %v4286
      %v4291 = vadd.f32 %v4235, %v4287
      %v4292 = vmul.f32 %v4271, %v3457
      %v4293 = vmul.f32 %v4275, %v3459
      %v4294 = vmul.f32 %v4279, %v3530
      %v4295 = vmul.f32 %v4283, %v3532
      %v4296 = vadd.f32 %v4264, %v4292
      %v4297 = vadd.f32 %v4265, %v4293
      %v4298 = vadd.f32 %v4266, %v4294
      %v4299 = vadd.f32 %v4267, %v4295
      %v4300 = vlaneseq
      %v4301 = vshrl.u32 %v4300, 7
      %v4302 = vsub.s32 6, %v4301
      %v4303 = vrot.slane %v2675, %v4302
      %v4304 = vlaneseq
      %v4305 = vshrl.u32 %v4304, 7
      %v4306 = vsub.s32 6, %v4305
      %v4307 = vrot.slane %v2677, %v4306
      %v4308 = vlaneseq
      %v4309 = vshrl.u32 %v4308, 7
      %v4310 = vsub.s32 6, %v4309
      %v4311 = vrot.slane %v2748, %v4310
      %v4312 = vlaneseq
      %v4313 = vshrl.u32 %v4312, 7
      %v4314 = vsub.s32 6, %v4313
      %v4315 = vrot.slane %v2750, %v4314
      %v4316 = vmul.f32 %v4303, %v3659
      %v4317 = vmul.f32 %v4307, %v3661
      %v4318 = vmul.f32 %v4311, %v3732
      %v4319 = vmul.f32 %v4315, %v3734
      %v4320 = vadd.f32 %v4296, %v4316
      %v4321 = vadd.f32 %v4297, %v4317
      %v4322 = vadd.f32 %v4298, %v4318
      %v4323 = vadd.f32 %v4299, %v4319
      %v4324 = vlaneseq
      %v4325 = vshrl.u32 %v4324, 7
      %v4326 = vsub.s32 7, %v4325
      %v4327 = vrot.slane %v2695, %v4326
      %v4328 = vlaneseq
      %v4329 = vshrl.u32 %v4328, 7
      %v4330 = vsub.s32 7, %v4329
      %v4331 = vrot.slane %v2697, %v4330
      %v4332 = vlaneseq
      %v4333 = vshrl.u32 %v4332, 7
      %v4334 = vsub.s32 7, %v4333
      %v4335 = vrot.slane %v2768, %v4334
      %v4336 = vlaneseq
      %v4337 = vshrl.u32 %v4336, 7
      %v4338 = vsub.s32 7, %v4337
      %v4339 = vrot.slane %v2770, %v4338
      %v4340 = vmul.f32 %v4327, %v3059
      %v4341 = vmul.f32 %v4331, %v3061
      %v4342 = vmul.f32 %v4335, %v3252
      %v4343 = vmul.f32 %v4339, %v3254
      %v4344 = vadd.f32 %v4288, %v4340
      %v4345 = vadd.f32 %v4289, %v4341
      %v4346 = vadd.f32 %v4290, %v4342
      %v4347 = vadd.f32 %v4291, %v4343
      %v4348 = vmul.f32 %v4327, %v3461
      %v4349 = vmul.f32 %v4331, %v3463
      %v4350 = vmul.f32 %v4335, %v3534
      %v4351 = vmul.f32 %v4339, %v3536
      %v4352 = vadd.f32 %v4320, %v4348
      %v4353 = vadd.f32 %v4321, %v4349
      %v4354 = vadd.f32 %v4322, %v4350
      %v4355 = vadd.f32 %v4323, %v4351
      %v4356 = vlaneseq
      %v4357 = vshrl.u32 %v4356, 7
      %v4358 = vsub.s32 7, %v4357
      %v4359 = vrot.slane %v2675, %v4358
      %v4360 = vlaneseq
      %v4361 = vshrl.u32 %v4360, 7
      %v4362 = vsub.s32 7, %v4361
      %v4363 = vrot.slane %v2677, %v4362
      %v4364 = vlaneseq
      %v4365 = vshrl.u32 %v4364, 7
      %v4366 = vsub.s32 7, %v4365
      %v4367 = vrot.slane %v2748, %v4366
      %v4368 = vlaneseq
      %v4369 = vshrl.u32 %v4368, 7
      %v4370 = vsub.s32 7, %v4369
      %v4371 = vrot.slane %v2750, %v4370
      %v4372 = vmul.f32 %v4359, %v3663
      %v4373 = vmul.f32 %v4363, %v3665
      %v4374 = vmul.f32 %v4367, %v3736
      %v4375 = vmul.f32 %v4371, %v3738
      %v4376 = vadd.f32 %v4352, %v4372
      %v4377 = vadd.f32 %v4353, %v4373
      %v4378 = vadd.f32 %v4354, %v4374
      %v4379 = vadd.f32 %v4355, %v4375
      %v4380 = vlaneseq
      %v4381 = vshrl.u32 %v4380, 7
      %v4382 = vsub.s32 0, %v4381
      %v4383 = vrot.slane %v2701, %v4382
      %v4384 = vlaneseq
      %v4385 = vshrl.u32 %v4384, 7
      %v4386 = vsub.s32 0, %v4385
      %v4387 = vrot.slane %v2703, %v4386
      %v4388 = vlaneseq
      %v4389 = vshrl.u32 %v4388, 7
      %v4390 = vsub.s32 0, %v4389
      %v4391 = vrot.slane %v2774, %v4390
      %v4392 = vlaneseq
      %v4393 = vshrl.u32 %v4392, 7
      %v4394 = vsub.s32 0, %v4393
      %v4395 = vrot.slane %v2776, %v4394
      %v4396 = vmul.f32 %v4383, %v3065
      %v4397 = vmul.f32 %v4387, %v3067
      %v4398 = vmul.f32 %v4391, %v3258
      %v4399 = vmul.f32 %v4395, %v3260
      %v4400 = vadd.f32 %v4344, %v4396
      %v4401 = vadd.f32 %v4345, %v4397
      %v4402 = vadd.f32 %v4346, %v4398
      %v4403 = vadd.f32 %v4347, %v4399
      %v4404 = vmul.f32 %v4383, %v3427
      %v4405 = vmul.f32 %v4387, %v3429
      %v4406 = vmul.f32 %v4391, %v3500
      %v4407 = vmul.f32 %v4395, %v3502
      %v4408 = vadd.f32 %v4404, 0.0
      %v4409 = vadd.f32 %v4405, 0.0
      %v4410 = vadd.f32 %v4406, 0.0
      %v4411 = vadd.f32 %v4407, 0.0
      %v4412 = vlaneseq
      %v4413 = vshrl.u32 %v4412, 7
      %v4414 = vsub.s32 0, %v4413
      %v4415 = vrot.slane %v2681, %v4414
      %v4416 = vlaneseq
      %v4417 = vshrl.u32 %v4416, 7
      %v4418 = vsub.s32 0, %v4417
      %v4419 = vrot.slane %v2683, %v4418
      %v4420 = vlaneseq
      %v4421 = vshrl.u32 %v4420, 7
      %v4422 = vsub.s32 0, %v4421
      %v4423 = vrot.slane %v2754, %v4422
      %v4424 = vlaneseq
      %v4425 = vshrl.u32 %v4424, 7
      %v4426 = vsub.s32 0, %v4425
      %v4427 = vrot.slane %v2756, %v4426
      %v4428 = vmul.f32 %v4415, %v3629
      %v4429 = vmul.f32 %v4419, %v3631
      %v4430 = vmul.f32 %v4423, %v3702
      %v4431 = vmul.f32 %v4427, %v3704
      %v4432 = vadd.f32 %v4408, %v4428
      %v4433 = vadd.f32 %v4409, %v4429
      %v4434 = vadd.f32 %v4410, %v4430
      %v4435 = vadd.f32 %v4411, %v4431
      %v4436 = vlaneseq
      %v4437 = vshrl.u32 %v4436, 7
      %v4438 = vsub.s32 1, %v4437
      %v4439 = vrot.slane %v2701, %v4438
      %v4440 = vlaneseq
      %v4441 = vshrl.u32 %v4440, 7
      %v4442 = vsub.s32 1, %v4441
      %v4443 = vrot.slane %v2703, %v4442
      %v4444 = vlaneseq
      %v4445 = vshrl.u32 %v4444, 7
      %v4446 = vsub.s32 1, %v4445
      %v4447 = vrot.slane %v2774, %v4446
      %v4448 = vlaneseq
      %v4449 = vshrl.u32 %v4448, 7
      %v4450 = vsub.s32 1, %v4449
      %v4451 = vrot.slane %v2776, %v4450
      %v4452 = vmul.f32 %v4439, %v3069
      %v4453 = vmul.f32 %v4443, %v3071
      %v4454 = vmul.f32 %v4447, %v3262
      %v4455 = vmul.f32 %v4451, %v3264
      %v4456 = vadd.f32 %v4400, %v4452
      %v4457 = vadd.f32 %v4401, %v4453
      %v4458 = vadd.f32 %v4402, %v4454
      %v4459 = vadd.f32 %v4403, %v4455
      %v4460 = vmul.f32 %v4439, %v3431
      %v4461 = vmul.f32 %v4443, %v3433
      %v4462 = vmul.f32 %v4447, %v3504
      %v4463 = vmul.f32 %v4451, %v3506
      %v4464 = vadd.f32 %v4432, %v4460
      %v4465 = vadd.f32 %v4433, %v4461
      %v4466 = vadd.f32 %v4434, %v4462
      %v4467 = vadd.f32 %v4435, %v4463
      %v4468 = vlaneseq
      %v4469 = vshrl.u32 %v4468, 7
      %v4470 = vsub.s32 1, %v4469
      %v4471 = vrot.slane %v2681, %v4470
      %v4472 = vlaneseq
      %v4473 = vshrl.u32 %v4472, 7
      %v4474 = vsub.s32 1, %v4473
      %v4475 = vrot.slane %v2683, %v4474
      %v4476 = vlaneseq
      %v4477 = vshrl.u32 %v4476, 7
      %v4478 = vsub.s32 1, %v4477
      %v4479 = vrot.slane %v2754, %v4478
      %v4480 = vlaneseq
      %v4481 = vshrl.u32 %v4480, 7
      %v4482 = vsub.s32 1, %v4481
      %v4483 = vrot.slane %v2756, %v4482
      %v4484 = vmul.f32 %v4471, %v3633
      %v4485 = vmul.f32 %v4475, %v3635
      %v4486 = vmul.f32 %v4479, %v3706
      %v4487 = vmul.f32 %v4483, %v3708
      %v4488 = vadd.f32 %v4464, %v4484
      %v4489 = vadd.f32 %v4465, %v4485
      %v4490 = vadd.f32 %v4466, %v4486
      %v4491 = vadd.f32 %v4467, %v4487
      %v4492 = vlaneseq
      %v4493 = vshrl.u32 %v4492, 7
      %v4494 = vsub.s32 2, %v4493
      %v4495 = vrot.slane %v2701, %v4494
      %v4496 = vlaneseq
      %v4497 = vshrl.u32 %v4496, 7
      %v4498 = vsub.s32 2, %v4497
      %v4499 = vrot.slane %v2703, %v4498
      %v4500 = vlaneseq
      %v4501 = vshrl.u32 %v4500, 7
      %v4502 = vsub.s32 2, %v4501
      %v4503 = vrot.slane %v2774, %v4502
      %v4504 = vlaneseq
      %v4505 = vshrl.u32 %v4504, 7
      %v4506 = vsub.s32 2, %v4505
      %v4507 = vrot.slane %v2776, %v4506
      %v4508 = vmul.f32 %v4495, %v3075
      %v4509 = vmul.f32 %v4499, %v3077
      %v4510 = vmul.f32 %v4503, %v3268
      %v4511 = vmul.f32 %v4507, %v3270
      %v4512 = vadd.f32 %v4456, %v4508
      %v4513 = vadd.f32 %v4457, %v4509
      %v4514 = vadd.f32 %v4458, %v4510
      %v4515 = vadd.f32 %v4459, %v4511
      %v4516 = vmul.f32 %v4495, %v3437
      %v4517 = vmul.f32 %v4499, %v3439
      %v4518 = vmul.f32 %v4503, %v3510
      %v4519 = vmul.f32 %v4507, %v3512
      %v4520 = vadd.f32 %v4488, %v4516
      %v4521 = vadd.f32 %v4489, %v4517
      %v4522 = vadd.f32 %v4490, %v4518
      %v4523 = vadd.f32 %v4491, %v4519
      %v4524 = vlaneseq
      %v4525 = vshrl.u32 %v4524, 7
      %v4526 = vsub.s32 2, %v4525
      %v4527 = vrot.slane %v2681, %v4526
      %v4528 = vlaneseq
      %v4529 = vshrl.u32 %v4528, 7
      %v4530 = vsub.s32 2, %v4529
      %v4531 = vrot.slane %v2683, %v4530
      %v4532 = vlaneseq
      %v4533 = vshrl.u32 %v4532, 7
      %v4534 = vsub.s32 2, %v4533
      %v4535 = vrot.slane %v2754, %v4534
      %v4536 = vlaneseq
      %v4537 = vshrl.u32 %v4536, 7
      %v4538 = vsub.s32 2, %v4537
      %v4539 = vrot.slane %v2756, %v4538
      %v4540 = vmul.f32 %v4527, %v3639
      %v4541 = vmul.f32 %v4531, %v3641
      %v4542 = vmul.f32 %v4535, %v3712
      %v4543 = vmul.f32 %v4539, %v3714
      %v4544 = vadd.f32 %v4520, %v4540
      %v4545 = vadd.f32 %v4521, %v4541
      %v4546 = vadd.f32 %v4522, %v4542
      %v4547 = vadd.f32 %v4523, %v4543
      %v4548 = vlaneseq
      %v4549 = vshrl.u32 %v4548, 7
      %v4550 = vsub.s32 3, %v4549
      %v4551 = vrot.slane %v2701, %v4550
      %v4552 = vlaneseq
      %v4553 = vshrl.u32 %v4552, 7
      %v4554 = vsub.s32 3, %v4553
      %v4555 = vrot.slane %v2703, %v4554
      %v4556 = vlaneseq
      %v4557 = vshrl.u32 %v4556, 7
      %v4558 = vsub.s32 3, %v4557
      %v4559 = vrot.slane %v2774, %v4558
      %v4560 = vlaneseq
      %v4561 = vshrl.u32 %v4560, 7
      %v4562 = vsub.s32 3, %v4561
      %v4563 = vrot.slane %v2776, %v4562
      %v4564 = vmul.f32 %v4551, %v3079
      %v4565 = vmul.f32 %v4555, %v3081
      %v4566 = vmul.f32 %v4559, %v3272
      %v4567 = vmul.f32 %v4563, %v3274
      %v4568 = vadd.f32 %v4512, %v4564
      %v4569 = vadd.f32 %v4513, %v4565
      %v4570 = vadd.f32 %v4514, %v4566
      %v4571 = vadd.f32 %v4515, %v4567
      %v4572 = vmul.f32 %v4551, %v3441
      %v4573 = vmul.f32 %v4555, %v3443
      %v4574 = vmul.f32 %v4559, %v3514
      %v4575 = vmul.f32 %v4563, %v3516
      %v4576 = vadd.f32 %v4544, %v4572
      %v4577 = vadd.f32 %v4545, %v4573
      %v4578 = vadd.f32 %v4546, %v4574
      %v4579 = vadd.f32 %v4547, %v4575
      %v4580 = vlaneseq
      %v4581 = vshrl.u32 %v4580, 7
      %v4582 = vsub.s32 3, %v4581
      %v4583 = vrot.slane %v2681, %v4582
      %v4584 = vlaneseq
      %v4585 = vshrl.u32 %v4584, 7
      %v4586 = vsub.s32 3, %v4585
      %v4587 = vrot.slane %v2683, %v4586
      %v4588 = vlaneseq
      %v4589 = vshrl.u32 %v4588, 7
      %v4590 = vsub.s32 3, %v4589
      %v4591 = vrot.slane %v2754, %v4590
      %v4592 = vlaneseq
      %v4593 = vshrl.u32 %v4592, 7
      %v4594 = vsub.s32 3, %v4593
      %v4595 = vrot.slane %v2756, %v4594
      %v4596 = vmul.f32 %v4583, %v3643
      %v4597 = vmul.f32 %v4587, %v3645
      %v4598 = vmul.f32 %v4591, %v3716
      %v4599 = vmul.f32 %v4595, %v3718
      %v4600 = vadd.f32 %v4576, %v4596
      %v4601 = vadd.f32 %v4577, %v4597
      %v4602 = vadd.f32 %v4578, %v4598
      %v4603 = vadd.f32 %v4579, %v4599
      %v4604 = vlaneseq
      %v4605 = vshrl.u32 %v4604, 7
      %v4606 = vsub.s32 4, %v4605
      %v4607 = vrot.slane %v2701, %v4606
      %v4608 = vlaneseq
      %v4609 = vshrl.u32 %v4608, 7
      %v4610 = vsub.s32 4, %v4609
      %v4611 = vrot.slane %v2703, %v4610
      %v4612 = vlaneseq
      %v4613 = vshrl.u32 %v4612, 7
      %v4614 = vsub.s32 4, %v4613
      %v4615 = vrot.slane %v2774, %v4614
      %v4616 = vlaneseq
      %v4617 = vshrl.u32 %v4616, 7
      %v4618 = vsub.s32 4, %v4617
      %v4619 = vrot.slane %v2776, %v4618
      %v4620 = vmul.f32 %v4607, %v3085
      %v4621 = vmul.f32 %v4611, %v3087
      %v4622 = vmul.f32 %v4615, %v3278
      %v4623 = vmul.f32 %v4619, %v3280
      %v4624 = vadd.f32 %v4568, %v4620
      %v4625 = vadd.f32 %v4569, %v4621
      %v4626 = vadd.f32 %v4570, %v4622
      %v4627 = vadd.f32 %v4571, %v4623
      %v4628 = vmul.f32 %v4607, %v3447
      %v4629 = vmul.f32 %v4611, %v3449
      %v4630 = vmul.f32 %v4615, %v3520
      %v4631 = vmul.f32 %v4619, %v3522
      %v4632 = vadd.f32 %v4600, %v4628
      %v4633 = vadd.f32 %v4601, %v4629
      %v4634 = vadd.f32 %v4602, %v4630
      %v4635 = vadd.f32 %v4603, %v4631
      %v4636 = vlaneseq
      %v4637 = vshrl.u32 %v4636, 7
      %v4638 = vsub.s32 4, %v4637
      %v4639 = vrot.slane %v2681, %v4638
      %v4640 = vlaneseq
      %v4641 = vshrl.u32 %v4640, 7
      %v4642 = vsub.s32 4, %v4641
      %v4643 = vrot.slane %v2683, %v4642
      %v4644 = vlaneseq
      %v4645 = vshrl.u32 %v4644, 7
      %v4646 = vsub.s32 4, %v4645
      %v4647 = vrot.slane %v2754, %v4646
      %v4648 = vlaneseq
      %v4649 = vshrl.u32 %v4648, 7
      %v4650 = vsub.s32 4, %v4649
      %v4651 = vrot.slane %v2756, %v4650
      %v4652 = vmul.f32 %v4639, %v3649
      %v4653 = vmul.f32 %v4643, %v3651
      %v4654 = vmul.f32 %v4647, %v3722
      %v4655 = vmul.f32 %v4651, %v3724
      %v4656 = vadd.f32 %v4632, %v4652
      %v4657 = vadd.f32 %v4633, %v4653
      %v4658 = vadd.f32 %v4634, %v4654
      %v4659 = vadd.f32 %v4635, %v4655
      %v4660 = vlaneseq
      %v4661 = vshrl.u32 %v4660, 7
      %v4662 = vsub.s32 5, %v4661
      %v4663 = vrot.slane %v2701, %v4662
      %v4664 = vlaneseq
      %v4665 = vshrl.u32 %v4664, 7
      %v4666 = vsub.s32 5, %v4665
      %v4667 = vrot.slane %v2703, %v4666
      %v4668 = vlaneseq
      %v4669 = vshrl.u32 %v4668, 7
      %v4670 = vsub.s32 5, %v4669
      %v4671 = vrot.slane %v2774, %v4670
      %v4672 = vlaneseq
      %v4673 = vshrl.u32 %v4672, 7
      %v4674 = vsub.s32 5, %v4673
      %v4675 = vrot.slane %v2776, %v4674
      %v4676 = vmul.f32 %v4663, %v3089
      %v4677 = vmul.f32 %v4667, %v3091
      %v4678 = vmul.f32 %v4671, %v3282
      %v4679 = vmul.f32 %v4675, %v3284
      %v4680 = vadd.f32 %v4624, %v4676
      %v4681 = vadd.f32 %v4625, %v4677
      %v4682 = vadd.f32 %v4626, %v4678
      %v4683 = vadd.f32 %v4627, %v4679
      %v4684 = vmul.f32 %v4663, %v3451
      %v4685 = vmul.f32 %v4667, %v3453
      %v4686 = vmul.f32 %v4671, %v3524
      %v4687 = vmul.f32 %v4675, %v3526
      %v4688 = vadd.f32 %v4656, %v4684
      %v4689 = vadd.f32 %v4657, %v4685
      %v4690 = vadd.f32 %v4658, %v4686
      %v4691 = vadd.f32 %v4659, %v4687
      %v4692 = vlaneseq
      %v4693 = vshrl.u32 %v4692, 7
      %v4694 = vsub.s32 5, %v4693
      %v4695 = vrot.slane %v2681, %v4694
      %v4696 = vlaneseq
      %v4697 = vshrl.u32 %v4696, 7
      %v4698 = vsub.s32 5, %v4697
      %v4699 = vrot.slane %v2683, %v4698
      %v4700 = vlaneseq
      %v4701 = vshrl.u32 %v4700, 7
      %v4702 = vsub.s32 5, %v4701
      %v4703 = vrot.slane %v2754, %v4702
      %v4704 = vlaneseq
      %v4705 = vshrl.u32 %v4704, 7
      %v4706 = vsub.s32 5, %v4705
      %v4707 = vrot.slane %v2756, %v4706
      %v4708 = vmul.f32 %v4695, %v3653
      %v4709 = vmul.f32 %v4699, %v3655
      %v4710 = vmul.f32 %v4703, %v3726
      %v4711 = vmul.f32 %v4707, %v3728
      %v4712 = vadd.f32 %v4688, %v4708
      %v4713 = vadd.f32 %v4689, %v4709
      %v4714 = vadd.f32 %v4690, %v4710
      %v4715 = vadd.f32 %v4691, %v4711
      %v4716 = vlaneseq
      %v4717 = vshrl.u32 %v4716, 7
      %v4718 = vsub.s32 6, %v4717
      %v4719 = vrot.slane %v2701, %v4718
      %v4720 = vlaneseq
      %v4721 = vshrl.u32 %v4720, 7
      %v4722 = vsub.s32 6, %v4721
      %v4723 = vrot.slane %v2703, %v4722
      %v4724 = vlaneseq
      %v4725 = vshrl.u32 %v4724, 7
      %v4726 = vsub.s32 6, %v4725
      %v4727 = vrot.slane %v2774, %v4726
      %v4728 = vlaneseq
      %v4729 = vshrl.u32 %v4728, 7
      %v4730 = vsub.s32 6, %v4729
      %v4731 = vrot.slane %v2776, %v4730
      %v4732 = vmul.f32 %v4719, %v3095
      %v4733 = vmul.f32 %v4723, %v3097
      %v4734 = vmul.f32 %v4727, %v3288
      %v4735 = vmul.f32 %v4731, %v3290
      %v4736 = vadd.f32 %v4680, %v4732
      %v4737 = vadd.f32 %v4681, %v4733
      %v4738 = vadd.f32 %v4682, %v4734
      %v4739 = vadd.f32 %v4683, %v4735
      %v4740 = vmul.f32 %v4719, %v3457
      %v4741 = vmul.f32 %v4723, %v3459
      %v4742 = vmul.f32 %v4727, %v3530
      %v4743 = vmul.f32 %v4731, %v3532
      %v4744 = vadd.f32 %v4712, %v4740
      %v4745 = vadd.f32 %v4713, %v4741
      %v4746 = vadd.f32 %v4714, %v4742
      %v4747 = vadd.f32 %v4715, %v4743
      %v4748 = vlaneseq
      %v4749 = vshrl.u32 %v4748, 7
      %v4750 = vsub.s32 6, %v4749
      %v4751 = vrot.slane %v2681, %v4750
      %v4752 = vlaneseq
      %v4753 = vshrl.u32 %v4752, 7
      %v4754 = vsub.s32 6, %v4753
      %v4755 = vrot.slane %v2683, %v4754
      %v4756 = vlaneseq
      %v4757 = vshrl.u32 %v4756, 7
      %v4758 = vsub.s32 6, %v4757
      %v4759 = vrot.slane %v2754, %v4758
      %v4760 = vlaneseq
      %v4761 = vshrl.u32 %v4760, 7
      %v4762 = vsub.s32 6, %v4761
      %v4763 = vrot.slane %v2756, %v4762
      %v4764 = vmul.f32 %v4751, %v3659
      %v4765 = vmul.f32 %v4755, %v3661
      %v4766 = vmul.f32 %v4759, %v3732
      %v4767 = vmul.f32 %v4763, %v3734
      %v4768 = vadd.f32 %v4744, %v4764
      %v4769 = vadd.f32 %v4745, %v4765
      %v4770 = vadd.f32 %v4746, %v4766
      %v4771 = vadd.f32 %v4747, %v4767
      %v4772 = vlaneseq
      %v4773 = vshrl.u32 %v4772, 7
      %v4774 = vsub.s32 7, %v4773
      %v4775 = vrot.slane %v2701, %v4774
      %v4776 = vlaneseq
      %v4777 = vshrl.u32 %v4776, 7
      %v4778 = vsub.s32 7, %v4777
      %v4779 = vrot.slane %v2703, %v4778
      %v4780 = vlaneseq
      %v4781 = vshrl.u32 %v4780, 7
      %v4782 = vsub.s32 7, %v4781
      %v4783 = vrot.slane %v2774, %v4782
      %v4784 = vlaneseq
      %v4785 = vshrl.u32 %v4784, 7
      %v4786 = vsub.s32 7, %v4785
      %v4787 = vrot.slane %v2776, %v4786
      %v4788 = vmul.f32 %v4775, %v3099
      %v4789 = vmul.f32 %v4779, %v3101
      %v4790 = vmul.f32 %v4783, %v3292
      %v4791 = vmul.f32 %v4787, %v3294
      %v4792 = vadd.f32 %v4736, %v4788
      %v4793 = vadd.f32 %v4737, %v4789
      %v4794 = vadd.f32 %v4738, %v4790
      %v4795 = vadd.f32 %v4739, %v4791
      %v4796 = vmul.f32 %v4775, %v3461
      %v4797 = vmul.f32 %v4779, %v3463
      %v4798 = vmul.f32 %v4783, %v3534
      %v4799 = vmul.f32 %v4787, %v3536
      %v4800 = vadd.f32 %v4768, %v4796
      %v4801 = vadd.f32 %v4769, %v4797
      %v4802 = vadd.f32 %v4770, %v4798
      %v4803 = vadd.f32 %v4771, %v4799
      %v4804 = vlaneseq
      %v4805 = vshrl.u32 %v4804, 7
      %v4806 = vsub.s32 7, %v4805
      %v4807 = vrot.slane %v2681, %v4806
      %v4808 = vlaneseq
      %v4809 = vshrl.u32 %v4808, 7
      %v4810 = vsub.s32 7, %v4809
      %v4811 = vrot.slane %v2683, %v4810
      %v4812 = vlaneseq
      %v4813 = vshrl.u32 %v4812, 7
      %v4814 = vsub.s32 7, %v4813
      %v4815 = vrot.slane %v2754, %v4814
      %v4816 = vlaneseq
      %v4817 = vshrl.u32 %v4816, 7
      %v4818 = vsub.s32 7, %v4817
      %v4819 = vrot.slane %v2756, %v4818
      %v4820 = vmul.f32 %v4807, %v3663
      %v4821 = vmul.f32 %v4811, %v3665
      %v4822 = vmul.f32 %v4815, %v3736
      %v4823 = vmul.f32 %v4819, %v3738
      %v4824 = vadd.f32 %v4800, %v4820
      %v4825 = vadd.f32 %v4801, %v4821
      %v4826 = vadd.f32 %v4802, %v4822
      %v4827 = vadd.f32 %v4803, %v4823
      %v4828 = vlaneseq
      %v4829 = vshrl.u32 %v4828, 7
      %v4830 = vsub.s32 0, %v4829
      %v4831 = vrot.slane %v2705, %v4830
      %v4832 = vlaneseq
      %v4833 = vshrl.u32 %v4832, 7
      %v4834 = vsub.s32 0, %v4833
      %v4835 = vrot.slane %v2707, %v4834
      %v4836 = vlaneseq
      %v4837 = vshrl.u32 %v4836, 7
      %v4838 = vsub.s32 0, %v4837
      %v4839 = vrot.slane %v2778, %v4838
      %v4840 = vlaneseq
      %v4841 = vshrl.u32 %v4840, 7
      %v4842 = vsub.s32 0, %v4841
      %v4843 = vrot.slane %v2780, %v4842
      %v4844 = vmul.f32 %v4831, %v3105
      %v4845 = vmul.f32 %v4835, %v3107
      %v4846 = vmul.f32 %v4839, %v3298
      %v4847 = vmul.f32 %v4843, %v3300
      %v4848 = vadd.f32 %v4792, %v4844
      %v4849 = vadd.f32 %v4793, %v4845
      %v4850 = vadd.f32 %v4794, %v4846
      %v4851 = vadd.f32 %v4795, %v4847
      %v4852 = vmul.f32 %v4831, %v3427
      %v4853 = vmul.f32 %v4835, %v3429
      %v4854 = vmul.f32 %v4839, %v3500
      %v4855 = vmul.f32 %v4843, %v3502
      %v4856 = vadd.f32 %v4852, 0.0
      %v4857 = vadd.f32 %v4853, 0.0
      %v4858 = vadd.f32 %v4854, 0.0
      %v4859 = vadd.f32 %v4855, 0.0
      %v4860 = vlaneseq
      %v4861 = vshrl.u32 %v4860, 7
      %v4862 = vsub.s32 0, %v4861
      %v4863 = vrot.slane %v2685, %v4862
      %v4864 = vlaneseq
      %v4865 = vshrl.u32 %v4864, 7
      %v4866 = vsub.s32 0, %v4865
      %v4867 = vrot.slane %v2687, %v4866
      %v4868 = vlaneseq
      %v4869 = vshrl.u32 %v4868, 7
      %v4870 = vsub.s32 0, %v4869
      %v4871 = vrot.slane %v2758, %v4870
      %v4872 = vlaneseq
      %v4873 = vshrl.u32 %v4872, 7
      %v4874 = vsub.s32 0, %v4873
      %v4875 = vrot.slane %v2760, %v4874
      %v4876 = vmul.f32 %v4863, %v3629
      %v4877 = vmul.f32 %v4867, %v3631
      %v4878 = vmul.f32 %v4871, %v3702
      %v4879 = vmul.f32 %v4875, %v3704
      %v4880 = vadd.f32 %v4856, %v4876
      %v4881 = vadd.f32 %v4857, %v4877
      %v4882 = vadd.f32 %v4858, %v4878
      %v4883 = vadd.f32 %v4859, %v4879
      %v4884 = vlaneseq
      %v4885 = vshrl.u32 %v4884, 7
      %v4886 = vsub.s32 1, %v4885
      %v4887 = vrot.slane %v2705, %v4886
      %v4888 = vlaneseq
      %v4889 = vshrl.u32 %v4888, 7
      %v4890 = vsub.s32 1, %v4889
      %v4891 = vrot.slane %v2707, %v4890
      %v4892 = vlaneseq
      %v4893 = vshrl.u32 %v4892, 7
      %v4894 = vsub.s32 1, %v4893
      %v4895 = vrot.slane %v2778, %v4894
      %v4896 = vlaneseq
      %v4897 = vshrl.u32 %v4896, 7
      %v4898 = vsub.s32 1, %v4897
      %v4899 = vrot.slane %v2780, %v4898
      %v4900 = vmul.f32 %v4887, %v3109
      %v4901 = vmul.f32 %v4891, %v3111
      %v4902 = vmul.f32 %v4895, %v3302
      %v4903 = vmul.f32 %v4899, %v3304
      %v4904 = vadd.f32 %v4848, %v4900
      %v4905 = vadd.f32 %v4849, %v4901
      %v4906 = vadd.f32 %v4850, %v4902
      %v4907 = vadd.f32 %v4851, %v4903
      %v4908 = vmul.f32 %v4887, %v3431
      %v4909 = vmul.f32 %v4891, %v3433
      %v4910 = vmul.f32 %v4895, %v3504
      %v4911 = vmul.f32 %v4899, %v3506
      %v4912 = vadd.f32 %v4880, %v4908
      %v4913 = vadd.f32 %v4881, %v4909
      %v4914 = vadd.f32 %v4882, %v4910
      %v4915 = vadd.f32 %v4883, %v4911
      %v4916 = vlaneseq
      %v4917 = vshrl.u32 %v4916, 7
      %v4918 = vsub.s32 1, %v4917
      %v4919 = vrot.slane %v2685, %v4918
      %v4920 = vlaneseq
      %v4921 = vshrl.u32 %v4920, 7
      %v4922 = vsub.s32 1, %v4921
      %v4923 = vrot.slane %v2687, %v4922
      %v4924 = vlaneseq
      %v4925 = vshrl.u32 %v4924, 7
      %v4926 = vsub.s32 1, %v4925
      %v4927 = vrot.slane %v2758, %v4926
      %v4928 = vlaneseq
      %v4929 = vshrl.u32 %v4928, 7
      %v4930 = vsub.s32 1, %v4929
      %v4931 = vrot.slane %v2760, %v4930
      %v4932 = vmul.f32 %v4919, %v3633
      %v4933 = vmul.f32 %v4923, %v3635
      %v4934 = vmul.f32 %v4927, %v3706
      %v4935 = vmul.f32 %v4931, %v3708
      %v4936 = vadd.f32 %v4912, %v4932
      %v4937 = vadd.f32 %v4913, %v4933
      %v4938 = vadd.f32 %v4914, %v4934
      %v4939 = vadd.f32 %v4915, %v4935
      %v4940 = vlaneseq
      %v4941 = vshrl.u32 %v4940, 7
      %v4942 = vsub.s32 2, %v4941
      %v4943 = vrot.slane %v2705, %v4942
      %v4944 = vlaneseq
      %v4945 = vshrl.u32 %v4944, 7
      %v4946 = vsub.s32 2, %v4945
      %v4947 = vrot.slane %v2707, %v4946
      %v4948 = vlaneseq
      %v4949 = vshrl.u32 %v4948, 7
      %v4950 = vsub.s32 2, %v4949
      %v4951 = vrot.slane %v2778, %v4950
      %v4952 = vlaneseq
      %v4953 = vshrl.u32 %v4952, 7
      %v4954 = vsub.s32 2, %v4953
      %v4955 = vrot.slane %v2780, %v4954
      %v4956 = vmul.f32 %v4943, %v3115
      %v4957 = vmul.f32 %v4947, %v3117
      %v4958 = vmul.f32 %v4951, %v3308
      %v4959 = vmul.f32 %v4955, %v3310
      %v4960 = vadd.f32 %v4904, %v4956
      %v4961 = vadd.f32 %v4905, %v4957
      %v4962 = vadd.f32 %v4906, %v4958
      %v4963 = vadd.f32 %v4907, %v4959
      %v4964 = vmul.f32 %v4943, %v3437
      %v4965 = vmul.f32 %v4947, %v3439
      %v4966 = vmul.f32 %v4951, %v3510
      %v4967 = vmul.f32 %v4955, %v3512
      %v4968 = vadd.f32 %v4936, %v4964
      %v4969 = vadd.f32 %v4937, %v4965
      %v4970 = vadd.f32 %v4938, %v4966
      %v4971 = vadd.f32 %v4939, %v4967
      %v4972 = vlaneseq
      %v4973 = vshrl.u32 %v4972, 7
      %v4974 = vsub.s32 2, %v4973
      %v4975 = vrot.slane %v2685, %v4974
      %v4976 = vlaneseq
      %v4977 = vshrl.u32 %v4976, 7
      %v4978 = vsub.s32 2, %v4977
      %v4979 = vrot.slane %v2687, %v4978
      %v4980 = vlaneseq
      %v4981 = vshrl.u32 %v4980, 7
      %v4982 = vsub.s32 2, %v4981
      %v4983 = vrot.slane %v2758, %v4982
      %v4984 = vlaneseq
      %v4985 = vshrl.u32 %v4984, 7
      %v4986 = vsub.s32 2, %v4985
      %v4987 = vrot.slane %v2760, %v4986
      %v4988 = vmul.f32 %v4975, %v3639
      %v4989 = vmul.f32 %v4979, %v3641
      %v4990 = vmul.f32 %v4983, %v3712
      %v4991 = vmul.f32 %v4987, %v3714
      %v4992 = vadd.f32 %v4968, %v4988
      %v4993 = vadd.f32 %v4969, %v4989
      %v4994 = vadd.f32 %v4970, %v4990
      %v4995 = vadd.f32 %v4971, %v4991
      %v4996 = vlaneseq
      %v4997 = vshrl.u32 %v4996, 7
      %v4998 = vsub.s32 3, %v4997
      %v4999 = vrot.slane %v2705, %v4998
      %v5000 = vlaneseq
      %v5001 = vshrl.u32 %v5000, 7
      %v5002 = vsub.s32 3, %v5001
      %v5003 = vrot.slane %v2707, %v5002
      %v5004 = vlaneseq
      %v5005 = vshrl.u32 %v5004, 7
      %v5006 = vsub.s32 3, %v5005
      %v5007 = vrot.slane %v2778, %v5006
      %v5008 = vlaneseq
      %v5009 = vshrl.u32 %v5008, 7
      %v5010 = vsub.s32 3, %v5009
      %v5011 = vrot.slane %v2780, %v5010
      %v5012 = vmul.f32 %v4999, %v3119
      %v5013 = vmul.f32 %v5003, %v3121
      %v5014 = vmul.f32 %v5007, %v3312
      %v5015 = vmul.f32 %v5011, %v3314
      %v5016 = vadd.f32 %v4960, %v5012
      %v5017 = vadd.f32 %v4961, %v5013
      %v5018 = vadd.f32 %v4962, %v5014
      %v5019 = vadd.f32 %v4963, %v5015
      %v5020 = vmul.f32 %v4999, %v3441
      %v5021 = vmul.f32 %v5003, %v3443
      %v5022 = vmul.f32 %v5007, %v3514
      %v5023 = vmul.f32 %v5011, %v3516
      %v5024 = vadd.f32 %v4992, %v5020
      %v5025 = vadd.f32 %v4993, %v5021
      %v5026 = vadd.f32 %v4994, %v5022
      %v5027 = vadd.f32 %v4995, %v5023
      %v5028 = vlaneseq
      %v5029 = vshrl.u32 %v5028, 7
      %v5030 = vsub.s32 3, %v5029
      %v5031 = vrot.slane %v2685, %v5030
      %v5032 = vlaneseq
      %v5033 = vshrl.u32 %v5032, 7
      %v5034 = vsub.s32 3, %v5033
      %v5035 = vrot.slane %v2687, %v5034
      %v5036 = vlaneseq
      %v5037 = vshrl.u32 %v5036, 7
      %v5038 = vsub.s32 3, %v5037
      %v5039 = vrot.slane %v2758, %v5038
      %v5040 = vlaneseq
      %v5041 = vshrl.u32 %v5040, 7
      %v5042 = vsub.s32 3, %v5041
      %v5043 = vrot.slane %v2760, %v5042
      %v5044 = vmul.f32 %v5031, %v3643
      %v5045 = vmul.f32 %v5035, %v3645
      %v5046 = vmul.f32 %v5039, %v3716
      %v5047 = vmul.f32 %v5043, %v3718
      %v5048 = vadd.f32 %v5024, %v5044
      %v5049 = vadd.f32 %v5025, %v5045
      %v5050 = vadd.f32 %v5026, %v5046
      %v5051 = vadd.f32 %v5027, %v5047
      %v5052 = vlaneseq
      %v5053 = vshrl.u32 %v5052, 7
      %v5054 = vsub.s32 4, %v5053
      %v5055 = vrot.slane %v2705, %v5054
      %v5056 = vlaneseq
      %v5057 = vshrl.u32 %v5056, 7
      %v5058 = vsub.s32 4, %v5057
      %v5059 = vrot.slane %v2707, %v5058
      %v5060 = vlaneseq
      %v5061 = vshrl.u32 %v5060, 7
      %v5062 = vsub.s32 4, %v5061
      %v5063 = vrot.slane %v2778, %v5062
      %v5064 = vlaneseq
      %v5065 = vshrl.u32 %v5064, 7
      %v5066 = vsub.s32 4, %v5065
      %v5067 = vrot.slane %v2780, %v5066
      %v5068 = vmul.f32 %v5055, %v3125
      %v5069 = vmul.f32 %v5059, %v3127
      %v5070 = vmul.f32 %v5063, %v3318
      %v5071 = vmul.f32 %v5067, %v3320
      %v5072 = vadd.f32 %v5016, %v5068
      %v5073 = vadd.f32 %v5017, %v5069
      %v5074 = vadd.f32 %v5018, %v5070
      %v5075 = vadd.f32 %v5019, %v5071
      %v5076 = vmul.f32 %v5055, %v3447
      %v5077 = vmul.f32 %v5059, %v3449
      %v5078 = vmul.f32 %v5063, %v3520
      %v5079 = vmul.f32 %v5067, %v3522
      %v5080 = vadd.f32 %v5048, %v5076
      %v5081 = vadd.f32 %v5049, %v5077
      %v5082 = vadd.f32 %v5050, %v5078
      %v5083 = vadd.f32 %v5051, %v5079
      %v5084 = vlaneseq
      %v5085 = vshrl.u32 %v5084, 7
      %v5086 = vsub.s32 4, %v5085
      %v5087 = vrot.slane %v2685, %v5086
      %v5088 = vlaneseq
      %v5089 = vshrl.u32 %v5088, 7
      %v5090 = vsub.s32 4, %v5089
      %v5091 = vrot.slane %v2687, %v5090
      %v5092 = vlaneseq
      %v5093 = vshrl.u32 %v5092, 7
      %v5094 = vsub.s32 4, %v5093
      %v5095 = vrot.slane %v2758, %v5094
      %v5096 = vlaneseq
      %v5097 = vshrl.u32 %v5096, 7
      %v5098 = vsub.s32 4, %v5097
      %v5099 = vrot.slane %v2760, %v5098
      %v5100 = vmul.f32 %v5087, %v3649
      %v5101 = vmul.f32 %v5091, %v3651
      %v5102 = vmul.f32 %v5095, %v3722
      %v5103 = vmul.f32 %v5099, %v3724
      %v5104 = vadd.f32 %v5080, %v5100
      %v5105 = vadd.f32 %v5081, %v5101
      %v5106 = vadd.f32 %v5082, %v5102
      %v5107 = vadd.f32 %v5083, %v5103
      %v5108 = vlaneseq
      %v5109 = vshrl.u32 %v5108, 7
      %v5110 = vsub.s32 5, %v5109
      %v5111 = vrot.slane %v2705, %v5110
      %v5112 = vlaneseq
      %v5113 = vshrl.u32 %v5112, 7
      %v5114 = vsub.s32 5, %v5113
      %v5115 = vrot.slane %v2707, %v5114
      %v5116 = vlaneseq
      %v5117 = vshrl.u32 %v5116, 7
      %v5118 = vsub.s32 5, %v5117
      %v5119 = vrot.slane %v2778, %v5118
      %v5120 = vlaneseq
      %v5121 = vshrl.u32 %v5120, 7
      %v5122 = vsub.s32 5, %v5121
      %v5123 = vrot.slane %v2780, %v5122
      %v5124 = vmul.f32 %v5111, %v3129
      %v5125 = vmul.f32 %v5115, %v3131
      %v5126 = vmul.f32 %v5119, %v3322
      %v5127 = vmul.f32 %v5123, %v3324
      %v5128 = vadd.f32 %v5072, %v5124
      %v5129 = vadd.f32 %v5073, %v5125
      %v5130 = vadd.f32 %v5074, %v5126
      %v5131 = vadd.f32 %v5075, %v5127
      %v5132 = vmul.f32 %v5111, %v3451
      %v5133 = vmul.f32 %v5115, %v3453
      %v5134 = vmul.f32 %v5119, %v3524
      %v5135 = vmul.f32 %v5123, %v3526
      %v5136 = vadd.f32 %v5104, %v5132
      %v5137 = vadd.f32 %v5105, %v5133
      %v5138 = vadd.f32 %v5106, %v5134
      %v5139 = vadd.f32 %v5107, %v5135
      %v5140 = vlaneseq
      %v5141 = vshrl.u32 %v5140, 7
      %v5142 = vsub.s32 5, %v5141
      %v5143 = vrot.slane %v2685, %v5142
      %v5144 = vlaneseq
      %v5145 = vshrl.u32 %v5144, 7
      %v5146 = vsub.s32 5, %v5145
      %v5147 = vrot.slane %v2687, %v5146
      %v5148 = vlaneseq
      %v5149 = vshrl.u32 %v5148, 7
      %v5150 = vsub.s32 5, %v5149
      %v5151 = vrot.slane %v2758, %v5150
      %v5152 = vlaneseq
      %v5153 = vshrl.u32 %v5152, 7
      %v5154 = vsub.s32 5, %v5153
      %v5155 = vrot.slane %v2760, %v5154
      %v5156 = vmul.f32 %v5143, %v3653
      %v5157 = vmul.f32 %v5147, %v3655
      %v5158 = vmul.f32 %v5151, %v3726
      %v5159 = vmul.f32 %v5155, %v3728
      %v5160 = vadd.f32 %v5136, %v5156
      %v5161 = vadd.f32 %v5137, %v5157
      %v5162 = vadd.f32 %v5138, %v5158
      %v5163 = vadd.f32 %v5139, %v5159
      %v5164 = vlaneseq
      %v5165 = vshrl.u32 %v5164, 7
      %v5166 = vsub.s32 6, %v5165
      %v5167 = vrot.slane %v2705, %v5166
      %v5168 = vlaneseq
      %v5169 = vshrl.u32 %v5168, 7
      %v5170 = vsub.s32 6, %v5169
      %v5171 = vrot.slane %v2707, %v5170
      %v5172 = vlaneseq
      %v5173 = vshrl.u32 %v5172, 7
      %v5174 = vsub.s32 6, %v5173
      %v5175 = vrot.slane %v2778, %v5174
      %v5176 = vlaneseq
      %v5177 = vshrl.u32 %v5176, 7
      %v5178 = vsub.s32 6, %v5177
      %v5179 = vrot.slane %v2780, %v5178
      %v5180 = vmul.f32 %v5167, %v3135
      %v5181 = vmul.f32 %v5171, %v3137
      %v5182 = vmul.f32 %v5175, %v3328
      %v5183 = vmul.f32 %v5179, %v3330
      %v5184 = vadd.f32 %v5128, %v5180
      %v5185 = vadd.f32 %v5129, %v5181
      %v5186 = vadd.f32 %v5130, %v5182
      %v5187 = vadd.f32 %v5131, %v5183
      %v5188 = vmul.f32 %v5167, %v3457
      %v5189 = vmul.f32 %v5171, %v3459
      %v5190 = vmul.f32 %v5175, %v3530
      %v5191 = vmul.f32 %v5179, %v3532
      %v5192 = vadd.f32 %v5160, %v5188
      %v5193 = vadd.f32 %v5161, %v5189
      %v5194 = vadd.f32 %v5162, %v5190
      %v5195 = vadd.f32 %v5163, %v5191
      %v5196 = vlaneseq
      %v5197 = vshrl.u32 %v5196, 7
      %v5198 = vsub.s32 6, %v5197
      %v5199 = vrot.slane %v2685, %v5198
      %v5200 = vlaneseq
      %v5201 = vshrl.u32 %v5200, 7
      %v5202 = vsub.s32 6, %v5201
      %v5203 = vrot.slane %v2687, %v5202
      %v5204 = vlaneseq
      %v5205 = vshrl.u32 %v5204, 7
      %v5206 = vsub.s32 6, %v5205
      %v5207 = vrot.slane %v2758, %v5206
      %v5208 = vlaneseq
      %v5209 = vshrl.u32 %v5208, 7
      %v5210 = vsub.s32 6, %v5209
      %v5211 = vrot.slane %v2760, %v5210
      %v5212 = vmul.f32 %v5199, %v3659
      %v5213 = vmul.f32 %v5203, %v3661
      %v5214 = vmul.f32 %v5207, %v3732
      %v5215 = vmul.f32 %v5211, %v3734
      %v5216 = vadd.f32 %v5192, %v5212
      %v5217 = vadd.f32 %v5193, %v5213
      %v5218 = vadd.f32 %v5194, %v5214
      %v5219 = vadd.f32 %v5195, %v5215
      %v5220 = vlaneseq
      %v5221 = vshrl.u32 %v5220, 7
      %v5222 = vsub.s32 7, %v5221
      %v5223 = vrot.slane %v2705, %v5222
      %v5224 = vlaneseq
      %v5225 = vshrl.u32 %v5224, 7
      %v5226 = vsub.s32 7, %v5225
      %v5227 = vrot.slane %v2707, %v5226
      %v5228 = vlaneseq
      %v5229 = vshrl.u32 %v5228, 7
      %v5230 = vsub.s32 7, %v5229
      %v5231 = vrot.slane %v2778, %v5230
      %v5232 = vlaneseq
      %v5233 = vshrl.u32 %v5232, 7
      %v5234 = vsub.s32 7, %v5233
      %v5235 = vrot.slane %v2780, %v5234
      %v5236 = vmul.f32 %v5223, %v3139
      %v5237 = vmul.f32 %v5227, %v3141
      %v5238 = vmul.f32 %v5231, %v3332
      %v5239 = vmul.f32 %v5235, %v3334
      %v5240 = vadd.f32 %v5184, %v5236
      %v5241 = vadd.f32 %v5185, %v5237
      %v5242 = vadd.f32 %v5186, %v5238
      %v5243 = vadd.f32 %v5187, %v5239
      %v5244 = vmul.f32 %v5223, %v3461
      %v5245 = vmul.f32 %v5227, %v3463
      %v5246 = vmul.f32 %v5231, %v3534
      %v5247 = vmul.f32 %v5235, %v3536
      %v5248 = vadd.f32 %v5216, %v5244
      %v5249 = vadd.f32 %v5217, %v5245
      %v5250 = vadd.f32 %v5218, %v5246
      %v5251 = vadd.f32 %v5219, %v5247
      %v5252 = vlaneseq
      %v5253 = vshrl.u32 %v5252, 7
      %v5254 = vsub.s32 7, %v5253
      %v5255 = vrot.slane %v2685, %v5254
      %v5256 = vlaneseq
      %v5257 = vshrl.u32 %v5256, 7
      %v5258 = vsub.s32 7, %v5257
      %v5259 = vrot.slane %v2687, %v5258
      %v5260 = vlaneseq
      %v5261 = vshrl.u32 %v5260, 7
      %v5262 = vsub.s32 7, %v5261
      %v5263 = vrot.slane %v2758, %v5262
      %v5264 = vlaneseq
      %v5265 = vshrl.u32 %v5264, 7
      %v5266 = vsub.s32 7, %v5265
      %v5267 = vrot.slane %v2760, %v5266
      %v5268 = vmul.f32 %v5255, %v3663
      %v5269 = vmul.f32 %v5259, %v3665
      %v5270 = vmul.f32 %v5263, %v3736
      %v5271 = vmul.f32 %v5267, %v3738
      %v5272 = vadd.f32 %v5248, %v5268
      %v5273 = vadd.f32 %v5249, %v5269
      %v5274 = vadd.f32 %v5250, %v5270
      %v5275 = vadd.f32 %v5251, %v5271
      %v5276 = vld [vmem:[%s11] sm:$0xf]
      %v5277 = vld [vmem:[%s11 + $0x4] sm:$0xf]
      %v5278 = vpack.c.bf16 %v5240, %v5240
      %v5279 = vpack.c.bf16 %v5241, %v5241
      %v5280 = vpack.c.bf16 %v5242, %v5242
      %v5281 = vpack.c.bf16 %v5243, %v5243
      %v5284 = vunpack.c.l.b16 %v5276
      %v5285 = vunpack.c.l.b16 %v5277
      %v5286 = vpack.c.b16 %v5285, %v5284
      %v5288 = vsel %vm2166, %v5286, 0
      %v5291 = vsel %vm2170, %v5278, 0
      %v5294 = vsel %vm2170, %v5279, 0
      %v5297 = vsel %vm2170, %v5280, 0
      %v5300 = vsel %vm2170, %v5281, 0
      %5302 = vmatprep.subr.bf16.mxu0 0
      %5303 = vmatpush1.bf16.msra.mxu0 0
      %5304 = vmatprep.subr.bf16.mxu0 0
      %5305 = vmatpush1.bf16.msra.mxu0 0
      %5306 = vmatprep.subr.bf16.mxu0 0
      %5307 = vmatpush1.bf16.msra.mxu0 0
      %5308 = vmatprep.subr.bf16.mxu0 0
      %5309 = vmatpush1.bf16.msra.mxu0 0
      %5310 = vmatprep.subr.bf16.mxu0 0
      %5311 = vmatpush1.bf16.msra.mxu0 0
      %5312 = vmatprep.subr.bf16.mxu0 0
      %5313 = vmatpush1.bf16.msra.mxu0 0
      %5314 = vmatprep.subr.bf16.mxu0 0
      %5315 = vmatpush1.bf16.msra.mxu0 0
      %5316 = vmatprep.subr.bf16.mxu0 %v5294
      %5317 = vmatpush1.bf16.msra.mxu0 %v5291
      %5318 = vmatprep.subr.bf16.mxu0 0
      %5319 = vmatpush2.bf16.msra.mxu0 0
      %5320 = vmatprep.subr.bf16.mxu0 0
      %5321 = vmatpush2.bf16.msra.mxu0 0
      %5322 = vmatprep.subr.bf16.mxu0 0
      %5323 = vmatpush2.bf16.msra.mxu0 0
      %5324 = vmatprep.subr.bf16.mxu0 0
      %5325 = vmatpush2.bf16.msra.mxu0 0
      %5326 = vmatprep.subr.bf16.mxu0 0
      %5327 = vmatpush2.bf16.msra.mxu0 0
      %5328 = vmatprep.subr.bf16.mxu0 0
      %5329 = vmatpush2.bf16.msra.mxu0 0
      %5330 = vmatprep.subr.bf16.mxu0 0
      %5331 = vmatpush2.bf16.msra.mxu0 0
      %5332 = vmatprep.subr.bf16.mxu0 0
      %5333 = vmatpush2.bf16.msra.mxu0 0
      %5334 = vmatprep.mubr.bf16.mxu0 0
      %5335 = vmatmul.mubr.bf16.gmra.mxu0 %v5288
      %v5336 = vpop.f32.mrf.mxu0
      %v5337 = vadd.f32 0.0, %v5336
      %v5338 = vpop.f32.mrf.mxu0
      %v5339 = vadd.f32 0.0, %v5338
      %v5340 = vpop.f32.mrf.mxu0
      %v5341 = vadd.f32 0.0, %v5340
      %v5342 = vpop.f32.mrf.mxu0
      %v5343 = vadd.f32 0.0, %v5342
      %5344 = vdwg.mxu0
      %5345 = vmatprep.subr.bf16.mxu0 0
      %5346 = vmatpush1.bf16.msra.mxu0 0
      %5347 = vmatprep.subr.bf16.mxu0 0
      %5348 = vmatpush1.bf16.msra.mxu0 0
      %5349 = vmatprep.subr.bf16.mxu0 0
      %5350 = vmatpush1.bf16.msra.mxu0 0
      %5351 = vmatprep.subr.bf16.mxu0 0
      %5352 = vmatpush1.bf16.msra.mxu0 0
      %5353 = vmatprep.subr.bf16.mxu0 0
      %5354 = vmatpush1.bf16.msra.mxu0 0
      %5355 = vmatprep.subr.bf16.mxu0 0
      %5356 = vmatpush1.bf16.msra.mxu0 0
      %5357 = vmatprep.subr.bf16.mxu0 0
      %5358 = vmatpush1.bf16.msra.mxu0 0
      %5359 = vmatprep.subr.bf16.mxu0 %v5300
      %5360 = vmatpush1.bf16.msra.mxu0 %v5297
      %5361 = vmatprep.subr.bf16.mxu0 0
      %5362 = vmatpush2.bf16.msra.mxu0 0
      %5363 = vmatprep.subr.bf16.mxu0 0
      %5364 = vmatpush2.bf16.msra.mxu0 0
      %5365 = vmatprep.subr.bf16.mxu0 0
      %5366 = vmatpush2.bf16.msra.mxu0 0
      %5367 = vmatprep.subr.bf16.mxu0 0
      %5368 = vmatpush2.bf16.msra.mxu0 0
      %5369 = vmatprep.subr.bf16.mxu0 0
      %5370 = vmatpush2.bf16.msra.mxu0 0
      %5371 = vmatprep.subr.bf16.mxu0 0
      %5372 = vmatpush2.bf16.msra.mxu0 0
      %5373 = vmatprep.subr.bf16.mxu0 0
      %5374 = vmatpush2.bf16.msra.mxu0 0
      %5375 = vmatprep.subr.bf16.mxu0 0
      %5376 = vmatpush2.bf16.msra.mxu0 0
      %5377 = vmatprep.mubr.bf16.mxu0 0
      %5378 = vmatmul.mubr.bf16.gmra.mxu0 %v5288
      %v5379 = vpop.f32.mrf.mxu0
      %v5380 = vadd.f32 0.0, %v5379
      %v5381 = vpop.f32.mrf.mxu0
      %v5382 = vadd.f32 0.0, %v5381
      %v5383 = vpop.f32.mrf.mxu0
      %v5384 = vadd.f32 0.0, %v5383
      %v5385 = vpop.f32.mrf.mxu0
      %v5386 = vadd.f32 0.0, %v5385
      %5387 = vdwg.mxu0
      %v5388 = vtanh.pop %v5337
      %v5389 = vtanh.pop %v5339
      %v5390 = vtanh.pop %v5380
      %v5391 = vtanh.pop %v5382
      %v5392 = vtanh.pop %v5341
      %v5393 = vtanh.pop %v5343
      %v5394 = vtanh.pop %v5384
      %v5395 = vtanh.pop %v5386
      %v5396 = vld [vmem:[%s12] sm:$0xf]
      %v5397 = vpack.c.bf16 %v4376, %v4376
      %v5398 = vpack.c.bf16 %v4377, %v4377
      %v5399 = vpack.c.bf16 %v4378, %v4378
      %v5400 = vpack.c.bf16 %v4379, %v4379
      %v5402 = vsel %vm2166, %v5396, 0
      %v5405 = vsel %vm2170, %v5397, 0
      %v5408 = vsel %vm2170, %v5398, 0
      %v5411 = vsel %vm2170, %v5399, 0
      %v5414 = vsel %vm2170, %v5400, 0
      %5416 = vmatprep.subr.bf16.mxu0 0
      %5417 = vmatpush1.bf16.msra.mxu0 0
      %5418 = vmatprep.subr.bf16.mxu0 0
      %5419 = vmatpush1.bf16.msra.mxu0 0
      %5420 = vmatprep.subr.bf16.mxu0 0
      %5421 = vmatpush1.bf16.msra.mxu0 0
      %5422 = vmatprep.subr.bf16.mxu0 0
      %5423 = vmatpush1.bf16.msra.mxu0 0
      %5424 = vmatprep.subr.bf16.mxu0 0
      %5425 = vmatpush1.bf16.msra.mxu0 0
      %5426 = vmatprep.subr.bf16.mxu0 0
      %5427 = vmatpush1.bf16.msra.mxu0 0
      %5428 = vmatprep.subr.bf16.mxu0 0
      %5429 = vmatpush1.bf16.msra.mxu0 0
      %5430 = vmatprep.subr.bf16.mxu0 %v5408
      %5431 = vmatpush1.bf16.msra.mxu0 %v5405
      %5432 = vmatprep.subr.bf16.mxu0 0
      %5433 = vmatpush2.bf16.msra.mxu0 0
      %5434 = vmatprep.subr.bf16.mxu0 0
      %5435 = vmatpush2.bf16.msra.mxu0 0
      %5436 = vmatprep.subr.bf16.mxu0 0
      %5437 = vmatpush2.bf16.msra.mxu0 0
      %5438 = vmatprep.subr.bf16.mxu0 0
      %5439 = vmatpush2.bf16.msra.mxu0 0
      %5440 = vmatprep.subr.bf16.mxu0 0
      %5441 = vmatpush2.bf16.msra.mxu0 0
      %5442 = vmatprep.subr.bf16.mxu0 0
      %5443 = vmatpush2.bf16.msra.mxu0 0
      %5444 = vmatprep.subr.bf16.mxu0 0
      %5445 = vmatpush2.bf16.msra.mxu0 0
      %5446 = vmatprep.subr.bf16.mxu0 0
      %5447 = vmatpush2.bf16.msra.mxu0 0
      %5448 = vmatprep.mubr.bf16.mxu0 0
      %5449 = vmatmul.mubr.bf16.gmra.mxu0 %v5402
      %v5450 = vpop.f32.mrf.mxu0
      %v5451 = vadd.f32 0.0, %v5450
      %v5452 = vpop.f32.mrf.mxu0
      %v5453 = vadd.f32 0.0, %v5452
      %v5454 = vpop.f32.mrf.mxu0
      %v5455 = vpop.f32.mrf.mxu0
      %5456 = vdwg.mxu0
      %5457 = vmatprep.subr.bf16.mxu0 0
      %5458 = vmatpush1.bf16.msra.mxu0 0
      %5459 = vmatprep.subr.bf16.mxu0 0
      %5460 = vmatpush1.bf16.msra.mxu0 0
      %5461 = vmatprep.subr.bf16.mxu0 0
      %5462 = vmatpush1.bf16.msra.mxu0 0
      %5463 = vmatprep.subr.bf16.mxu0 0
      %5464 = vmatpush1.bf16.msra.mxu0 0
      %5465 = vmatprep.subr.bf16.mxu0 0
      %5466 = vmatpush1.bf16.msra.mxu0 0
      %5467 = vmatprep.subr.bf16.mxu0 0
      %5468 = vmatpush1.bf16.msra.mxu0 0
      %5469 = vmatprep.subr.bf16.mxu0 0
      %5470 = vmatpush1.bf16.msra.mxu0 0
      %5471 = vmatprep.subr.bf16.mxu0 %v5414
      %5472 = vmatpush1.bf16.msra.mxu0 %v5411
      %5473 = vmatprep.subr.bf16.mxu0 0
      %5474 = vmatpush2.bf16.msra.mxu0 0
      %5475 = vmatprep.subr.bf16.mxu0 0
      %5476 = vmatpush2.bf16.msra.mxu0 0
      %5477 = vmatprep.subr.bf16.mxu0 0
      %5478 = vmatpush2.bf16.msra.mxu0 0
      %5479 = vmatprep.subr.bf16.mxu0 0
      %5480 = vmatpush2.bf16.msra.mxu0 0
      %5481 = vmatprep.subr.bf16.mxu0 0
      %5482 = vmatpush2.bf16.msra.mxu0 0
      %5483 = vmatprep.subr.bf16.mxu0 0
      %5484 = vmatpush2.bf16.msra.mxu0 0
      %5485 = vmatprep.subr.bf16.mxu0 0
      %5486 = vmatpush2.bf16.msra.mxu0 0
      %5487 = vmatprep.subr.bf16.mxu0 0
      %5488 = vmatpush2.bf16.msra.mxu0 0
      %5489 = vmatprep.mubr.bf16.mxu0 0
      %5490 = vmatmul.mubr.bf16.gmra.mxu0 %v5402
      %v5491 = vpop.f32.mrf.mxu0
      %v5492 = vadd.f32 0.0, %v5491
      %v5493 = vpop.f32.mrf.mxu0
      %v5494 = vadd.f32 0.0, %v5493
      %v5495 = vpop.f32.mrf.mxu0
      %v5496 = vpop.f32.mrf.mxu0
      %5497 = vdwg.mxu0
      %v5498 = vmul.f32 %v5392, %v5451
      %v5499 = vmul.f32 %v5393, %v5453
      %v5500 = vmul.f32 %v5394, %v5492
      %v5501 = vmul.f32 %v5395, %v5494
      %v5502 = vpack.c.bf16 %v4824, %v4824
      %v5503 = vpack.c.bf16 %v4825, %v4825
      %v5504 = vpack.c.bf16 %v4826, %v4826
      %v5505 = vpack.c.bf16 %v4827, %v4827
      %v5507 = vsel %vm2170, %v5502, 0
      %v5510 = vsel %vm2170, %v5503, 0
      %v5513 = vsel %vm2170, %v5504, 0
      %v5516 = vsel %vm2170, %v5505, 0
      %5518 = vmatprep.subr.bf16.mxu0 0
      %5519 = vmatpush1.bf16.msra.mxu0 0
      %5520 = vmatprep.subr.bf16.mxu0 0
      %5521 = vmatpush1.bf16.msra.mxu0 0
      %5522 = vmatprep.subr.bf16.mxu0 0
      %5523 = vmatpush1.bf16.msra.mxu0 0
      %5524 = vmatprep.subr.bf16.mxu0 0
      %5525 = vmatpush1.bf16.msra.mxu0 0
      %5526 = vmatprep.subr.bf16.mxu0 0
      %5527 = vmatpush1.bf16.msra.mxu0 0
      %5528 = vmatprep.subr.bf16.mxu0 0
      %5529 = vmatpush1.bf16.msra.mxu0 0
      %5530 = vmatprep.subr.bf16.mxu0 0
      %5531 = vmatpush1.bf16.msra.mxu0 0
      %5532 = vmatprep.subr.bf16.mxu0 %v5510
      %5533 = vmatpush1.bf16.msra.mxu0 %v5507
      %5534 = vmatprep.subr.bf16.mxu0 0
      %5535 = vmatpush2.bf16.msra.mxu0 0
      %5536 = vmatprep.subr.bf16.mxu0 0
      %5537 = vmatpush2.bf16.msra.mxu0 0
      %5538 = vmatprep.subr.bf16.mxu0 0
      %5539 = vmatpush2.bf16.msra.mxu0 0
      %5540 = vmatprep.subr.bf16.mxu0 0
      %5541 = vmatpush2.bf16.msra.mxu0 0
      %5542 = vmatprep.subr.bf16.mxu0 0
      %5543 = vmatpush2.bf16.msra.mxu0 0
      %5544 = vmatprep.subr.bf16.mxu0 0
      %5545 = vmatpush2.bf16.msra.mxu0 0
      %5546 = vmatprep.subr.bf16.mxu0 0
      %5547 = vmatpush2.bf16.msra.mxu0 0
      %5548 = vmatprep.subr.bf16.mxu0 0
      %5549 = vmatpush2.bf16.msra.mxu0 0
      %5550 = vmatprep.mubr.bf16.mxu0 0
      %5551 = vmatmul.mubr.bf16.gmra.mxu0 %v5402
      %v5552 = vpop.f32.mrf.mxu0
      %v5553 = vadd.f32 0.0, %v5552
      %v5554 = vpop.f32.mrf.mxu0
      %v5555 = vadd.f32 0.0, %v5554
      %v5556 = vpop.f32.mrf.mxu0
      %v5557 = vpop.f32.mrf.mxu0
      %5558 = vdwg.mxu0
      %5559 = vmatprep.subr.bf16.mxu0 0
      %5560 = vmatpush1.bf16.msra.mxu0 0
      %5561 = vmatprep.subr.bf16.mxu0 0
      %5562 = vmatpush1.bf16.msra.mxu0 0
      %5563 = vmatprep.subr.bf16.mxu0 0
      %5564 = vmatpush1.bf16.msra.mxu0 0
      %5565 = vmatprep.subr.bf16.mxu0 0
      %5566 = vmatpush1.bf16.msra.mxu0 0
      %5567 = vmatprep.subr.bf16.mxu0 0
      %5568 = vmatpush1.bf16.msra.mxu0 0
      %5569 = vmatprep.subr.bf16.mxu0 0
      %5570 = vmatpush1.bf16.msra.mxu0 0
      %5571 = vmatprep.subr.bf16.mxu0 0
      %5572 = vmatpush1.bf16.msra.mxu0 0
      %5573 = vmatprep.subr.bf16.mxu0 %v5516
      %5574 = vmatpush1.bf16.msra.mxu0 %v5513
      %5575 = vmatprep.subr.bf16.mxu0 0
      %5576 = vmatpush2.bf16.msra.mxu0 0
      %5577 = vmatprep.subr.bf16.mxu0 0
      %5578 = vmatpush2.bf16.msra.mxu0 0
      %5579 = vmatprep.subr.bf16.mxu0 0
      %5580 = vmatpush2.bf16.msra.mxu0 0
      %5581 = vmatprep.subr.bf16.mxu0 0
      %5582 = vmatpush2.bf16.msra.mxu0 0
      %5583 = vmatprep.subr.bf16.mxu0 0
      %5584 = vmatpush2.bf16.msra.mxu0 0
      %5585 = vmatprep.subr.bf16.mxu0 0
      %5586 = vmatpush2.bf16.msra.mxu0 0
      %5587 = vmatprep.subr.bf16.mxu0 0
      %5588 = vmatpush2.bf16.msra.mxu0 0
      %5589 = vmatprep.subr.bf16.mxu0 0
      %5590 = vmatpush2.bf16.msra.mxu0 0
      %5591 = vmatprep.mubr.bf16.mxu0 0
      %5592 = vmatmul.mubr.bf16.gmra.mxu0 %v5402
      %v5593 = vpop.f32.mrf.mxu0
      %v5594 = vadd.f32 0.0, %v5593
      %v5595 = vpop.f32.mrf.mxu0
      %v5596 = vadd.f32 0.0, %v5595
      %v5597 = vpop.f32.mrf.mxu0
      %v5598 = vpop.f32.mrf.mxu0
      %5599 = vdwg.mxu0
      %v5600 = vmul.f32 %v5392, %v5553
      %v5601 = vmul.f32 %v5393, %v5555
      %v5602 = vmul.f32 %v5394, %v5594
      %v5603 = vmul.f32 %v5395, %v5596
      %v5604 = vpack.c.bf16 %v5272, %v5272
      %v5605 = vpack.c.bf16 %v5273, %v5273
      %v5606 = vpack.c.bf16 %v5274, %v5274
      %v5607 = vpack.c.bf16 %v5275, %v5275
      %v5609 = vsel %vm2170, %v5604, 0
      %v5612 = vsel %vm2170, %v5605, 0
      %v5615 = vsel %vm2170, %v5606, 0
      %v5618 = vsel %vm2170, %v5607, 0
      %5620 = vmatprep.subr.bf16.mxu0 0
      %5621 = vmatpush1.bf16.msra.mxu0 0
      %5622 = vmatprep.subr.bf16.mxu0 0
      %5623 = vmatpush1.bf16.msra.mxu0 0
      %5624 = vmatprep.subr.bf16.mxu0 0
      %5625 = vmatpush1.bf16.msra.mxu0 0
      %5626 = vmatprep.subr.bf16.mxu0 0
      %5627 = vmatpush1.bf16.msra.mxu0 0
      %5628 = vmatprep.subr.bf16.mxu0 0
      %5629 = vmatpush1.bf16.msra.mxu0 0
      %5630 = vmatprep.subr.bf16.mxu0 0
      %5631 = vmatpush1.bf16.msra.mxu0 0
      %5632 = vmatprep.subr.bf16.mxu0 0
      %5633 = vmatpush1.bf16.msra.mxu0 0
      %5634 = vmatprep.subr.bf16.mxu0 %v5612
      %5635 = vmatpush1.bf16.msra.mxu0 %v5609
      %5636 = vmatprep.subr.bf16.mxu0 0
      %5637 = vmatpush2.bf16.msra.mxu0 0
      %5638 = vmatprep.subr.bf16.mxu0 0
      %5639 = vmatpush2.bf16.msra.mxu0 0
      %5640 = vmatprep.subr.bf16.mxu0 0
      %5641 = vmatpush2.bf16.msra.mxu0 0
      %5642 = vmatprep.subr.bf16.mxu0 0
      %5643 = vmatpush2.bf16.msra.mxu0 0
      %5644 = vmatprep.subr.bf16.mxu0 0
      %5645 = vmatpush2.bf16.msra.mxu0 0
      %5646 = vmatprep.subr.bf16.mxu0 0
      %5647 = vmatpush2.bf16.msra.mxu0 0
      %5648 = vmatprep.subr.bf16.mxu0 0
      %5649 = vmatpush2.bf16.msra.mxu0 0
      %5650 = vmatprep.subr.bf16.mxu0 0
      %5651 = vmatpush2.bf16.msra.mxu0 0
      %5652 = vmatprep.mubr.bf16.mxu0 0
      %5653 = vmatmul.mubr.bf16.gmra.mxu0 %v5402
      %v5654 = vpop.f32.mrf.mxu0
      %v5655 = vadd.f32 0.0, %v5654
      %v5656 = vpop.f32.mrf.mxu0
      %v5657 = vadd.f32 0.0, %v5656
      %v5658 = vpop.f32.mrf.mxu0
      %v5659 = vpop.f32.mrf.mxu0
      %5660 = vdwg.mxu0
      %5661 = vmatprep.subr.bf16.mxu0 0
      %5662 = vmatpush1.bf16.msra.mxu0 0
      %5663 = vmatprep.subr.bf16.mxu0 0
      %5664 = vmatpush1.bf16.msra.mxu0 0
      %5665 = vmatprep.subr.bf16.mxu0 0
      %5666 = vmatpush1.bf16.msra.mxu0 0
      %5667 = vmatprep.subr.bf16.mxu0 0
      %5668 = vmatpush1.bf16.msra.mxu0 0
      %5669 = vmatprep.subr.bf16.mxu0 0
      %5670 = vmatpush1.bf16.msra.mxu0 0
      %5671 = vmatprep.subr.bf16.mxu0 0
      %5672 = vmatpush1.bf16.msra.mxu0 0
      %5673 = vmatprep.subr.bf16.mxu0 0
      %5674 = vmatpush1.bf16.msra.mxu0 0
      %5675 = vmatprep.subr.bf16.mxu0 %v5618
      %5676 = vmatpush1.bf16.msra.mxu0 %v5615
      %5677 = vmatprep.subr.bf16.mxu0 0
      %5678 = vmatpush2.bf16.msra.mxu0 0
      %5679 = vmatprep.subr.bf16.mxu0 0
      %5680 = vmatpush2.bf16.msra.mxu0 0
      %5681 = vmatprep.subr.bf16.mxu0 0
      %5682 = vmatpush2.bf16.msra.mxu0 0
      %5683 = vmatprep.subr.bf16.mxu0 0
      %5684 = vmatpush2.bf16.msra.mxu0 0
      %5685 = vmatprep.subr.bf16.mxu0 0
      %5686 = vmatpush2.bf16.msra.mxu0 0
      %5687 = vmatprep.subr.bf16.mxu0 0
      %5688 = vmatpush2.bf16.msra.mxu0 0
      %5689 = vmatprep.subr.bf16.mxu0 0
      %5690 = vmatpush2.bf16.msra.mxu0 0
      %5691 = vmatprep.subr.bf16.mxu0 0
      %5692 = vmatpush2.bf16.msra.mxu0 0
      %5693 = vmatprep.mubr.bf16.mxu0 0
      %5694 = vmatmul.mubr.bf16.gmra.mxu0 %v5402
      %v5695 = vpop.f32.mrf.mxu0
      %v5696 = vadd.f32 0.0, %v5695
      %v5697 = vpop.f32.mrf.mxu0
      %v5698 = vadd.f32 0.0, %v5697
      %v5699 = vpop.f32.mrf.mxu0
      %v5700 = vpop.f32.mrf.mxu0
      %5701 = vdwg.mxu0
      %v5702 = vmul.f32 %v5392, %v5655
      %v5703 = vmul.f32 %v5393, %v5657
      %v5704 = vmul.f32 %v5394, %v5696
      %v5705 = vmul.f32 %v5395, %v5698
      %v5706 = vld [vmem:[%s13] sm:$0xff]
      %v5707 = vld [vmem:[%s13 + $0x8] sm:$0xff]
      %v5708 = vld [vmem:[%s13 + $0x10] sm:$0xff]
      %v5709 = vld [vmem:[%s13 + $0x18] sm:$0xff]
      %5710 = vxpose.xlu0.b32.start [1/16] %v5388, 128
      %5711 = vxpose.xlu0.b32.cont [2/16] %v5498, 128
      %5712 = vxpose.xlu0.b32.cont [3/16] %v5600, 128
      %5713 = vxpose.xlu0.b32.cont [4/16] %v5702, 128
      %5714 = vxpose.xlu0.b32.cont [5/16] 0.0, 128
      %5715 = vxpose.xlu0.b32.cont [6/16] 0.0, 128
      %5716 = vxpose.xlu0.b32.cont [7/16] 0.0, 128
      %5717 = vxpose.xlu0.b32.cont [8/16] 0.0, 128
      %5718 = vxpose.xlu0.b32.cont [9/16] 0.0, 128
      %5719 = vxpose.xlu0.b32.cont [10/16] 0.0, 128
      %5720 = vxpose.xlu0.b32.cont [11/16] 0.0, 128
      %5721 = vxpose.xlu0.b32.cont [12/16] 0.0, 128
      %5722 = vxpose.xlu0.b32.cont [13/16] 0.0, 128
      %5723 = vxpose.xlu0.b32.cont [14/16] 0.0, 128
      %5724 = vxpose.xlu0.b32.cont [15/16] 0.0, 128
      %5725 = vxpose.xlu0.b32.end [16/16] 0.0, 128
      %v5726 = vpop.trf.xlu0
      %v5727 = vpop.trf.xlu0
      %v5728 = vpop.trf.xlu0
      %v5729 = vpop.trf.xlu0
      %v5730 = vpop.trf.xlu0
      %v5731 = vpop.trf.xlu0
      %v5732 = vpop.trf.xlu0
      %v5733 = vpop.trf.xlu0
      %v5734 = vpop.trf.xlu0
      %v5735 = vpop.trf.xlu0
      %v5736 = vpop.trf.xlu0
      %v5737 = vpop.trf.xlu0
      %v5738 = vpop.trf.xlu0
      %v5739 = vpop.trf.xlu0
      %v5740 = vpop.trf.xlu0
      %v5741 = vpop.trf.xlu0
      %5742 = vxpose.xlu0.b32.start [1/16] %v5389, 128
      %5743 = vxpose.xlu0.b32.cont [2/16] %v5499, 128
      %5744 = vxpose.xlu0.b32.cont [3/16] %v5601, 128
      %5745 = vxpose.xlu0.b32.cont [4/16] %v5703, 128
      %5746 = vxpose.xlu0.b32.cont [5/16] 0.0, 128
      %5747 = vxpose.xlu0.b32.cont [6/16] 0.0, 128
      %5748 = vxpose.xlu0.b32.cont [7/16] 0.0, 128
      %5749 = vxpose.xlu0.b32.cont [8/16] 0.0, 128
      %5750 = vxpose.xlu0.b32.cont [9/16] 0.0, 128
      %5751 = vxpose.xlu0.b32.cont [10/16] 0.0, 128
      %5752 = vxpose.xlu0.b32.cont [11/16] 0.0, 128
      %5753 = vxpose.xlu0.b32.cont [12/16] 0.0, 128
      %5754 = vxpose.xlu0.b32.cont [13/16] 0.0, 128
      %5755 = vxpose.xlu0.b32.cont [14/16] 0.0, 128
      %5756 = vxpose.xlu0.b32.cont [15/16] 0.0, 128
      %5757 = vxpose.xlu0.b32.end [16/16] 0.0, 128
      %v5758 = vpop.trf.xlu0
      %v5759 = vpop.trf.xlu0
      %v5760 = vpop.trf.xlu0
      %v5761 = vpop.trf.xlu0
      %v5762 = vpop.trf.xlu0
      %v5763 = vpop.trf.xlu0
      %v5764 = vpop.trf.xlu0
      %v5765 = vpop.trf.xlu0
      %v5766 = vpop.trf.xlu0
      %v5767 = vpop.trf.xlu0
      %v5768 = vpop.trf.xlu0
      %v5769 = vpop.trf.xlu0
      %v5770 = vpop.trf.xlu0
      %v5771 = vpop.trf.xlu0
      %v5772 = vpop.trf.xlu0
      %v5773 = vpop.trf.xlu0
      %5774 = vxpose.xlu0.b32.start [1/16] %v5390, 128
      %5775 = vxpose.xlu0.b32.cont [2/16] %v5500, 128
      %5776 = vxpose.xlu0.b32.cont [3/16] %v5602, 128
      %5777 = vxpose.xlu0.b32.cont [4/16] %v5704, 128
      %5778 = vxpose.xlu0.b32.cont [5/16] 0.0, 128
      %5779 = vxpose.xlu0.b32.cont [6/16] 0.0, 128
      %5780 = vxpose.xlu0.b32.cont [7/16] 0.0, 128
      %5781 = vxpose.xlu0.b32.cont [8/16] 0.0, 128
      %5782 = vxpose.xlu0.b32.cont [9/16] 0.0, 128
      %5783 = vxpose.xlu0.b32.cont [10/16] 0.0, 128
      %5784 = vxpose.xlu0.b32.cont [11/16] 0.0, 128
      %5785 = vxpose.xlu0.b32.cont [12/16] 0.0, 128
      %5786 = vxpose.xlu0.b32.cont [13/16] 0.0, 128
      %5787 = vxpose.xlu0.b32.cont [14/16] 0.0, 128
      %5788 = vxpose.xlu0.b32.cont [15/16] 0.0, 128
      %5789 = vxpose.xlu0.b32.end [16/16] 0.0, 128
      %v5790 = vpop.trf.xlu0
      %v5791 = vpop.trf.xlu0
      %v5792 = vpop.trf.xlu0
      %v5793 = vpop.trf.xlu0
      %v5794 = vpop.trf.xlu0
      %v5795 = vpop.trf.xlu0
      %v5796 = vpop.trf.xlu0
      %v5797 = vpop.trf.xlu0
      %v5798 = vpop.trf.xlu0
      %v5799 = vpop.trf.xlu0
      %v5800 = vpop.trf.xlu0
      %v5801 = vpop.trf.xlu0
      %v5802 = vpop.trf.xlu0
      %v5803 = vpop.trf.xlu0
      %v5804 = vpop.trf.xlu0
      %v5805 = vpop.trf.xlu0
      %5806 = vxpose.xlu0.b32.start [1/16] %v5391, 128
      %5807 = vxpose.xlu0.b32.cont [2/16] %v5501, 128
      %5808 = vxpose.xlu0.b32.cont [3/16] %v5603, 128
      %5809 = vxpose.xlu0.b32.cont [4/16] %v5705, 128
      %5810 = vxpose.xlu0.b32.cont [5/16] 0.0, 128
      %5811 = vxpose.xlu0.b32.cont [6/16] 0.0, 128
      %5812 = vxpose.xlu0.b32.cont [7/16] 0.0, 128
      %5813 = vxpose.xlu0.b32.cont [8/16] 0.0, 128
      %5814 = vxpose.xlu0.b32.cont [9/16] 0.0, 128
      %5815 = vxpose.xlu0.b32.cont [10/16] 0.0, 128
      %5816 = vxpose.xlu0.b32.cont [11/16] 0.0, 128
      %5817 = vxpose.xlu0.b32.cont [12/16] 0.0, 128
      %5818 = vxpose.xlu0.b32.cont [13/16] 0.0, 128
      %5819 = vxpose.xlu0.b32.cont [14/16] 0.0, 128
      %5820 = vxpose.xlu0.b32.cont [15/16] 0.0, 128
      %5821 = vxpose.xlu0.b32.end [16/16] 0.0, 128
      %v5822 = vpop.trf.xlu0
      %v5823 = vpop.trf.xlu0
      %v5824 = vpop.trf.xlu0
      %v5825 = vpop.trf.xlu0
      %v5826 = vpop.trf.xlu0
      %v5827 = vpop.trf.xlu0
      %v5828 = vpop.trf.xlu0
      %v5829 = vpop.trf.xlu0
      %v5830 = vpop.trf.xlu0
      %v5831 = vpop.trf.xlu0
      %v5832 = vpop.trf.xlu0
      %v5833 = vpop.trf.xlu0
      %v5834 = vpop.trf.xlu0
      %v5835 = vpop.trf.xlu0
      %v5836 = vpop.trf.xlu0
      %v5837 = vpop.trf.xlu0
      %v5839 = vsel %vm2623, %v5726, 0
      %v5842 = vsel %vm2623, %v5727, 0
      %v5845 = vsel %vm2623, %v5728, 0
      %v5848 = vsel %vm2623, %v5729, 0
      %v5851 = vsel %vm2623, %v5730, 0
      %v5854 = vsel %vm2623, %v5731, 0
      %v5857 = vsel %vm2623, %v5732, 0
      %v5860 = vsel %vm2623, %v5733, 0
      %v5863 = vsel %vm2623, %v5734, 0
      %v5866 = vsel %vm2623, %v5735, 0
      %v5869 = vsel %vm2623, %v5736, 0
      %v5872 = vsel %vm2623, %v5737, 0
      %v5875 = vsel %vm2623, %v5738, 0
      %v5878 = vsel %vm2623, %v5739, 0
      %v5881 = vsel %vm2623, %v5740, 0
      %v5884 = vsel %vm2623, %v5741, 0
      %v5887 = vsel %vm2623, %v5758, 0
      %v5890 = vsel %vm2623, %v5759, 0
      %v5893 = vsel %vm2623, %v5760, 0
      %v5896 = vsel %vm2623, %v5761, 0
      %v5899 = vsel %vm2623, %v5762, 0
      %v5902 = vsel %vm2623, %v5763, 0
      %v5905 = vsel %vm2623, %v5764, 0
      %v5908 = vsel %vm2623, %v5765, 0
      %v5911 = vsel %vm2623, %v5766, 0
      %v5914 = vsel %vm2623, %v5767, 0
      %v5917 = vsel %vm2623, %v5768, 0
      %v5920 = vsel %vm2623, %v5769, 0
      %v5923 = vsel %vm2623, %v5770, 0
      %v5926 = vsel %vm2623, %v5771, 0
      %v5929 = vsel %vm2623, %v5772, 0
      %v5932 = vsel %vm2623, %v5773, 0
      %v5935 = vsel %vm2623, %v5790, 0
      %v5938 = vsel %vm2623, %v5791, 0
      %v5941 = vsel %vm2623, %v5792, 0
      %v5944 = vsel %vm2623, %v5793, 0
      %v5947 = vsel %vm2623, %v5794, 0
      %v5950 = vsel %vm2623, %v5795, 0
      %v5953 = vsel %vm2623, %v5796, 0
      %v5956 = vsel %vm2623, %v5797, 0
      %v5959 = vsel %vm2623, %v5798, 0
      %v5962 = vsel %vm2623, %v5799, 0
      %v5965 = vsel %vm2623, %v5800, 0
      %v5968 = vsel %vm2623, %v5801, 0
      %v5971 = vsel %vm2623, %v5802, 0
      %v5974 = vsel %vm2623, %v5803, 0
      %v5977 = vsel %vm2623, %v5804, 0
      %v5980 = vsel %vm2623, %v5805, 0
      %v5983 = vsel %vm2623, %v5822, 0
      %v5986 = vsel %vm2623, %v5823, 0
      %v5989 = vsel %vm2623, %v5824, 0
      %v5992 = vsel %vm2623, %v5825, 0
      %v5995 = vsel %vm2623, %v5826, 0
      %v5998 = vsel %vm2623, %v5827, 0
      %v6001 = vsel %vm2623, %v5828, 0
      %v6004 = vsel %vm2623, %v5829, 0
      %v6007 = vsel %vm2623, %v5830, 0
      %v6010 = vsel %vm2623, %v5831, 0
      %v6013 = vsel %vm2623, %v5832, 0
      %v6016 = vsel %vm2623, %v5833, 0
      %v6019 = vsel %vm2623, %v5834, 0
      %v6022 = vsel %vm2623, %v5835, 0
      %v6025 = vsel %vm2623, %v5836, 0
      %v6028 = vsel %vm2623, %v5837, 0
      %6030 = vmatprep.subr.mxu0 0.0
      %6031 = vmatpush1.msra.mxu0 0.0
      %6032 = vmatprep.subr.mxu0 0.0
      %6033 = vmatpush1.msra.mxu0 0.0
      %6034 = vmatprep.subr.mxu0 0.0
      %6035 = vmatpush1.msra.mxu0 0.0
      %6036 = vmatprep.subr.mxu0 0.0
      %6037 = vmatpush1.msra.mxu0 0.0
      %6038 = vmatprep.subr.mxu0 0.0
      %6039 = vmatpush1.msra.mxu0 0.0
      %6040 = vmatprep.subr.mxu0 0.0
      %6041 = vmatpush1.msra.mxu0 0.0
      %6042 = vmatprep.subr.mxu0 0.0
      %6043 = vmatpush1.msra.mxu0 0.0
      %6044 = vmatprep.subr.mxu0 0.0
      %6045 = vmatpush1.msra.mxu0 0.0
      %6046 = vmatprep.subr.mxu0 0.0
      %6047 = vmatpush1.msra.mxu0 0.0
      %6048 = vmatprep.subr.mxu0 0.0
      %6049 = vmatpush1.msra.mxu0 0.0
      %6050 = vmatprep.subr.mxu0 0.0
      %6051 = vmatpush1.msra.mxu0 0.0
      %6052 = vmatprep.subr.mxu0 0.0
      %6053 = vmatpush1.msra.mxu0 0.0
      %6054 = vmatprep.subr.mxu0 0.0
      %6055 = vmatpush1.msra.mxu0 %v5709
      %6056 = vmatprep.subr.mxu0 0.0
      %6057 = vmatpush1.msra.mxu0 %v5708
      %6058 = vmatprep.subr.mxu0 0.0
      %6059 = vmatpush1.msra.mxu0 %v5707
      %6060 = vmatprep.subr.mxu0 0.0
      %6061 = vmatpush1.msra.mxu0 %v5706
      %6062 = vmatprep.subr.mxu0 0.0
      %6063 = vmatpush2.msra.mxu0 0.0
      %6064 = vmatprep.subr.mxu0 0.0
      %6065 = vmatpush2.msra.mxu0 0.0
      %6066 = vmatprep.subr.mxu0 0.0
      %6067 = vmatpush2.msra.mxu0 0.0
      %6068 = vmatprep.subr.mxu0 0.0
      %6069 = vmatpush2.msra.mxu0 0.0
      %6070 = vmatprep.subr.mxu0 0.0
      %6071 = vmatpush2.msra.mxu0 0.0
      %6072 = vmatprep.subr.mxu0 0.0
      %6073 = vmatpush2.msra.mxu0 0.0
      %6074 = vmatprep.subr.mxu0 0.0
      %6075 = vmatpush2.msra.mxu0 0.0
      %6076 = vmatprep.subr.mxu0 0.0
      %6077 = vmatpush2.msra.mxu0 0.0
      %6078 = vmatprep.subr.mxu0 0.0
      %6079 = vmatpush2.msra.mxu0 0.0
      %6080 = vmatprep.subr.mxu0 0.0
      %6081 = vmatpush2.msra.mxu0 0.0
      %6082 = vmatprep.subr.mxu0 0.0
      %6083 = vmatpush2.msra.mxu0 0.0
      %6084 = vmatprep.subr.mxu0 0.0
      %6085 = vmatpush2.msra.mxu0 0.0
      %6086 = vmatprep.subr.mxu0 0.0
      %6087 = vmatpush2.msra.mxu0 0.0
      %6088 = vmatprep.subr.mxu0 0.0
      %6089 = vmatpush2.msra.mxu0 0.0
      %6090 = vmatprep.subr.mxu0 0.0
      %6091 = vmatpush2.msra.mxu0 0.0
      %6092 = vmatprep.subr.mxu0 0.0
      %6093 = vmatpush2.msra.mxu0 0.0
      %6094 = vmatprep.mubr.f32.mxu0 0.0
      %6095 = vmatmul.mubr.f32.gmra.mxu0 %v5839
      %v6096 = vpop.f32.mrf.mxu0
      %v6097 = vadd.f32 0.0, %v6096
      %v6098 = vpop.f32.mrf.mxu0
      %6099 = vmatprep.mubr.f32.mxu0 0.0
      %6100 = vmatmul.mubr.f32.gmra.mxu0 %v5842
      %v6101 = vpop.f32.mrf.mxu0
      %v6102 = vadd.f32 0.0, %v6101
      %v6103 = vpop.f32.mrf.mxu0
      %6104 = vmatprep.mubr.f32.mxu0 0.0
      %6105 = vmatmul.mubr.f32.gmra.mxu0 %v5845
      %v6106 = vpop.f32.mrf.mxu0
      %v6107 = vadd.f32 0.0, %v6106
      %v6108 = vpop.f32.mrf.mxu0
      %6109 = vmatprep.mubr.f32.mxu0 0.0
      %6110 = vmatmul.mubr.f32.gmra.mxu0 %v5848
      %v6111 = vpop.f32.mrf.mxu0
      %v6112 = vadd.f32 0.0, %v6111
      %v6113 = vpop.f32.mrf.mxu0
      %6114 = vmatprep.mubr.f32.mxu0 0.0
      %6115 = vmatmul.mubr.f32.gmra.mxu0 %v5851
      %v6116 = vpop.f32.mrf.mxu0
      %v6117 = vadd.f32 0.0, %v6116
      %v6118 = vpop.f32.mrf.mxu0
      %6119 = vmatprep.mubr.f32.mxu0 0.0
      %6120 = vmatmul.mubr.f32.gmra.mxu0 %v5854
      %v6121 = vpop.f32.mrf.mxu0
      %v6122 = vadd.f32 0.0, %v6121
      %v6123 = vpop.f32.mrf.mxu0
      %6124 = vmatprep.mubr.f32.mxu0 0.0
      %6125 = vmatmul.mubr.f32.gmra.mxu0 %v5857
      %v6126 = vpop.f32.mrf.mxu0
      %v6127 = vadd.f32 0.0, %v6126
      %v6128 = vpop.f32.mrf.mxu0
      %6129 = vmatprep.mubr.f32.mxu0 0.0
      %6130 = vmatmul.mubr.f32.gmra.mxu0 %v5860
      %v6131 = vpop.f32.mrf.mxu0
      %v6132 = vadd.f32 0.0, %v6131
      %v6133 = vpop.f32.mrf.mxu0
      %6134 = vmatprep.mubr.f32.mxu0 0.0
      %6135 = vmatmul.mubr.f32.gmra.mxu0 %v5863
      %v6136 = vpop.f32.mrf.mxu0
      %v6137 = vadd.f32 0.0, %v6136
      %v6138 = vpop.f32.mrf.mxu0
      %6139 = vmatprep.mubr.f32.mxu0 0.0
      %6140 = vmatmul.mubr.f32.gmra.mxu0 %v5866
      %v6141 = vpop.f32.mrf.mxu0
      %v6142 = vadd.f32 0.0, %v6141
      %v6143 = vpop.f32.mrf.mxu0
      %6144 = vmatprep.mubr.f32.mxu0 0.0
      %6145 = vmatmul.mubr.f32.gmra.mxu0 %v5869
      %v6146 = vpop.f32.mrf.mxu0
      %v6147 = vadd.f32 0.0, %v6146
      %v6148 = vpop.f32.mrf.mxu0
      %6149 = vmatprep.mubr.f32.mxu0 0.0
      %6150 = vmatmul.mubr.f32.gmra.mxu0 %v5872
      %v6151 = vpop.f32.mrf.mxu0
      %v6152 = vadd.f32 0.0, %v6151
      %v6153 = vpop.f32.mrf.mxu0
      %6154 = vmatprep.mubr.f32.mxu0 0.0
      %6155 = vmatmul.mubr.f32.gmra.mxu0 %v5875
      %v6156 = vpop.f32.mrf.mxu0
      %v6157 = vadd.f32 0.0, %v6156
      %v6158 = vpop.f32.mrf.mxu0
      %6159 = vmatprep.mubr.f32.mxu0 0.0
      %6160 = vmatmul.mubr.f32.gmra.mxu0 %v5878
      %v6161 = vpop.f32.mrf.mxu0
      %v6162 = vadd.f32 0.0, %v6161
      %v6163 = vpop.f32.mrf.mxu0
      %6164 = vmatprep.mubr.f32.mxu0 0.0
      %6165 = vmatmul.mubr.f32.gmra.mxu0 %v5881
      %v6166 = vpop.f32.mrf.mxu0
      %v6167 = vadd.f32 0.0, %v6166
      %v6168 = vpop.f32.mrf.mxu0
      %6169 = vmatprep.mubr.f32.mxu0 0.0
      %6170 = vmatmul.mubr.f32.gmra.mxu0 %v5884
      %v6171 = vpop.f32.mrf.mxu0
      %v6172 = vadd.f32 0.0, %v6171
      %v6173 = vpop.f32.mrf.mxu0
      %6174 = vmatprep.mubr.f32.mxu0 0.0
      %6175 = vmatmul.mubr.f32.gmra.mxu0 %v5887
      %v6176 = vpop.f32.mrf.mxu0
      %v6177 = vadd.f32 0.0, %v6176
      %v6178 = vpop.f32.mrf.mxu0
      %6179 = vmatprep.mubr.f32.mxu0 0.0
      %6180 = vmatmul.mubr.f32.gmra.mxu0 %v5890
      %v6181 = vpop.f32.mrf.mxu0
      %v6182 = vadd.f32 0.0, %v6181
      %v6183 = vpop.f32.mrf.mxu0
      %6184 = vmatprep.mubr.f32.mxu0 0.0
      %6185 = vmatmul.mubr.f32.gmra.mxu0 %v5893
      %v6186 = vpop.f32.mrf.mxu0
      %v6187 = vadd.f32 0.0, %v6186
      %v6188 = vpop.f32.mrf.mxu0
      %6189 = vmatprep.mubr.f32.mxu0 0.0
      %6190 = vmatmul.mubr.f32.gmra.mxu0 %v5896
      %v6191 = vpop.f32.mrf.mxu0
      %v6192 = vadd.f32 0.0, %v6191
      %v6193 = vpop.f32.mrf.mxu0
      %6194 = vmatprep.mubr.f32.mxu0 0.0
      %6195 = vmatmul.mubr.f32.gmra.mxu0 %v5899
      %v6196 = vpop.f32.mrf.mxu0
      %v6197 = vadd.f32 0.0, %v6196
      %v6198 = vpop.f32.mrf.mxu0
      %6199 = vmatprep.mubr.f32.mxu0 0.0
      %6200 = vmatmul.mubr.f32.gmra.mxu0 %v5902
      %v6201 = vpop.f32.mrf.mxu0
      %v6202 = vadd.f32 0.0, %v6201
      %v6203 = vpop.f32.mrf.mxu0
      %6204 = vmatprep.mubr.f32.mxu0 0.0
      %6205 = vmatmul.mubr.f32.gmra.mxu0 %v5905
      %v6206 = vpop.f32.mrf.mxu0
      %v6207 = vadd.f32 0.0, %v6206
      %v6208 = vpop.f32.mrf.mxu0
      %6209 = vmatprep.mubr.f32.mxu0 0.0
      %6210 = vmatmul.mubr.f32.gmra.mxu0 %v5908
      %v6211 = vpop.f32.mrf.mxu0
      %v6212 = vadd.f32 0.0, %v6211
      %v6213 = vpop.f32.mrf.mxu0
      %6214 = vmatprep.mubr.f32.mxu0 0.0
      %6215 = vmatmul.mubr.f32.gmra.mxu0 %v5911
      %v6216 = vpop.f32.mrf.mxu0
      %v6217 = vadd.f32 0.0, %v6216
      %v6218 = vpop.f32.mrf.mxu0
      %6219 = vmatprep.mubr.f32.mxu0 0.0
      %6220 = vmatmul.mubr.f32.gmra.mxu0 %v5914
      %v6221 = vpop.f32.mrf.mxu0
      %v6222 = vadd.f32 0.0, %v6221
      %v6223 = vpop.f32.mrf.mxu0
      %6224 = vmatprep.mubr.f32.mxu0 0.0
      %6225 = vmatmul.mubr.f32.gmra.mxu0 %v5917
      %v6226 = vpop.f32.mrf.mxu0
      %v6227 = vadd.f32 0.0, %v6226
      %v6228 = vpop.f32.mrf.mxu0
      %6229 = vmatprep.mubr.f32.mxu0 0.0
      %6230 = vmatmul.mubr.f32.gmra.mxu0 %v5920
      %v6231 = vpop.f32.mrf.mxu0
      %v6232 = vadd.f32 0.0, %v6231
      %v6233 = vpop.f32.mrf.mxu0
      %6234 = vmatprep.mubr.f32.mxu0 0.0
      %6235 = vmatmul.mubr.f32.gmra.mxu0 %v5923
      %v6236 = vpop.f32.mrf.mxu0
      %v6237 = vadd.f32 0.0, %v6236
      %v6238 = vpop.f32.mrf.mxu0
      %6239 = vmatprep.mubr.f32.mxu0 0.0
      %6240 = vmatmul.mubr.f32.gmra.mxu0 %v5926
      %v6241 = vpop.f32.mrf.mxu0
      %v6242 = vadd.f32 0.0, %v6241
      %v6243 = vpop.f32.mrf.mxu0
      %6244 = vmatprep.mubr.f32.mxu0 0.0
      %6245 = vmatmul.mubr.f32.gmra.mxu0 %v5929
      %v6246 = vpop.f32.mrf.mxu0
      %v6247 = vadd.f32 0.0, %v6246
      %v6248 = vpop.f32.mrf.mxu0
      %6249 = vmatprep.mubr.f32.mxu0 0.0
      %6250 = vmatmul.mubr.f32.gmra.mxu0 %v5932
      %v6251 = vpop.f32.mrf.mxu0
      %v6252 = vadd.f32 0.0, %v6251
      %v6253 = vpop.f32.mrf.mxu0
      %6254 = vmatprep.mubr.f32.mxu0 0.0
      %6255 = vmatmul.mubr.f32.gmra.mxu0 %v5935
      %v6256 = vpop.f32.mrf.mxu0
      %v6257 = vadd.f32 0.0, %v6256
      %v6258 = vpop.f32.mrf.mxu0
      %6259 = vmatprep.mubr.f32.mxu0 0.0
      %6260 = vmatmul.mubr.f32.gmra.mxu0 %v5938
      %v6261 = vpop.f32.mrf.mxu0
      %v6262 = vadd.f32 0.0, %v6261
      %v6263 = vpop.f32.mrf.mxu0
      %6264 = vmatprep.mubr.f32.mxu0 0.0
      %6265 = vmatmul.mubr.f32.gmra.mxu0 %v5941
      %v6266 = vpop.f32.mrf.mxu0
      %v6267 = vadd.f32 0.0, %v6266
      %v6268 = vpop.f32.mrf.mxu0
      %6269 = vmatprep.mubr.f32.mxu0 0.0
      %6270 = vmatmul.mubr.f32.gmra.mxu0 %v5944
      %v6271 = vpop.f32.mrf.mxu0
      %v6272 = vadd.f32 0.0, %v6271
      %v6273 = vpop.f32.mrf.mxu0
      %6274 = vmatprep.mubr.f32.mxu0 0.0
      %6275 = vmatmul.mubr.f32.gmra.mxu0 %v5947
      %v6276 = vpop.f32.mrf.mxu0
      %v6277 = vadd.f32 0.0, %v6276
      %v6278 = vpop.f32.mrf.mxu0
      %6279 = vmatprep.mubr.f32.mxu0 0.0
      %6280 = vmatmul.mubr.f32.gmra.mxu0 %v5950
      %v6281 = vpop.f32.mrf.mxu0
      %v6282 = vadd.f32 0.0, %v6281
      %v6283 = vpop.f32.mrf.mxu0
      %6284 = vmatprep.mubr.f32.mxu0 0.0
      %6285 = vmatmul.mubr.f32.gmra.mxu0 %v5953
      %v6286 = vpop.f32.mrf.mxu0
      %v6287 = vadd.f32 0.0, %v6286
      %v6288 = vpop.f32.mrf.mxu0
      %6289 = vmatprep.mubr.f32.mxu0 0.0
      %6290 = vmatmul.mubr.f32.gmra.mxu0 %v5956
      %v6291 = vpop.f32.mrf.mxu0
      %v6292 = vadd.f32 0.0, %v6291
      %v6293 = vpop.f32.mrf.mxu0
      %6294 = vmatprep.mubr.f32.mxu0 0.0
      %6295 = vmatmul.mubr.f32.gmra.mxu0 %v5959
      %v6296 = vpop.f32.mrf.mxu0
      %v6297 = vadd.f32 0.0, %v6296
      %v6298 = vpop.f32.mrf.mxu0
      %6299 = vmatprep.mubr.f32.mxu0 0.0
      %6300 = vmatmul.mubr.f32.gmra.mxu0 %v5962
      %v6301 = vpop.f32.mrf.mxu0
      %v6302 = vadd.f32 0.0, %v6301
      %v6303 = vpop.f32.mrf.mxu0
      %6304 = vmatprep.mubr.f32.mxu0 0.0
      %6305 = vmatmul.mubr.f32.gmra.mxu0 %v5965
      %v6306 = vpop.f32.mrf.mxu0
      %v6307 = vadd.f32 0.0, %v6306
      %v6308 = vpop.f32.mrf.mxu0
      %6309 = vmatprep.mubr.f32.mxu0 0.0
      %6310 = vmatmul.mubr.f32.gmra.mxu0 %v5968
      %v6311 = vpop.f32.mrf.mxu0
      %v6312 = vadd.f32 0.0, %v6311
      %v6313 = vpop.f32.mrf.mxu0
      %6314 = vmatprep.mubr.f32.mxu0 0.0
      %6315 = vmatmul.mubr.f32.gmra.mxu0 %v5971
      %v6316 = vpop.f32.mrf.mxu0
      %v6317 = vadd.f32 0.0, %v6316
      %v6318 = vpop.f32.mrf.mxu0
      %6319 = vmatprep.mubr.f32.mxu0 0.0
      %6320 = vmatmul.mubr.f32.gmra.mxu0 %v5974
      %v6321 = vpop.f32.mrf.mxu0
      %v6322 = vadd.f32 0.0, %v6321
      %v6323 = vpop.f32.mrf.mxu0
      %6324 = vmatprep.mubr.f32.mxu0 0.0
      %6325 = vmatmul.mubr.f32.gmra.mxu0 %v5977
      %v6326 = vpop.f32.mrf.mxu0
      %v6327 = vadd.f32 0.0, %v6326
      %v6328 = vpop.f32.mrf.mxu0
      %6329 = vmatprep.mubr.f32.mxu0 0.0
      %6330 = vmatmul.mubr.f32.gmra.mxu0 %v5980
      %v6331 = vpop.f32.mrf.mxu0
      %v6332 = vadd.f32 0.0, %v6331
      %v6333 = vpop.f32.mrf.mxu0
      %6334 = vmatprep.mubr.f32.mxu0 0.0
      %6335 = vmatmul.mubr.f32.gmra.mxu0 %v5983
      %v6336 = vpop.f32.mrf.mxu0
      %v6337 = vadd.f32 0.0, %v6336
      %v6338 = vpop.f32.mrf.mxu0
      %6339 = vmatprep.mubr.f32.mxu0 0.0
      %6340 = vmatmul.mubr.f32.gmra.mxu0 %v5986
      %v6341 = vpop.f32.mrf.mxu0
      %v6342 = vadd.f32 0.0, %v6341
      %v6343 = vpop.f32.mrf.mxu0
      %6344 = vmatprep.mubr.f32.mxu0 0.0
      %6345 = vmatmul.mubr.f32.gmra.mxu0 %v5989
      %v6346 = vpop.f32.mrf.mxu0
      %v6347 = vadd.f32 0.0, %v6346
      %v6348 = vpop.f32.mrf.mxu0
      %6349 = vmatprep.mubr.f32.mxu0 0.0
      %6350 = vmatmul.mubr.f32.gmra.mxu0 %v5992
      %v6351 = vpop.f32.mrf.mxu0
      %v6352 = vadd.f32 0.0, %v6351
      %v6353 = vpop.f32.mrf.mxu0
      %6354 = vmatprep.mubr.f32.mxu0 0.0
      %6355 = vmatmul.mubr.f32.gmra.mxu0 %v5995
      %v6356 = vpop.f32.mrf.mxu0
      %v6357 = vadd.f32 0.0, %v6356
      %v6358 = vpop.f32.mrf.mxu0
      %6359 = vmatprep.mubr.f32.mxu0 0.0
      %6360 = vmatmul.mubr.f32.gmra.mxu0 %v5998
      %v6361 = vpop.f32.mrf.mxu0
      %v6362 = vadd.f32 0.0, %v6361
      %v6363 = vpop.f32.mrf.mxu0
      %6364 = vmatprep.mubr.f32.mxu0 0.0
      %6365 = vmatmul.mubr.f32.gmra.mxu0 %v6001
      %v6366 = vpop.f32.mrf.mxu0
      %v6367 = vadd.f32 0.0, %v6366
      %v6368 = vpop.f32.mrf.mxu0
      %6369 = vmatprep.mubr.f32.mxu0 0.0
      %6370 = vmatmul.mubr.f32.gmra.mxu0 %v6004
      %v6371 = vpop.f32.mrf.mxu0
      %v6372 = vadd.f32 0.0, %v6371
      %v6373 = vpop.f32.mrf.mxu0
      %6374 = vmatprep.mubr.f32.mxu0 0.0
      %6375 = vmatmul.mubr.f32.gmra.mxu0 %v6007
      %v6376 = vpop.f32.mrf.mxu0
      %v6377 = vadd.f32 0.0, %v6376
      %v6378 = vpop.f32.mrf.mxu0
      %6379 = vmatprep.mubr.f32.mxu0 0.0
      %6380 = vmatmul.mubr.f32.gmra.mxu0 %v6010
      %v6381 = vpop.f32.mrf.mxu0
      %v6382 = vadd.f32 0.0, %v6381
      %v6383 = vpop.f32.mrf.mxu0
      %6384 = vmatprep.mubr.f32.mxu0 0.0
      %6385 = vmatmul.mubr.f32.gmra.mxu0 %v6013
      %v6386 = vpop.f32.mrf.mxu0
      %v6387 = vadd.f32 0.0, %v6386
      %v6388 = vpop.f32.mrf.mxu0
      %6389 = vmatprep.mubr.f32.mxu0 0.0
      %6390 = vmatmul.mubr.f32.gmra.mxu0 %v6016
      %v6391 = vpop.f32.mrf.mxu0
      %v6392 = vadd.f32 0.0, %v6391
      %v6393 = vpop.f32.mrf.mxu0
      %6394 = vmatprep.mubr.f32.mxu0 0.0
      %6395 = vmatmul.mubr.f32.gmra.mxu0 %v6019
      %v6396 = vpop.f32.mrf.mxu0
      %v6397 = vadd.f32 0.0, %v6396
      %v6398 = vpop.f32.mrf.mxu0
      %6399 = vmatprep.mubr.f32.mxu0 0.0
      %6400 = vmatmul.mubr.f32.gmra.mxu0 %v6022
      %v6401 = vpop.f32.mrf.mxu0
      %v6402 = vadd.f32 0.0, %v6401
      %v6403 = vpop.f32.mrf.mxu0
      %6404 = vmatprep.mubr.f32.mxu0 0.0
      %6405 = vmatmul.mubr.f32.gmra.mxu0 %v6025
      %v6406 = vpop.f32.mrf.mxu0
      %v6407 = vadd.f32 0.0, %v6406
      %v6408 = vpop.f32.mrf.mxu0
      %6409 = vmatprep.mubr.f32.mxu0 0.0
      %6410 = vmatmul.mubr.f32.gmra.mxu0 %v6028
      %v6411 = vpop.f32.mrf.mxu0
      %v6412 = vadd.f32 0.0, %v6411
      %v6413 = vpop.f32.mrf.mxu0
      %6414 = vdwg.mxu0
      %6415 = vst.msk [vmem:[%s469] sm:$0xff] %vm2166, %v6097
      %6416 = vst.msk [vmem:[%s469 + $0x8] sm:$0xff] %vm2166, %v6102
      %6417 = vst.msk [vmem:[%s469 + $0x10] sm:$0xff] %vm2166, %v6107
      %6418 = vst.msk [vmem:[%s469 + $0x18] sm:$0xff] %vm2166, %v6112
      %6419 = vst.msk [vmem:[%s469 + $0x20] sm:$0xff] %vm2166, %v6117
      %6420 = vst.msk [vmem:[%s469 + $0x28] sm:$0xff] %vm2166, %v6122
      %6421 = vst.msk [vmem:[%s469 + $0x30] sm:$0xff] %vm2166, %v6127
      %6422 = vst.msk [vmem:[%s469 + $0x38] sm:$0xff] %vm2166, %v6132
      %6423 = vst.msk [vmem:[%s469 + $0x40] sm:$0xff] %vm2166, %v6137
      %6424 = vst.msk [vmem:[%s469 + $0x48] sm:$0xff] %vm2166, %v6142
      %6425 = vst.msk [vmem:[%s469 + $0x50] sm:$0xff] %vm2166, %v6147
      %6426 = vst.msk [vmem:[%s469 + $0x58] sm:$0xff] %vm2166, %v6152
      %6427 = vst.msk [vmem:[%s469 + $0x60] sm:$0xff] %vm2166, %v6157
      %6428 = vst.msk [vmem:[%s469 + $0x68] sm:$0xff] %vm2166, %v6162
      %6429 = vst.msk [vmem:[%s469 + $0x70] sm:$0xff] %vm2166, %v6167
      %6430 = vst.msk [vmem:[%s469 + $0x78] sm:$0xff] %vm2166, %v6172
      %6431 = vst.msk [vmem:[%s469 + $0x80] sm:$0xff] %vm2166, %v6177
      %6432 = vst.msk [vmem:[%s469 + $0x88] sm:$0xff] %vm2166, %v6182
      %6433 = vst.msk [vmem:[%s469 + $0x90] sm:$0xff] %vm2166, %v6187
      %6434 = vst.msk [vmem:[%s469 + $0x98] sm:$0xff] %vm2166, %v6192
      %6435 = vst.msk [vmem:[%s469 + $0xa0] sm:$0xff] %vm2166, %v6197
      %6436 = vst.msk [vmem:[%s469 + $0xa8] sm:$0xff] %vm2166, %v6202
      %6437 = vst.msk [vmem:[%s469 + $0xb0] sm:$0xff] %vm2166, %v6207
      %6438 = vst.msk [vmem:[%s469 + $0xb8] sm:$0xff] %vm2166, %v6212
      %6439 = vst.msk [vmem:[%s469 + $0xc0] sm:$0xff] %vm2166, %v6217
      %6440 = vst.msk [vmem:[%s469 + $0xc8] sm:$0xff] %vm2166, %v6222
      %6441 = vst.msk [vmem:[%s469 + $0xd0] sm:$0xff] %vm2166, %v6227
      %6442 = vst.msk [vmem:[%s469 + $0xd8] sm:$0xff] %vm2166, %v6232
      %6443 = vst.msk [vmem:[%s469 + $0xe0] sm:$0xff] %vm2166, %v6237
      %6444 = vst.msk [vmem:[%s469 + $0xe8] sm:$0xff] %vm2166, %v6242
      %6445 = vst.msk [vmem:[%s469 + $0xf0] sm:$0xff] %vm2166, %v6247
      %6446 = vst.msk [vmem:[%s469 + $0xf8] sm:$0xff] %vm2166, %v6252
      %6447 = vst.msk [vmem:[%s469 + $0x100] sm:$0xff] %vm2166, %v6257
      %6448 = vst.msk [vmem:[%s469 + $0x108] sm:$0xff] %vm2166, %v6262
      %6449 = vst.msk [vmem:[%s469 + $0x110] sm:$0xff] %vm2166, %v6267
      %6450 = vst.msk [vmem:[%s469 + $0x118] sm:$0xff] %vm2166, %v6272
      %6451 = vst.msk [vmem:[%s469 + $0x120] sm:$0xff] %vm2166, %v6277
      %6452 = vst.msk [vmem:[%s469 + $0x128] sm:$0xff] %vm2166, %v6282
      %6453 = vst.msk [vmem:[%s469 + $0x130] sm:$0xff] %vm2166, %v6287
      %6454 = vst.msk [vmem:[%s469 + $0x138] sm:$0xff] %vm2166, %v6292
      %6455 = vst.msk [vmem:[%s469 + $0x140] sm:$0xff] %vm2166, %v6297
      %6456 = vst.msk [vmem:[%s469 + $0x148] sm:$0xff] %vm2166, %v6302
      %6457 = vst.msk [vmem:[%s469 + $0x150] sm:$0xff] %vm2166, %v6307
      %6458 = vst.msk [vmem:[%s469 + $0x158] sm:$0xff] %vm2166, %v6312
      %6459 = vst.msk [vmem:[%s469 + $0x160] sm:$0xff] %vm2166, %v6317
      %6460 = vst.msk [vmem:[%s469 + $0x168] sm:$0xff] %vm2166, %v6322
      %6461 = vst.msk [vmem:[%s469 + $0x170] sm:$0xff] %vm2166, %v6327
      %6462 = vst.msk [vmem:[%s469 + $0x178] sm:$0xff] %vm2166, %v6332
      %6463 = vst.msk [vmem:[%s469 + $0x180] sm:$0xff] %vm2166, %v6337
      %6464 = vst.msk [vmem:[%s469 + $0x188] sm:$0xff] %vm2166, %v6342
      %6465 = vst.msk [vmem:[%s469 + $0x190] sm:$0xff] %vm2166, %v6347
      %6466 = vst.msk [vmem:[%s469 + $0x198] sm:$0xff] %vm2166, %v6352
      %6467 = vst.msk [vmem:[%s469 + $0x1a0] sm:$0xff] %vm2166, %v6357
      %6468 = vst.msk [vmem:[%s469 + $0x1a8] sm:$0xff] %vm2166, %v6362
      %6469 = vst.msk [vmem:[%s469 + $0x1b0] sm:$0xff] %vm2166, %v6367
      %6470 = vst.msk [vmem:[%s469 + $0x1b8] sm:$0xff] %vm2166, %v6372
      %6471 = vst.msk [vmem:[%s469 + $0x1c0] sm:$0xff] %vm2166, %v6377
      %6472 = vst.msk [vmem:[%s469 + $0x1c8] sm:$0xff] %vm2166, %v6382
      %6473 = vst.msk [vmem:[%s469 + $0x1d0] sm:$0xff] %vm2166, %v6387
      %6474 = vst.msk [vmem:[%s469 + $0x1d8] sm:$0xff] %vm2166, %v6392
      %6475 = vst.msk [vmem:[%s469 + $0x1e0] sm:$0xff] %vm2166, %v6397
      %6476 = vst.msk [vmem:[%s469 + $0x1e8] sm:$0xff] %vm2166, %v6402
      %6477 = vst.msk [vmem:[%s469 + $0x1f0] sm:$0xff] %vm2166, %v6407
      %6478 = vst.msk [vmem:[%s469 + $0x1f8] sm:$0xff] %vm2166, %v6412
      %s6479 = smul.u32 64, %s25
      %p6480 = scmp.lt.s32.totalorder %s6479, 127
      %s6481 = scalar_select %p6480, %s6479, 127
      %s6482 = smul.addr %s6481, 8
      %s6483 = scalar_lea.vmem %s14, %s6482
      // Predicated region
      $region77: #{model.1} parent=75 // pred_check
        %p6484 = pneg %p342
      $region78: #{model.1} parent=75 // pred_check_branch
        %6486 = sbr.rel (%p6484) target = $region80
      $region79: #{model.1} parent=75 // pred_region
        %s6487 = smul.u32 64, %s25
      $region80: #{model.1} parent=75 // pred_fallthru
        _
    $region76: #{model.1} parent=5 // pred_fallthru
      _
    %p6488 = scmp.le.s32.totalorder 2, %s20
    // Predicated region
    $region81: #{model.1} parent=5 // pred_check
      %p6489 = pneg %p6488
    $region82: #{model.1} parent=5 // pred_check_branch
      %6491 = sbr.rel (%p6489) target = $region84
    $region83: #{model.1} parent=5 // pred_region
      %s6492 = ssub.s32 %s20, 2
      // Predicated region
      $region85: #{model.1} parent=83 // pred_check
        %p6493 = pneg %p348
      $region86: #{model.1} parent=83 // pred_check_branch
        %6495 = sbr.rel (%p6493) target = $region88
      $region87: #{model.1} parent=83 // pred_region
        %s6496 = smul.u32 64, %s26
        %p6497 = scmp.lt.s32.totalorder %s6496, 127
        %s6498 = scalar_select %p6497, %s6496, 127
        %s6499 = smul.addr %s6498, 8
        %s6500 = scalar_lea.vmem %s14, %s6499
      $region88: #{model.1} parent=83 // pred_fallthru
        _
    $region84: #{model.1} parent=5 // pred_fallthru
      _
  $region6: #{model.1} parent=0 // loop_footer
    %s24 = sadd.s32 1, %s20
  $region7: #{model.1} parent=0 // loop_footer_branch
    %19 = sbr.rel target = $region3
  $region8: #{model.1} parent=0 // loop_exit
    _

</llo_original>
